<compile_context>
chip_gen: v6e
topology: v6e:2x2x1
jax: 0.10.0
libtpu: 0.0.40
codegen_flags: <defaults>
</compile_context>

<pallas_src>
import numpy as np
import jax
import jax.numpy as jnp
from jax import lax
from jax.experimental import pallas as pl
from jax.experimental.pallas import tpu as pltpu

# ----------------------------- hyper-parameters (PES.__init__ defaults) --------
CUTOFF = 4.5
NWAVE = 7
NIPSIN = 3                                   # nipsin = 2 in the input file, += 1 in __init__
NTYPES = 2                                   # atomtype = ['H', 'O']
NORBIT = NWAVE * (NWAVE + 1) // 2 * NIPSIN   # 84
NHID = 128                                   # nl = [norbit, 128, 128], nblock = 1
NFEAT = 128                                  # density zero-padded to 128 lanes
NOUT_PAD = 8                                 # output head padded to 8 lanes (nout is 1 or 7)
OC_LOOP = 1
OUTPUTNEURON = 1
LN_EPS = 1e-5
MXU_DT = jnp.bfloat16                        # MXU operand dtype (f32 accumulation)

_TRIU_I, _TRIU_J = np.triu_indices(NWAVE)
_ANG_SIZES = (1, 3, 9)                       # angular components per l (index_para)

_DNT = (((1,), (1,)), ((), ()))              # A @ B.T via contracting-dim choice

_FWD_KEYS = ("w0", "b0", "w1", "b1", "w2", "b2", "wout", "bout",
             "ln_g", "ln_b", "act_a", "act_b")
_BWD_KEYS = ("w0", "b0", "w1", "b1", "w2", "b2", "wout",
             "ln_g", "ln_b", "act_a", "act_b")


# ----------------------------- in-kernel math helpers --------------------------
def _ln(v):
    mu = jnp.mean(v, axis=-1, keepdims=True)
    var = jnp.mean(jnp.square(v - mu), axis=-1, keepdims=True)
    return (v - mu) * lax.rsqrt(var + LN_EPS)


def _ln_bwd(dn, v):
    """VJP of the (pre-affine) LayerNorm: dn -> dv."""
    mu = jnp.mean(v, axis=-1, keepdims=True)
    var = jnp.mean(jnp.square(v - mu), axis=-1, keepdims=True)
    inv = lax.rsqrt(var + LN_EPS)
    nv = (v - mu) * inv
    return inv * (dn - jnp.mean(dn, axis=-1, keepdims=True)
                  - nv * jnp.mean(dn * nv, axis=-1, keepdims=True))


def _relu_like(t, a, b):
    """REANN 'Relu_like' activation: alpha * silu(beta * t)."""
    u = b * t
    return a * u * jax.nn.sigmoid(u)


def _relu_like_grad(t, a, b):
    u = b * t
    s = jax.nn.sigmoid(u)
    return a * b * s * (1.0 + u * (1.0 - s))


def _hidden_stack(x, w0, b0, w1, b1, w2, b2, lng, lnb, aa, ab):
    """Residual MLP trunk on 128 lanes (single atom type); bf16 dots, f32 math."""
    z0 = jnp.dot(x.astype(MXU_DT), w0, preferred_element_type=jnp.float32) + b0
    t0 = _ln(z0) * lng[0] + lnb[0]
    a0 = _relu_like(t0, aa[0], ab[0])
    z1 = jnp.dot(a0.astype(MXU_DT), w1, preferred_element_type=jnp.float32) + b1
    t1 = _ln(z1) * lng[1] + lnb[1]
    a1 = _relu_like(t1, aa[1], ab[1])
    z2 = jnp.dot(a1.astype(MXU_DT), w2, preferred_element_type=jnp.float32) + b2
    t2 = _ln(z2) * lng[2] + lnb[2]
    a2 = _relu_like(t2, aa[2], ab[2])
    return z0, t0, a0, z1, t1, a1, z2, t2, a2


# ----------------------------- fused NNMod kernels (per-type, 128 lanes) -------
def _mlp_fwd_kernel(bt_ref, bc_ref, x_ref, w0_ref, b0_ref, w1_ref, b1_ref,
                    w2_ref, b2_ref, wout_ref, bout_ref,
                    lng_ref, lnb_ref, aa_ref, ab_ref, o_ref):
    del bt_ref, bc_ref
    (_, _, a0, _, _, _, _, _, a2) = _hidden_stack(
        x_ref[...], w0_ref[0], b0_ref[0], w1_ref[0], b1_ref[0],
        w2_ref[0], b2_ref[0], lng_ref[0], lnb_ref[0], aa_ref[0], ab_ref[0])
    h = a0 + a2                                            # residual
    o_ref[...] = (jnp.dot(h.astype(MXU_DT), wout_ref[0],
                          preferred_element_type=jnp.float32) + bout_ref[0])


def _mlp_energy_kernel(bt_ref, bc_ref, x_ref, w0_ref, b0_ref, w1_ref, b1_ref,
                       w2_ref, b2_ref, wout_ref, bout_ref,
                       lng_ref, lnb_ref, aa_ref, ab_ref, o_ref):
    del bt_ref
    (_, _, a0, _, _, _, _, _, a2) = _hidden_stack(
        x_ref[...], w0_ref[0], b0_ref[0], w1_ref[0], b1_ref[0],
        w2_ref[0], b2_ref[0], lng_ref[0], lnb_ref[0], aa_ref[0], ab_ref[0])
    h = a0 + a2
    e = (jnp.dot(h.astype(MXU_DT), wout_ref[0],
                 preferred_element_type=jnp.float32) + bout_ref[0])   # (BM, 8)
    cnt = bc_ref[pl.program_id(0)]                          # valid rows are a prefix
    rows_i = lax.broadcasted_iota(jnp.int32, e.shape, 0)
    lane_i = lax.broadcasted_iota(jnp.int32, e.shape, 1)
    valid = (rows_i < cnt) & (lane_i < OUTPUTNEURON)
    partial = jnp.sum(jnp.where(valid, e, 0.0))
    o_ref[...] = partial + jnp.zeros(o_ref.shape, jnp.float32)


def _mlp_bwd_kernel(bt_ref, bc_ref, x_ref, g_ref, w0_ref, b0_ref, w1_ref, b1_ref,
                    w2_ref, b2_ref, wout_ref, lng_ref, lnb_ref, aa_ref, ab_ref,
                    dx_ref):
    del bt_ref, bc_ref
    lng = lng_ref[0]
    lnb = lnb_ref[0]
    aa = aa_ref[0]
    ab = ab_ref[0]
    # recompute forward intermediates in VMEM (cheaper than saving them to HBM)
    (z0, t0, a0, z1, t1, a1, z2, t2, _) = _hidden_stack(
        x_ref[...], w0_ref[0], b0_ref[0], w1_ref[0], b1_ref[0],
        w2_ref[0], b2_ref[0], lng, lnb, aa, ab)
    g = g_ref[...]                                          # (BM, 8) head cotangent
    # backward (transposed-contraction matmuls, K=8 output head, no W.T materialise)
    d_h = lax.dot_general(g.astype(MXU_DT), wout_ref[0], _DNT,
                          preferred_element_type=jnp.float32)           # (BM, 128)
    d_t2 = d_h * _relu_like_grad(t2, aa[2], ab[2])
    d_z2 = _ln_bwd(d_t2 * lng[2], z2)
    d_a1 = lax.dot_general(d_z2.astype(MXU_DT), w2_ref[0], _DNT,
                           preferred_element_type=jnp.float32)
    d_t1 = d_a1 * _relu_like_grad(t1, aa[1], ab[1])
    d_z1 = _ln_bwd(d_t1 * lng[1], z1)
    d_a0 = d_h + lax.dot_general(d_z1.astype(MXU_DT), w1_ref[0], _DNT,
                                 preferred_element_type=jnp.float32)
    d_t0 = d_a0 * _relu_like_grad(t0, aa[0], ab[0])
    d_z0 = _ln_bwd(d_t0 * lng[0], z0)
    dx_ref[...] = lax.dot_general(d_z0.astype(MXU_DT), w0_ref[0], _DNT,
                                  preferred_element_type=jnp.float32)   # (BM, 128)


# ----------------------------- pallas_call wrappers ----------------------------
def _mosaic_params():
    return pltpu.CompilerParams(dimension_semantics=("parallel",),
                                vmem_limit_bytes=32 * 1024 * 1024)


def _row_spec(bm, width):
    return pl.BlockSpec((bm, width), lambda i, bt, bc: (i, 0))


def _wspec(a):
    # per-type-stacked parameter: leading dim selected by the scalar-prefetched type
    return pl.BlockSpec((1,) + a.shape[1:], lambda i, bt, bc: (bt[i], 0, 0))


def _call_fwd(xg, bt, bc, kp):
    rows = xg.shape[0]
    grid = bt.shape[0]
    bm = rows // grid
    return pl.pallas_call(
        _mlp_fwd_kernel,
        out_shape=jax.ShapeDtypeStruct((rows, NOUT_PAD), jnp.float32),
        grid_spec=pltpu.PrefetchScalarGridSpec(
            num_scalar_prefetch=2, grid=(grid,),
            in_specs=[_row_spec(bm, NFEAT)] + [_wspec(kp[k]) for k in _FWD_KEYS],
            out_specs=_row_spec(bm, NOUT_PAD)),
        compiler_params=_mosaic_params(),
    )(bt, bc, xg, *(kp[k] for k in _FWD_KEYS))


def _call_bwd(xg, gct, bt, bc, kp):
    rows = xg.shape[0]
    grid = bt.shape[0]
    bm = rows // grid
    return pl.pallas_call(
        _mlp_bwd_kernel,
        out_shape=jax.ShapeDtypeStruct((rows, NFEAT), jnp.float32),
        grid_spec=pltpu.PrefetchScalarGridSpec(
            num_scalar_prefetch=2, grid=(grid,),
            in_specs=[_row_spec(bm, NFEAT), _row_spec(bm, NOUT_PAD)]
                     + [_wspec(kp[k]) for k in _BWD_KEYS],
            out_specs=_row_spec(bm, NFEAT)),
        compiler_params=_mosaic_params(),
    )(bt, bc, xg, gct, *(kp[k] for k in _BWD_KEYS))


def _call_energy(xg, bt, bc, kp):
    rows = xg.shape[0]
    grid = bt.shape[0]
    bm = rows // grid
    return pl.pallas_call(
        _mlp_energy_kernel,
        out_shape=jax.ShapeDtypeStruct((grid, 8, 128), jnp.float32),
        grid_spec=pltpu.PrefetchScalarGridSpec(
            num_scalar_prefetch=2, grid=(grid,),
            in_specs=[_row_spec(bm, NFEAT)] + [_wspec(kp[k]) for k in _FWD_KEYS],
            out_specs=pl.BlockSpec((1, 8, 128), lambda i, bt_, bc_: (i, 0, 0))),
        compiler_params=_mosaic_params(),
    )(bt, bc, xg, *(kp[k] for k in _FWD_KEYS))


# ----------------------------- differentiable fused NNMod (oc head) ------------
@jax.custom_vjp
def _mlp_fused(x, btf, bcf, kp):
    return _call_fwd(x, btf.astype(jnp.int32), bcf.astype(jnp.int32), kp)


def _mlp_fused_fwd(x, btf, bcf, kp):
    out = _call_fwd(x, btf.astype(jnp.int32), bcf.astype(jnp.int32), kp)
    return out, (x, btf, bcf, kp)


def _mlp_fused_bwd(res, g):
    x, btf, bcf, kp = res
    dx = _call_bwd(x, g, btf.astype(jnp.int32), bcf.astype(jnp.int32), kp)
    return (dx, jnp.zeros_like(btf), jnp.zeros_like(bcf),
            jax.tree_util.tree_map(jnp.zeros_like, kp))


_mlp_fused.defvjp(_mlp_fused_fwd, _mlp_fused_bwd)


# ----------------------------- species grouping (XLA side) ---------------------
def _choose_bm(n):
    per_type = -(-n // NTYPES)
    return int(min(512, max(8, -(-per_type // 8) * 8)))


def _make_groups(species, bm):
    """Type-homogeneous row blocks: dest row per atom, per-block type / valid count."""
    n = species.shape[0]
    g_blocks = -(-n // bm) + (NTYPES - 1)                    # static worst case
    rows = g_blocks * bm
    spec = species.astype(jnp.int32)
    onehot = (spec[:, None] == jnp.arange(NTYPES, dtype=jnp.int32)[None, :]).astype(jnp.int32)
    counts = jnp.sum(onehot, axis=0)                         # (NTYPES,)
    blocks_per_type = (counts + bm - 1) // bm
    start_blk = jnp.cumsum(blocks_per_type) - blocks_per_type
    rank = jnp.sum(jnp.cumsum(onehot, axis=0) * onehot, axis=1) - 1
    dest = start_blk[spec] * bm + rank                       # unique row per atom
    blk = jnp.arange(g_blocks, dtype=jnp.int32)
    blk_type = jnp.zeros((g_blocks,), jnp.int32)
    blk_cnt = jnp.zeros((g_blocks,), jnp.int32)
    for t in range(NTYPES):
        lo = start_blk[t]
        in_t = (blk >= lo) & (blk < lo + blocks_per_type[t])
        cnt_t = jnp.clip(counts[t] - (blk - lo) * bm, 0, bm)
        blk_type = jnp.where(in_t, t, blk_type)
        blk_cnt = jnp.where(in_t, cnt_t, blk_cnt)
    return {"dest": dest, "bt": blk_type, "bc": blk_cnt,
            "btf": blk_type.astype(jnp.float32), "bcf": blk_cnt.astype(jnp.float32),
            "rows": rows}


def _pad_feat(density):
    return jnp.pad(density.astype(jnp.float32),
                   ((0, 0), (0, NFEAT - density.shape[1])))


def _scatter_rows(x, dest, rows):
    return jnp.zeros((rows, x.shape[1]), x.dtype).at[dest].set(x)


def _gather_rows(xg, dest):
    return xg[dest]


def _oc_apply(kp, density, grp):
    """Fused per-type NNMod for the orbital-coefficient head; returns (n, NWAVE)."""
    x = _scatter_rows(_pad_feat(density), grp["dest"], grp["rows"])
    out = _mlp_fused(x, grp["btf"], grp["bcf"], kp)          # (rows, 8)
    return _gather_rows(out, grp["dest"])[:, :NWAVE]


# ----------------------------- kernel-friendly parameter packing ---------------
def _prep_head(per_type):
    """Stack the two per-type MLPs along a leading type axis (bf16 MXU weights)."""
    def pad_in(w):       # (NORBIT, NHID) -> (NFEAT, NHID)
        return jnp.pad(w, ((0, NFEAT - w.shape[0]), (0, 0)))

    def pad_out(w):      # (NHID, nout) -> (NHID, NOUT_PAD)
        return jnp.pad(w, ((0, 0), (0, NOUT_PAD - w.shape[1])))

    def pad_bout(b):     # (nout,) -> (NOUT_PAD,)
        return jnp.pad(b, (0, NOUT_PAD - b.shape[0]))

    def ln_stack(key_fmt):
        return jnp.stack([jnp.stack([p[key_fmt.format(l)] for l in range(3)], 0)
                          for p in per_type], 0)             # (2, 3, 128) f32

    return {
        "w0": jnp.stack([pad_in(p["w0"]) for p in per_type], 0).astype(MXU_DT),
        "b0": jnp.stack([p["b0"][None, :] for p in per_type], 0),
        "w1": jnp.stack([p["w1"] for p in per_type], 0).astype(MXU_DT),
        "b1": jnp.stack([p["b1"][None, :] for p in per_type], 0),
        "w2": jnp.stack([p["w2"] for p in per_type], 0).astype(MXU_DT),
        "b2": jnp.stack([p["b2"][None, :] for p in per_type], 0),
        "wout": jnp.stack([pad_out(p["wout"]) for p in per_type], 0).astype(MXU_DT),
        "bout": jnp.stack([pad_bout(p["bout"])[None, :] for p in per_type], 0),
        "ln_g": ln_stack("ln{}_g"),
        "ln_b": ln_stack("ln{}_b"),
        "act_a": ln_stack("act{}_a"),
        "act_b": ln_stack("act{}_b"),
    }


# ----------------------------- GetDensity --------------------------------------
def get_density(params, oc_kps, cart, species, pair_i, pair_j, grp):
    natoms = cart.shape[0]
    p_cnt = pair_i.shape[0]
    rij = cart[pair_i] - cart[pair_j]                         # (P, 3)  (no PBC shifts)
    d = jnp.sqrt(jnp.sum(rij * rij, axis=-1))                 # (P,)
    fcut = jnp.where(
        d < CUTOFF, jnp.square(0.5 * jnp.cos(np.pi * d / CUTOFF) + 0.5), 0.0)
    spec_j = species[pair_j]
    rs_j = params["rs"][spec_j]                               # (P, NWAVE)
    inta_j = params["inta"][spec_j]
    radial = jnp.exp(-inta_j * jnp.square(d[:, None] - rs_j))

    ang0 = fcut[:, None]                                      # l = 0
    ang1 = ang0 * rij                                         # l = 1
    ang2 = (ang1[:, :, None] * rij[:, None, :]).reshape(p_cnt, 9)   # l = 2
    angular = jnp.concatenate([ang0, ang1, ang2], axis=1)     # (P, 13)
    nang = angular.shape[1]

    def contract(orb_coeff):
        cj = orb_coeff[pair_j]                                # (P, NWAVE)
        w = radial * cj
        contrib = (angular[:, :, None] * w[:, None, :]).reshape(p_cnt, nang * NWAVE)
        s = jax.ops.segment_sum(contrib, pair_i, num_segments=natoms)
        s = s.reshape(natoms, nang, NWAVE)
        parts, start = [], 0
        for nm in _ANG_SIZES:
            sl = s[:, start:start + nm, :]
            gmat = jnp.einsum("imk,iml->ikl", sl, sl)         # symmetric wave products
            parts.append(gmat[:, _TRIU_I, _TRIU_J])
            start += nm
        return jnp.concatenate(parts, axis=1)                 # (N, NORBIT)

    orb_coeff = params["coeff"][species]                      # (N, NWAVE)
    density = contract(orb_coeff)
    for oc_kp in oc_kps:                                      # ocmod loop (oc_loop = 1)
        orb_coeff = orb_coeff + _oc_apply(oc_kp, density, grp)
        density = contract(orb_coeff)
    return density


# ----------------------------- PES forward -------------------------------------
def pes_forward(params, period_table, cart, cell, species, mass, pair_i, pair_j):
    # TODO(synk): Neigh_List (periodic images via `cell`/`shifts`, linked cells,
    # mass-based ghost handling) has no clean Pallas equivalent; a static in-cutoff
    # pair list without PBC is used instead.
    del period_table, cell, mass

    n = cart.shape[0]
    bm = _choose_bm(n)
    grp = _make_groups(species, bm)

    oc_kps = [_prep_head(p) for p in params["oc"]]
    kps = [_prep_head(params[k]) for k in ("nn0", "nn1", "nn2")]

    # density is computed ONCE and shared by all three heads; jab1/jab2 reuse one
    # shared VJP of density w.r.t. cart (matches the torch autograd graph sharing).
    density, dens_vjp = jax.vjp(
        lambda c: get_density(params, oc_kps, c, species, pair_i, pair_j, grp), cart)

    # grouped, padded density shared by all three heads
    xg = _scatter_rows(_pad_feat(density), grp["dest"], grp["rows"])
    # grad(sum(head)) cotangent: ones in output lane 0 for real atoms only
    g_e = jnp.zeros((grp["rows"], NOUT_PAD), jnp.float32).at[grp["dest"], 0].set(1.0)

    # nn0 / nn1: no forward launch — their outputs only feed grad(sum(.)).
    ct0 = _gather_rows(_call_bwd(xg, g_e, grp["bt"], grp["bc"], kps[0]),
                       grp["dest"])[:, :NORBIT]
    ct1 = _gather_rows(_call_bwd(xg, g_e, grp["bt"], grp["bc"], kps[1]),
                       grp["dest"])[:, :NORBIT]

    jab1 = dens_vjp(ct0)[0] + cart
    jab2 = dens_vjp(ct1)[0]

    # nn2: in-kernel masked energy reduction (padded rows excluded from varene)
    partials = _call_energy(xg, grp["bt"], grp["bc"], kps[2])   # (G, 8, 128)
    varene = jnp.sum(partials[:, 0, 0])

    polar = jnp.einsum("ij,ik->jk", jab1, jab2)       # tiny 3x3: plain XLA
    polar = polar + polar.T
    polar = polar + varene * jnp.eye(3, dtype=jnp.float32)
    return polar


# ----------------------------- deterministic parameter init --------------------
def _init_nnmod(key, nout):
    per_type = []
    for tk in jax.random.split(key, NTYPES):
        ks = jax.random.split(tk, 4)
        p = {
            "w0": jax.random.normal(ks[0], (NORBIT, NHID), jnp.float32) / np.sqrt(NORBIT),
            "b0": jnp.zeros((NHID,), jnp.float32),
            "w1": jax.random.normal(ks[1], (NHID, NHID), jnp.float32) / np.sqrt(NHID),
            "b1": jnp.zeros((NHID,), jnp.float32),
            "w2": jax.random.normal(ks[2], (NHID, NHID), jnp.float32) / np.sqrt(NHID),
            "b2": jnp.zeros((NHID,), jnp.float32),
            "wout": jax.random.normal(ks[3], (NHID, nout), jnp.float32) * 0.1,
            "bout": jnp.zeros((nout,), jnp.float32),
        }
        for l in range(3):
            p[f"ln{l}_g"] = jnp.ones((NHID,), jnp.float32)
            p[f"ln{l}_b"] = jnp.zeros((NHID,), jnp.float32)
            p[f"act{l}_a"] = jnp.full((NHID,), 1.0 / np.sqrt(NHID), jnp.float32)
            p[f"act{l}_b"] = jnp.ones((NHID,), jnp.float32)
        per_type.append(p)
    return per_type


if __name__ == "__main__":
    natoms = 8
    key = jax.random.PRNGKey(0)
    k_cart, k_par = jax.random.split(key)

    # example inputs (small, deterministic)
    cart = jax.random.uniform(k_cart, (natoms, 3), jnp.float32, minval=0.0, maxval=3.0)
    species = jnp.array([0, 1, 0, 1, 0, 0, 1, 1], dtype=jnp.int32)
    cell = 10.0 * jnp.eye(3, dtype=jnp.float32)
    mass = jnp.ones((natoms,), jnp.float32)
    period_table = jnp.zeros((3,), jnp.int32)

    # static full i != j pair list; cutoff mask is applied inside get_density
    ii, jj = np.meshgrid(np.arange(natoms), np.arange(natoms), indexing="ij")
    keep = ii != jj
    pair_i = jnp.asarray(ii[keep], dtype=jnp.int32)
    pair_j = jnp.asarray(jj[keep], dtype=jnp.int32)

    # deterministic parameters (shapes follow PES.__init__ defaults)
    kd, k0, k1, k2, koc = jax.random.split(k_par, 5)
    params = {
        "rs": jnp.stack([jnp.linspace(0.0, CUTOFF, NWAVE, dtype=jnp.float32)] * NTYPES),
        "inta": jnp.ones((NTYPES, NWAVE), jnp.float32),
        "coeff": 1.0 + 0.05 * jax.random.normal(kd, (NTYPES, NWAVE), jnp.float32),
        "oc": [_init_nnmod(jax.random.fold_in(koc, i), NWAVE) for i in range(OC_LOOP)],
        "nn0": _init_nnmod(k0, OUTPUTNEURON),
        "nn1": _init_nnmod(k1, OUTPUTNEURON),
        "nn2": _init_nnmod(k2, OUTPUTNEURON),
    }

    polar = jax.jit(pes_forward)(
        params, period_table, cart, cell, species, mass, pair_i, pair_j
    )
    jax.block_until_ready(polar)
    assert polar.shape == (3, 3) and bool(jnp.all(jnp.isfinite(polar)))
    print("KERNEL_OK")
</pallas_src>

<mosaic_0001>
module attributes {stable_mosaic.version = 11 : i64} {
  func.func @_mlp_fwd_kernel(%arg0: i32, %arg1: memref<2xi32, #tpu.memory_space<smem>>, %arg2: memref<2xi32, #tpu.memory_space<smem>>, %arg3: memref<8x128xf32, #tpu.memory_space<vmem>>, %arg4: memref<1x128x128xbf16, #tpu.memory_space<vmem>>, %arg5: memref<1x1x128xf32, #tpu.memory_space<vmem>>, %arg6: memref<1x128x128xbf16, #tpu.memory_space<vmem>>, %arg7: memref<1x1x128xf32, #tpu.memory_space<vmem>>, %arg8: memref<1x128x128xbf16, #tpu.memory_space<vmem>>, %arg9: memref<1x1x128xf32, #tpu.memory_space<vmem>>, %arg10: memref<1x128x8xbf16, #tpu.memory_space<vmem>>, %arg11: memref<1x1x8xf32, #tpu.memory_space<vmem>>, %arg12: memref<1x3x128xf32, #tpu.memory_space<vmem>>, %arg13: memref<1x3x128xf32, #tpu.memory_space<vmem>>, %arg14: memref<1x3x128xf32, #tpu.memory_space<vmem>>, %arg15: memref<1x3x128xf32, #tpu.memory_space<vmem>>, %arg16: memref<8x8xf32, #tpu.memory_space<vmem>>) attributes {dimension_semantics = [#tpu.dimension_semantics<parallel>], iteration_bounds = array<i64: 2>, scalar_prefetch = 2 : i64, scratch_operands = 0 : i64, tpu.core_type = #tpu.core_type<tc>, window_params = [{transform_indices = @transform_0, window_bounds = array<i64: 8, 128>}, {transform_indices = @transform_1, window_bounds = array<i64: 1, 128, 128>}, {transform_indices = @transform_2, window_bounds = array<i64: 1, 1, 128>}, {transform_indices = @transform_3, window_bounds = array<i64: 1, 128, 128>}, {transform_indices = @transform_4, window_bounds = array<i64: 1, 1, 128>}, {transform_indices = @transform_5, window_bounds = array<i64: 1, 128, 128>}, {transform_indices = @transform_6, window_bounds = array<i64: 1, 1, 128>}, {transform_indices = @transform_7, window_bounds = array<i64: 1, 128, 8>}, {transform_indices = @transform_8, window_bounds = array<i64: 1, 1, 8>}, {transform_indices = @transform_9, window_bounds = array<i64: 1, 3, 128>}, {transform_indices = @transform_10, window_bounds = array<i64: 1, 3, 128>}, {transform_indices = @transform_11, window_bounds = array<i64: 1, 3, 128>}, {transform_indices = @transform_12, window_bounds = array<i64: 1, 3, 128>}, {transform_indices = @transform_13, window_bounds = array<i64: 8, 8>}]} {
    %c0 = arith.constant 0 : index
    %c0_0 = arith.constant 0 : index
    %0 = vector.load %arg3[%c0, %c0_0] : memref<8x128xf32, #tpu.memory_space<vmem>>, vector<8x128xf32>
    %c0_1 = arith.constant 0 : index
    %c0_2 = arith.constant 0 : index
    %c0_3 = arith.constant 0 : index
    %1 = vector.load %arg4[%c0_1, %c0_2, %c0_3] : memref<1x128x128xbf16, #tpu.memory_space<vmem>>, vector<1x128x128xbf16>
    %2 = vector.shape_cast %1 : vector<1x128x128xbf16> to vector<128x128xbf16>
    %c0_4 = arith.constant 0 : index
    %c0_5 = arith.constant 0 : index
    %c0_6 = arith.constant 0 : index
    %3 = vector.load %arg5[%c0_4, %c0_5, %c0_6] : memref<1x1x128xf32, #tpu.memory_space<vmem>>, vector<1x1x128xf32>
    %4 = vector.shape_cast %3 : vector<1x1x128xf32> to vector<1x128xf32>
    %c0_7 = arith.constant 0 : index
    %c0_8 = arith.constant 0 : index
    %c0_9 = arith.constant 0 : index
    %5 = vector.load %arg6[%c0_7, %c0_8, %c0_9] : memref<1x128x128xbf16, #tpu.memory_space<vmem>>, vector<1x128x128xbf16>
    %6 = vector.shape_cast %5 : vector<1x128x128xbf16> to vector<128x128xbf16>
    %c0_10 = arith.constant 0 : index
    %c0_11 = arith.constant 0 : index
    %c0_12 = arith.constant 0 : index
    %7 = vector.load %arg7[%c0_10, %c0_11, %c0_12] : memref<1x1x128xf32, #tpu.memory_space<vmem>>, vector<1x1x128xf32>
    %8 = vector.shape_cast %7 : vector<1x1x128xf32> to vector<1x128xf32>
    %c0_13 = arith.constant 0 : index
    %c0_14 = arith.constant 0 : index
    %c0_15 = arith.constant 0 : index
    %9 = vector.load %arg8[%c0_13, %c0_14, %c0_15] : memref<1x128x128xbf16, #tpu.memory_space<vmem>>, vector<1x128x128xbf16>
    %10 = vector.shape_cast %9 : vector<1x128x128xbf16> to vector<128x128xbf16>
    %c0_16 = arith.constant 0 : index
    %c0_17 = arith.constant 0 : index
    %c0_18 = arith.constant 0 : index
    %11 = vector.load %arg9[%c0_16, %c0_17, %c0_18] : memref<1x1x128xf32, #tpu.memory_space<vmem>>, vector<1x1x128xf32>
    %12 = vector.shape_cast %11 : vector<1x1x128xf32> to vector<1x128xf32>
    %c0_19 = arith.constant 0 : index
    %c0_20 = arith.constant 0 : index
    %c0_21 = arith.constant 0 : index
    %13 = vector.load %arg12[%c0_19, %c0_20, %c0_21] : memref<1x3x128xf32, #tpu.memory_space<vmem>>, vector<1x3x128xf32>
    %14 = vector.shape_cast %13 : vector<1x3x128xf32> to vector<3x128xf32>
    %c0_22 = arith.constant 0 : index
    %c0_23 = arith.constant 0 : index
    %c0_24 = arith.constant 0 : index
    %15 = vector.load %arg13[%c0_22, %c0_23, %c0_24] : memref<1x3x128xf32, #tpu.memory_space<vmem>>, vector<1x3x128xf32>
    %16 = vector.shape_cast %15 : vector<1x3x128xf32> to vector<3x128xf32>
    %c0_25 = arith.constant 0 : index
    %c0_26 = arith.constant 0 : index
    %c0_27 = arith.constant 0 : index
    %17 = vector.load %arg14[%c0_25, %c0_26, %c0_27] : memref<1x3x128xf32, #tpu.memory_space<vmem>>, vector<1x3x128xf32>
    %18 = vector.shape_cast %17 : vector<1x3x128xf32> to vector<3x128xf32>
    %c0_28 = arith.constant 0 : index
    %c0_29 = arith.constant 0 : index
    %c0_30 = arith.constant 0 : index
    %19 = vector.load %arg15[%c0_28, %c0_29, %c0_30] : memref<1x3x128xf32, #tpu.memory_space<vmem>>, vector<1x3x128xf32>
    %20 = vector.shape_cast %19 : vector<1x3x128xf32> to vector<3x128xf32>
    %21 = arith.truncf %0 : vector<8x128xf32> to vector<8x128xbf16>
    %cst = arith.constant dense<0.000000e+00> : vector<8x128xf32>
    %22 = tpu.matmul %21, %2, %cst {dimension_numbers = #tpu.dot_dimension_numbers<[1], [0], [0], [1], [0, 0, 1, 1], [], []>} : vector<8x128xbf16>, vector<128x128xbf16>, vector<8x128xf32> -> vector<8x128xf32>
    %23 = vector.broadcast %4 : vector<1x128xf32> to vector<8x128xf32>
    %24 = arith.addf %22, %23 : vector<8x128xf32>
    %cst_31 = arith.constant dense<0.000000e+00> : vector<8xf32>
    %25 = vector.multi_reduction <add>, %24, %cst_31 [1] : vector<8x128xf32> to vector<8xf32>
    %26 = vector.shape_cast %25 : vector<8xf32> to vector<8x1xf32>
    %cst_32 = arith.constant 1.280000e+02 : f32
    %27 = vector.broadcast %cst_32 : f32 to vector<8x1xf32>
    %28 = arith.divf %26, %27 : vector<8x1xf32>
    %29 = vector.broadcast %28 : vector<8x1xf32> to vector<8x128xf32>
    %30 = arith.subf %24, %29 : vector<8x128xf32>
    %31 = arith.mulf %30, %30 : vector<8x128xf32>
    %cst_33 = arith.constant dense<0.000000e+00> : vector<8xf32>
    %32 = vector.multi_reduction <add>, %31, %cst_33 [1] : vector<8x128xf32> to vector<8xf32>
    %33 = vector.shape_cast %32 : vector<8xf32> to vector<8x1xf32>
    %cst_34 = arith.constant 1.280000e+02 : f32
    %34 = vector.broadcast %cst_34 : f32 to vector<8x1xf32>
    %35 = arith.divf %33, %34 : vector<8x1xf32>
    %36 = vector.broadcast %28 : vector<8x1xf32> to vector<8x128xf32>
    %37 = arith.subf %24, %36 : vector<8x128xf32>
    %cst_35 = arith.constant 9.99999974E-6 : f32
    %38 = vector.broadcast %cst_35 : f32 to vector<8x1xf32>
    %39 = arith.addf %35, %38 : vector<8x1xf32>
    %40 = math.rsqrt %39 : vector<8x1xf32>
    %41 = vector.broadcast %40 : vector<8x1xf32> to vector<8x128xf32>
    %42 = arith.mulf %37, %41 : vector<8x128xf32>
    %43 = vector.extract_strided_slice %14 {offsets = [0, 0], sizes = [1, 128], strides = [1, 1]} : vector<3x128xf32> to vector<1x128xf32>
    %44 = vector.shape_cast %43 : vector<1x128xf32> to vector<128xf32>
    %45 = vector.shape_cast %44 : vector<128xf32> to vector<1x128xf32>
    %46 = vector.broadcast %45 : vector<1x128xf32> to vector<8x128xf32>
    %47 = arith.mulf %42, %46 : vector<8x128xf32>
    %48 = vector.extract_strided_slice %16 {offsets = [0, 0], sizes = [1, 128], strides = [1, 1]} : vector<3x128xf32> to vector<1x128xf32>
    %49 = vector.shape_cast %48 : vector<1x128xf32> to vector<128xf32>
    %50 = vector.shape_cast %49 : vector<128xf32> to vector<1x128xf32>
    %51 = vector.broadcast %50 : vector<1x128xf32> to vector<8x128xf32>
    %52 = arith.addf %47, %51 : vector<8x128xf32>
    %53 = vector.extract_strided_slice %18 {offsets = [0, 0], sizes = [1, 128], strides = [1, 1]} : vector<3x128xf32> to vector<1x128xf32>
    %54 = vector.shape_cast %53 : vector<1x128xf32> to vector<128xf32>
    %55 = vector.extract_strided_slice %20 {offsets = [0, 0], sizes = [1, 128], strides = [1, 1]} : vector<3x128xf32> to vector<1x128xf32>
    %56 = vector.shape_cast %55 : vector<1x128xf32> to vector<128xf32>
    %57 = vector.shape_cast %56 : vector<128xf32> to vector<1x128xf32>
    %58 = vector.broadcast %57 : vector<1x128xf32> to vector<8x128xf32>
    %59 = arith.mulf %58, %52 : vector<8x128xf32>
    %60 = vector.shape_cast %54 : vector<128xf32> to vector<1x128xf32>
    %61 = vector.broadcast %60 : vector<1x128xf32> to vector<8x128xf32>
    %62 = arith.mulf %61, %59 : vector<8x128xf32>
    %63 = arith.negf %59 : vector<8x128xf32>
    %64 = math.exp %63 : vector<8x128xf32>
    %cst_36 = arith.constant 1.000000e+00 : f32
    %65 = vector.broadcast %cst_36 : f32 to vector<8x128xf32>
    %66 = arith.addf %65, %64 : vector<8x128xf32>
    %67 = arith.divf %65, %66 : vector<8x128xf32>
    %68 = arith.mulf %62, %67 : vector<8x128xf32>
    %69 = arith.truncf %68 : vector<8x128xf32> to vector<8x128xbf16>
    %cst_37 = arith.constant dense<0.000000e+00> : vector<8x128xf32>
    %70 = tpu.matmul %69, %6, %cst_37 {dimension_numbers = #tpu.dot_dimension_numbers<[1], [0], [0], [1], [0, 0, 1, 1], [], []>} : vector<8x128xbf16>, vector<128x128xbf16>, vector<8x128xf32> -> vector<8x128xf32>
    %71 = vector.broadcast %8 : vector<1x128xf32> to vector<8x128xf32>
    %72 = arith.addf %70, %71 : vector<8x128xf32>
    %cst_38 = arith.constant dense<0.000000e+00> : vector<8xf32>
    %73 = vector.multi_reduction <add>, %72, %cst_38 [1] : vector<8x128xf32> to vector<8xf32>
    %74 = vector.shape_cast %73 : vector<8xf32> to vector<8x1xf32>
    %cst_39 = arith.constant 1.280000e+02 : f32
    %75 = vector.broadcast %cst_39 : f32 to vector<8x1xf32>
    %76 = arith.divf %74, %75 : vector<8x1xf32>
    %77 = vector.broadcast %76 : vector<8x1xf32> to vector<8x128xf32>
    %78 = arith.subf %72, %77 : vector<8x128xf32>
    %79 = arith.mulf %78, %78 : vector<8x128xf32>
    %cst_40 = arith.constant dense<0.000000e+00> : vector<8xf32>
    %80 = vector.multi_reduction <add>, %79, %cst_40 [1] : vector<8x128xf32> to vector<8xf32>
    %81 = vector.shape_cast %80 : vector<8xf32> to vector<8x1xf32>
    %cst_41 = arith.constant 1.280000e+02 : f32
    %82 = vector.broadcast %cst_41 : f32 to vector<8x1xf32>
    %83 = arith.divf %81, %82 : vector<8x1xf32>
    %84 = vector.broadcast %76 : vector<8x1xf32> to vector<8x128xf32>
    %85 = arith.subf %72, %84 : vector<8x128xf32>
    %cst_42 = arith.constant 9.99999974E-6 : f32
    %86 = vector.broadcast %cst_42 : f32 to vector<8x1xf32>
    %87 = arith.addf %83, %86 : vector<8x1xf32>
    %88 = math.rsqrt %87 : vector<8x1xf32>
    %89 = vector.broadcast %88 : vector<8x1xf32> to vector<8x128xf32>
    %90 = arith.mulf %85, %89 : vector<8x128xf32>
    %91 = vector.extract_strided_slice %14 {offsets = [1, 0], sizes = [1, 128], strides = [1, 1]} : vector<3x128xf32> to vector<1x128xf32>
    %92 = vector.shape_cast %91 : vector<1x128xf32> to vector<128xf32>
    %93 = vector.shape_cast %92 : vector<128xf32> to vector<1x128xf32>
    %94 = vector.broadcast %93 : vector<1x128xf32> to vector<8x128xf32>
    %95 = arith.mulf %90, %94 : vector<8x128xf32>
    %96 = vector.extract_strided_slice %16 {offsets = [1, 0], sizes = [1, 128], strides = [1, 1]} : vector<3x128xf32> to vector<1x128xf32>
    %97 = vector.shape_cast %96 : vector<1x128xf32> to vector<128xf32>
    %98 = vector.shape_cast %97 : vector<128xf32> to vector<1x128xf32>
    %99 = vector.broadcast %98 : vector<1x128xf32> to vector<8x128xf32>
    %100 = arith.addf %95, %99 : vector<8x128xf32>
    %101 = vector.extract_strided_slice %18 {offsets = [1, 0], sizes = [1, 128], strides = [1, 1]} : vector<3x128xf32> to vector<1x128xf32>
    %102 = vector.shape_cast %101 : vector<1x128xf32> to vector<128xf32>
    %103 = vector.extract_strided_slice %20 {offsets = [1, 0], sizes = [1, 128], strides = [1, 1]} : vector<3x128xf32> to vector<1x128xf32>
    %104 = vector.shape_cast %103 : vector<1x128xf32> to vector<128xf32>
    %105 = vector.shape_cast %104 : vector<128xf32> to vector<1x128xf32>
    %106 = vector.broadcast %105 : vector<1x128xf32> to vector<8x128xf32>
    %107 = arith.mulf %106, %100 : vector<8x128xf32>
    %108 = vector.shape_cast %102 : vector<128xf32> to vector<1x128xf32>
    %109 = vector.broadcast %108 : vector<1x128xf32> to vector<8x128xf32>
    %110 = arith.mulf %109, %107 : vector<8x128xf32>
    %111 = arith.negf %107 : vector<8x128xf32>
    %112 = math.exp %111 : vector<8x128xf32>
    %cst_43 = arith.constant 1.000000e+00 : f32
    %113 = vector.broadcast %cst_43 : f32 to vector<8x128xf32>
    %114 = arith.addf %113, %112 : vector<8x128xf32>
    %115 = arith.divf %113, %114 : vector<8x128xf32>
    %116 = arith.mulf %110, %115 : vector<8x128xf32>
    %117 = arith.truncf %116 : vector<8x128xf32> to vector<8x128xbf16>
    %cst_44 = arith.constant dense<0.000000e+00> : vector<8x128xf32>
    %118 = tpu.matmul %117, %10, %cst_44 {dimension_numbers = #tpu.dot_dimension_numbers<[1], [0], [0], [1], [0, 0, 1, 1], [], []>} : vector<8x128xbf16>, vector<128x128xbf16>, vector<8x128xf32> -> vector<8x128xf32>
    %119 = vector.broadcast %12 : vector<1x128xf32> to vector<8x128xf32>
    %120 = arith.addf %118, %119 : vector<8x128xf32>
    %cst_45 = arith.constant dense<0.000000e+00> : vector<8xf32>
    %121 = vector.multi_reduction <add>, %120, %cst_45 [1] : vector<8x128xf32> to vector<8xf32>
    %122 = vector.shape_cast %121 : vector<8xf32> to vector<8x1xf32>
    %cst_46 = arith.constant 1.280000e+02 : f32
    %123 = vector.broadcast %cst_46 : f32 to vector<8x1xf32>
    %124 = arith.divf %122, %123 : vector<8x1xf32>
    %125 = vector.broadcast %124 : vector<8x1xf32> to vector<8x128xf32>
    %126 = arith.subf %120, %125 : vector<8x128xf32>
    %127 = arith.mulf %126, %126 : vector<8x128xf32>
    %cst_47 = arith.constant dense<0.000000e+00> : vector<8xf32>
    %128 = vector.multi_reduction <add>, %127, %cst_47 [1] : vector<8x128xf32> to vector<8xf32>
    %129 = vector.shape_cast %128 : vector<8xf32> to vector<8x1xf32>
    %cst_48 = arith.constant 1.280000e+02 : f32
    %130 = vector.broadcast %cst_48 : f32 to vector<8x1xf32>
    %131 = arith.divf %129, %130 : vector<8x1xf32>
    %132 = vector.broadcast %124 : vector<8x1xf32> to vector<8x128xf32>
    %133 = arith.subf %120, %132 : vector<8x128xf32>
    %cst_49 = arith.constant 9.99999974E-6 : f32
    %134 = vector.broadcast %cst_49 : f32 to vector<8x1xf32>
    %135 = arith.addf %131, %134 : vector<8x1xf32>
    %136 = math.rsqrt %135 : vector<8x1xf32>
    %137 = vector.broadcast %136 : vector<8x1xf32> to vector<8x128xf32>
    %138 = arith.mulf %133, %137 : vector<8x128xf32>
    %139 = vector.extract_strided_slice %14 {offsets = [2, 0], sizes = [1, 128], strides = [1, 1]} : vector<3x128xf32> to vector<1x128xf32>
    %140 = vector.shape_cast %139 : vector<1x128xf32> to vector<128xf32>
    %141 = vector.shape_cast %140 : vector<128xf32> to vector<1x128xf32>
    %142 = vector.broadcast %141 : vector<1x128xf32> to vector<8x128xf32>
    %143 = arith.mulf %138, %142 : vector<8x128xf32>
    %144 = vector.extract_strided_slice %16 {offsets = [2, 0], sizes = [1, 128], strides = [1, 1]} : vector<3x128xf32> to vector<1x128xf32>
    %145 = vector.shape_cast %144 : vector<1x128xf32> to vector<128xf32>
    %146 = vector.shape_cast %145 : vector<128xf32> to vector<1x128xf32>
    %147 = vector.broadcast %146 : vector<1x128xf32> to vector<8x128xf32>
    %148 = arith.addf %143, %147 : vector<8x128xf32>
    %149 = vector.extract_strided_slice %18 {offsets = [2, 0], sizes = [1, 128], strides = [1, 1]} : vector<3x128xf32> to vector<1x128xf32>
    %150 = vector.shape_cast %149 : vector<1x128xf32> to vector<128xf32>
    %151 = vector.extract_strided_slice %20 {offsets = [2, 0], sizes = [1, 128], strides = [1, 1]} : vector<3x128xf32> to vector<1x128xf32>
    %152 = vector.shape_cast %151 : vector<1x128xf32> to vector<128xf32>
    %153 = vector.shape_cast %152 : vector<128xf32> to vector<1x128xf32>
    %154 = vector.broadcast %153 : vector<1x128xf32> to vector<8x128xf32>
    %155 = arith.mulf %154, %148 : vector<8x128xf32>
    %156 = vector.shape_cast %150 : vector<128xf32> to vector<1x128xf32>
    %157 = vector.broadcast %156 : vector<1x128xf32> to vector<8x128xf32>
    %158 = arith.mulf %157, %155 : vector<8x128xf32>
    %159 = arith.negf %155 : vector<8x128xf32>
    %160 = math.exp %159 : vector<8x128xf32>
    %cst_50 = arith.constant 1.000000e+00 : f32
    %161 = vector.broadcast %cst_50 : f32 to vector<8x128xf32>
    %162 = arith.addf %161, %160 : vector<8x128xf32>
    %163 = arith.divf %161, %162 : vector<8x128xf32>
    %164 = arith.mulf %158, %163 : vector<8x128xf32>
    %165 = arith.addf %68, %164 : vector<8x128xf32>
    %166 = arith.truncf %165 : vector<8x128xf32> to vector<8x128xbf16>
    %c0_51 = arith.constant 0 : index
    %c0_52 = arith.constant 0 : index
    %c0_53 = arith.constant 0 : index
    %167 = vector.load %arg10[%c0_51, %c0_52, %c0_53] : memref<1x128x8xbf16, #tpu.memory_space<vmem>>, vector<1x128x8xbf16>
    %168 = vector.shape_cast %167 : vector<1x128x8xbf16> to vector<128x8xbf16>
    %cst_54 = arith.constant dense<0.000000e+00> : vector<8x8xf32>
    %169 = tpu.matmul %166, %168, %cst_54 {dimension_numbers = #tpu.dot_dimension_numbers<[1], [0], [0], [1], [0, 0, 1, 1], [], []>} : vector<8x128xbf16>, vector<128x8xbf16>, vector<8x8xf32> -> vector<8x8xf32>
    %c0_55 = arith.constant 0 : index
    %c0_56 = arith.constant 0 : index
    %c0_57 = arith.constant 0 : index
    %170 = vector.load %arg11[%c0_55, %c0_56, %c0_57] : memref<1x1x8xf32, #tpu.memory_space<vmem>>, vector<1x1x8xf32>
    %171 = vector.shape_cast %170 : vector<1x1x8xf32> to vector<1x8xf32>
    %172 = vector.broadcast %171 : vector<1x8xf32> to vector<8x8xf32>
    %173 = arith.addf %169, %172 : vector<8x8xf32>
    %c0_58 = arith.constant 0 : index
    %c0_59 = arith.constant 0 : index
    %174 = vector.load %arg16[%c0_58, %c0_59] : memref<8x8xf32, #tpu.memory_space<vmem>>, vector<8x8xf32>
    tpu.vector_store %arg16[%c0_58, %c0_59], %173 {strides = array<i32>} : memref<8x8xf32, #tpu.memory_space<vmem>>, vector<8x8xf32>,
    return
  }
  func.func @transform_0(%arg0: i32, %arg1: memref<2xi32, #tpu.memory_space<smem>>, %arg2: memref<2xi32, #tpu.memory_space<smem>>) -> (i32, i32) {
    %c0_i32 = arith.constant 0 : i32
    %c0_i32_0 = arith.constant 0 : i32
    return %arg0, %c0_i32 : i32, i32
  }
  func.func @transform_1(%arg0: i32, %arg1: memref<2xi32, #tpu.memory_space<smem>>, %arg2: memref<2xi32, #tpu.memory_space<smem>>) -> (i32, i32, i32) {
    %0 = arith.index_cast %arg0 : i32 to index
    %1 = memref.load %arg1[%0] : memref<2xi32, #tpu.memory_space<smem>>
    %c0_i32 = arith.constant 0 : i32
    %c0_i32_0 = arith.constant 0 : i32
    %c0_i32_1 = arith.constant 0 : i32
    return %1, %c0_i32, %c0_i32_0 : i32, i32, i32
  }
  func.func @transform_2(%arg0: i32, %arg1: memref<2xi32, #tpu.memory_space<smem>>, %arg2: memref<2xi32, #tpu.memory_space<smem>>) -> (i32, i32, i32) {
    %0 = arith.index_cast %arg0 : i32 to index
    %1 = memref.load %arg1[%0] : memref<2xi32, #tpu.memory_space<smem>>
    %c0_i32 = arith.constant 0 : i32
    %c0_i32_0 = arith.constant 0 : i32
    %c0_i32_1 = arith.constant 0 : i32
    return %1, %c0_i32, %c0_i32_0 : i32, i32, i32
  }
  func.func @transform_3(%arg0: i32, %arg1: memref<2xi32, #tpu.memory_space<smem>>, %arg2: memref<2xi32, #tpu.memory_space<smem>>) -> (i32, i32, i32) {
    %0 = arith.index_cast %arg0 : i32 to index
    %1 = memref.load %arg1[%0] : memref<2xi32, #tpu.memory_space<smem>>
    %c0_i32 = arith.constant 0 : i32
    %c0_i32_0 = arith.constant 0 : i32
    %c0_i32_1 = arith.constant 0 : i32
    return %1, %c0_i32, %c0_i32_0 : i32, i32, i32
  }
  func.func @transform_4(%arg0: i32, %arg1: memref<2xi32, #tpu.memory_space<smem>>, %arg2: memref<2xi32, #tpu.memory_space<smem>>) -> (i32, i32, i32) {
    %0 = arith.index_cast %arg0 : i32 to index
    %1 = memref.load %arg1[%0] : memref<2xi32, #tpu.memory_space<smem>>
    %c0_i32 = arith.constant 0 : i32
    %c0_i32_0 = arith.constant 0 : i32
    %c0_i32_1 = arith.constant 0 : i32
    return %1, %c0_i32, %c0_i32_0 : i32, i32, i32
  }
  func.func @transform_5(%arg0: i32, %arg1: memref<2xi32, #tpu.memory_space<smem>>, %arg2: memref<2xi32, #tpu.memory_space<smem>>) -> (i32, i32, i32) {
    %0 = arith.index_cast %arg0 : i32 to index
    %1 = memref.load %arg1[%0] : memref<2xi32, #tpu.memory_space<smem>>
    %c0_i32 = arith.constant 0 : i32
    %c0_i32_0 = arith.constant 0 : i32
    %c0_i32_1 = arith.constant 0 : i32
    return %1, %c0_i32, %c0_i32_0 : i32, i32, i32
  }
  func.func @transform_6(%arg0: i32, %arg1: memref<2xi32, #tpu.memory_space<smem>>, %arg2: memref<2xi32, #tpu.memory_space<smem>>) -> (i32, i32, i32) {
    %0 = arith.index_cast %arg0 : i32 to index
    %1 = memref.load %arg1[%0] : memref<2xi32, #tpu.memory_space<smem>>
    %c0_i32 = arith.constant 0 : i32
    %c0_i32_0 = arith.constant 0 : i32
    %c0_i32_1 = arith.constant 0 : i32
    return %1, %c0_i32, %c0_i32_0 : i32, i32, i32
  }
  func.func @transform_7(%arg0: i32, %arg1: memref<2xi32, #tpu.memory_space<smem>>, %arg2: memref<2xi32, #tpu.memory_space<smem>>) -> (i32, i32, i32) {
    %0 = arith.index_cast %arg0 : i32 to index
    %1 = memref.load %arg1[%0] : memref<2xi32, #tpu.memory_space<smem>>
    %c0_i32 = arith.constant 0 : i32
    %c0_i32_0 = arith.constant 0 : i32
    %c0_i32_1 = arith.constant 0 : i32
    return %1, %c0_i32, %c0_i32_0 : i32, i32, i32
  }
  func.func @transform_8(%arg0: i32, %arg1: memref<2xi32, #tpu.memory_space<smem>>, %arg2: memref<2xi32, #tpu.memory_space<smem>>) -> (i32, i32, i32) {
    %0 = arith.index_cast %arg0 : i32 to index
    %1 = memref.load %arg1[%0] : memref<2xi32, #tpu.memory_space<smem>>
    %c0_i32 = arith.constant 0 : i32
    %c0_i32_0 = arith.constant 0 : i32
    %c0_i32_1 = arith.constant 0 : i32
    return %1, %c0_i32, %c0_i32_0 : i32, i32, i32
  }
  func.func @transform_9(%arg0: i32, %arg1: memref<2xi32, #tpu.memory_space<smem>>, %arg2: memref<2xi32, #tpu.memory_space<smem>>) -> (i32, i32, i32) {
    %0 = arith.index_cast %arg0 : i32 to index
    %1 = memref.load %arg1[%0] : memref<2xi32, #tpu.memory_space<smem>>
    %c0_i32 = arith.constant 0 : i32
    %c0_i32_0 = arith.constant 0 : i32
    %c0_i32_1 = arith.constant 0 : i32
    return %1, %c0_i32, %c0_i32_0 : i32, i32, i32
  }
  func.func @transform_10(%arg0: i32, %arg1: memref<2xi32, #tpu.memory_space<smem>>, %arg2: memref<2xi32, #tpu.memory_space<smem>>) -> (i32, i32, i32) {
    %0 = arith.index_cast %arg0 : i32 to index
    %1 = memref.load %arg1[%0] : memref<2xi32, #tpu.memory_space<smem>>
    %c0_i32 = arith.constant 0 : i32
    %c0_i32_0 = arith.constant 0 : i32
    %c0_i32_1 = arith.constant 0 : i32
    return %1, %c0_i32, %c0_i32_0 : i32, i32, i32
  }
  func.func @transform_11(%arg0: i32, %arg1: memref<2xi32, #tpu.memory_space<smem>>, %arg2: memref<2xi32, #tpu.memory_space<smem>>) -> (i32, i32, i32) {
    %0 = arith.index_cast %arg0 : i32 to index
    %1 = memref.load %arg1[%0] : memref<2xi32, #tpu.memory_space<smem>>
    %c0_i32 = arith.constant 0 : i32
    %c0_i32_0 = arith.constant 0 : i32
    %c0_i32_1 = arith.constant 0 : i32
    return %1, %c0_i32, %c0_i32_0 : i32, i32, i32
  }
  func.func @transform_12(%arg0: i32, %arg1: memref<2xi32, #tpu.memory_space<smem>>, %arg2: memref<2xi32, #tpu.memory_space<smem>>) -> (i32, i32, i32) {
    %0 = arith.index_cast %arg0 : i32 to index
    %1 = memref.load %arg1[%0] : memref<2xi32, #tpu.memory_space<smem>>
    %c0_i32 = arith.constant 0 : i32
    %c0_i32_0 = arith.constant 0 : i32
    %c0_i32_1 = arith.constant 0 : i32
    return %1, %c0_i32, %c0_i32_0 : i32, i32, i32
  }
  func.func @transform_13(%arg0: i32, %arg1: memref<2xi32, #tpu.memory_space<smem>>, %arg2: memref<2xi32, #tpu.memory_space<smem>>) -> (i32, i32) {
    %c0_i32 = arith.constant 0 : i32
    %c0_i32_0 = arith.constant 0 : i32
    return %arg0, %c0_i32 : i32, i32
  }
}

module attributes {stable_mosaic.version = 11 : i64} {
  func.func @_mlp_bwd_kernel(%arg0: i32, %arg1: memref<2xi32, #tpu.memory_space<smem>>, %arg2: memref<2xi32, #tpu.memory_space<smem>>, %arg3: memref<8x128xf32, #tpu.memory_space<vmem>>, %arg4: memref<8x8xf32, #tpu.memory_space<vmem>>, %arg5: memref<1x128x128xbf16, #tpu.memory_space<vmem>>, %arg6: memref<1x1x128xf32, #tpu.memory_space<vmem>>, %arg7: memref<1x128x128xbf16, #tpu.memory_space<vmem>>, %arg8: memref<1x1x128xf32, #tpu.memory_space<vmem>>, %arg9: memref<1x128x128xbf16, #tpu.memory_space<vmem>>, %arg10: memref<1x1x128xf32, #tpu.memory_space<vmem>>, %arg11: memref<1x128x8xbf16, #tpu.memory_space<vmem>>, %arg12: memref<1x3x128xf32, #tpu.memory_space<vmem>>, %arg13: memref<1x3x128xf32, #tpu.memory_space<vmem>>, %arg14: memref<1x3x128xf32, #tpu.memory_space<vmem>>, %arg15: memref<1x3x128xf32, #tpu.memory_space<vmem>>, %arg16: memref<8x128xf32, #tpu.memory_space<vmem>>) attributes {dimension_semantics = [#tpu.dimension_semantics<parallel>], iteration_bounds = array<i64: 2>, scalar_prefetch = 2 : i64, scratch_operands = 0 : i64, tpu.core_type = #tpu.core_type<tc>, window_params = [{transform_indices = @transform_0, window_bounds = array<i64: 8, 128>}, {transform_indices = @transform_1, window_bounds = array<i64: 8, 8>}, {transform_indices = @transform_2, window_bounds = array<i64: 1, 128, 128>}, {transform_indices = @transform_3, window_bounds = array<i64: 1, 1, 128>}, {transform_indices = @transform_4, window_bounds = array<i64: 1, 128, 128>}, {transform_indices = @transform_5, window_bounds = array<i64: 1, 1, 128>}, {transform_indices = @transform_6, window_bounds = array<i64: 1, 128, 128>}, {transform_indices = @transform_7, window_bounds = array<i64: 1, 1, 128>}, {transform_indices = @transform_8, window_bounds = array<i64: 1, 128, 8>}, {transform_indices = @transform_9, window_bounds = array<i64: 1, 3, 128>}, {transform_indices = @transform_10, window_bounds = array<i64: 1, 3, 128>}, {transform_indices = @transform_11, window_bounds = array<i64: 1, 3, 128>}, {transform_indices = @transform_12, window_bounds = array<i64: 1, 3, 128>}, {transform_indices = @transform_13, window_bounds = array<i64: 8, 128>}]} {
    %c0 = arith.constant 0 : index
    %c0_0 = arith.constant 0 : index
    %c0_1 = arith.constant 0 : index
    %0 = vector.load %arg12[%c0, %c0_0, %c0_1] : memref<1x3x128xf32, #tpu.memory_space<vmem>>, vector<1x3x128xf32>
    %1 = vector.shape_cast %0 : vector<1x3x128xf32> to vector<3x128xf32>
    %c0_2 = arith.constant 0 : index
    %c0_3 = arith.constant 0 : index
    %c0_4 = arith.constant 0 : index
    %2 = vector.load %arg13[%c0_2, %c0_3, %c0_4] : memref<1x3x128xf32, #tpu.memory_space<vmem>>, vector<1x3x128xf32>
    %3 = vector.shape_cast %2 : vector<1x3x128xf32> to vector<3x128xf32>
    %c0_5 = arith.constant 0 : index
    %c0_6 = arith.constant 0 : index
    %c0_7 = arith.constant 0 : index
    %4 = vector.load %arg14[%c0_5, %c0_6, %c0_7] : memref<1x3x128xf32, #tpu.memory_space<vmem>>, vector<1x3x128xf32>
    %5 = vector.shape_cast %4 : vector<1x3x128xf32> to vector<3x128xf32>
    %c0_8 = arith.constant 0 : index
    %c0_9 = arith.constant 0 : index
    %c0_10 = arith.constant 0 : index
    %6 = vector.load %arg15[%c0_8, %c0_9, %c0_10] : memref<1x3x128xf32, #tpu.memory_space<vmem>>, vector<1x3x128xf32>
    %7 = vector.shape_cast %6 : vector<1x3x128xf32> to vector<3x128xf32>
    %c0_11 = arith.constant 0 : index
    %c0_12 = arith.constant 0 : index
    %8 = vector.load %arg3[%c0_11, %c0_12] : memref<8x128xf32, #tpu.memory_space<vmem>>, vector<8x128xf32>
    %c0_13 = arith.constant 0 : index
    %c0_14 = arith.constant 0 : index
    %c0_15 = arith.constant 0 : index
    %9 = vector.load %arg5[%c0_13, %c0_14, %c0_15] : memref<1x128x128xbf16, #tpu.memory_space<vmem>>, vector<1x128x128xbf16>
    %10 = vector.shape_cast %9 : vector<1x128x128xbf16> to vector<128x128xbf16>
    %c0_16 = arith.constant 0 : index
    %c0_17 = arith.constant 0 : index
    %c0_18 = arith.constant 0 : index
    %11 = vector.load %arg6[%c0_16, %c0_17, %c0_18] : memref<1x1x128xf32, #tpu.memory_space<vmem>>, vector<1x1x128xf32>
    %12 = vector.shape_cast %11 : vector<1x1x128xf32> to vector<1x128xf32>
    %c0_19 = arith.constant 0 : index
    %c0_20 = arith.constant 0 : index
    %c0_21 = arith.constant 0 : index
    %13 = vector.load %arg7[%c0_19, %c0_20, %c0_21] : memref<1x128x128xbf16, #tpu.memory_space<vmem>>, vector<1x128x128xbf16>
    %14 = vector.shape_cast %13 : vector<1x128x128xbf16> to vector<128x128xbf16>
    %c0_22 = arith.constant 0 : index
    %c0_23 = arith.constant 0 : index
    %c0_24 = arith.constant 0 : index
    %15 = vector.load %arg8[%c0_22, %c0_23, %c0_24] : memref<1x1x128xf32, #tpu.memory_space<vmem>>, vector<1x1x128xf32>
    %16 = vector.shape_cast %15 : vector<1x1x128xf32> to vector<1x128xf32>
    %c0_25 = arith.constant 0 : index
    %c0_26 = arith.constant 0 : index
    %c0_27 = arith.constant 0 : index
    %17 = vector.load %arg9[%c0_25, %c0_26, %c0_27] : memref<1x128x128xbf16, #tpu.memory_space<vmem>>, vector<1x128x128xbf16>
    %18 = vector.shape_cast %17 : vector<1x128x128xbf16> to vector<128x128xbf16>
    %c0_28 = arith.constant 0 : index
    %c0_29 = arith.constant 0 : index
    %c0_30 = arith.constant 0 : index
    %19 = vector.load %arg10[%c0_28, %c0_29, %c0_30] : memref<1x1x128xf32, #tpu.memory_space<vmem>>, vector<1x1x128xf32>
    %20 = vector.shape_cast %19 : vector<1x1x128xf32> to vector<1x128xf32>
    %21 = arith.truncf %8 : vector<8x128xf32> to vector<8x128xbf16>
    %cst = arith.constant dense<0.000000e+00> : vector<8x128xf32>
    %22 = tpu.matmul %21, %10, %cst {dimension_numbers = #tpu.dot_dimension_numbers<[1], [0], [0], [1], [0, 0, 1, 1], [], []>} : vector<8x128xbf16>, vector<128x128xbf16>, vector<8x128xf32> -> vector<8x128xf32>
    %23 = vector.broadcast %12 : vector<1x128xf32> to vector<8x128xf32>
    %24 = arith.addf %22, %23 : vector<8x128xf32>
    %cst_31 = arith.constant dense<0.000000e+00> : vector<8xf32>
    %25 = vector.multi_reduction <add>, %24, %cst_31 [1] : vector<8x128xf32> to vector<8xf32>
    %26 = vector.shape_cast %25 : vector<8xf32> to vector<8x1xf32>
    %cst_32 = arith.constant 1.280000e+02 : f32
    %27 = vector.broadcast %cst_32 : f32 to vector<8x1xf32>
    %28 = arith.divf %26, %27 : vector<8x1xf32>
    %29 = vector.broadcast %28 : vector<8x1xf32> to vector<8x128xf32>
    %30 = arith.subf %24, %29 : vector<8x128xf32>
    %31 = arith.mulf %30, %30 : vector<8x128xf32>
    %cst_33 = arith.constant dense<0.000000e+00> : vector<8xf32>
    %32 = vector.multi_reduction <add>, %31, %cst_33 [1] : vector<8x128xf32> to vector<8xf32>
    %33 = vector.shape_cast %32 : vector<8xf32> to vector<8x1xf32>
    %cst_34 = arith.constant 1.280000e+02 : f32
    %34 = vector.broadcast %cst_34 : f32 to vector<8x1xf32>
    %35 = arith.divf %33, %34 : vector<8x1xf32>
    %36 = vector.broadcast %28 : vector<8x1xf32> to vector<8x128xf32>
    %37 = arith.subf %24, %36 : vector<8x128xf32>
    %cst_35 = arith.constant 9.99999974E-6 : f32
    %38 = vector.broadcast %cst_35 : f32 to vector<8x1xf32>
    %39 = arith.addf %35, %38 : vector<8x1xf32>
    %40 = math.rsqrt %39 : vector<8x1xf32>
    %41 = vector.broadcast %40 : vector<8x1xf32> to vector<8x128xf32>
    %42 = arith.mulf %37, %41 : vector<8x128xf32>
    %43 = vector.extract_strided_slice %1 {offsets = [0, 0], sizes = [1, 128], strides = [1, 1]} : vector<3x128xf32> to vector<1x128xf32>
    %44 = vector.shape_cast %43 : vector<1x128xf32> to vector<128xf32>
    %45 = vector.shape_cast %44 : vector<128xf32> to vector<1x128xf32>
    %46 = vector.broadcast %45 : vector<1x128xf32> to vector<8x128xf32>
    %47 = arith.mulf %42, %46 : vector<8x128xf32>
    %48 = vector.extract_strided_slice %3 {offsets = [0, 0], sizes = [1, 128], strides = [1, 1]} : vector<3x128xf32> to vector<1x128xf32>
    %49 = vector.shape_cast %48 : vector<1x128xf32> to vector<128xf32>
    %50 = vector.shape_cast %49 : vector<128xf32> to vector<1x128xf32>
    %51 = vector.broadcast %50 : vector<1x128xf32> to vector<8x128xf32>
    %52 = arith.addf %47, %51 : vector<8x128xf32>
    %53 = vector.extract_strided_slice %5 {offsets = [0, 0], sizes = [1, 128], strides = [1, 1]} : vector<3x128xf32> to vector<1x128xf32>
    %54 = vector.shape_cast %53 : vector<1x128xf32> to vector<128xf32>
    %55 = vector.extract_strided_slice %7 {offsets = [0, 0], sizes = [1, 128], strides = [1, 1]} : vector<3x128xf32> to vector<1x128xf32>
    %56 = vector.shape_cast %55 : vector<1x128xf32> to vector<128xf32>
    %57 = vector.shape_cast %56 : vector<128xf32> to vector<1x128xf32>
    %58 = vector.broadcast %57 : vector<1x128xf32> to vector<8x128xf32>
    %59 = arith.mulf %58, %52 : vector<8x128xf32>
    %60 = vector.shape_cast %54 : vector<128xf32> to vector<1x128xf32>
    %61 = vector.broadcast %60 : vector<1x128xf32> to vector<8x128xf32>
    %62 = arith.mulf %61, %59 : vector<8x128xf32>
    %63 = arith.negf %59 : vector<8x128xf32>
    %64 = math.exp %63 : vector<8x128xf32>
    %cst_36 = arith.constant 1.000000e+00 : f32
    %65 = vector.broadcast %cst_36 : f32 to vector<8x128xf32>
    %66 = arith.addf %65, %64 : vector<8x128xf32>
    %67 = arith.divf %65, %66 : vector<8x128xf32>
    %68 = arith.mulf %62, %67 : vector<8x128xf32>
    %69 = arith.truncf %68 : vector<8x128xf32> to vector<8x128xbf16>
    %cst_37 = arith.constant dense<0.000000e+00> : vector<8x128xf32>
    %70 = tpu.matmul %69, %14, %cst_37 {dimension_numbers = #tpu.dot_dimension_numbers<[1], [0], [0], [1], [0, 0, 1, 1], [], []>} : vector<8x128xbf16>, vector<128x128xbf16>, vector<8x128xf32> -> vector<8x128xf32>
    %71 = vector.broadcast %16 : vector<1x128xf32> to vector<8x128xf32>
    %72 = arith.addf %70, %71 : vector<8x128xf32>
    %cst_38 = arith.constant dense<0.000000e+00> : vector<8xf32>
    %73 = vector.multi_reduction <add>, %72, %cst_38 [1] : vector<8x128xf32> to vector<8xf32>
    %74 = vector.shape_cast %73 : vector<8xf32> to vector<8x1xf32>
    %cst_39 = arith.constant 1.280000e+02 : f32
    %75 = vector.broadcast %cst_39 : f32 to vector<8x1xf32>
    %76 = arith.divf %74, %75 : vector<8x1xf32>
    %77 = vector.broadcast %76 : vector<8x1xf32> to vector<8x128xf32>
    %78 = arith.subf %72, %77 : vector<8x128xf32>
    %79 = arith.mulf %78, %78 : vector<8x128xf32>
    %cst_40 = arith.constant dense<0.000000e+00> : vector<8xf32>
    %80 = vector.multi_reduction <add>, %79, %cst_40 [1] : vector<8x128xf32> to vector<8xf32>
    %81 = vector.shape_cast %80 : vector<8xf32> to vector<8x1xf32>
    %cst_41 = arith.constant 1.280000e+02 : f32
    %82 = vector.broadcast %cst_41 : f32 to vector<8x1xf32>
    %83 = arith.divf %81, %82 : vector<8x1xf32>
    %84 = vector.broadcast %76 : vector<8x1xf32> to vector<8x128xf32>
    %85 = arith.subf %72, %84 : vector<8x128xf32>
    %cst_42 = arith.constant 9.99999974E-6 : f32
    %86 = vector.broadcast %cst_42 : f32 to vector<8x1xf32>
    %87 = arith.addf %83, %86 : vector<8x1xf32>
    %88 = math.rsqrt %87 : vector<8x1xf32>
    %89 = vector.broadcast %88 : vector<8x1xf32> to vector<8x128xf32>
    %90 = arith.mulf %85, %89 : vector<8x128xf32>
    %91 = vector.extract_strided_slice %1 {offsets = [1, 0], sizes = [1, 128], strides = [1, 1]} : vector<3x128xf32> to vector<1x128xf32>
    %92 = vector.shape_cast %91 : vector<1x128xf32> to vector<128xf32>
    %93 = vector.shape_cast %92 : vector<128xf32> to vector<1x128xf32>
    %94 = vector.broadcast %93 : vector<1x128xf32> to vector<8x128xf32>
    %95 = arith.mulf %90, %94 : vector<8x128xf32>
    %96 = vector.extract_strided_slice %3 {offsets = [1, 0], sizes = [1, 128], strides = [1, 1]} : vector<3x128xf32> to vector<1x128xf32>
    %97 = vector.shape_cast %96 : vector<1x128xf32> to vector<128xf32>
    %98 = vector.shape_cast %97 : vector<128xf32> to vector<1x128xf32>
    %99 = vector.broadcast %98 : vector<1x128xf32> to vector<8x128xf32>
    %100 = arith.addf %95, %99 : vector<8x128xf32>
    %101 = vector.extract_strided_slice %5 {offsets = [1, 0], sizes = [1, 128], strides = [1, 1]} : vector<3x128xf32> to vector<1x128xf32>
    %102 = vector.shape_cast %101 : vector<1x128xf32> to vector<128xf32>
    %103 = vector.extract_strided_slice %7 {offsets = [1, 0], sizes = [1, 128], strides = [1, 1]} : vector<3x128xf32> to vector<1x128xf32>
    %104 = vector.shape_cast %103 : vector<1x128xf32> to vector<128xf32>
    %105 = vector.shape_cast %104 : vector<128xf32> to vector<1x128xf32>
    %106 = vector.broadcast %105 : vector<1x128xf32> to vector<8x128xf32>
    %107 = arith.mulf %106, %100 : vector<8x128xf32>
    %108 = vector.shape_cast %102 : vector<128xf32> to vector<1x128xf32>
    %109 = vector.broadcast %108 : vector<1x128xf32> to vector<8x128xf32>
    %110 = arith.mulf %109, %107 : vector<8x128xf32>
    %111 = arith.negf %107 : vector<8x128xf32>
    %112 = math.exp %111 : vector<8x128xf32>
    %cst_43 = arith.constant 1.000000e+00 : f32
    %113 = vector.broadcast %cst_43 : f32 to vector<8x128xf32>
    %114 = arith.addf %113, %112 : vector<8x128xf32>
    %115 = arith.divf %113, %114 : vector<8x128xf32>
    %116 = arith.mulf %110, %115 : vector<8x128xf32>
    %117 = arith.truncf %116 : vector<8x128xf32> to vector<8x128xbf16>
    %cst_44 = arith.constant dense<0.000000e+00> : vector<8x128xf32>
    %118 = tpu.matmul %117, %18, %cst_44 {dimension_numbers = #tpu.dot_dimension_numbers<[1], [0], [0], [1], [0, 0, 1, 1], [], []>} : vector<8x128xbf16>, vector<128x128xbf16>, vector<8x128xf32> -> vector<8x128xf32>
    %119 = vector.broadcast %20 : vector<1x128xf32> to vector<8x128xf32>
    %120 = arith.addf %118, %119 : vector<8x128xf32>
    %cst_45 = arith.constant dense<0.000000e+00> : vector<8xf32>
    %121 = vector.multi_reduction <add>, %120, %cst_45 [1] : vector<8x128xf32> to vector<8xf32>
    %122 = vector.shape_cast %121 : vector<8xf32> to vector<8x1xf32>
    %cst_46 = arith.constant 1.280000e+02 : f32
    %123 = vector.broadcast %cst_46 : f32 to vector<8x1xf32>
    %124 = arith.divf %122, %123 : vector<8x1xf32>
    %125 = vector.broadcast %124 : vector<8x1xf32> to vector<8x128xf32>
    %126 = arith.subf %120, %125 : vector<8x128xf32>
    %127 = arith.mulf %126, %126 : vector<8x128xf32>
    %cst_47 = arith.constant dense<0.000000e+00> : vector<8xf32>
    %128 = vector.multi_reduction <add>, %127, %cst_47 [1] : vector<8x128xf32> to vector<8xf32>
    %129 = vector.shape_cast %128 : vector<8xf32> to vector<8x1xf32>
    %cst_48 = arith.constant 1.280000e+02 : f32
    %130 = vector.broadcast %cst_48 : f32 to vector<8x1xf32>
    %131 = arith.divf %129, %130 : vector<8x1xf32>
    %132 = vector.broadcast %124 : vector<8x1xf32> to vector<8x128xf32>
    %133 = arith.subf %120, %132 : vector<8x128xf32>
    %cst_49 = arith.constant 9.99999974E-6 : f32
    %134 = vector.broadcast %cst_49 : f32 to vector<8x1xf32>
    %135 = arith.addf %131, %134 : vector<8x1xf32>
    %136 = math.rsqrt %135 : vector<8x1xf32>
    %137 = vector.broadcast %136 : vector<8x1xf32> to vector<8x128xf32>
    %138 = arith.mulf %133, %137 : vector<8x128xf32>
    %139 = vector.extract_strided_slice %1 {offsets = [2, 0], sizes = [1, 128], strides = [1, 1]} : vector<3x128xf32> to vector<1x128xf32>
    %140 = vector.shape_cast %139 : vector<1x128xf32> to vector<128xf32>
    %141 = vector.shape_cast %140 : vector<128xf32> to vector<1x128xf32>
    %142 = vector.broadcast %141 : vector<1x128xf32> to vector<8x128xf32>
    %143 = arith.mulf %138, %142 : vector<8x128xf32>
    %144 = vector.extract_strided_slice %3 {offsets = [2, 0], sizes = [1, 128], strides = [1, 1]} : vector<3x128xf32> to vector<1x128xf32>
    %145 = vector.shape_cast %144 : vector<1x128xf32> to vector<128xf32>
    %146 = vector.shape_cast %145 : vector<128xf32> to vector<1x128xf32>
    %147 = vector.broadcast %146 : vector<1x128xf32> to vector<8x128xf32>
    %148 = arith.addf %143, %147 : vector<8x128xf32>
    %c0_50 = arith.constant 0 : index
    %c0_51 = arith.constant 0 : index
    %149 = vector.load %arg4[%c0_50, %c0_51] : memref<8x8xf32, #tpu.memory_space<vmem>>, vector<8x8xf32>
    %150 = arith.truncf %149 : vector<8x8xf32> to vector<8x8xbf16>
    %c0_52 = arith.constant 0 : index
    %c0_53 = arith.constant 0 : index
    %c0_54 = arith.constant 0 : index
    %151 = vector.load %arg11[%c0_52, %c0_53, %c0_54] : memref<1x128x8xbf16, #tpu.memory_space<vmem>>, vector<1x128x8xbf16>
    %152 = vector.shape_cast %151 : vector<1x128x8xbf16> to vector<128x8xbf16>
    %cst_55 = arith.constant dense<0.000000e+00> : vector<8x128xf32>
    %153 = tpu.matmul %150, %152, %cst_55 {dimension_numbers = #tpu.dot_dimension_numbers<[1], [1], [0], [0], [0, 0, 1, 0], [], []>} : vector<8x8xbf16>, vector<128x8xbf16>, vector<8x128xf32> -> vector<8x128xf32>
    %154 = vector.extract_strided_slice %5 {offsets = [2, 0], sizes = [1, 128], strides = [1, 1]} : vector<3x128xf32> to vector<1x128xf32>
    %155 = vector.shape_cast %154 : vector<1x128xf32> to vector<128xf32>
    %156 = vector.extract_strided_slice %7 {offsets = [2, 0], sizes = [1, 128], strides = [1, 1]} : vector<3x128xf32> to vector<1x128xf32>
    %157 = vector.shape_cast %156 : vector<1x128xf32> to vector<128xf32>
    %158 = vector.shape_cast %157 : vector<128xf32> to vector<1x128xf32>
    %159 = vector.broadcast %158 : vector<1x128xf32> to vector<8x128xf32>
    %160 = arith.mulf %159, %148 : vector<8x128xf32>
    %161 = arith.negf %160 : vector<8x128xf32>
    %162 = math.exp %161 : vector<8x128xf32>
    %cst_56 = arith.constant 1.000000e+00 : f32
    %163 = vector.broadcast %cst_56 : f32 to vector<8x128xf32>
    %164 = arith.addf %163, %162 : vector<8x128xf32>
    %165 = arith.divf %163, %164 : vector<8x128xf32>
    %166 = arith.mulf %155, %157 : vector<128xf32>
    %167 = vector.shape_cast %166 : vector<128xf32> to vector<1x128xf32>
    %168 = vector.broadcast %167 : vector<1x128xf32> to vector<8x128xf32>
    %169 = arith.mulf %168, %165 : vector<8x128xf32>
    %cst_57 = arith.constant 1.000000e+00 : f32
    %170 = vector.broadcast %cst_57 : f32 to vector<8x128xf32>
    %171 = arith.subf %170, %165 : vector<8x128xf32>
    %172 = arith.mulf %160, %171 : vector<8x128xf32>
    %cst_58 = arith.constant 1.000000e+00 : f32
    %173 = vector.broadcast %cst_58 : f32 to vector<8x128xf32>
    %174 = arith.addf %173, %172 : vector<8x128xf32>
    %175 = arith.mulf %169, %174 : vector<8x128xf32>
    %176 = arith.mulf %153, %175 : vector<8x128xf32>
    %177 = vector.extract_strided_slice %1 {offsets = [2, 0], sizes = [1, 128], strides = [1, 1]} : vector<3x128xf32> to vector<1x128xf32>
    %178 = vector.shape_cast %177 : vector<1x128xf32> to vector<128xf32>
    %179 = vector.shape_cast %178 : vector<128xf32> to vector<1x128xf32>
    %180 = vector.broadcast %179 : vector<1x128xf32> to vector<8x128xf32>
    %181 = arith.mulf %176, %180 : vector<8x128xf32>
    %cst_59 = arith.constant dense<0.000000e+00> : vector<8xf32>
    %182 = vector.multi_reduction <add>, %120, %cst_59 [1] : vector<8x128xf32> to vector<8xf32>
    %183 = vector.shape_cast %182 : vector<8xf32> to vector<8x1xf32>
    %cst_60 = arith.constant 1.280000e+02 : f32
    %184 = vector.broadcast %cst_60 : f32 to vector<8x1xf32>
    %185 = arith.divf %183, %184 : vector<8x1xf32>
    %186 = vector.broadcast %185 : vector<8x1xf32> to vector<8x128xf32>
    %187 = arith.subf %120, %186 : vector<8x128xf32>
    %188 = arith.mulf %187, %187 : vector<8x128xf32>
    %cst_61 = arith.constant dense<0.000000e+00> : vector<8xf32>
    %189 = vector.multi_reduction <add>, %188, %cst_61 [1] : vector<8x128xf32> to vector<8xf32>
    %190 = vector.shape_cast %189 : vector<8xf32> to vector<8x1xf32>
    %cst_62 = arith.constant 1.280000e+02 : f32
    %191 = vector.broadcast %cst_62 : f32 to vector<8x1xf32>
    %192 = arith.divf %190, %191 : vector<8x1xf32>
    %cst_63 = arith.constant 9.99999974E-6 : f32
    %193 = vector.broadcast %cst_63 : f32 to vector<8x1xf32>
    %194 = arith.addf %192, %193 : vector<8x1xf32>
    %195 = math.rsqrt %194 : vector<8x1xf32>
    %196 = vector.broadcast %185 : vector<8x1xf32> to vector<8x128xf32>
    %197 = arith.subf %120, %196 : vector<8x128xf32>
    %198 = vector.broadcast %195 : vector<8x1xf32> to vector<8x128xf32>
    %199 = arith.mulf %197, %198 : vector<8x128xf32>
    %cst_64 = arith.constant dense<0.000000e+00> : vector<8xf32>
    %200 = vector.multi_reduction <add>, %181, %cst_64 [1] : vector<8x128xf32> to vector<8xf32>
    %201 = vector.shape_cast %200 : vector<8xf32> to vector<8x1xf32>
    %cst_65 = arith.constant 1.280000e+02 : f32
    %202 = vector.broadcast %cst_65 : f32 to vector<8x1xf32>
    %203 = arith.divf %201, %202 : vector<8x1xf32>
    %204 = vector.broadcast %203 : vector<8x1xf32> to vector<8x128xf32>
    %205 = arith.subf %181, %204 : vector<8x128xf32>
    %206 = arith.mulf %181, %199 : vector<8x128xf32>
    %cst_66 = arith.constant dense<0.000000e+00> : vector<8xf32>
    %207 = vector.multi_reduction <add>, %206, %cst_66 [1] : vector<8x128xf32> to vector<8xf32>
    %208 = vector.shape_cast %207 : vector<8xf32> to vector<8x1xf32>
    %cst_67 = arith.constant 1.280000e+02 : f32
    %209 = vector.broadcast %cst_67 : f32 to vector<8x1xf32>
    %210 = arith.divf %208, %209 : vector<8x1xf32>
    %211 = vector.broadcast %210 : vector<8x1xf32> to vector<8x128xf32>
    %212 = arith.mulf %199, %211 : vector<8x128xf32>
    %213 = arith.subf %205, %212 : vector<8x128xf32>
    %214 = vector.broadcast %195 : vector<8x1xf32> to vector<8x128xf32>
    %215 = arith.mulf %214, %213 : vector<8x128xf32>
    %216 = arith.truncf %215 : vector<8x128xf32> to vector<8x128xbf16>
    %c0_68 = arith.constant 0 : index
    %c0_69 = arith.constant 0 : index
    %c0_70 = arith.constant 0 : index
    %217 = vector.load %arg9[%c0_68, %c0_69, %c0_70] : memref<1x128x128xbf16, #tpu.memory_space<vmem>>, vector<1x128x128xbf16>
    %218 = vector.shape_cast %217 : vector<1x128x128xbf16> to vector<128x128xbf16>
    %cst_71 = arith.constant dense<0.000000e+00> : vector<8x128xf32>
    %219 = tpu.matmul %216, %218, %cst_71 {dimension_numbers = #tpu.dot_dimension_numbers<[1], [1], [0], [0], [0, 0, 1, 0], [], []>} : vector<8x128xbf16>, vector<128x128xbf16>, vector<8x128xf32> -> vector<8x128xf32>
    %220 = vector.extract_strided_slice %5 {offsets = [1, 0], sizes = [1, 128], strides = [1, 1]} : vector<3x128xf32> to vector<1x128xf32>
    %221 = vector.shape_cast %220 : vector<1x128xf32> to vector<128xf32>
    %222 = vector.extract_strided_slice %7 {offsets = [1, 0], sizes = [1, 128], strides = [1, 1]} : vector<3x128xf32> to vector<1x128xf32>
    %223 = vector.shape_cast %222 : vector<1x128xf32> to vector<128xf32>
    %224 = vector.shape_cast %223 : vector<128xf32> to vector<1x128xf32>
    %225 = vector.broadcast %224 : vector<1x128xf32> to vector<8x128xf32>
    %226 = arith.mulf %225, %100 : vector<8x128xf32>
    %227 = arith.negf %226 : vector<8x128xf32>
    %228 = math.exp %227 : vector<8x128xf32>
    %cst_72 = arith.constant 1.000000e+00 : f32
    %229 = vector.broadcast %cst_72 : f32 to vector<8x128xf32>
    %230 = arith.addf %229, %228 : vector<8x128xf32>
    %231 = arith.divf %229, %230 : vector<8x128xf32>
    %232 = arith.mulf %221, %223 : vector<128xf32>
    %233 = vector.shape_cast %232 : vector<128xf32> to vector<1x128xf32>
    %234 = vector.broadcast %233 : vector<1x128xf32> to vector<8x128xf32>
    %235 = arith.mulf %234, %231 : vector<8x128xf32>
    %cst_73 = arith.constant 1.000000e+00 : f32
    %236 = vector.broadcast %cst_73 : f32 to vector<8x128xf32>
    %237 = arith.subf %236, %231 : vector<8x128xf32>
    %238 = arith.mulf %226, %237 : vector<8x128xf32>
    %cst_74 = arith.constant 1.000000e+00 : f32
    %239 = vector.broadcast %cst_74 : f32 to vector<8x128xf32>
    %240 = arith.addf %239, %238 : vector<8x128xf32>
    %241 = arith.mulf %235, %240 : vector<8x128xf32>
    %242 = arith.mulf %219, %241 : vector<8x128xf32>
    %243 = vector.extract_strided_slice %1 {offsets = [1, 0], sizes = [1, 128], strides = [1, 1]} : vector<3x128xf32> to vector<1x128xf32>
    %244 = vector.shape_cast %243 : vector<1x128xf32> to vector<128xf32>
    %245 = vector.shape_cast %244 : vector<128xf32> to vector<1x128xf32>
    %246 = vector.broadcast %245 : vector<1x128xf32> to vector<8x128xf32>
    %247 = arith.mulf %242, %246 : vector<8x128xf32>
    %cst_75 = arith.constant dense<0.000000e+00> : vector<8xf32>
    %248 = vector.multi_reduction <add>, %72, %cst_75 [1] : vector<8x128xf32> to vector<8xf32>
    %249 = vector.shape_cast %248 : vector<8xf32> to vector<8x1xf32>
    %cst_76 = arith.constant 1.280000e+02 : f32
    %250 = vector.broadcast %cst_76 : f32 to vector<8x1xf32>
    %251 = arith.divf %249, %250 : vector<8x1xf32>
    %252 = vector.broadcast %251 : vector<8x1xf32> to vector<8x128xf32>
    %253 = arith.subf %72, %252 : vector<8x128xf32>
    %254 = arith.mulf %253, %253 : vector<8x128xf32>
    %cst_77 = arith.constant dense<0.000000e+00> : vector<8xf32>
    %255 = vector.multi_reduction <add>, %254, %cst_77 [1] : vector<8x128xf32> to vector<8xf32>
    %256 = vector.shape_cast %255 : vector<8xf32> to vector<8x1xf32>
    %cst_78 = arith.constant 1.280000e+02 : f32
    %257 = vector.broadcast %cst_78 : f32 to vector<8x1xf32>
    %258 = arith.divf %256, %257 : vector<8x1xf32>
    %cst_79 = arith.constant 9.99999974E-6 : f32
    %259 = vector.broadcast %cst_79 : f32 to vector<8x1xf32>
    %260 = arith.addf %258, %259 : vector<8x1xf32>
    %261 = math.rsqrt %260 : vector<8x1xf32>
    %262 = vector.broadcast %251 : vector<8x1xf32> to vector<8x128xf32>
    %263 = arith.subf %72, %262 : vector<8x128xf32>
    %264 = vector.broadcast %261 : vector<8x1xf32> to vector<8x128xf32>
    %265 = arith.mulf %263, %264 : vector<8x128xf32>
    %cst_80 = arith.constant dense<0.000000e+00> : vector<8xf32>
    %266 = vector.multi_reduction <add>, %247, %cst_80 [1] : vector<8x128xf32> to vector<8xf32>
    %267 = vector.shape_cast %266 : vector<8xf32> to vector<8x1xf32>
    %cst_81 = arith.constant 1.280000e+02 : f32
    %268 = vector.broadcast %cst_81 : f32 to vector<8x1xf32>
    %269 = arith.divf %267, %268 : vector<8x1xf32>
    %270 = vector.broadcast %269 : vector<8x1xf32> to vector<8x128xf32>
    %271 = arith.subf %247, %270 : vector<8x128xf32>
    %272 = arith.mulf %247, %265 : vector<8x128xf32>
    %cst_82 = arith.constant dense<0.000000e+00> : vector<8xf32>
    %273 = vector.multi_reduction <add>, %272, %cst_82 [1] : vector<8x128xf32> to vector<8xf32>
    %274 = vector.shape_cast %273 : vector<8xf32> to vector<8x1xf32>
    %cst_83 = arith.constant 1.280000e+02 : f32
    %275 = vector.broadcast %cst_83 : f32 to vector<8x1xf32>
    %276 = arith.divf %274, %275 : vector<8x1xf32>
    %277 = vector.broadcast %276 : vector<8x1xf32> to vector<8x128xf32>
    %278 = arith.mulf %265, %277 : vector<8x128xf32>
    %279 = arith.subf %271, %278 : vector<8x128xf32>
    %280 = vector.broadcast %261 : vector<8x1xf32> to vector<8x128xf32>
    %281 = arith.mulf %280, %279 : vector<8x128xf32>
    %282 = arith.truncf %281 : vector<8x128xf32> to vector<8x128xbf16>
    %c0_84 = arith.constant 0 : index
    %c0_85 = arith.constant 0 : index
    %c0_86 = arith.constant 0 : index
    %283 = vector.load %arg7[%c0_84, %c0_85, %c0_86] : memref<1x128x128xbf16, #tpu.memory_space<vmem>>, vector<1x128x128xbf16>
    %284 = vector.shape_cast %283 : vector<1x128x128xbf16> to vector<128x128xbf16>
    %cst_87 = arith.constant dense<0.000000e+00> : vector<8x128xf32>
    %285 = tpu.matmul %282, %284, %cst_87 {dimension_numbers = #tpu.dot_dimension_numbers<[1], [1], [0], [0], [0, 0, 1, 0], [], []>} : vector<8x128xbf16>, vector<128x128xbf16>, vector<8x128xf32> -> vector<8x128xf32>
    %286 = arith.addf %153, %285 : vector<8x128xf32>
    %287 = vector.extract_strided_slice %5 {offsets = [0, 0], sizes = [1, 128], strides = [1, 1]} : vector<3x128xf32> to vector<1x128xf32>
    %288 = vector.shape_cast %287 : vector<1x128xf32> to vector<128xf32>
    %289 = vector.extract_strided_slice %7 {offsets = [0, 0], sizes = [1, 128], strides = [1, 1]} : vector<3x128xf32> to vector<1x128xf32>
    %290 = vector.shape_cast %289 : vector<1x128xf32> to vector<128xf32>
    %291 = vector.shape_cast %290 : vector<128xf32> to vector<1x128xf32>
    %292 = vector.broadcast %291 : vector<1x128xf32> to vector<8x128xf32>
    %293 = arith.mulf %292, %52 : vector<8x128xf32>
    %294 = arith.negf %293 : vector<8x128xf32>
    %295 = math.exp %294 : vector<8x128xf32>
    %cst_88 = arith.constant 1.000000e+00 : f32
    %296 = vector.broadcast %cst_88 : f32 to vector<8x128xf32>
    %297 = arith.addf %296, %295 : vector<8x128xf32>
    %298 = arith.divf %296, %297 : vector<8x128xf32>
    %299 = arith.mulf %288, %290 : vector<128xf32>
    %300 = vector.shape_cast %299 : vector<128xf32> to vector<1x128xf32>
    %301 = vector.broadcast %300 : vector<1x128xf32> to vector<8x128xf32>
    %302 = arith.mulf %301, %298 : vector<8x128xf32>
    %cst_89 = arith.constant 1.000000e+00 : f32
    %303 = vector.broadcast %cst_89 : f32 to vector<8x128xf32>
    %304 = arith.subf %303, %298 : vector<8x128xf32>
    %305 = arith.mulf %293, %304 : vector<8x128xf32>
    %cst_90 = arith.constant 1.000000e+00 : f32
    %306 = vector.broadcast %cst_90 : f32 to vector<8x128xf32>
    %307 = arith.addf %306, %305 : vector<8x128xf32>
    %308 = arith.mulf %302, %307 : vector<8x128xf32>
    %309 = arith.mulf %286, %308 : vector<8x128xf32>
    %310 = vector.extract_strided_slice %1 {offsets = [0, 0], sizes = [1, 128], strides = [1, 1]} : vector<3x128xf32> to vector<1x128xf32>
    %311 = vector.shape_cast %310 : vector<1x128xf32> to vector<128xf32>
    %312 = vector.shape_cast %311 : vector<128xf32> to vector<1x128xf32>
    %313 = vector.broadcast %312 : vector<1x128xf32> to vector<8x128xf32>
    %314 = arith.mulf %309, %313 : vector<8x128xf32>
    %cst_91 = arith.constant dense<0.000000e+00> : vector<8xf32>
    %315 = vector.multi_reduction <add>, %24, %cst_91 [1] : vector<8x128xf32> to vector<8xf32>
    %316 = vector.shape_cast %315 : vector<8xf32> to vector<8x1xf32>
    %cst_92 = arith.constant 1.280000e+02 : f32
    %317 = vector.broadcast %cst_92 : f32 to vector<8x1xf32>
    %318 = arith.divf %316, %317 : vector<8x1xf32>
    %319 = vector.broadcast %318 : vector<8x1xf32> to vector<8x128xf32>
    %320 = arith.subf %24, %319 : vector<8x128xf32>
    %321 = arith.mulf %320, %320 : vector<8x128xf32>
    %cst_93 = arith.constant dense<0.000000e+00> : vector<8xf32>
    %322 = vector.multi_reduction <add>, %321, %cst_93 [1] : vector<8x128xf32> to vector<8xf32>
    %323 = vector.shape_cast %322 : vector<8xf32> to vector<8x1xf32>
    %cst_94 = arith.constant 1.280000e+02 : f32
    %324 = vector.broadcast %cst_94 : f32 to vector<8x1xf32>
    %325 = arith.divf %323, %324 : vector<8x1xf32>
    %cst_95 = arith.constant 9.99999974E-6 : f32
    %326 = vector.broadcast %cst_95 : f32 to vector<8x1xf32>
    %327 = arith.addf %325, %326 : vector<8x1xf32>
    %328 = math.rsqrt %327 : vector<8x1xf32>
    %329 = vector.broadcast %318 : vector<8x1xf32> to vector<8x128xf32>
    %330 = arith.subf %24, %329 : vector<8x128xf32>
    %331 = vector.broadcast %328 : vector<8x1xf32> to vector<8x128xf32>
    %332 = arith.mulf %330, %331 : vector<8x128xf32>
    %cst_96 = arith.constant dense<0.000000e+00> : vector<8xf32>
    %333 = vector.multi_reduction <add>, %314, %cst_96 [1] : vector<8x128xf32> to vector<8xf32>
    %334 = vector.shape_cast %333 : vector<8xf32> to vector<8x1xf32>
    %cst_97 = arith.constant 1.280000e+02 : f32
    %335 = vector.broadcast %cst_97 : f32 to vector<8x1xf32>
    %336 = arith.divf %334, %335 : vector<8x1xf32>
    %337 = vector.broadcast %336 : vector<8x1xf32> to vector<8x128xf32>
    %338 = arith.subf %314, %337 : vector<8x128xf32>
    %339 = arith.mulf %314, %332 : vector<8x128xf32>
    %cst_98 = arith.constant dense<0.000000e+00> : vector<8xf32>
    %340 = vector.multi_reduction <add>, %339, %cst_98 [1] : vector<8x128xf32> to vector<8xf32>
    %341 = vector.shape_cast %340 : vector<8xf32> to vector<8x1xf32>
    %cst_99 = arith.constant 1.280000e+02 : f32
    %342 = vector.broadcast %cst_99 : f32 to vector<8x1xf32>
    %343 = arith.divf %341, %342 : vector<8x1xf32>
    %344 = vector.broadcast %343 : vector<8x1xf32> to vector<8x128xf32>
    %345 = arith.mulf %332, %344 : vector<8x128xf32>
    %346 = arith.subf %338, %345 : vector<8x128xf32>
    %347 = vector.broadcast %328 : vector<8x1xf32> to vector<8x128xf32>
    %348 = arith.mulf %347, %346 : vector<8x128xf32>
    %349 = arith.truncf %348 : vector<8x128xf32> to vector<8x128xbf16>
    %c0_100 = arith.constant 0 : index
    %c0_101 = arith.constant 0 : index
    %c0_102 = arith.constant 0 : index
    %350 = vector.load %arg5[%c0_100, %c0_101, %c0_102] : memref<1x128x128xbf16, #tpu.memory_space<vmem>>, vector<1x128x128xbf16>
    %351 = vector.shape_cast %350 : vector<1x128x128xbf16> to vector<128x128xbf16>
    %cst_103 = arith.constant dense<0.000000e+00> : vector<8x128xf32>
    %352 = tpu.matmul %349, %351, %cst_103 {dimension_numbers = #tpu.dot_dimension_numbers<[1], [1], [0], [0], [0, 0, 1, 0], [], []>} : vector<8x128xbf16>, vector<128x128xbf16>, vector<8x128xf32> -> vector<8x128xf32>
    %c0_104 = arith.constant 0 : index
    %c0_105 = arith.constant 0 : index
    %353 = vector.load %arg16[%c0_104, %c0_105] : memref<8x128xf32, #tpu.memory_space<vmem>>, vector<8x128xf32>
    tpu.vector_store %arg16[%c0_104, %c0_105], %352 {strides = array<i32>} : memref<8x128xf32, #tpu.memory_space<vmem>>, vector<8x128xf32>,
    return
  }
  func.func @transform_0(%arg0: i32, %arg1: memref<2xi32, #tpu.memory_space<smem>>, %arg2: memref<2xi32, #tpu.memory_space<smem>>) -> (i32, i32) {
    %c0_i32 = arith.constant 0 : i32
    %c0_i32_0 = arith.constant 0 : i32
    return %arg0, %c0_i32 : i32, i32
  }
  func.func @transform_1(%arg0: i32, %arg1: memref<2xi32, #tpu.memory_space<smem>>, %arg2: memref<2xi32, #tpu.memory_space<smem>>) -> (i32, i32) {
    %c0_i32 = arith.constant 0 : i32
    %c0_i32_0 = arith.constant 0 : i32
    return %arg0, %c0_i32 : i32, i32
  }
  func.func @transform_2(%arg0: i32, %arg1: memref<2xi32, #tpu.memory_space<smem>>, %arg2: memref<2xi32, #tpu.memory_space<smem>>) -> (i32, i32, i32) {
    %0 = arith.index_cast %arg0 : i32 to index
    %1 = memref.load %arg1[%0] : memref<2xi32, #tpu.memory_space<smem>>
    %c0_i32 = arith.constant 0 : i32
    %c0_i32_0 = arith.constant 0 : i32
    %c0_i32_1 = arith.constant 0 : i32
    return %1, %c0_i32, %c0_i32_0 : i32, i32, i32
  }
  func.func @transform_3(%arg0: i32, %arg1: memref<2xi32, #tpu.memory_space<smem>>, %arg2: memref<2xi32, #tpu.memory_space<smem>>) -> (i32, i32, i32) {
    %0 = arith.index_cast %arg0 : i32 to index
    %1 = memref.load %arg1[%0] : memref<2xi32, #tpu.memory_space<smem>>
    %c0_i32 = arith.constant 0 : i32
    %c0_i32_0 = arith.constant 0 : i32
    %c0_i32_1 = arith.constant 0 : i32
    return %1, %c0_i32, %c0_i32_0 : i32, i32, i32
  }
  func.func @transform_4(%arg0: i32, %arg1: memref<2xi32, #tpu.memory_space<smem>>, %arg2: memref<2xi32, #tpu.memory_space<smem>>) -> (i32, i32, i32) {
    %0 = arith.index_cast %arg0 : i32 to index
    %1 = memref.load %arg1[%0] : memref<2xi32, #tpu.memory_space<smem>>
    %c0_i32 = arith.constant 0 : i32
    %c0_i32_0 = arith.constant 0 : i32
    %c0_i32_1 = arith.constant 0 : i32
    return %1, %c0_i32, %c0_i32_0 : i32, i32, i32
  }
  func.func @transform_5(%arg0: i32, %arg1: memref<2xi32, #tpu.memory_space<smem>>, %arg2: memref<2xi32, #tpu.memory_space<smem>>) -> (i32, i32, i32) {
    %0 = arith.index_cast %arg0 : i32 to index
    %1 = memref.load %arg1[%0] : memref<2xi32, #tpu.memory_space<smem>>
    %c0_i32 = arith.constant 0 : i32
    %c0_i32_0 = arith.constant 0 : i32
    %c0_i32_1 = arith.constant 0 : i32
    return %1, %c0_i32, %c0_i32_0 : i32, i32, i32
  }
  func.func @transform_6(%arg0: i32, %arg1: memref<2xi32, #tpu.memory_space<smem>>, %arg2: memref<2xi32, #tpu.memory_space<smem>>) -> (i32, i32, i32) {
    %0 = arith.index_cast %arg0 : i32 to index
    %1 = memref.load %arg1[%0] : memref<2xi32, #tpu.memory_space<smem>>
    %c0_i32 = arith.constant 0 : i32
    %c0_i32_0 = arith.constant 0 : i32
    %c0_i32_1 = arith.constant 0 : i32
    return %1, %c0_i32, %c0_i32_0 : i32, i32, i32
  }
  func.func @transform_7(%arg0: i32, %arg1: memref<2xi32, #tpu.memory_space<smem>>, %arg2: memref<2xi32, #tpu.memory_space<smem>>) -> (i32, i32, i32) {
    %0 = arith.index_cast %arg0 : i32 to index
    %1 = memref.load %arg1[%0] : memref<2xi32, #tpu.memory_space<smem>>
    %c0_i32 = arith.constant 0 : i32
    %c0_i32_0 = arith.constant 0 : i32
    %c0_i32_1 = arith.constant 0 : i32
    return %1, %c0_i32, %c0_i32_0 : i32, i32, i32
  }
  func.func @transform_8(%arg0: i32, %arg1: memref<2xi32, #tpu.memory_space<smem>>, %arg2: memref<2xi32, #tpu.memory_space<smem>>) -> (i32, i32, i32) {
    %0 = arith.index_cast %arg0 : i32 to index
    %1 = memref.load %arg1[%0] : memref<2xi32, #tpu.memory_space<smem>>
    %c0_i32 = arith.constant 0 : i32
    %c0_i32_0 = arith.constant 0 : i32
    %c0_i32_1 = arith.constant 0 : i32
    return %1, %c0_i32, %c0_i32_0 : i32, i32, i32
  }
  func.func @transform_9(%arg0: i32, %arg1: memref<2xi32, #tpu.memory_space<smem>>, %arg2: memref<2xi32, #tpu.memory_space<smem>>) -> (i32, i32, i32) {
    %0 = arith.index_cast %arg0 : i32 to index
    %1 = memref.load %arg1[%0] : memref<2xi32, #tpu.memory_space<smem>>
    %c0_i32 = arith.constant 0 : i32
    %c0_i32_0 = arith.constant 0 : i32
    %c0_i32_1 = arith.constant 0 : i32
    return %1, %c0_i32, %c0_i32_0 : i32, i32, i32
  }
  func.func @transform_10(%arg0: i32, %arg1: memref<2xi32, #tpu.memory_space<smem>>, %arg2: memref<2xi32, #tpu.memory_space<smem>>) -> (i32, i32, i32) {
    %0 = arith.index_cast %arg0 : i32 to index
    %1 = memref.load %arg1[%0] : memref<2xi32, #tpu.memory_space<smem>>
    %c0_i32 = arith.constant 0 : i32
    %c0_i32_0 = arith.constant 0 : i32
    %c0_i32_1 = arith.constant 0 : i32
    return %1, %c0_i32, %c0_i32_0 : i32, i32, i32
  }
  func.func @transform_11(%arg0: i32, %arg1: memref<2xi32, #tpu.memory_space<smem>>, %arg2: memref<2xi32, #tpu.memory_space<smem>>) -> (i32, i32, i32) {
    %0 = arith.index_cast %arg0 : i32 to index
    %1 = memref.load %arg1[%0] : memref<2xi32, #tpu.memory_space<smem>>
    %c0_i32 = arith.constant 0 : i32
    %c0_i32_0 = arith.constant 0 : i32
    %c0_i32_1 = arith.constant 0 : i32
    return %1, %c0_i32, %c0_i32_0 : i32, i32, i32
  }
  func.func @transform_12(%arg0: i32, %arg1: memref<2xi32, #tpu.memory_space<smem>>, %arg2: memref<2xi32, #tpu.memory_space<smem>>) -> (i32, i32, i32) {
    %0 = arith.index_cast %arg0 : i32 to index
    %1 = memref.load %arg1[%0] : memref<2xi32, #tpu.memory_space<smem>>
    %c0_i32 = arith.constant 0 : i32
    %c0_i32_0 = arith.constant 0 : i32
    %c0_i32_1 = arith.constant 0 : i32
    return %1, %c0_i32, %c0_i32_0 : i32, i32, i32
  }
  func.func @transform_13(%arg0: i32, %arg1: memref<2xi32, #tpu.memory_space<smem>>, %arg2: memref<2xi32, #tpu.memory_space<smem>>) -> (i32, i32) {
    %c0_i32 = arith.constant 0 : i32
    %c0_i32_0 = arith.constant 0 : i32
    return %arg0, %c0_i32 : i32, i32
  }
}

module attributes {stable_mosaic.version = 11 : i64} {
  func.func @_mlp_bwd_kernel(%arg0: i32, %arg1: memref<2xi32, #tpu.memory_space<smem>>, %arg2: memref<2xi32, #tpu.memory_space<smem>>, %arg3: memref<8x128xf32, #tpu.memory_space<vmem>>, %arg4: memref<8x8xf32, #tpu.memory_space<vmem>>, %arg5: memref<1x128x128xbf16, #tpu.memory_space<vmem>>, %arg6: memref<1x1x128xf32, #tpu.memory_space<vmem>>, %arg7: memref<1x128x128xbf16, #tpu.memory_space<vmem>>, %arg8: memref<1x1x128xf32, #tpu.memory_space<vmem>>, %arg9: memref<1x128x128xbf16, #tpu.memory_space<vmem>>, %arg10: memref<1x1x128xf32, #tpu.memory_space<vmem>>, %arg11: memref<1x128x8xbf16, #tpu.memory_space<vmem>>, %arg12: memref<1x3x128xf32, #tpu.memory_space<vmem>>, %arg13: memref<1x3x128xf32, #tpu.memory_space<vmem>>, %arg14: memref<1x3x128xf32, #tpu.memory_space<vmem>>, %arg15: memref<1x3x128xf32, #tpu.memory_space<vmem>>, %arg16: memref<8x128xf32, #tpu.memory_space<vmem>>) attributes {dimension_semantics = [#tpu.dimension_semantics<parallel>], iteration_bounds = array<i64: 2>, scalar_prefetch = 2 : i64, scratch_operands = 0 : i64, tpu.core_type = #tpu.core_type<tc>, window_params = [{transform_indices = @transform_0, window_bounds = array<i64: 8, 128>}, {transform_indices = @transform_1, window_bounds = array<i64: 8, 8>}, {transform_indices = @transform_2, window_bounds = array<i64: 1, 128, 128>}, {transform_indices = @transform_3, window_bounds = array<i64: 1, 1, 128>}, {transform_indices = @transform_4, window_bounds = array<i64: 1, 128, 128>}, {transform_indices = @transform_5, window_bounds = array<i64: 1, 1, 128>}, {transform_indices = @transform_6, window_bounds = array<i64: 1, 128, 128>}, {transform_indices = @transform_7, window_bounds = array<i64: 1, 1, 128>}, {transform_indices = @transform_8, window_bounds = array<i64: 1, 128, 8>}, {transform_indices = @transform_9, window_bounds = array<i64: 1, 3, 128>}, {transform_indices = @transform_10, window_bounds = array<i64: 1, 3, 128>}, {transform_indices = @transform_11, window_bounds = array<i64: 1, 3, 128>}, {transform_indices = @transform_12, window_bounds = array<i64: 1, 3, 128>}, {transform_indices = @transform_13, window_bounds = array<i64: 8, 128>}]} {
    %c0 = arith.constant 0 : index
    %c0_0 = arith.constant 0 : index
    %c0_1 = arith.constant 0 : index
    %0 = vector.load %arg12[%c0, %c0_0, %c0_1] : memref<1x3x128xf32, #tpu.memory_space<vmem>>, vector<1x3x128xf32>
    %1 = vector.shape_cast %0 : vector<1x3x128xf32> to vector<3x128xf32>
    %c0_2 = arith.constant 0 : index
    %c0_3 = arith.constant 0 : index
    %c0_4 = arith.constant 0 : index
    %2 = vector.load %arg13[%c0_2, %c0_3, %c0_4] : memref<1x3x128xf32, #tpu.memory_space<vmem>>, vector<1x3x128xf32>
    %3 = vector.shape_cast %2 : vector<1x3x128xf32> to vector<3x128xf32>
    %c0_5 = arith.constant 0 : index
    %c0_6 = arith.constant 0 : index
    %c0_7 = arith.constant 0 : index
    %4 = vector.load %arg14[%c0_5, %c0_6, %c0_7] : memref<1x3x128xf32, #tpu.memory_space<vmem>>, vector<1x3x128xf32>
    %5 = vector.shape_cast %4 : vector<1x3x128xf32> to vector<3x128xf32>
    %c0_8 = arith.constant 0 : index
    %c0_9 = arith.constant 0 : index
    %c0_10 = arith.constant 0 : index
    %6 = vector.load %arg15[%c0_8, %c0_9, %c0_10] : memref<1x3x128xf32, #tpu.memory_space<vmem>>, vector<1x3x128xf32>
    %7 = vector.shape_cast %6 : vector<1x3x128xf32> to vector<3x128xf32>
    %c0_11 = arith.constant 0 : index
    %c0_12 = arith.constant 0 : index
    %8 = vector.load %arg3[%c0_11, %c0_12] : memref<8x128xf32, #tpu.memory_space<vmem>>, vector<8x128xf32>
    %c0_13 = arith.constant 0 : index
    %c0_14 = arith.constant 0 : index
    %c0_15 = arith.constant 0 : index
    %9 = vector.load %arg5[%c0_13, %c0_14, %c0_15] : memref<1x128x128xbf16, #tpu.memory_space<vmem>>, vector<1x128x128xbf16>
    %10 = vector.shape_cast %9 : vector<1x128x128xbf16> to vector<128x128xbf16>
    %c0_16 = arith.constant 0 : index
    %c0_17 = arith.constant 0 : index
    %c0_18 = arith.constant 0 : index
    %11 = vector.load %arg6[%c0_16, %c0_17, %c0_18] : memref<1x1x128xf32, #tpu.memory_space<vmem>>, vector<1x1x128xf32>
    %12 = vector.shape_cast %11 : vector<1x1x128xf32> to vector<1x128xf32>
    %c0_19 = arith.constant 0 : index
    %c0_20 = arith.constant 0 : index
    %c0_21 = arith.constant 0 : index
    %13 = vector.load %arg7[%c0_19, %c0_20, %c0_21] : memref<1x128x128xbf16, #tpu.memory_space<vmem>>, vector<1x128x128xbf16>
    %14 = vector.shape_cast %13 : vector<1x128x128xbf16> to vector<128x128xbf16>
    %c0_22 = arith.constant 0 : index
    %c0_23 = arith.constant 0 : index
    %c0_24 = arith.constant 0 : index
    %15 = vector.load %arg8[%c0_22, %c0_23, %c0_24] : memref<1x1x128xf32, #tpu.memory_space<vmem>>, vector<1x1x128xf32>
    %16 = vector.shape_cast %15 : vector<1x1x128xf32> to vector<1x128xf32>
    %c0_25 = arith.constant 0 : index
    %c0_26 = arith.constant 0 : index
    %c0_27 = arith.constant 0 : index
    %17 = vector.load %arg9[%c0_25, %c0_26, %c0_27] : memref<1x128x128xbf16, #tpu.memory_space<vmem>>, vector<1x128x128xbf16>
    %18 = vector.shape_cast %17 : vector<1x128x128xbf16> to vector<128x128xbf16>
    %c0_28 = arith.constant 0 : index
    %c0_29 = arith.constant 0 : index
    %c0_30 = arith.constant 0 : index
    %19 = vector.load %arg10[%c0_28, %c0_29, %c0_30] : memref<1x1x128xf32, #tpu.memory_space<vmem>>, vector<1x1x128xf32>
    %20 = vector.shape_cast %19 : vector<1x1x128xf32> to vector<1x128xf32>
    %21 = arith.truncf %8 : vector<8x128xf32> to vector<8x128xbf16>
    %cst = arith.constant dense<0.000000e+00> : vector<8x128xf32>
    %22 = tpu.matmul %21, %10, %cst {dimension_numbers = #tpu.dot_dimension_numbers<[1], [0], [0], [1], [0, 0, 1, 1], [], []>} : vector<8x128xbf16>, vector<128x128xbf16>, vector<8x128xf32> -> vector<8x128xf32>
    %23 = vector.broadcast %12 : vector<1x128xf32> to vector<8x128xf32>
    %24 = arith.addf %22, %23 : vector<8x128xf32>
    %cst_31 = arith.constant dense<0.000000e+00> : vector<8xf32>
    %25 = vector.multi_reduction <add>, %24, %cst_31 [1] : vector<8x128xf32> to vector<8xf32>
    %26 = vector.shape_cast %25 : vector<8xf32> to vector<8x1xf32>
    %cst_32 = arith.constant 1.280000e+02 : f32
    %27 = vector.broadcast %cst_32 : f32 to vector<8x1xf32>
    %28 = arith.divf %26, %27 : vector<8x1xf32>
    %29 = vector.broadcast %28 : vector<8x1xf32> to vector<8x128xf32>
    %30 = arith.subf %24, %29 : vector<8x128xf32>
    %31 = arith.mulf %30, %30 : vector<8x128xf32>
    %cst_33 = arith.constant dense<0.000000e+00> : vector<8xf32>
    %32 = vector.multi_reduction <add>, %31, %cst_33 [1] : vector<8x128xf32> to vector<8xf32>
    %33 = vector.shape_cast %32 : vector<8xf32> to vector<8x1xf32>
    %cst_34 = arith.constant 1.280000e+02 : f32
    %34 = vector.broadcast %cst_34 : f32 to vector<8x1xf32>
    %35 = arith.divf %33, %34 : vector<8x1xf32>
    %36 = vector.broadcast %28 : vector<8x1xf32> to vector<8x128xf32>
    %37 = arith.subf %24, %36 : vector<8x128xf32>
    %cst_35 = arith.constant 9.99999974E-6 : f32
    %38 = vector.broadcast %cst_35 : f32 to vector<8x1xf32>
    %39 = arith.addf %35, %38 : vector<8x1xf32>
    %40 = math.rsqrt %39 : vector<8x1xf32>
    %41 = vector.broadcast %40 : vector<8x1xf32> to vector<8x128xf32>
    %42 = arith.mulf %37, %41 : vector<8x128xf32>
    %43 = vector.extract_strided_slice %1 {offsets = [0, 0], sizes = [1, 128], strides = [1, 1]} : vector<3x128xf32> to vector<1x128xf32>
    %44 = vector.shape_cast %43 : vector<1x128xf32> to vector<128xf32>
    %45 = vector.shape_cast %44 : vector<128xf32> to vector<1x128xf32>
    %46 = vector.broadcast %45 : vector<1x128xf32> to vector<8x128xf32>
    %47 = arith.mulf %42, %46 : vector<8x128xf32>
    %48 = vector.extract_strided_slice %3 {offsets = [0, 0], sizes = [1, 128], strides = [1, 1]} : vector<3x128xf32> to vector<1x128xf32>
    %49 = vector.shape_cast %48 : vector<1x128xf32> to vector<128xf32>
    %50 = vector.shape_cast %49 : vector<128xf32> to vector<1x128xf32>
    %51 = vector.broadcast %50 : vector<1x128xf32> to vector<8x128xf32>
    %52 = arith.addf %47, %51 : vector<8x128xf32>
    %53 = vector.extract_strided_slice %5 {offsets = [0, 0], sizes = [1, 128], strides = [1, 1]} : vector<3x128xf32> to vector<1x128xf32>
    %54 = vector.shape_cast %53 : vector<1x128xf32> to vector<128xf32>
    %55 = vector.extract_strided_slice %7 {offsets = [0, 0], sizes = [1, 128], strides = [1, 1]} : vector<3x128xf32> to vector<1x128xf32>
    %56 = vector.shape_cast %55 : vector<1x128xf32> to vector<128xf32>
    %57 = vector.shape_cast %56 : vector<128xf32> to vector<1x128xf32>
    %58 = vector.broadcast %57 : vector<1x128xf32> to vector<8x128xf32>
    %59 = arith.mulf %58, %52 : vector<8x128xf32>
    %60 = vector.shape_cast %54 : vector<128xf32> to vector<1x128xf32>
    %61 = vector.broadcast %60 : vector<1x128xf32> to vector<8x128xf32>
    %62 = arith.mulf %61, %59 : vector<8x128xf32>
    %63 = arith.negf %59 : vector<8x128xf32>
    %64 = math.exp %63 : vector<8x128xf32>
    %cst_36 = arith.constant 1.000000e+00 : f32
    %65 = vector.broadcast %cst_36 : f32 to vector<8x128xf32>
    %66 = arith.addf %65, %64 : vector<8x128xf32>
    %67 = arith.divf %65, %66 : vector<8x128xf32>
    %68 = arith.mulf %62, %67 : vector<8x128xf32>
    %69 = arith.truncf %68 : vector<8x128xf32> to vector<8x128xbf16>
    %cst_37 = arith.constant dense<0.000000e+00> : vector<8x128xf32>
    %70 = tpu.matmul %69, %14, %cst_37 {dimension_numbers = #tpu.dot_dimension_numbers<[1], [0], [0], [1], [0, 0, 1, 1], [], []>} : vector<8x128xbf16>, vector<128x128xbf16>, vector<8x128xf32> -> vector<8x128xf32>
    %71 = vector.broadcast %16 : vector<1x128xf32> to vector<8x128xf32>
    %72 = arith.addf %70, %71 : vector<8x128xf32>
    %cst_38 = arith.constant dense<0.000000e+00> : vector<8xf32>
    %73 = vector.multi_reduction <add>, %72, %cst_38 [1] : vector<8x128xf32> to vector<8xf32>
    %74 = vector.shape_cast %73 : vector<8xf32> to vector<8x1xf32>
    %cst_39 = arith.constant 1.280000e+02 : f32
    %75 = vector.broadcast %cst_39 : f32 to vector<8x1xf32>
    %76 = arith.divf %74, %75 : vector<8x1xf32>
    %77 = vector.broadcast %76 : vector<8x1xf32> to vector<8x128xf32>
    %78 = arith.subf %72, %77 : vector<8x128xf32>
    %79 = arith.mulf %78, %78 : vector<8x128xf32>
    %cst_40 = arith.constant dense<0.000000e+00> : vector<8xf32>
    %80 = vector.multi_reduction <add>, %79, %cst_40 [1] : vector<8x128xf32> to vector<8xf32>
    %81 = vector.shape_cast %80 : vector<8xf32> to vector<8x1xf32>
    %cst_41 = arith.constant 1.280000e+02 : f32
    %82 = vector.broadcast %cst_41 : f32 to vector<8x1xf32>
    %83 = arith.divf %81, %82 : vector<8x1xf32>
    %84 = vector.broadcast %76 : vector<8x1xf32> to vector<8x128xf32>
    %85 = arith.subf %72, %84 : vector<8x128xf32>
    %cst_42 = arith.constant 9.99999974E-6 : f32
    %86 = vector.broadcast %cst_42 : f32 to vector<8x1xf32>
    %87 = arith.addf %83, %86 : vector<8x1xf32>
    %88 = math.rsqrt %87 : vector<8x1xf32>
    %89 = vector.broadcast %88 : vector<8x1xf32> to vector<8x128xf32>
    %90 = arith.mulf %85, %89 : vector<8x128xf32>
    %91 = vector.extract_strided_slice %1 {offsets = [1, 0], sizes = [1, 128], strides = [1, 1]} : vector<3x128xf32> to vector<1x128xf32>
    %92 = vector.shape_cast %91 : vector<1x128xf32> to vector<128xf32>
    %93 = vector.shape_cast %92 : vector<128xf32> to vector<1x128xf32>
    %94 = vector.broadcast %93 : vector<1x128xf32> to vector<8x128xf32>
    %95 = arith.mulf %90, %94 : vector<8x128xf32>
    %96 = vector.extract_strided_slice %3 {offsets = [1, 0], sizes = [1, 128], strides = [1, 1]} : vector<3x128xf32> to vector<1x128xf32>
    %97 = vector.shape_cast %96 : vector<1x128xf32> to vector<128xf32>
    %98 = vector.shape_cast %97 : vector<128xf32> to vector<1x128xf32>
    %99 = vector.broadcast %98 : vector<1x128xf32> to vector<8x128xf32>
    %100 = arith.addf %95, %99 : vector<8x128xf32>
    %101 = vector.extract_strided_slice %5 {offsets = [1, 0], sizes = [1, 128], strides = [1, 1]} : vector<3x128xf32> to vector<1x128xf32>
    %102 = vector.shape_cast %101 : vector<1x128xf32> to vector<128xf32>
    %103 = vector.extract_strided_slice %7 {offsets = [1, 0], sizes = [1, 128], strides = [1, 1]} : vector<3x128xf32> to vector<1x128xf32>
    %104 = vector.shape_cast %103 : vector<1x128xf32> to vector<128xf32>
    %105 = vector.shape_cast %104 : vector<128xf32> to vector<1x128xf32>
    %106 = vector.broadcast %105 : vector<1x128xf32> to vector<8x128xf32>
    %107 = arith.mulf %106, %100 : vector<8x128xf32>
    %108 = vector.shape_cast %102 : vector<128xf32> to vector<1x128xf32>
    %109 = vector.broadcast %108 : vector<1x128xf32> to vector<8x128xf32>
    %110 = arith.mulf %109, %107 : vector<8x128xf32>
    %111 = arith.negf %107 : vector<8x128xf32>
    %112 = math.exp %111 : vector<8x128xf32>
    %cst_43 = arith.constant 1.000000e+00 : f32
    %113 = vector.broadcast %cst_43 : f32 to vector<8x128xf32>
    %114 = arith.addf %113, %112 : vector<8x128xf32>
    %115 = arith.divf %113, %114 : vector<8x128xf32>
    %116 = arith.mulf %110, %115 : vector<8x128xf32>
    %117 = arith.truncf %116 : vector<8x128xf32> to vector<8x128xbf16>
    %cst_44 = arith.constant dense<0.000000e+00> : vector<8x128xf32>
    %118 = tpu.matmul %117, %18, %cst_44 {dimension_numbers = #tpu.dot_dimension_numbers<[1], [0], [0], [1], [0, 0, 1, 1], [], []>} : vector<8x128xbf16>, vector<128x128xbf16>, vector<8x128xf32> -> vector<8x128xf32>
    %119 = vector.broadcast %20 : vector<1x128xf32> to vector<8x128xf32>
    %120 = arith.addf %118, %119 : vector<8x128xf32>
    %cst_45 = arith.constant dense<0.000000e+00> : vector<8xf32>
    %121 = vector.multi_reduction <add>, %120, %cst_45 [1] : vector<8x128xf32> to vector<8xf32>
    %122 = vector.shape_cast %121 : vector<8xf32> to vector<8x1xf32>
    %cst_46 = arith.constant 1.280000e+02 : f32
    %123 = vector.broadcast %cst_46 : f32 to vector<8x1xf32>
    %124 = arith.divf %122, %123 : vector<8x1xf32>
    %125 = vector.broadcast %124 : vector<8x1xf32> to vector<8x128xf32>
    %126 = arith.subf %120, %125 : vector<8x128xf32>
    %127 = arith.mulf %126, %126 : vector<8x128xf32>
    %cst_47 = arith.constant dense<0.000000e+00> : vector<8xf32>
    %128 = vector.multi_reduction <add>, %127, %cst_47 [1] : vector<8x128xf32> to vector<8xf32>
    %129 = vector.shape_cast %128 : vector<8xf32> to vector<8x1xf32>
    %cst_48 = arith.constant 1.280000e+02 : f32
    %130 = vector.broadcast %cst_48 : f32 to vector<8x1xf32>
    %131 = arith.divf %129, %130 : vector<8x1xf32>
    %132 = vector.broadcast %124 : vector<8x1xf32> to vector<8x128xf32>
    %133 = arith.subf %120, %132 : vector<8x128xf32>
    %cst_49 = arith.constant 9.99999974E-6 : f32
    %134 = vector.broadcast %cst_49 : f32 to vector<8x1xf32>
    %135 = arith.addf %131, %134 : vector<8x1xf32>
    %136 = math.rsqrt %135 : vector<8x1xf32>
    %137 = vector.broadcast %136 : vector<8x1xf32> to vector<8x128xf32>
    %138 = arith.mulf %133, %137 : vector<8x128xf32>
    %139 = vector.extract_strided_slice %1 {offsets = [2, 0], sizes = [1, 128], strides = [1, 1]} : vector<3x128xf32> to vector<1x128xf32>
    %140 = vector.shape_cast %139 : vector<1x128xf32> to vector<128xf32>
    %141 = vector.shape_cast %140 : vector<128xf32> to vector<1x128xf32>
    %142 = vector.broadcast %141 : vector<1x128xf32> to vector<8x128xf32>
    %143 = arith.mulf %138, %142 : vector<8x128xf32>
    %144 = vector.extract_strided_slice %3 {offsets = [2, 0], sizes = [1, 128], strides = [1, 1]} : vector<3x128xf32> to vector<1x128xf32>
    %145 = vector.shape_cast %144 : vector<1x128xf32> to vector<128xf32>
    %146 = vector.shape_cast %145 : vector<128xf32> to vector<1x128xf32>
    %147 = vector.broadcast %146 : vector<1x128xf32> to vector<8x128xf32>
    %148 = arith.addf %143, %147 : vector<8x128xf32>
    %c0_50 = arith.constant 0 : index
    %c0_51 = arith.constant 0 : index
    %149 = vector.load %arg4[%c0_50, %c0_51] : memref<8x8xf32, #tpu.memory_space<vmem>>, vector<8x8xf32>
    %150 = arith.truncf %149 : vector<8x8xf32> to vector<8x8xbf16>
    %c0_52 = arith.constant 0 : index
    %c0_53 = arith.constant 0 : index
    %c0_54 = arith.constant 0 : index
    %151 = vector.load %arg11[%c0_52, %c0_53, %c0_54] : memref<1x128x8xbf16, #tpu.memory_space<vmem>>, vector<1x128x8xbf16>
    %152 = vector.shape_cast %151 : vector<1x128x8xbf16> to vector<128x8xbf16>
    %cst_55 = arith.constant dense<0.000000e+00> : vector<8x128xf32>
    %153 = tpu.matmul %150, %152, %cst_55 {dimension_numbers = #tpu.dot_dimension_numbers<[1], [1], [0], [0], [0, 0, 1, 0], [], []>} : vector<8x8xbf16>, vector<128x8xbf16>, vector<8x128xf32> -> vector<8x128xf32>
    %154 = vector.extract_strided_slice %5 {offsets = [2, 0], sizes = [1, 128], strides = [1, 1]} : vector<3x128xf32> to vector<1x128xf32>
    %155 = vector.shape_cast %154 : vector<1x128xf32> to vector<128xf32>
    %156 = vector.extract_strided_slice %7 {offsets = [2, 0], sizes = [1, 128], strides = [1, 1]} : vector<3x128xf32> to vector<1x128xf32>
    %157 = vector.shape_cast %156 : vector<1x128xf32> to vector<128xf32>
    %158 = vector.shape_cast %157 : vector<128xf32> to vector<1x128xf32>
    %159 = vector.broadcast %158 : vector<1x128xf32> to vector<8x128xf32>
    %160 = arith.mulf %159, %148 : vector<8x128xf32>
    %161 = arith.negf %160 : vector<8x128xf32>
    %162 = math.exp %161 : vector<8x128xf32>
    %cst_56 = arith.constant 1.000000e+00 : f32
    %163 = vector.broadcast %cst_56 : f32 to vector<8x128xf32>
    %164 = arith.addf %163, %162 : vector<8x128xf32>
    %165 = arith.divf %163, %164 : vector<8x128xf32>
    %166 = arith.mulf %155, %157 : vector<128xf32>
    %167 = vector.shape_cast %166 : vector<128xf32> to vector<1x128xf32>
    %168 = vector.broadcast %167 : vector<1x128xf32> to vector<8x128xf32>
    %169 = arith.mulf %168, %165 : vector<8x128xf32>
    %cst_57 = arith.constant 1.000000e+00 : f32
    %170 = vector.broadcast %cst_57 : f32 to vector<8x128xf32>
    %171 = arith.subf %170, %165 : vector<8x128xf32>
    %172 = arith.mulf %160, %171 : vector<8x128xf32>
    %cst_58 = arith.constant 1.000000e+00 : f32
    %173 = vector.broadcast %cst_58 : f32 to vector<8x128xf32>
    %174 = arith.addf %173, %172 : vector<8x128xf32>
    %175 = arith.mulf %169, %174 : vector<8x128xf32>
    %176 = arith.mulf %153, %175 : vector<8x128xf32>
    %177 = vector.extract_strided_slice %1 {offsets = [2, 0], sizes = [1, 128], strides = [1, 1]} : vector<3x128xf32> to vector<1x128xf32>
    %178 = vector.shape_cast %177 : vector<1x128xf32> to vector<128xf32>
    %179 = vector.shape_cast %178 : vector<128xf32> to vector<1x128xf32>
    %180 = vector.broadcast %179 : vector<1x128xf32> to vector<8x128xf32>
    %181 = arith.mulf %176, %180 : vector<8x128xf32>
    %cst_59 = arith.constant dense<0.000000e+00> : vector<8xf32>
    %182 = vector.multi_reduction <add>, %120, %cst_59 [1] : vector<8x128xf32> to vector<8xf32>
    %183 = vector.shape_cast %182 : vector<8xf32> to vector<8x1xf32>
    %cst_60 = arith.constant 1.280000e+02 : f32
    %184 = vector.broadcast %cst_60 : f32 to vector<8x1xf32>
    %185 = arith.divf %183, %184 : vector<8x1xf32>
    %186 = vector.broadcast %185 : vector<8x1xf32> to vector<8x128xf32>
    %187 = arith.subf %120, %186 : vector<8x128xf32>
    %188 = arith.mulf %187, %187 : vector<8x128xf32>
    %cst_61 = arith.constant dense<0.000000e+00> : vector<8xf32>
    %189 = vector.multi_reduction <add>, %188, %cst_61 [1] : vector<8x128xf32> to vector<8xf32>
    %190 = vector.shape_cast %189 : vector<8xf32> to vector<8x1xf32>
    %cst_62 = arith.constant 1.280000e+02 : f32
    %191 = vector.broadcast %cst_62 : f32 to vector<8x1xf32>
    %192 = arith.divf %190, %191 : vector<8x1xf32>
    %cst_63 = arith.constant 9.99999974E-6 : f32
    %193 = vector.broadcast %cst_63 : f32 to vector<8x1xf32>
    %194 = arith.addf %192, %193 : vector<8x1xf32>
    %195 = math.rsqrt %194 : vector<8x1xf32>
    %196 = vector.broadcast %185 : vector<8x1xf32> to vector<8x128xf32>
    %197 = arith.subf %120, %196 : vector<8x128xf32>
    %198 = vector.broadcast %195 : vector<8x1xf32> to vector<8x128xf32>
    %199 = arith.mulf %197, %198 : vector<8x128xf32>
    %cst_64 = arith.constant dense<0.000000e+00> : vector<8xf32>
    %200 = vector.multi_reduction <add>, %181, %cst_64 [1] : vector<8x128xf32> to vector<8xf32>
    %201 = vector.shape_cast %200 : vector<8xf32> to vector<8x1xf32>
    %cst_65 = arith.constant 1.280000e+02 : f32
    %202 = vector.broadcast %cst_65 : f32 to vector<8x1xf32>
    %203 = arith.divf %201, %202 : vector<8x1xf32>
    %204 = vector.broadcast %203 : vector<8x1xf32> to vector<8x128xf32>
    %205 = arith.subf %181, %204 : vector<8x128xf32>
    %206 = arith.mulf %181, %199 : vector<8x128xf32>
    %cst_66 = arith.constant dense<0.000000e+00> : vector<8xf32>
    %207 = vector.multi_reduction <add>, %206, %cst_66 [1] : vector<8x128xf32> to vector<8xf32>
    %208 = vector.shape_cast %207 : vector<8xf32> to vector<8x1xf32>
    %cst_67 = arith.constant 1.280000e+02 : f32
    %209 = vector.broadcast %cst_67 : f32 to vector<8x1xf32>
    %210 = arith.divf %208, %209 : vector<8x1xf32>
    %211 = vector.broadcast %210 : vector<8x1xf32> to vector<8x128xf32>
    %212 = arith.mulf %199, %211 : vector<8x128xf32>
    %213 = arith.subf %205, %212 : vector<8x128xf32>
    %214 = vector.broadcast %195 : vector<8x1xf32> to vector<8x128xf32>
    %215 = arith.mulf %214, %213 : vector<8x128xf32>
    %216 = arith.truncf %215 : vector<8x128xf32> to vector<8x128xbf16>
    %c0_68 = arith.constant 0 : index
    %c0_69 = arith.constant 0 : index
    %c0_70 = arith.constant 0 : index
    %217 = vector.load %arg9[%c0_68, %c0_69, %c0_70] : memref<1x128x128xbf16, #tpu.memory_space<vmem>>, vector<1x128x128xbf16>
    %218 = vector.shape_cast %217 : vector<1x128x128xbf16> to vector<128x128xbf16>
    %cst_71 = arith.constant dense<0.000000e+00> : vector<8x128xf32>
    %219 = tpu.matmul %216, %218, %cst_71 {dimension_numbers = #tpu.dot_dimension_numbers<[1], [1], [0], [0], [0, 0, 1, 0], [], []>} : vector<8x128xbf16>, vector<128x128xbf16>, vector<8x128xf32> -> vector<8x128xf32>
    %220 = vector.extract_strided_slice %5 {offsets = [1, 0], sizes = [1, 128], strides = [1, 1]} : vector<3x128xf32> to vector<1x128xf32>
    %221 = vector.shape_cast %220 : vector<1x128xf32> to vector<128xf32>
    %222 = vector.extract_strided_slice %7 {offsets = [1, 0], sizes = [1, 128], strides = [1, 1]} : vector<3x128xf32> to vector<1x128xf32>
    %223 = vector.shape_cast %222 : vector<1x128xf32> to vector<128xf32>
    %224 = vector.shape_cast %223 : vector<128xf32> to vector<1x128xf32>
    %225 = vector.broadcast %224 : vector<1x128xf32> to vector<8x128xf32>
    %226 = arith.mulf %225, %100 : vector<8x128xf32>
    %227 = arith.negf %226 : vector<8x128xf32>
    %228 = math.exp %227 : vector<8x128xf32>
    %cst_72 = arith.constant 1.000000e+00 : f32
    %229 = vector.broadcast %cst_72 : f32 to vector<8x128xf32>
    %230 = arith.addf %229, %228 : vector<8x128xf32>
    %231 = arith.divf %229, %230 : vector<8x128xf32>
    %232 = arith.mulf %221, %223 : vector<128xf32>
    %233 = vector.shape_cast %232 : vector<128xf32> to vector<1x128xf32>
    %234 = vector.broadcast %233 : vector<1x128xf32> to vector<8x128xf32>
    %235 = arith.mulf %234, %231 : vector<8x128xf32>
    %cst_73 = arith.constant 1.000000e+00 : f32
    %236 = vector.broadcast %cst_73 : f32 to vector<8x128xf32>
    %237 = arith.subf %236, %231 : vector<8x128xf32>
    %238 = arith.mulf %226, %237 : vector<8x128xf32>
    %cst_74 = arith.constant 1.000000e+00 : f32
    %239 = vector.broadcast %cst_74 : f32 to vector<8x128xf32>
    %240 = arith.addf %239, %238 : vector<8x128xf32>
    %241 = arith.mulf %235, %240 : vector<8x128xf32>
    %242 = arith.mulf %219, %241 : vector<8x128xf32>
    %243 = vector.extract_strided_slice %1 {offsets = [1, 0], sizes = [1, 128], strides = [1, 1]} : vector<3x128xf32> to vector<1x128xf32>
    %244 = vector.shape_cast %243 : vector<1x128xf32> to vector<128xf32>
    %245 = vector.shape_cast %244 : vector<128xf32> to vector<1x128xf32>
    %246 = vector.broadcast %245 : vector<1x128xf32> to vector<8x128xf32>
    %247 = arith.mulf %242, %246 : vector<8x128xf32>
    %cst_75 = arith.constant dense<0.000000e+00> : vector<8xf32>
    %248 = vector.multi_reduction <add>, %72, %cst_75 [1] : vector<8x128xf32> to vector<8xf32>
    %249 = vector.shape_cast %248 : vector<8xf32> to vector<8x1xf32>
    %cst_76 = arith.constant 1.280000e+02 : f32
    %250 = vector.broadcast %cst_76 : f32 to vector<8x1xf32>
    %251 = arith.divf %249, %250 : vector<8x1xf32>
    %252 = vector.broadcast %251 : vector<8x1xf32> to vector<8x128xf32>
    %253 = arith.subf %72, %252 : vector<8x128xf32>
    %254 = arith.mulf %253, %253 : vector<8x128xf32>
    %cst_77 = arith.constant dense<0.000000e+00> : vector<8xf32>
    %255 = vector.multi_reduction <add>, %254, %cst_77 [1] : vector<8x128xf32> to vector<8xf32>
    %256 = vector.shape_cast %255 : vector<8xf32> to vector<8x1xf32>
    %cst_78 = arith.constant 1.280000e+02 : f32
    %257 = vector.broadcast %cst_78 : f32 to vector<8x1xf32>
    %258 = arith.divf %256, %257 : vector<8x1xf32>
    %cst_79 = arith.constant 9.99999974E-6 : f32
    %259 = vector.broadcast %cst_79 : f32 to vector<8x1xf32>
    %260 = arith.addf %258, %259 : vector<8x1xf32>
    %261 = math.rsqrt %260 : vector<8x1xf32>
    %262 = vector.broadcast %251 : vector<8x1xf32> to vector<8x128xf32>
    %263 = arith.subf %72, %262 : vector<8x128xf32>
    %264 = vector.broadcast %261 : vector<8x1xf32> to vector<8x128xf32>
    %265 = arith.mulf %263, %264 : vector<8x128xf32>
    %cst_80 = arith.constant dense<0.000000e+00> : vector<8xf32>
    %266 = vector.multi_reduction <add>, %247, %cst_80 [1] : vector<8x128xf32> to vector<8xf32>
    %267 = vector.shape_cast %266 : vector<8xf32> to vector<8x1xf32>
    %cst_81 = arith.constant 1.280000e+02 : f32
    %268 = vector.broadcast %cst_81 : f32 to vector<8x1xf32>
    %269 = arith.divf %267, %268 : vector<8x1xf32>
    %270 = vector.broadcast %269 : vector<8x1xf32> to vector<8x128xf32>
    %271 = arith.subf %247, %270 : vector<8x128xf32>
    %272 = arith.mulf %247, %265 : vector<8x128xf32>
    %cst_82 = arith.constant dense<0.000000e+00> : vector<8xf32>
    %273 = vector.multi_reduction <add>, %272, %cst_82 [1] : vector<8x128xf32> to vector<8xf32>
    %274 = vector.shape_cast %273 : vector<8xf32> to vector<8x1xf32>
    %cst_83 = arith.constant 1.280000e+02 : f32
    %275 = vector.broadcast %cst_83 : f32 to vector<8x1xf32>
    %276 = arith.divf %274, %275 : vector<8x1xf32>
    %277 = vector.broadcast %276 : vector<8x1xf32> to vector<8x128xf32>
    %278 = arith.mulf %265, %277 : vector<8x128xf32>
    %279 = arith.subf %271, %278 : vector<8x128xf32>
    %280 = vector.broadcast %261 : vector<8x1xf32> to vector<8x128xf32>
    %281 = arith.mulf %280, %279 : vector<8x128xf32>
    %282 = arith.truncf %281 : vector<8x128xf32> to vector<8x128xbf16>
    %c0_84 = arith.constant 0 : index
    %c0_85 = arith.constant 0 : index
    %c0_86 = arith.constant 0 : index
    %283 = vector.load %arg7[%c0_84, %c0_85, %c0_86] : memref<1x128x128xbf16, #tpu.memory_space<vmem>>, vector<1x128x128xbf16>
    %284 = vector.shape_cast %283 : vector<1x128x128xbf16> to vector<128x128xbf16>
    %cst_87 = arith.constant dense<0.000000e+00> : vector<8x128xf32>
    %285 = tpu.matmul %282, %284, %cst_87 {dimension_numbers = #tpu.dot_dimension_numbers<[1], [1], [0], [0], [0, 0, 1, 0], [], []>} : vector<8x128xbf16>, vector<128x128xbf16>, vector<8x128xf32> -> vector<8x128xf32>
    %286 = arith.addf %153, %285 : vector<8x128xf32>
    %287 = vector.extract_strided_slice %5 {offsets = [0, 0], sizes = [1, 128], strides = [1, 1]} : vector<3x128xf32> to vector<1x128xf32>
    %288 = vector.shape_cast %287 : vector<1x128xf32> to vector<128xf32>
    %289 = vector.extract_strided_slice %7 {offsets = [0, 0], sizes = [1, 128], strides = [1, 1]} : vector<3x128xf32> to vector<1x128xf32>
    %290 = vector.shape_cast %289 : vector<1x128xf32> to vector<128xf32>
    %291 = vector.shape_cast %290 : vector<128xf32> to vector<1x128xf32>
    %292 = vector.broadcast %291 : vector<1x128xf32> to vector<8x128xf32>
    %293 = arith.mulf %292, %52 : vector<8x128xf32>
    %294 = arith.negf %293 : vector<8x128xf32>
    %295 = math.exp %294 : vector<8x128xf32>
    %cst_88 = arith.constant 1.000000e+00 : f32
    %296 = vector.broadcast %cst_88 : f32 to vector<8x128xf32>
    %297 = arith.addf %296, %295 : vector<8x128xf32>
    %298 = arith.divf %296, %297 : vector<8x128xf32>
    %299 = arith.mulf %288, %290 : vector<128xf32>
    %300 = vector.shape_cast %299 : vector<128xf32> to vector<1x128xf32>
    %301 = vector.broadcast %300 : vector<1x128xf32> to vector<8x128xf32>
    %302 = arith.mulf %301, %298 : vector<8x128xf32>
    %cst_89 = arith.constant 1.000000e+00 : f32
    %303 = vector.broadcast %cst_89 : f32 to vector<8x128xf32>
    %304 = arith.subf %303, %298 : vector<8x128xf32>
    %305 = arith.mulf %293, %304 : vector<8x128xf32>
    %cst_90 = arith.constant 1.000000e+00 : f32
    %306 = vector.broadcast %cst_90 : f32 to vector<8x128xf32>
    %307 = arith.addf %306, %305 : vector<8x128xf32>
    %308 = arith.mulf %302, %307 : vector<8x128xf32>
    %309 = arith.mulf %286, %308 : vector<8x128xf32>
    %310 = vector.extract_strided_slice %1 {offsets = [0, 0], sizes = [1, 128], strides = [1, 1]} : vector<3x128xf32> to vector<1x128xf32>
    %311 = vector.shape_cast %310 : vector<1x128xf32> to vector<128xf32>
    %312 = vector.shape_cast %311 : vector<128xf32> to vector<1x128xf32>
    %313 = vector.broadcast %312 : vector<1x128xf32> to vector<8x128xf32>
    %314 = arith.mulf %309, %313 : vector<8x128xf32>
    %cst_91 = arith.constant dense<0.000000e+00> : vector<8xf32>
    %315 = vector.multi_reduction <add>, %24, %cst_91 [1] : vector<8x128xf32> to vector<8xf32>
    %316 = vector.shape_cast %315 : vector<8xf32> to vector<8x1xf32>
    %cst_92 = arith.constant 1.280000e+02 : f32
    %317 = vector.broadcast %cst_92 : f32 to vector<8x1xf32>
    %318 = arith.divf %316, %317 : vector<8x1xf32>
    %319 = vector.broadcast %318 : vector<8x1xf32> to vector<8x128xf32>
    %320 = arith.subf %24, %319 : vector<8x128xf32>
    %321 = arith.mulf %320, %320 : vector<8x128xf32>
    %cst_93 = arith.constant dense<0.000000e+00> : vector<8xf32>
    %322 = vector.multi_reduction <add>, %321, %cst_93 [1] : vector<8x128xf32> to vector<8xf32>
    %323 = vector.shape_cast %322 : vector<8xf32> to vector<8x1xf32>
    %cst_94 = arith.constant 1.280000e+02 : f32
    %324 = vector.broadcast %cst_94 : f32 to vector<8x1xf32>
    %325 = arith.divf %323, %324 : vector<8x1xf32>
    %cst_95 = arith.constant 9.99999974E-6 : f32
    %326 = vector.broadcast %cst_95 : f32 to vector<8x1xf32>
    %327 = arith.addf %325, %326 : vector<8x1xf32>
    %328 = math.rsqrt %327 : vector<8x1xf32>
    %329 = vector.broadcast %318 : vector<8x1xf32> to vector<8x128xf32>
    %330 = arith.subf %24, %329 : vector<8x128xf32>
    %331 = vector.broadcast %328 : vector<8x1xf32> to vector<8x128xf32>
    %332 = arith.mulf %330, %331 : vector<8x128xf32>
    %cst_96 = arith.constant dense<0.000000e+00> : vector<8xf32>
    %333 = vector.multi_reduction <add>, %314, %cst_96 [1] : vector<8x128xf32> to vector<8xf32>
    %334 = vector.shape_cast %333 : vector<8xf32> to vector<8x1xf32>
    %cst_97 = arith.constant 1.280000e+02 : f32
    %335 = vector.broadcast %cst_97 : f32 to vector<8x1xf32>
    %336 = arith.divf %334, %335 : vector<8x1xf32>
    %337 = vector.broadcast %336 : vector<8x1xf32> to vector<8x128xf32>
    %338 = arith.subf %314, %337 : vector<8x128xf32>
    %339 = arith.mulf %314, %332 : vector<8x128xf32>
    %cst_98 = arith.constant dense<0.000000e+00> : vector<8xf32>
    %340 = vector.multi_reduction <add>, %339, %cst_98 [1] : vector<8x128xf32> to vector<8xf32>
    %341 = vector.shape_cast %340 : vector<8xf32> to vector<8x1xf32>
    %cst_99 = arith.constant 1.280000e+02 : f32
    %342 = vector.broadcast %cst_99 : f32 to vector<8x1xf32>
    %343 = arith.divf %341, %342 : vector<8x1xf32>
    %344 = vector.broadcast %343 : vector<8x1xf32> to vector<8x128xf32>
    %345 = arith.mulf %332, %344 : vector<8x128xf32>
    %346 = arith.subf %338, %345 : vector<8x128xf32>
    %347 = vector.broadcast %328 : vector<8x1xf32> to vector<8x128xf32>
    %348 = arith.mulf %347, %346 : vector<8x128xf32>
    %349 = arith.truncf %348 : vector<8x128xf32> to vector<8x128xbf16>
    %c0_100 = arith.constant 0 : index
    %c0_101 = arith.constant 0 : index
    %c0_102 = arith.constant 0 : index
    %350 = vector.load %arg5[%c0_100, %c0_101, %c0_102] : memref<1x128x128xbf16, #tpu.memory_space<vmem>>, vector<1x128x128xbf16>
    %351 = vector.shape_cast %350 : vector<1x128x128xbf16> to vector<128x128xbf16>
    %cst_103 = arith.constant dense<0.000000e+00> : vector<8x128xf32>
    %352 = tpu.matmul %349, %351, %cst_103 {dimension_numbers = #tpu.dot_dimension_numbers<[1], [1], [0], [0], [0, 0, 1, 0], [], []>} : vector<8x128xbf16>, vector<128x128xbf16>, vector<8x128xf32> -> vector<8x128xf32>
    %c0_104 = arith.constant 0 : index
    %c0_105 = arith.constant 0 : index
    %353 = vector.load %arg16[%c0_104, %c0_105] : memref<8x128xf32, #tpu.memory_space<vmem>>, vector<8x128xf32>
    tpu.vector_store %arg16[%c0_104, %c0_105], %352 {strides = array<i32>} : memref<8x128xf32, #tpu.memory_space<vmem>>, vector<8x128xf32>,
    return
  }
  func.func @transform_0(%arg0: i32, %arg1: memref<2xi32, #tpu.memory_space<smem>>, %arg2: memref<2xi32, #tpu.memory_space<smem>>) -> (i32, i32) {
    %c0_i32 = arith.constant 0 : i32
    %c0_i32_0 = arith.constant 0 : i32
    return %arg0, %c0_i32 : i32, i32
  }
  func.func @transform_1(%arg0: i32, %arg1: memref<2xi32, #tpu.memory_space<smem>>, %arg2: memref<2xi32, #tpu.memory_space<smem>>) -> (i32, i32) {
    %c0_i32 = arith.constant 0 : i32
    %c0_i32_0 = arith.constant 0 : i32
    return %arg0, %c0_i32 : i32, i32
  }
  func.func @transform_2(%arg0: i32, %arg1: memref<2xi32, #tpu.memory_space<smem>>, %arg2: memref<2xi32, #tpu.memory_space<smem>>) -> (i32, i32, i32) {
    %0 = arith.index_cast %arg0 : i32 to index
    %1 = memref.load %arg1[%0] : memref<2xi32, #tpu.memory_space<smem>>
    %c0_i32 = arith.constant 0 : i32
    %c0_i32_0 = arith.constant 0 : i32
    %c0_i32_1 = arith.constant 0 : i32
    return %1, %c0_i32, %c0_i32_0 : i32, i32, i32
  }
  func.func @transform_3(%arg0: i32, %arg1: memref<2xi32, #tpu.memory_space<smem>>, %arg2: memref<2xi32, #tpu.memory_space<smem>>) -> (i32, i32, i32) {
    %0 = arith.index_cast %arg0 : i32 to index
    %1 = memref.load %arg1[%0] : memref<2xi32, #tpu.memory_space<smem>>
    %c0_i32 = arith.constant 0 : i32
    %c0_i32_0 = arith.constant 0 : i32
    %c0_i32_1 = arith.constant 0 : i32
    return %1, %c0_i32, %c0_i32_0 : i32, i32, i32
  }
  func.func @transform_4(%arg0: i32, %arg1: memref<2xi32, #tpu.memory_space<smem>>, %arg2: memref<2xi32, #tpu.memory_space<smem>>) -> (i32, i32, i32) {
    %0 = arith.index_cast %arg0 : i32 to index
    %1 = memref.load %arg1[%0] : memref<2xi32, #tpu.memory_space<smem>>
    %c0_i32 = arith.constant 0 : i32
    %c0_i32_0 = arith.constant 0 : i32
    %c0_i32_1 = arith.constant 0 : i32
    return %1, %c0_i32, %c0_i32_0 : i32, i32, i32
  }
  func.func @transform_5(%arg0: i32, %arg1: memref<2xi32, #tpu.memory_space<smem>>, %arg2: memref<2xi32, #tpu.memory_space<smem>>) -> (i32, i32, i32) {
    %0 = arith.index_cast %arg0 : i32 to index
    %1 = memref.load %arg1[%0] : memref<2xi32, #tpu.memory_space<smem>>
    %c0_i32 = arith.constant 0 : i32
    %c0_i32_0 = arith.constant 0 : i32
    %c0_i32_1 = arith.constant 0 : i32
    return %1, %c0_i32, %c0_i32_0 : i32, i32, i32
  }
  func.func @transform_6(%arg0: i32, %arg1: memref<2xi32, #tpu.memory_space<smem>>, %arg2: memref<2xi32, #tpu.memory_space<smem>>) -> (i32, i32, i32) {
    %0 = arith.index_cast %arg0 : i32 to index
    %1 = memref.load %arg1[%0] : memref<2xi32, #tpu.memory_space<smem>>
    %c0_i32 = arith.constant 0 : i32
    %c0_i32_0 = arith.constant 0 : i32
    %c0_i32_1 = arith.constant 0 : i32
    return %1, %c0_i32, %c0_i32_0 : i32, i32, i32
  }
  func.func @transform_7(%arg0: i32, %arg1: memref<2xi32, #tpu.memory_space<smem>>, %arg2: memref<2xi32, #tpu.memory_space<smem>>) -> (i32, i32, i32) {
    %0 = arith.index_cast %arg0 : i32 to index
    %1 = memref.load %arg1[%0] : memref<2xi32, #tpu.memory_space<smem>>
    %c0_i32 = arith.constant 0 : i32
    %c0_i32_0 = arith.constant 0 : i32
    %c0_i32_1 = arith.constant 0 : i32
    return %1, %c0_i32, %c0_i32_0 : i32, i32, i32
  }
  func.func @transform_8(%arg0: i32, %arg1: memref<2xi32, #tpu.memory_space<smem>>, %arg2: memref<2xi32, #tpu.memory_space<smem>>) -> (i32, i32, i32) {
    %0 = arith.index_cast %arg0 : i32 to index
    %1 = memref.load %arg1[%0] : memref<2xi32, #tpu.memory_space<smem>>
    %c0_i32 = arith.constant 0 : i32
    %c0_i32_0 = arith.constant 0 : i32
    %c0_i32_1 = arith.constant 0 : i32
    return %1, %c0_i32, %c0_i32_0 : i32, i32, i32
  }
  func.func @transform_9(%arg0: i32, %arg1: memref<2xi32, #tpu.memory_space<smem>>, %arg2: memref<2xi32, #tpu.memory_space<smem>>) -> (i32, i32, i32) {
    %0 = arith.index_cast %arg0 : i32 to index
    %1 = memref.load %arg1[%0] : memref<2xi32, #tpu.memory_space<smem>>
    %c0_i32 = arith.constant 0 : i32
    %c0_i32_0 = arith.constant 0 : i32
    %c0_i32_1 = arith.constant 0 : i32
    return %1, %c0_i32, %c0_i32_0 : i32, i32, i32
  }
  func.func @transform_10(%arg0: i32, %arg1: memref<2xi32, #tpu.memory_space<smem>>, %arg2: memref<2xi32, #tpu.memory_space<smem>>) -> (i32, i32, i32) {
    %0 = arith.index_cast %arg0 : i32 to index
    %1 = memref.load %arg1[%0] : memref<2xi32, #tpu.memory_space<smem>>
    %c0_i32 = arith.constant 0 : i32
    %c0_i32_0 = arith.constant 0 : i32
    %c0_i32_1 = arith.constant 0 : i32
    return %1, %c0_i32, %c0_i32_0 : i32, i32, i32
  }
  func.func @transform_11(%arg0: i32, %arg1: memref<2xi32, #tpu.memory_space<smem>>, %arg2: memref<2xi32, #tpu.memory_space<smem>>) -> (i32, i32, i32) {
    %0 = arith.index_cast %arg0 : i32 to index
    %1 = memref.load %arg1[%0] : memref<2xi32, #tpu.memory_space<smem>>
    %c0_i32 = arith.constant 0 : i32
    %c0_i32_0 = arith.constant 0 : i32
    %c0_i32_1 = arith.constant 0 : i32
    return %1, %c0_i32, %c0_i32_0 : i32, i32, i32
  }
  func.func @transform_12(%arg0: i32, %arg1: memref<2xi32, #tpu.memory_space<smem>>, %arg2: memref<2xi32, #tpu.memory_space<smem>>) -> (i32, i32, i32) {
    %0 = arith.index_cast %arg0 : i32 to index
    %1 = memref.load %arg1[%0] : memref<2xi32, #tpu.memory_space<smem>>
    %c0_i32 = arith.constant 0 : i32
    %c0_i32_0 = arith.constant 0 : i32
    %c0_i32_1 = arith.constant 0 : i32
    return %1, %c0_i32, %c0_i32_0 : i32, i32, i32
  }
  func.func @transform_13(%arg0: i32, %arg1: memref<2xi32, #tpu.memory_space<smem>>, %arg2: memref<2xi32, #tpu.memory_space<smem>>) -> (i32, i32) {
    %c0_i32 = arith.constant 0 : i32
    %c0_i32_0 = arith.constant 0 : i32
    return %arg0, %c0_i32 : i32, i32
  }
}

module attributes {stable_mosaic.version = 11 : i64} {
  func.func @_mlp_energy_kernel(%arg0: i32, %arg1: memref<2xi32, #tpu.memory_space<smem>>, %arg2: memref<2xi32, #tpu.memory_space<smem>>, %arg3: memref<8x128xf32, #tpu.memory_space<vmem>>, %arg4: memref<1x128x128xbf16, #tpu.memory_space<vmem>>, %arg5: memref<1x1x128xf32, #tpu.memory_space<vmem>>, %arg6: memref<1x128x128xbf16, #tpu.memory_space<vmem>>, %arg7: memref<1x1x128xf32, #tpu.memory_space<vmem>>, %arg8: memref<1x128x128xbf16, #tpu.memory_space<vmem>>, %arg9: memref<1x1x128xf32, #tpu.memory_space<vmem>>, %arg10: memref<1x128x8xbf16, #tpu.memory_space<vmem>>, %arg11: memref<1x1x8xf32, #tpu.memory_space<vmem>>, %arg12: memref<1x3x128xf32, #tpu.memory_space<vmem>>, %arg13: memref<1x3x128xf32, #tpu.memory_space<vmem>>, %arg14: memref<1x3x128xf32, #tpu.memory_space<vmem>>, %arg15: memref<1x3x128xf32, #tpu.memory_space<vmem>>, %arg16: memref<1x8x128xf32, #tpu.memory_space<vmem>>) attributes {dimension_semantics = [#tpu.dimension_semantics<parallel>], iteration_bounds = array<i64: 2>, scalar_prefetch = 2 : i64, scratch_operands = 0 : i64, tpu.core_type = #tpu.core_type<tc>, window_params = [{transform_indices = @transform_0, window_bounds = array<i64: 8, 128>}, {transform_indices = @transform_1, window_bounds = array<i64: 1, 128, 128>}, {transform_indices = @transform_2, window_bounds = array<i64: 1, 1, 128>}, {transform_indices = @transform_3, window_bounds = array<i64: 1, 128, 128>}, {transform_indices = @transform_4, window_bounds = array<i64: 1, 1, 128>}, {transform_indices = @transform_5, window_bounds = array<i64: 1, 128, 128>}, {transform_indices = @transform_6, window_bounds = array<i64: 1, 1, 128>}, {transform_indices = @transform_7, window_bounds = array<i64: 1, 128, 8>}, {transform_indices = @transform_8, window_bounds = array<i64: 1, 1, 8>}, {transform_indices = @transform_9, window_bounds = array<i64: 1, 3, 128>}, {transform_indices = @transform_10, window_bounds = array<i64: 1, 3, 128>}, {transform_indices = @transform_11, window_bounds = array<i64: 1, 3, 128>}, {transform_indices = @transform_12, window_bounds = array<i64: 1, 3, 128>}, {transform_indices = @transform_13, window_bounds = array<i64: 1, 8, 128>}]} {
    %c0 = arith.constant 0 : index
    %c0_0 = arith.constant 0 : index
    %0 = vector.load %arg3[%c0, %c0_0] : memref<8x128xf32, #tpu.memory_space<vmem>>, vector<8x128xf32>
    %c0_1 = arith.constant 0 : index
    %c0_2 = arith.constant 0 : index
    %c0_3 = arith.constant 0 : index
    %1 = vector.load %arg4[%c0_1, %c0_2, %c0_3] : memref<1x128x128xbf16, #tpu.memory_space<vmem>>, vector<1x128x128xbf16>
    %2 = vector.shape_cast %1 : vector<1x128x128xbf16> to vector<128x128xbf16>
    %c0_4 = arith.constant 0 : index
    %c0_5 = arith.constant 0 : index
    %c0_6 = arith.constant 0 : index
    %3 = vector.load %arg5[%c0_4, %c0_5, %c0_6] : memref<1x1x128xf32, #tpu.memory_space<vmem>>, vector<1x1x128xf32>
    %4 = vector.shape_cast %3 : vector<1x1x128xf32> to vector<1x128xf32>
    %c0_7 = arith.constant 0 : index
    %c0_8 = arith.constant 0 : index
    %c0_9 = arith.constant 0 : index
    %5 = vector.load %arg6[%c0_7, %c0_8, %c0_9] : memref<1x128x128xbf16, #tpu.memory_space<vmem>>, vector<1x128x128xbf16>
    %6 = vector.shape_cast %5 : vector<1x128x128xbf16> to vector<128x128xbf16>
    %c0_10 = arith.constant 0 : index
    %c0_11 = arith.constant 0 : index
    %c0_12 = arith.constant 0 : index
    %7 = vector.load %arg7[%c0_10, %c0_11, %c0_12] : memref<1x1x128xf32, #tpu.memory_space<vmem>>, vector<1x1x128xf32>
    %8 = vector.shape_cast %7 : vector<1x1x128xf32> to vector<1x128xf32>
    %c0_13 = arith.constant 0 : index
    %c0_14 = arith.constant 0 : index
    %c0_15 = arith.constant 0 : index
    %9 = vector.load %arg8[%c0_13, %c0_14, %c0_15] : memref<1x128x128xbf16, #tpu.memory_space<vmem>>, vector<1x128x128xbf16>
    %10 = vector.shape_cast %9 : vector<1x128x128xbf16> to vector<128x128xbf16>
    %c0_16 = arith.constant 0 : index
    %c0_17 = arith.constant 0 : index
    %c0_18 = arith.constant 0 : index
    %11 = vector.load %arg9[%c0_16, %c0_17, %c0_18] : memref<1x1x128xf32, #tpu.memory_space<vmem>>, vector<1x1x128xf32>
    %12 = vector.shape_cast %11 : vector<1x1x128xf32> to vector<1x128xf32>
    %c0_19 = arith.constant 0 : index
    %c0_20 = arith.constant 0 : index
    %c0_21 = arith.constant 0 : index
    %13 = vector.load %arg12[%c0_19, %c0_20, %c0_21] : memref<1x3x128xf32, #tpu.memory_space<vmem>>, vector<1x3x128xf32>
    %14 = vector.shape_cast %13 : vector<1x3x128xf32> to vector<3x128xf32>
    %c0_22 = arith.constant 0 : index
    %c0_23 = arith.constant 0 : index
    %c0_24 = arith.constant 0 : index
    %15 = vector.load %arg13[%c0_22, %c0_23, %c0_24] : memref<1x3x128xf32, #tpu.memory_space<vmem>>, vector<1x3x128xf32>
    %16 = vector.shape_cast %15 : vector<1x3x128xf32> to vector<3x128xf32>
    %c0_25 = arith.constant 0 : index
    %c0_26 = arith.constant 0 : index
    %c0_27 = arith.constant 0 : index
    %17 = vector.load %arg14[%c0_25, %c0_26, %c0_27] : memref<1x3x128xf32, #tpu.memory_space<vmem>>, vector<1x3x128xf32>
    %18 = vector.shape_cast %17 : vector<1x3x128xf32> to vector<3x128xf32>
    %c0_28 = arith.constant 0 : index
    %c0_29 = arith.constant 0 : index
    %c0_30 = arith.constant 0 : index
    %19 = vector.load %arg15[%c0_28, %c0_29, %c0_30] : memref<1x3x128xf32, #tpu.memory_space<vmem>>, vector<1x3x128xf32>
    %20 = vector.shape_cast %19 : vector<1x3x128xf32> to vector<3x128xf32>
    %21 = arith.truncf %0 : vector<8x128xf32> to vector<8x128xbf16>
    %cst = arith.constant dense<0.000000e+00> : vector<8x128xf32>
    %22 = tpu.matmul %21, %2, %cst {dimension_numbers = #tpu.dot_dimension_numbers<[1], [0], [0], [1], [0, 0, 1, 1], [], []>} : vector<8x128xbf16>, vector<128x128xbf16>, vector<8x128xf32> -> vector<8x128xf32>
    %23 = vector.broadcast %4 : vector<1x128xf32> to vector<8x128xf32>
    %24 = arith.addf %22, %23 : vector<8x128xf32>
    %cst_31 = arith.constant dense<0.000000e+00> : vector<8xf32>
    %25 = vector.multi_reduction <add>, %24, %cst_31 [1] : vector<8x128xf32> to vector<8xf32>
    %26 = vector.shape_cast %25 : vector<8xf32> to vector<8x1xf32>
    %cst_32 = arith.constant 1.280000e+02 : f32
    %27 = vector.broadcast %cst_32 : f32 to vector<8x1xf32>
    %28 = arith.divf %26, %27 : vector<8x1xf32>
    %29 = vector.broadcast %28 : vector<8x1xf32> to vector<8x128xf32>
    %30 = arith.subf %24, %29 : vector<8x128xf32>
    %31 = arith.mulf %30, %30 : vector<8x128xf32>
    %cst_33 = arith.constant dense<0.000000e+00> : vector<8xf32>
    %32 = vector.multi_reduction <add>, %31, %cst_33 [1] : vector<8x128xf32> to vector<8xf32>
    %33 = vector.shape_cast %32 : vector<8xf32> to vector<8x1xf32>
    %cst_34 = arith.constant 1.280000e+02 : f32
    %34 = vector.broadcast %cst_34 : f32 to vector<8x1xf32>
    %35 = arith.divf %33, %34 : vector<8x1xf32>
    %36 = vector.broadcast %28 : vector<8x1xf32> to vector<8x128xf32>
    %37 = arith.subf %24, %36 : vector<8x128xf32>
    %cst_35 = arith.constant 9.99999974E-6 : f32
    %38 = vector.broadcast %cst_35 : f32 to vector<8x1xf32>
    %39 = arith.addf %35, %38 : vector<8x1xf32>
    %40 = math.rsqrt %39 : vector<8x1xf32>
    %41 = vector.broadcast %40 : vector<8x1xf32> to vector<8x128xf32>
    %42 = arith.mulf %37, %41 : vector<8x128xf32>
    %43 = vector.extract_strided_slice %14 {offsets = [0, 0], sizes = [1, 128], strides = [1, 1]} : vector<3x128xf32> to vector<1x128xf32>
    %44 = vector.shape_cast %43 : vector<1x128xf32> to vector<128xf32>
    %45 = vector.shape_cast %44 : vector<128xf32> to vector<1x128xf32>
    %46 = vector.broadcast %45 : vector<1x128xf32> to vector<8x128xf32>
    %47 = arith.mulf %42, %46 : vector<8x128xf32>
    %48 = vector.extract_strided_slice %16 {offsets = [0, 0], sizes = [1, 128], strides = [1, 1]} : vector<3x128xf32> to vector<1x128xf32>
    %49 = vector.shape_cast %48 : vector<1x128xf32> to vector<128xf32>
    %50 = vector.shape_cast %49 : vector<128xf32> to vector<1x128xf32>
    %51 = vector.broadcast %50 : vector<1x128xf32> to vector<8x128xf32>
    %52 = arith.addf %47, %51 : vector<8x128xf32>
    %53 = vector.extract_strided_slice %18 {offsets = [0, 0], sizes = [1, 128], strides = [1, 1]} : vector<3x128xf32> to vector<1x128xf32>
    %54 = vector.shape_cast %53 : vector<1x128xf32> to vector<128xf32>
    %55 = vector.extract_strided_slice %20 {offsets = [0, 0], sizes = [1, 128], strides = [1, 1]} : vector<3x128xf32> to vector<1x128xf32>
    %56 = vector.shape_cast %55 : vector<1x128xf32> to vector<128xf32>
    %57 = vector.shape_cast %56 : vector<128xf32> to vector<1x128xf32>
    %58 = vector.broadcast %57 : vector<1x128xf32> to vector<8x128xf32>
    %59 = arith.mulf %58, %52 : vector<8x128xf32>
    %60 = vector.shape_cast %54 : vector<128xf32> to vector<1x128xf32>
    %61 = vector.broadcast %60 : vector<1x128xf32> to vector<8x128xf32>
    %62 = arith.mulf %61, %59 : vector<8x128xf32>
    %63 = arith.negf %59 : vector<8x128xf32>
    %64 = math.exp %63 : vector<8x128xf32>
    %cst_36 = arith.constant 1.000000e+00 : f32
    %65 = vector.broadcast %cst_36 : f32 to vector<8x128xf32>
    %66 = arith.addf %65, %64 : vector<8x128xf32>
    %67 = arith.divf %65, %66 : vector<8x128xf32>
    %68 = arith.mulf %62, %67 : vector<8x128xf32>
    %69 = arith.truncf %68 : vector<8x128xf32> to vector<8x128xbf16>
    %cst_37 = arith.constant dense<0.000000e+00> : vector<8x128xf32>
    %70 = tpu.matmul %69, %6, %cst_37 {dimension_numbers = #tpu.dot_dimension_numbers<[1], [0], [0], [1], [0, 0, 1, 1], [], []>} : vector<8x128xbf16>, vector<128x128xbf16>, vector<8x128xf32> -> vector<8x128xf32>
    %71 = vector.broadcast %8 : vector<1x128xf32> to vector<8x128xf32>
    %72 = arith.addf %70, %71 : vector<8x128xf32>
    %cst_38 = arith.constant dense<0.000000e+00> : vector<8xf32>
    %73 = vector.multi_reduction <add>, %72, %cst_38 [1] : vector<8x128xf32> to vector<8xf32>
    %74 = vector.shape_cast %73 : vector<8xf32> to vector<8x1xf32>
    %cst_39 = arith.constant 1.280000e+02 : f32
    %75 = vector.broadcast %cst_39 : f32 to vector<8x1xf32>
    %76 = arith.divf %74, %75 : vector<8x1xf32>
    %77 = vector.broadcast %76 : vector<8x1xf32> to vector<8x128xf32>
    %78 = arith.subf %72, %77 : vector<8x128xf32>
    %79 = arith.mulf %78, %78 : vector<8x128xf32>
    %cst_40 = arith.constant dense<0.000000e+00> : vector<8xf32>
    %80 = vector.multi_reduction <add>, %79, %cst_40 [1] : vector<8x128xf32> to vector<8xf32>
    %81 = vector.shape_cast %80 : vector<8xf32> to vector<8x1xf32>
    %cst_41 = arith.constant 1.280000e+02 : f32
    %82 = vector.broadcast %cst_41 : f32 to vector<8x1xf32>
    %83 = arith.divf %81, %82 : vector<8x1xf32>
    %84 = vector.broadcast %76 : vector<8x1xf32> to vector<8x128xf32>
    %85 = arith.subf %72, %84 : vector<8x128xf32>
    %cst_42 = arith.constant 9.99999974E-6 : f32
    %86 = vector.broadcast %cst_42 : f32 to vector<8x1xf32>
    %87 = arith.addf %83, %86 : vector<8x1xf32>
    %88 = math.rsqrt %87 : vector<8x1xf32>
    %89 = vector.broadcast %88 : vector<8x1xf32> to vector<8x128xf32>
    %90 = arith.mulf %85, %89 : vector<8x128xf32>
    %91 = vector.extract_strided_slice %14 {offsets = [1, 0], sizes = [1, 128], strides = [1, 1]} : vector<3x128xf32> to vector<1x128xf32>
    %92 = vector.shape_cast %91 : vector<1x128xf32> to vector<128xf32>
    %93 = vector.shape_cast %92 : vector<128xf32> to vector<1x128xf32>
    %94 = vector.broadcast %93 : vector<1x128xf32> to vector<8x128xf32>
    %95 = arith.mulf %90, %94 : vector<8x128xf32>
    %96 = vector.extract_strided_slice %16 {offsets = [1, 0], sizes = [1, 128], strides = [1, 1]} : vector<3x128xf32> to vector<1x128xf32>
    %97 = vector.shape_cast %96 : vector<1x128xf32> to vector<128xf32>
    %98 = vector.shape_cast %97 : vector<128xf32> to vector<1x128xf32>
    %99 = vector.broadcast %98 : vector<1x128xf32> to vector<8x128xf32>
    %100 = arith.addf %95, %99 : vector<8x128xf32>
    %101 = vector.extract_strided_slice %18 {offsets = [1, 0], sizes = [1, 128], strides = [1, 1]} : vector<3x128xf32> to vector<1x128xf32>
    %102 = vector.shape_cast %101 : vector<1x128xf32> to vector<128xf32>
    %103 = vector.extract_strided_slice %20 {offsets = [1, 0], sizes = [1, 128], strides = [1, 1]} : vector<3x128xf32> to vector<1x128xf32>
    %104 = vector.shape_cast %103 : vector<1x128xf32> to vector<128xf32>
    %105 = vector.shape_cast %104 : vector<128xf32> to vector<1x128xf32>
    %106 = vector.broadcast %105 : vector<1x128xf32> to vector<8x128xf32>
    %107 = arith.mulf %106, %100 : vector<8x128xf32>
    %108 = vector.shape_cast %102 : vector<128xf32> to vector<1x128xf32>
    %109 = vector.broadcast %108 : vector<1x128xf32> to vector<8x128xf32>
    %110 = arith.mulf %109, %107 : vector<8x128xf32>
    %111 = arith.negf %107 : vector<8x128xf32>
    %112 = math.exp %111 : vector<8x128xf32>
    %cst_43 = arith.constant 1.000000e+00 : f32
    %113 = vector.broadcast %cst_43 : f32 to vector<8x128xf32>
    %114 = arith.addf %113, %112 : vector<8x128xf32>
    %115 = arith.divf %113, %114 : vector<8x128xf32>
    %116 = arith.mulf %110, %115 : vector<8x128xf32>
    %117 = arith.truncf %116 : vector<8x128xf32> to vector<8x128xbf16>
    %cst_44 = arith.constant dense<0.000000e+00> : vector<8x128xf32>
    %118 = tpu.matmul %117, %10, %cst_44 {dimension_numbers = #tpu.dot_dimension_numbers<[1], [0], [0], [1], [0, 0, 1, 1], [], []>} : vector<8x128xbf16>, vector<128x128xbf16>, vector<8x128xf32> -> vector<8x128xf32>
    %119 = vector.broadcast %12 : vector<1x128xf32> to vector<8x128xf32>
    %120 = arith.addf %118, %119 : vector<8x128xf32>
    %cst_45 = arith.constant dense<0.000000e+00> : vector<8xf32>
    %121 = vector.multi_reduction <add>, %120, %cst_45 [1] : vector<8x128xf32> to vector<8xf32>
    %122 = vector.shape_cast %121 : vector<8xf32> to vector<8x1xf32>
    %cst_46 = arith.constant 1.280000e+02 : f32
    %123 = vector.broadcast %cst_46 : f32 to vector<8x1xf32>
    %124 = arith.divf %122, %123 : vector<8x1xf32>
    %125 = vector.broadcast %124 : vector<8x1xf32> to vector<8x128xf32>
    %126 = arith.subf %120, %125 : vector<8x128xf32>
    %127 = arith.mulf %126, %126 : vector<8x128xf32>
    %cst_47 = arith.constant dense<0.000000e+00> : vector<8xf32>
    %128 = vector.multi_reduction <add>, %127, %cst_47 [1] : vector<8x128xf32> to vector<8xf32>
    %129 = vector.shape_cast %128 : vector<8xf32> to vector<8x1xf32>
    %cst_48 = arith.constant 1.280000e+02 : f32
    %130 = vector.broadcast %cst_48 : f32 to vector<8x1xf32>
    %131 = arith.divf %129, %130 : vector<8x1xf32>
    %132 = vector.broadcast %124 : vector<8x1xf32> to vector<8x128xf32>
    %133 = arith.subf %120, %132 : vector<8x128xf32>
    %cst_49 = arith.constant 9.99999974E-6 : f32
    %134 = vector.broadcast %cst_49 : f32 to vector<8x1xf32>
    %135 = arith.addf %131, %134 : vector<8x1xf32>
    %136 = math.rsqrt %135 : vector<8x1xf32>
    %137 = vector.broadcast %136 : vector<8x1xf32> to vector<8x128xf32>
    %138 = arith.mulf %133, %137 : vector<8x128xf32>
    %139 = vector.extract_strided_slice %14 {offsets = [2, 0], sizes = [1, 128], strides = [1, 1]} : vector<3x128xf32> to vector<1x128xf32>
    %140 = vector.shape_cast %139 : vector<1x128xf32> to vector<128xf32>
    %141 = vector.shape_cast %140 : vector<128xf32> to vector<1x128xf32>
    %142 = vector.broadcast %141 : vector<1x128xf32> to vector<8x128xf32>
    %143 = arith.mulf %138, %142 : vector<8x128xf32>
    %144 = vector.extract_strided_slice %16 {offsets = [2, 0], sizes = [1, 128], strides = [1, 1]} : vector<3x128xf32> to vector<1x128xf32>
    %145 = vector.shape_cast %144 : vector<1x128xf32> to vector<128xf32>
    %146 = vector.shape_cast %145 : vector<128xf32> to vector<1x128xf32>
    %147 = vector.broadcast %146 : vector<1x128xf32> to vector<8x128xf32>
    %148 = arith.addf %143, %147 : vector<8x128xf32>
    %149 = vector.extract_strided_slice %18 {offsets = [2, 0], sizes = [1, 128], strides = [1, 1]} : vector<3x128xf32> to vector<1x128xf32>
    %150 = vector.shape_cast %149 : vector<1x128xf32> to vector<128xf32>
    %151 = vector.extract_strided_slice %20 {offsets = [2, 0], sizes = [1, 128], strides = [1, 1]} : vector<3x128xf32> to vector<1x128xf32>
    %152 = vector.shape_cast %151 : vector<1x128xf32> to vector<128xf32>
    %153 = vector.shape_cast %152 : vector<128xf32> to vector<1x128xf32>
    %154 = vector.broadcast %153 : vector<1x128xf32> to vector<8x128xf32>
    %155 = arith.mulf %154, %148 : vector<8x128xf32>
    %156 = vector.shape_cast %150 : vector<128xf32> to vector<1x128xf32>
    %157 = vector.broadcast %156 : vector<1x128xf32> to vector<8x128xf32>
    %158 = arith.mulf %157, %155 : vector<8x128xf32>
    %159 = arith.negf %155 : vector<8x128xf32>
    %160 = math.exp %159 : vector<8x128xf32>
    %cst_50 = arith.constant 1.000000e+00 : f32
    %161 = vector.broadcast %cst_50 : f32 to vector<8x128xf32>
    %162 = arith.addf %161, %160 : vector<8x128xf32>
    %163 = arith.divf %161, %162 : vector<8x128xf32>
    %164 = arith.mulf %158, %163 : vector<8x128xf32>
    %165 = arith.addf %68, %164 : vector<8x128xf32>
    %166 = arith.truncf %165 : vector<8x128xf32> to vector<8x128xbf16>
    %c0_51 = arith.constant 0 : index
    %c0_52 = arith.constant 0 : index
    %c0_53 = arith.constant 0 : index
    %167 = vector.load %arg10[%c0_51, %c0_52, %c0_53] : memref<1x128x8xbf16, #tpu.memory_space<vmem>>, vector<1x128x8xbf16>
    %168 = vector.shape_cast %167 : vector<1x128x8xbf16> to vector<128x8xbf16>
    %cst_54 = arith.constant dense<0.000000e+00> : vector<8x8xf32>
    %169 = tpu.matmul %166, %168, %cst_54 {dimension_numbers = #tpu.dot_dimension_numbers<[1], [0], [0], [1], [0, 0, 1, 1], [], []>} : vector<8x128xbf16>, vector<128x8xbf16>, vector<8x8xf32> -> vector<8x8xf32>
    %c0_55 = arith.constant 0 : index
    %c0_56 = arith.constant 0 : index
    %c0_57 = arith.constant 0 : index
    %170 = vector.load %arg11[%c0_55, %c0_56, %c0_57] : memref<1x1x8xf32, #tpu.memory_space<vmem>>, vector<1x1x8xf32>
    %171 = vector.shape_cast %170 : vector<1x1x8xf32> to vector<1x8xf32>
    %172 = vector.broadcast %171 : vector<1x8xf32> to vector<8x8xf32>
    %173 = arith.addf %169, %172 : vector<8x8xf32>
    %174 = arith.index_cast %arg0 : i32 to index
    %175 = memref.load %arg2[%174] : memref<2xi32, #tpu.memory_space<smem>>
    %176 = tpu.iota {dimensions = array<i32: 0>} : vector<8x8xi32>
    %177 = tpu.iota {dimensions = array<i32: 1>} : vector<8x8xi32>
    %178 = vector.broadcast %175 : i32 to vector<8x8xi32>
    %179 = arith.cmpi slt, %176, %178 : vector<8x8xi32>
    %c1_i32 = arith.constant 1 : i32
    %180 = vector.broadcast %c1_i32 : i32 to vector<8x8xi32>
    %181 = arith.cmpi slt, %177, %180 : vector<8x8xi32>
    %182 = arith.andi %179, %181 : vector<8x8xi1>
    %cst_58 = arith.constant 0.000000e+00 : f32
    %183 = vector.broadcast %cst_58 : f32 to vector<8x8xf32>
    %184 = arith.select %182, %173, %183 : vector<8x8xi1>, vector<8x8xf32>
    %185 = vector.shape_cast %184 : vector<8x8xf32> to vector<1x8x8xf32>
    %cst_59 = arith.constant dense<0.000000e+00> : vector<1xf32>
    %186 = vector.multi_reduction <add>, %185, %cst_59 [1, 2] : vector<1x8x8xf32> to vector<1xf32>
    %187 = vector.shape_cast %186 : vector<1xf32> to vector<1x1x1xf32>
    %188 = vector.extract %187[0, 0, 0] : f32 from vector<1x1x1xf32>
    %cst_60 = arith.constant 0.000000e+00 : f32
    %189 = vector.broadcast %cst_60 : f32 to vector<1x8x128xf32>
    %190 = vector.broadcast %188 : f32 to vector<1x8x128xf32>
    %191 = arith.addf %190, %189 : vector<1x8x128xf32>
    %c0_61 = arith.constant 0 : index
    %c0_62 = arith.constant 0 : index
    %c0_63 = arith.constant 0 : index
    %192 = vector.load %arg16[%c0_61, %c0_62, %c0_63] : memref<1x8x128xf32, #tpu.memory_space<vmem>>, vector<1x8x128xf32>
    tpu.vector_store %arg16[%c0_61, %c0_62, %c0_63], %191 {strides = array<i32>} : memref<1x8x128xf32, #tpu.memory_space<vmem>>, vector<1x8x128xf32>,
    return
  }
  func.func @transform_0(%arg0: i32, %arg1: memref<2xi32, #tpu.memory_space<smem>>, %arg2: memref<2xi32, #tpu.memory_space<smem>>) -> (i32, i32) {
    %c0_i32 = arith.constant 0 : i32
    %c0_i32_0 = arith.constant 0 : i32
    return %arg0, %c0_i32 : i32, i32
  }
  func.func @transform_1(%arg0: i32, %arg1: memref<2xi32, #tpu.memory_space<smem>>, %arg2: memref<2xi32, #tpu.memory_space<smem>>) -> (i32, i32, i32) {
    %0 = arith.index_cast %arg0 : i32 to index
    %1 = memref.load %arg1[%0] : memref<2xi32, #tpu.memory_space<smem>>
    %c0_i32 = arith.constant 0 : i32
    %c0_i32_0 = arith.constant 0 : i32
    %c0_i32_1 = arith.constant 0 : i32
    return %1, %c0_i32, %c0_i32_0 : i32, i32, i32
  }
  func.func @transform_2(%arg0: i32, %arg1: memref<2xi32, #tpu.memory_space<smem>>, %arg2: memref<2xi32, #tpu.memory_space<smem>>) -> (i32, i32, i32) {
    %0 = arith.index_cast %arg0 : i32 to index
    %1 = memref.load %arg1[%0] : memref<2xi32, #tpu.memory_space<smem>>
    %c0_i32 = arith.constant 0 : i32
    %c0_i32_0 = arith.constant 0 : i32
    %c0_i32_1 = arith.constant 0 : i32
    return %1, %c0_i32, %c0_i32_0 : i32, i32, i32
  }
  func.func @transform_3(%arg0: i32, %arg1: memref<2xi32, #tpu.memory_space<smem>>, %arg2: memref<2xi32, #tpu.memory_space<smem>>) -> (i32, i32, i32) {
    %0 = arith.index_cast %arg0 : i32 to index
    %1 = memref.load %arg1[%0] : memref<2xi32, #tpu.memory_space<smem>>
    %c0_i32 = arith.constant 0 : i32
    %c0_i32_0 = arith.constant 0 : i32
    %c0_i32_1 = arith.constant 0 : i32
    return %1, %c0_i32, %c0_i32_0 : i32, i32, i32
  }
  func.func @transform_4(%arg0: i32, %arg1: memref<2xi32, #tpu.memory_space<smem>>, %arg2: memref<2xi32, #tpu.memory_space<smem>>) -> (i32, i32, i32) {
    %0 = arith.index_cast %arg0 : i32 to index
    %1 = memref.load %arg1[%0] : memref<2xi32, #tpu.memory_space<smem>>
    %c0_i32 = arith.constant 0 : i32
    %c0_i32_0 = arith.constant 0 : i32
    %c0_i32_1 = arith.constant 0 : i32
    return %1, %c0_i32, %c0_i32_0 : i32, i32, i32
  }
  func.func @transform_5(%arg0: i32, %arg1: memref<2xi32, #tpu.memory_space<smem>>, %arg2: memref<2xi32, #tpu.memory_space<smem>>) -> (i32, i32, i32) {
    %0 = arith.index_cast %arg0 : i32 to index
    %1 = memref.load %arg1[%0] : memref<2xi32, #tpu.memory_space<smem>>
    %c0_i32 = arith.constant 0 : i32
    %c0_i32_0 = arith.constant 0 : i32
    %c0_i32_1 = arith.constant 0 : i32
    return %1, %c0_i32, %c0_i32_0 : i32, i32, i32
  }
  func.func @transform_6(%arg0: i32, %arg1: memref<2xi32, #tpu.memory_space<smem>>, %arg2: memref<2xi32, #tpu.memory_space<smem>>) -> (i32, i32, i32) {
    %0 = arith.index_cast %arg0 : i32 to index
    %1 = memref.load %arg1[%0] : memref<2xi32, #tpu.memory_space<smem>>
    %c0_i32 = arith.constant 0 : i32
    %c0_i32_0 = arith.constant 0 : i32
    %c0_i32_1 = arith.constant 0 : i32
    return %1, %c0_i32, %c0_i32_0 : i32, i32, i32
  }
  func.func @transform_7(%arg0: i32, %arg1: memref<2xi32, #tpu.memory_space<smem>>, %arg2: memref<2xi32, #tpu.memory_space<smem>>) -> (i32, i32, i32) {
    %0 = arith.index_cast %arg0 : i32 to index
    %1 = memref.load %arg1[%0] : memref<2xi32, #tpu.memory_space<smem>>
    %c0_i32 = arith.constant 0 : i32
    %c0_i32_0 = arith.constant 0 : i32
    %c0_i32_1 = arith.constant 0 : i32
    return %1, %c0_i32, %c0_i32_0 : i32, i32, i32
  }
  func.func @transform_8(%arg0: i32, %arg1: memref<2xi32, #tpu.memory_space<smem>>, %arg2: memref<2xi32, #tpu.memory_space<smem>>) -> (i32, i32, i32) {
    %0 = arith.index_cast %arg0 : i32 to index
    %1 = memref.load %arg1[%0] : memref<2xi32, #tpu.memory_space<smem>>
    %c0_i32 = arith.constant 0 : i32
    %c0_i32_0 = arith.constant 0 : i32
    %c0_i32_1 = arith.constant 0 : i32
    return %1, %c0_i32, %c0_i32_0 : i32, i32, i32
  }
  func.func @transform_9(%arg0: i32, %arg1: memref<2xi32, #tpu.memory_space<smem>>, %arg2: memref<2xi32, #tpu.memory_space<smem>>) -> (i32, i32, i32) {
    %0 = arith.index_cast %arg0 : i32 to index
    %1 = memref.load %arg1[%0] : memref<2xi32, #tpu.memory_space<smem>>
    %c0_i32 = arith.constant 0 : i32
    %c0_i32_0 = arith.constant 0 : i32
    %c0_i32_1 = arith.constant 0 : i32
    return %1, %c0_i32, %c0_i32_0 : i32, i32, i32
  }
  func.func @transform_10(%arg0: i32, %arg1: memref<2xi32, #tpu.memory_space<smem>>, %arg2: memref<2xi32, #tpu.memory_space<smem>>) -> (i32, i32, i32) {
    %0 = arith.index_cast %arg0 : i32 to index
    %1 = memref.load %arg1[%0] : memref<2xi32, #tpu.memory_space<smem>>
    %c0_i32 = arith.constant 0 : i32
    %c0_i32_0 = arith.constant 0 : i32
    %c0_i32_1 = arith.constant 0 : i32
    return %1, %c0_i32, %c0_i32_0 : i32, i32, i32
  }
  func.func @transform_11(%arg0: i32, %arg1: memref<2xi32, #tpu.memory_space<smem>>, %arg2: memref<2xi32, #tpu.memory_space<smem>>) -> (i32, i32, i32) {
    %0 = arith.index_cast %arg0 : i32 to index
    %1 = memref.load %arg1[%0] : memref<2xi32, #tpu.memory_space<smem>>
    %c0_i32 = arith.constant 0 : i32
    %c0_i32_0 = arith.constant 0 : i32
    %c0_i32_1 = arith.constant 0 : i32
    return %1, %c0_i32, %c0_i32_0 : i32, i32, i32
  }
  func.func @transform_12(%arg0: i32, %arg1: memref<2xi32, #tpu.memory_space<smem>>, %arg2: memref<2xi32, #tpu.memory_space<smem>>) -> (i32, i32, i32) {
    %0 = arith.index_cast %arg0 : i32 to index
    %1 = memref.load %arg1[%0] : memref<2xi32, #tpu.memory_space<smem>>
    %c0_i32 = arith.constant 0 : i32
    %c0_i32_0 = arith.constant 0 : i32
    %c0_i32_1 = arith.constant 0 : i32
    return %1, %c0_i32, %c0_i32_0 : i32, i32, i32
  }
  func.func @transform_13(%arg0: i32, %arg1: memref<2xi32, #tpu.memory_space<smem>>, %arg2: memref<2xi32, #tpu.memory_space<smem>>) -> (i32, i32, i32) {
    %c0_i32 = arith.constant 0 : i32
    %c0_i32_0 = arith.constant 0 : i32
    %c0_i32_1 = arith.constant 0 : i32
    return %arg0, %c0_i32, %c0_i32_0 : i32, i32, i32
  }
}

</mosaic_0001>

<llo_original>
// kernel: neg.11
$region0: #{neg.11}
  #allocation0 [shape = 's32[1]{0}', space=sflag, size = 0x4, scoped, tag = 'scoped memory for neg.11']
  %s0 = inlined_call_operand.vmem [shape: f32[56,7], index: 0, kind: input, shape index: {}]
  %s1 = inlined_call_operand.vmem [shape: f32[56,7], index: 1, kind: output, shape index: {}]
  %v2 = vld [vmem:[%s0] sm:$0x7f]
  %3 = xla_tuple %v2
  %4 = xla_tuple %3
  %v5 = vxor.u32 %v2, 2147483648
  %6 = xla_tuple %v5
  %7 = vst [vmem:[%s1] sm:$0xff] %v5

// kernel: pes_forward.3
$region0: #{pes_forward.3}
  #allocation0 [shape = 'u32[]', space=smem, size = 0x4, offset = 0x4, fixed_abs, tag = 'smem constant byte address 0x4 - core index']
  #allocation1 [shape = 'u32[144,128]{1,0:T(1,128)}', space=vmem, size = 0x12000, scoped, tag = 'internal scratch']
  #allocation2 [shape = 's32[1]{0}', space=sflag, size = 0x4, scoped, tag = 'scoped memory for pes_forward.3']
  #allocation3 [shape = 'u8[512]{0}', space=smem, size = 0x200, scoped, tag = 'prefetched SMEM operand 0']
  #allocation4 [shape = 'u8[512]{0}', space=smem, size = 0x200, scoped, tag = 'prefetched SMEM operand 1']
  %s0 = inlined_call_operand.vmem [shape: s32[2], index: 0, kind: input, shape index: {}]
  %s1 = inlined_call_operand.vmem [shape: s32[2], index: 1, kind: input, shape index: {}]
  %s2 = inlined_call_operand.vmem [shape: f32[16,128], index: 2, kind: input, shape index: {}]
  %s3 = inlined_call_operand.vmem [shape: f32[16,8], index: 3, kind: input, shape index: {}]
  %s4 = inlined_call_operand.vmem [shape: bf16[2,128,128], index: 4, kind: input, shape index: {}]
  %s5 = inlined_call_operand.vmem [shape: f32[2,1,128], index: 5, kind: input, shape index: {}]
  %s6 = inlined_call_operand.vmem [shape: bf16[2,128,128], index: 6, kind: input, shape index: {}]
  %s7 = inlined_call_operand.vmem [shape: f32[2,1,128], index: 7, kind: input, shape index: {}]
  %s8 = inlined_call_operand.vmem [shape: bf16[2,128,128], index: 8, kind: input, shape index: {}]
  %s9 = inlined_call_operand.vmem [shape: f32[2,1,128], index: 9, kind: input, shape index: {}]
  %s10 = inlined_call_operand.vmem [shape: bf16[2,128,8], index: 10, kind: input, shape index: {}]
  %s11 = inlined_call_operand.vmem [shape: f32[2,3,128], index: 11, kind: input, shape index: {}]
  %s12 = inlined_call_operand.vmem [shape: f32[2,3,128], index: 12, kind: input, shape index: {}]
  %s13 = inlined_call_operand.vmem [shape: f32[2,3,128], index: 13, kind: input, shape index: {}]
  %s14 = inlined_call_operand.vmem [shape: f32[2,3,128], index: 14, kind: input, shape index: {}]
  %s15 = inlined_call_operand.vmem [shape: f32[16,128], index: 15, kind: output, shape index: {}]
  %s16 = sld [smem:[#allocation0]]
  $region85: #{pes_forward.3} parent=0
    _
  %s18 = ssub.s32 1, %s16
  %s19 = scalar_select 0, %s18, %s16
  %s20 = sshll.u32 %s0, 4
  %s21 = int_to_ptr.vmem [resolvable:$true] %s20
  %23 = dma.vmem_to_smem %s21, 16, [#allocation3], [#allocation2]
  %s24 = sshll.u32 %s1, 4
  %s25 = int_to_ptr.vmem [resolvable:$true] %s24
  %27 = dma.vmem_to_smem %s25, 16, [#allocation4], [#allocation2]
  %28 = dma.done [#allocation2], 32
  %29 = sfence
  loop: start=0, step=1, limit=4
  $region2: #{pes_forward.3} parent=0 // loop_pre_header
    _
  $region3: #{pes_forward.3} parent=0 // loop_header
    %s31 = sphi 0, %s35
    %p32 = scmp.ge.s32.totalorder %s31, 4
    %s41 = sphi 0, %s43
    %s44 = sphi 0, %s41
    %s45 = sphi 0, %s44
    %s61 = sphi 0, %s45
    %s67 = sphi 0, %s69
    %s70 = sphi 0, %s67
    %s71 = sphi 0, %s70
    %s87 = sphi 0, %s71
    %s95 = sphi 0, %s97
    %s98 = sphi 0, %s95
    %s99 = sphi 0, %s98
    %s115 = sphi 0, %s99
    %s123 = sphi 0, %s125
    %s126 = sphi 0, %s123
    %s127 = sphi 0, %s126
    %s143 = sphi 0, %s127
    %s151 = sphi 0, %s153
    %s154 = sphi 0, %s151
    %s155 = sphi 0, %s154
    %s171 = sphi 0, %s155
    %s179 = sphi 0, %s181
    %s182 = sphi 0, %s179
    %s183 = sphi 0, %s182
    %s199 = sphi 0, %s183
    %s207 = sphi 0, %s209
    %s210 = sphi 0, %s207
    %s211 = sphi 0, %s210
    %s227 = sphi 0, %s211
    %s235 = sphi 0, %s237
    %s238 = sphi 0, %s235
    %s239 = sphi 0, %s238
    %s255 = sphi 0, %s239
    %s263 = sphi 0, %s265
    %s266 = sphi 0, %s263
    %s267 = sphi 0, %s266
    %s283 = sphi 0, %s267
    %s291 = sphi 0, %s293
    %s294 = sphi 0, %s291
    %s295 = sphi 0, %s294
    %s311 = sphi 0, %s295
    %s319 = sphi 0, %s321
    %s322 = sphi 0, %s319
    %s323 = sphi 0, %s322
    %s339 = sphi 0, %s323
    %s347 = sphi 0, %s349
    %s350 = sphi 0, %s347
    %s351 = sphi 0, %s350
    %s367 = sphi 0, %s351
    %s375 = sphi 0, %s377
    %s378 = sphi 0, %s375
    %s379 = sphi 0, %s378
    %s395 = sphi 0, %s379
    %s401 = sphi 0, %s403
    %s404 = sphi 0, %s401
    %s405 = sphi 0, %s404
    %s421 = sphi 0, %s405
  $region4: #{pes_forward.3} parent=0 // loop_header_branch
    %34 = sbr.rel (%p32) target = $region8
  $region5: #{pes_forward.3} parent=0 // loop_body
    %s36 = ssub.s32 %s31, 1
    %s37 = ssub.s32 %s31, 2
    %s38 = sadd.s32 %s31, 1
    %s39 = ssub.s32 %s31, %s38
    %p40 = scmp.eq.s32.totalorder %s39, 0
    %s42 = sadd.s32 %s41, 1
    %s43 = scalar_select %p40, %s41, %s42
    %p46 = pneg %p40
    %p47 = scmp.eq.s32.totalorder %s31, 1
    %p48 = por %p46, %p47
    %p49 = scmp.ne.s32.totalorder %s41, %s44
    %p50 = scmp.eq.s32.totalorder %s31, 0
    %p51 = por %p49, %p50
    %p52 = scmp.ne.s32.totalorder %s41, %s44
    %p53 = scmp.eq.s32.totalorder %s36, 1
    %p54 = por %p52, %p53
    %p55 = scmp.ne.s32.totalorder %s44, %s45
    %p56 = scmp.eq.s32.totalorder %s36, 0
    %p57 = por %p55, %p56
    %p58 = scmp.ne.s32.totalorder %s44, %s45
    %p59 = scmp.eq.s32.totalorder %s37, 1
    %p60 = por %p58, %p59
    %p62 = scmp.ne.s32.totalorder %s45, %s61
    %p63 = scmp.eq.s32.totalorder %s37, 0
    %p64 = por %p62, %p63
    %s65 = ssub.s32 %s31, %s38
    %p66 = scmp.eq.s32.totalorder %s65, 0
    %s68 = sadd.s32 %s67, 1
    %s69 = scalar_select %p66, %s67, %s68
    %p72 = pneg %p66
    %p73 = scmp.eq.s32.totalorder %s31, 1
    %p74 = por %p72, %p73
    %p75 = scmp.ne.s32.totalorder %s67, %s70
    %p76 = scmp.eq.s32.totalorder %s31, 0
    %p77 = por %p75, %p76
    %p78 = scmp.ne.s32.totalorder %s67, %s70
    %p79 = scmp.eq.s32.totalorder %s36, 1
    %p80 = por %p78, %p79
    %p81 = scmp.ne.s32.totalorder %s70, %s71
    %p82 = scmp.eq.s32.totalorder %s36, 0
    %p83 = por %p81, %p82
    %p84 = scmp.ne.s32.totalorder %s70, %s71
    %p85 = scmp.eq.s32.totalorder %s37, 1
    %p86 = por %p84, %p85
    %p88 = scmp.ne.s32.totalorder %s71, %s87
    %p89 = scmp.eq.s32.totalorder %s37, 0
    %p90 = por %p88, %p89
    %s91 = sld [smem:[#allocation3 + %s31]]
    %s92 = sld [smem:[#allocation3 + %s38]]
    %s93 = ssub.s32 %s91, %s92
    %p94 = scmp.eq.s32.totalorder %s93, 0
    %s96 = sadd.s32 %s95, 1
    %s97 = scalar_select %p94, %s95, %s96
    %p100 = pneg %p94
    %p101 = scmp.eq.s32.totalorder %s31, 1
    %p102 = por %p100, %p101
    %p103 = scmp.ne.s32.totalorder %s95, %s98
    %p104 = scmp.eq.s32.totalorder %s31, 0
    %p105 = por %p103, %p104
    %p106 = scmp.ne.s32.totalorder %s95, %s98
    %p107 = scmp.eq.s32.totalorder %s36, 1
    %p108 = por %p106, %p107
    %p109 = scmp.ne.s32.totalorder %s98, %s99
    %p110 = scmp.eq.s32.totalorder %s36, 0
    %p111 = por %p109, %p110
    %p112 = scmp.ne.s32.totalorder %s98, %s99
    %p113 = scmp.eq.s32.totalorder %s37, 1
    %p114 = por %p112, %p113
    %p116 = scmp.ne.s32.totalorder %s99, %s115
    %p117 = scmp.eq.s32.totalorder %s37, 0
    %p118 = por %p116, %p117
    %s119 = sld [smem:[#allocation3 + %s31]]
    %s120 = sld [smem:[#allocation3 + %s38]]
    %s121 = ssub.s32 %s119, %s120
    %p122 = scmp.eq.s32.totalorder %s121, 0
    %s124 = sadd.s32 %s123, 1
    %s125 = scalar_select %p122, %s123, %s124
    %p128 = pneg %p122
    %p129 = scmp.eq.s32.totalorder %s31, 1
    %p130 = por %p128, %p129
    %p131 = scmp.ne.s32.totalorder %s123, %s126
    %p132 = scmp.eq.s32.totalorder %s31, 0
    %p133 = por %p131, %p132
    %p134 = scmp.ne.s32.totalorder %s123, %s126
    %p135 = scmp.eq.s32.totalorder %s36, 1
    %p136 = por %p134, %p135
    %p137 = scmp.ne.s32.totalorder %s126, %s127
    %p138 = scmp.eq.s32.totalorder %s36, 0
    %p139 = por %p137, %p138
    %p140 = scmp.ne.s32.totalorder %s126, %s127
    %p141 = scmp.eq.s32.totalorder %s37, 1
    %p142 = por %p140, %p141
    %p144 = scmp.ne.s32.totalorder %s127, %s143
    %p145 = scmp.eq.s32.totalorder %s37, 0
    %p146 = por %p144, %p145
    %s147 = sld [smem:[#allocation3 + %s31]]
    %s148 = sld [smem:[#allocation3 + %s38]]
    %s149 = ssub.s32 %s147, %s148
    %p150 = scmp.eq.s32.totalorder %s149, 0
    %s152 = sadd.s32 %s151, 1
    %s153 = scalar_select %p150, %s151, %s152
    %p156 = pneg %p150
    %p157 = scmp.eq.s32.totalorder %s31, 1
    %p158 = por %p156, %p157
    %p159 = scmp.ne.s32.totalorder %s151, %s154
    %p160 = scmp.eq.s32.totalorder %s31, 0
    %p161 = por %p159, %p160
    %p162 = scmp.ne.s32.totalorder %s151, %s154
    %p163 = scmp.eq.s32.totalorder %s36, 1
    %p164 = por %p162, %p163
    %p165 = scmp.ne.s32.totalorder %s154, %s155
    %p166 = scmp.eq.s32.totalorder %s36, 0
    %p167 = por %p165, %p166
    %p168 = scmp.ne.s32.totalorder %s154, %s155
    %p169 = scmp.eq.s32.totalorder %s37, 1
    %p170 = por %p168, %p169
    %p172 = scmp.ne.s32.totalorder %s155, %s171
    %p173 = scmp.eq.s32.totalorder %s37, 0
    %p174 = por %p172, %p173
    %s175 = sld [smem:[#allocation3 + %s31]]
    %s176 = sld [smem:[#allocation3 + %s38]]
    %s177 = ssub.s32 %s175, %s176
    %p178 = scmp.eq.s32.totalorder %s177, 0
    %s180 = sadd.s32 %s179, 1
    %s181 = scalar_select %p178, %s179, %s180
    %p184 = pneg %p178
    %p185 = scmp.eq.s32.totalorder %s31, 1
    %p186 = por %p184, %p185
    %p187 = scmp.ne.s32.totalorder %s179, %s182
    %p188 = scmp.eq.s32.totalorder %s31, 0
    %p189 = por %p187, %p188
    %p190 = scmp.ne.s32.totalorder %s179, %s182
    %p191 = scmp.eq.s32.totalorder %s36, 1
    %p192 = por %p190, %p191
    %p193 = scmp.ne.s32.totalorder %s182, %s183
    %p194 = scmp.eq.s32.totalorder %s36, 0
    %p195 = por %p193, %p194
    %p196 = scmp.ne.s32.totalorder %s182, %s183
    %p197 = scmp.eq.s32.totalorder %s37, 1
    %p198 = por %p196, %p197
    %p200 = scmp.ne.s32.totalorder %s183, %s199
    %p201 = scmp.eq.s32.totalorder %s37, 0
    %p202 = por %p200, %p201
    %s203 = sld [smem:[#allocation3 + %s31]]
    %s204 = sld [smem:[#allocation3 + %s38]]
    %s205 = ssub.s32 %s203, %s204
    %p206 = scmp.eq.s32.totalorder %s205, 0
    %s208 = sadd.s32 %s207, 1
    %s209 = scalar_select %p206, %s207, %s208
    %p212 = pneg %p206
    %p213 = scmp.eq.s32.totalorder %s31, 1
    %p214 = por %p212, %p213
    %p215 = scmp.ne.s32.totalorder %s207, %s210
    %p216 = scmp.eq.s32.totalorder %s31, 0
    %p217 = por %p215, %p216
    %p218 = scmp.ne.s32.totalorder %s207, %s210
    %p219 = scmp.eq.s32.totalorder %s36, 1
    %p220 = por %p218, %p219
    %p221 = scmp.ne.s32.totalorder %s210, %s211
    %p222 = scmp.eq.s32.totalorder %s36, 0
    %p223 = por %p221, %p222
    %p224 = scmp.ne.s32.totalorder %s210, %s211
    %p225 = scmp.eq.s32.totalorder %s37, 1
    %p226 = por %p224, %p225
    %p228 = scmp.ne.s32.totalorder %s211, %s227
    %p229 = scmp.eq.s32.totalorder %s37, 0
    %p230 = por %p228, %p229
    %s231 = sld [smem:[#allocation3 + %s31]]
    %s232 = sld [smem:[#allocation3 + %s38]]
    %s233 = ssub.s32 %s231, %s232
    %p234 = scmp.eq.s32.totalorder %s233, 0
    %s236 = sadd.s32 %s235, 1
    %s237 = scalar_select %p234, %s235, %s236
    %p240 = pneg %p234
    %p241 = scmp.eq.s32.totalorder %s31, 1
    %p242 = por %p240, %p241
    %p243 = scmp.ne.s32.totalorder %s235, %s238
    %p244 = scmp.eq.s32.totalorder %s31, 0
    %p245 = por %p243, %p244
    %p246 = scmp.ne.s32.totalorder %s235, %s238
    %p247 = scmp.eq.s32.totalorder %s36, 1
    %p248 = por %p246, %p247
    %p249 = scmp.ne.s32.totalorder %s238, %s239
    %p250 = scmp.eq.s32.totalorder %s36, 0
    %p251 = por %p249, %p250
    %p252 = scmp.ne.s32.totalorder %s238, %s239
    %p253 = scmp.eq.s32.totalorder %s37, 1
    %p254 = por %p252, %p253
    %p256 = scmp.ne.s32.totalorder %s239, %s255
    %p257 = scmp.eq.s32.totalorder %s37, 0
    %p258 = por %p256, %p257
    %s259 = sld [smem:[#allocation3 + %s31]]
    %s260 = sld [smem:[#allocation3 + %s38]]
    %s261 = ssub.s32 %s259, %s260
    %p262 = scmp.eq.s32.totalorder %s261, 0
    %s264 = sadd.s32 %s263, 1
    %s265 = scalar_select %p262, %s263, %s264
    %p268 = pneg %p262
    %p269 = scmp.eq.s32.totalorder %s31, 1
    %p270 = por %p268, %p269
    %p271 = scmp.ne.s32.totalorder %s263, %s266
    %p272 = scmp.eq.s32.totalorder %s31, 0
    %p273 = por %p271, %p272
    %p274 = scmp.ne.s32.totalorder %s263, %s266
    %p275 = scmp.eq.s32.totalorder %s36, 1
    %p276 = por %p274, %p275
    %p277 = scmp.ne.s32.totalorder %s266, %s267
    %p278 = scmp.eq.s32.totalorder %s36, 0
    %p279 = por %p277, %p278
    %p280 = scmp.ne.s32.totalorder %s266, %s267
    %p281 = scmp.eq.s32.totalorder %s37, 1
    %p282 = por %p280, %p281
    %p284 = scmp.ne.s32.totalorder %s267, %s283
    %p285 = scmp.eq.s32.totalorder %s37, 0
    %p286 = por %p284, %p285
    %s287 = sld [smem:[#allocation3 + %s31]]
    %s288 = sld [smem:[#allocation3 + %s38]]
    %s289 = ssub.s32 %s287, %s288
    %p290 = scmp.eq.s32.totalorder %s289, 0
    %s292 = sadd.s32 %s291, 1
    %s293 = scalar_select %p290, %s291, %s292
    %p296 = pneg %p290
    %p297 = scmp.eq.s32.totalorder %s31, 1
    %p298 = por %p296, %p297
    %p299 = scmp.ne.s32.totalorder %s291, %s294
    %p300 = scmp.eq.s32.totalorder %s31, 0
    %p301 = por %p299, %p300
    %p302 = scmp.ne.s32.totalorder %s291, %s294
    %p303 = scmp.eq.s32.totalorder %s36, 1
    %p304 = por %p302, %p303
    %p305 = scmp.ne.s32.totalorder %s294, %s295
    %p306 = scmp.eq.s32.totalorder %s36, 0
    %p307 = por %p305, %p306
    %p308 = scmp.ne.s32.totalorder %s294, %s295
    %p309 = scmp.eq.s32.totalorder %s37, 1
    %p310 = por %p308, %p309
    %p312 = scmp.ne.s32.totalorder %s295, %s311
    %p313 = scmp.eq.s32.totalorder %s37, 0
    %p314 = por %p312, %p313
    %s315 = sld [smem:[#allocation3 + %s31]]
    %s316 = sld [smem:[#allocation3 + %s38]]
    %s317 = ssub.s32 %s315, %s316
    %p318 = scmp.eq.s32.totalorder %s317, 0
    %s320 = sadd.s32 %s319, 1
    %s321 = scalar_select %p318, %s319, %s320
    %p324 = pneg %p318
    %p325 = scmp.eq.s32.totalorder %s31, 1
    %p326 = por %p324, %p325
    %p327 = scmp.ne.s32.totalorder %s319, %s322
    %p328 = scmp.eq.s32.totalorder %s31, 0
    %p329 = por %p327, %p328
    %p330 = scmp.ne.s32.totalorder %s319, %s322
    %p331 = scmp.eq.s32.totalorder %s36, 1
    %p332 = por %p330, %p331
    %p333 = scmp.ne.s32.totalorder %s322, %s323
    %p334 = scmp.eq.s32.totalorder %s36, 0
    %p335 = por %p333, %p334
    %p336 = scmp.ne.s32.totalorder %s322, %s323
    %p337 = scmp.eq.s32.totalorder %s37, 1
    %p338 = por %p336, %p337
    %p340 = scmp.ne.s32.totalorder %s323, %s339
    %p341 = scmp.eq.s32.totalorder %s37, 0
    %p342 = por %p340, %p341
    %s343 = sld [smem:[#allocation3 + %s31]]
    %s344 = sld [smem:[#allocation3 + %s38]]
    %s345 = ssub.s32 %s343, %s344
    %p346 = scmp.eq.s32.totalorder %s345, 0
    %s348 = sadd.s32 %s347, 1
    %s349 = scalar_select %p346, %s347, %s348
    %p352 = pneg %p346
    %p353 = scmp.eq.s32.totalorder %s31, 1
    %p354 = por %p352, %p353
    %p355 = scmp.ne.s32.totalorder %s347, %s350
    %p356 = scmp.eq.s32.totalorder %s31, 0
    %p357 = por %p355, %p356
    %p358 = scmp.ne.s32.totalorder %s347, %s350
    %p359 = scmp.eq.s32.totalorder %s36, 1
    %p360 = por %p358, %p359
    %p361 = scmp.ne.s32.totalorder %s350, %s351
    %p362 = scmp.eq.s32.totalorder %s36, 0
    %p363 = por %p361, %p362
    %p364 = scmp.ne.s32.totalorder %s350, %s351
    %p365 = scmp.eq.s32.totalorder %s37, 1
    %p366 = por %p364, %p365
    %p368 = scmp.ne.s32.totalorder %s351, %s367
    %p369 = scmp.eq.s32.totalorder %s37, 0
    %p370 = por %p368, %p369
    %s371 = sld [smem:[#allocation3 + %s31]]
    %s372 = sld [smem:[#allocation3 + %s38]]
    %s373 = ssub.s32 %s371, %s372
    %p374 = scmp.eq.s32.totalorder %s373, 0
    %s376 = sadd.s32 %s375, 1
    %s377 = scalar_select %p374, %s375, %s376
    %p380 = pneg %p374
    %p381 = scmp.eq.s32.totalorder %s31, 1
    %p382 = por %p380, %p381
    %p383 = scmp.ne.s32.totalorder %s375, %s378
    %p384 = scmp.eq.s32.totalorder %s31, 0
    %p385 = por %p383, %p384
    %p386 = scmp.ne.s32.totalorder %s375, %s378
    %p387 = scmp.eq.s32.totalorder %s36, 1
    %p388 = por %p386, %p387
    %p389 = scmp.ne.s32.totalorder %s378, %s379
    %p390 = scmp.eq.s32.totalorder %s36, 0
    %p391 = por %p389, %p390
    %p392 = scmp.ne.s32.totalorder %s378, %s379
    %p393 = scmp.eq.s32.totalorder %s37, 1
    %p394 = por %p392, %p393
    %p396 = scmp.ne.s32.totalorder %s379, %s395
    %p397 = scmp.eq.s32.totalorder %s37, 0
    %p398 = por %p396, %p397
    %s399 = ssub.s32 %s31, %s38
    %p400 = scmp.eq.s32.totalorder %s399, 0
    %s402 = sadd.s32 %s401, 1
    %s403 = scalar_select %p400, %s401, %s402
    %p406 = pneg %p400
    %p407 = scmp.eq.s32.totalorder %s31, 1
    %p408 = por %p406, %p407
    %p409 = scmp.ne.s32.totalorder %s401, %s404
    %p410 = scmp.eq.s32.totalorder %s31, 0
    %p411 = por %p409, %p410
    %p412 = scmp.ne.s32.totalorder %s401, %s404
    %p413 = scmp.eq.s32.totalorder %s36, 1
    %p414 = por %p412, %p413
    %p415 = scmp.ne.s32.totalorder %s404, %s405
    %p416 = scmp.eq.s32.totalorder %s36, 0
    %p417 = por %p415, %p416
    %p418 = scmp.ne.s32.totalorder %s404, %s405
    %p419 = scmp.eq.s32.totalorder %s37, 1
    %p420 = por %p418, %p419
    %p422 = scmp.ne.s32.totalorder %s405, %s421
    %p423 = scmp.eq.s32.totalorder %s37, 0
    %p424 = por %p422, %p423
    %p425 = scmp.le.s32.totalorder 1, %s31
    %p426 = scmp.lt.s32.totalorder %s31, 3
    %p427 = pnand %p425, %p426
    %p428 = pneg %p427
    // Predicated region
    $region9: #{pes_forward.3} parent=5 // pred_check
      _
    $region10: #{pes_forward.3} parent=5 // pred_check_branch
      %430 = sbr.rel (%p427) target = $region12
    $region11: #{pes_forward.3} parent=5 // pred_region
      %s431 = ssub.s32 %s31, 1
    $region12: #{pes_forward.3} parent=5 // pred_fallthru
      _
    %p432 = scmp.lt.s32.totalorder %s31, 2
    // Predicated region
    $region13: #{pes_forward.3} parent=5 // pred_check
      %p433 = pneg %p432
    $region14: #{pes_forward.3} parent=5 // pred_check_branch
      %435 = sbr.rel (%p433) target = $region16
    $region15: #{pes_forward.3} parent=5 // pred_region
      // Predicated region
      $region17: #{pes_forward.3} parent=15 // pred_check
        %p436 = pneg %p51
      $region18: #{pes_forward.3} parent=15 // pred_check_branch
        %438 = sbr.rel (%p436) target = $region20
      $region19: #{pes_forward.3} parent=15 // pred_region
        %p439 = scmp.lt.s32.totalorder %s31, 1
        %s440 = scalar_select %p439, %s31, 1
        %s441 = smul.addr %s440, 8
        %s442 = scalar_lea.vmem %s2, %s441
      $region20: #{pes_forward.3} parent=15 // pred_fallthru
        _
      // Predicated region
      $region21: #{pes_forward.3} parent=15 // pred_check
        %p443 = pneg %p77
      $region22: #{pes_forward.3} parent=15 // pred_check_branch
        %445 = sbr.rel (%p443) target = $region24
      $region23: #{pes_forward.3} parent=15 // pred_region
        %p446 = scmp.lt.s32.totalorder %s31, 1
        %s447 = scalar_select %p446, %s31, 1
        %s448 = smul.addr %s447, 8
        %s449 = scalar_lea.vmem %s3, %s448
      $region24: #{pes_forward.3} parent=15 // pred_fallthru
        _
      // Predicated region
      $region25: #{pes_forward.3} parent=15 // pred_check
        %p450 = pneg %p105
      $region26: #{pes_forward.3} parent=15 // pred_check_branch
        %452 = sbr.rel (%p450) target = $region28
      $region27: #{pes_forward.3} parent=15 // pred_region
        %s453 = sld [smem:[#allocation3 + %s31]]
        %p454 = scmp.lt.s32.totalorder %s453, 1
        %s455 = scalar_select %p454, %s453, 1
        %s456 = smul.addr %s455, 16
        %s457 = smul.addr %s456, 4
        %s458 = scalar_lea.vmem %s4, %s457
        %s459 = sld [smem:[#allocation3 + %s31]]
      $region28: #{pes_forward.3} parent=15 // pred_fallthru
        _
      // Predicated region
      $region29: #{pes_forward.3} parent=15 // pred_check
        %p460 = pneg %p133
      $region30: #{pes_forward.3} parent=15 // pred_check_branch
        %462 = sbr.rel (%p460) target = $region32
      $region31: #{pes_forward.3} parent=15 // pred_region
        %s463 = sld [smem:[#allocation3 + %s31]]
        %p464 = scmp.lt.s32.totalorder %s463, 1
        %s465 = scalar_select %p464, %s463, 1
        %s466 = scalar_lea.vmem %s5, %s465
        %s467 = sld [smem:[#allocation3 + %s31]]
      $region32: #{pes_forward.3} parent=15 // pred_fallthru
        _
      // Predicated region
      $region33: #{pes_forward.3} parent=15 // pred_check
        %p468 = pneg %p161
      $region34: #{pes_forward.3} parent=15 // pred_check_branch
        %470 = sbr.rel (%p468) target = $region36
      $region35: #{pes_forward.3} parent=15 // pred_region
        %s471 = sld [smem:[#allocation3 + %s31]]
        %p472 = scmp.lt.s32.totalorder %s471, 1
        %s473 = scalar_select %p472, %s471, 1
        %s474 = smul.addr %s473, 16
        %s475 = smul.addr %s474, 4
        %s476 = scalar_lea.vmem %s6, %s475
        %s477 = sld [smem:[#allocation3 + %s31]]
      $region36: #{pes_forward.3} parent=15 // pred_fallthru
        _
      // Predicated region
      $region37: #{pes_forward.3} parent=15 // pred_check
        %p478 = pneg %p189
      $region38: #{pes_forward.3} parent=15 // pred_check_branch
        %480 = sbr.rel (%p478) target = $region40
      $region39: #{pes_forward.3} parent=15 // pred_region
        %s481 = sld [smem:[#allocation3 + %s31]]
        %p482 = scmp.lt.s32.totalorder %s481, 1
        %s483 = scalar_select %p482, %s481, 1
        %s484 = scalar_lea.vmem %s7, %s483
        %s485 = sld [smem:[#allocation3 + %s31]]
      $region40: #{pes_forward.3} parent=15 // pred_fallthru
        _
      // Predicated region
      $region41: #{pes_forward.3} parent=15 // pred_check
        %p486 = pneg %p217
      $region42: #{pes_forward.3} parent=15 // pred_check_branch
        %488 = sbr.rel (%p486) target = $region44
      $region43: #{pes_forward.3} parent=15 // pred_region
        %s489 = sld [smem:[#allocation3 + %s31]]
        %p490 = scmp.lt.s32.totalorder %s489, 1
        %s491 = scalar_select %p490, %s489, 1
        %s492 = smul.addr %s491, 16
        %s493 = smul.addr %s492, 4
        %s494 = scalar_lea.vmem %s8, %s493
        %s495 = sld [smem:[#allocation3 + %s31]]
      $region44: #{pes_forward.3} parent=15 // pred_fallthru
        _
      // Predicated region
      $region45: #{pes_forward.3} parent=15 // pred_check
        %p496 = pneg %p245
      $region46: #{pes_forward.3} parent=15 // pred_check_branch
        %498 = sbr.rel (%p496) target = $region48
      $region47: #{pes_forward.3} parent=15 // pred_region
        %s499 = sld [smem:[#allocation3 + %s31]]
        %p500 = scmp.lt.s32.totalorder %s499, 1
        %s501 = scalar_select %p500, %s499, 1
        %s502 = scalar_lea.vmem %s9, %s501
        %s503 = sld [smem:[#allocation3 + %s31]]
      $region48: #{pes_forward.3} parent=15 // pred_fallthru
        _
      // Predicated region
      $region49: #{pes_forward.3} parent=15 // pred_check
        %p504 = pneg %p273
      $region50: #{pes_forward.3} parent=15 // pred_check_branch
        %506 = sbr.rel (%p504) target = $region52
      $region51: #{pes_forward.3} parent=15 // pred_region
        %s507 = sld [smem:[#allocation3 + %s31]]
        %p508 = scmp.lt.s32.totalorder %s507, 1
        %s509 = scalar_select %p508, %s507, 1
        %s510 = smul.addr %s509, 16
        %s511 = smul.addr %s510, 4
        %s512 = scalar_lea.vmem %s10, %s511
        %s513 = sld [smem:[#allocation3 + %s31]]
      $region52: #{pes_forward.3} parent=15 // pred_fallthru
        _
      // Predicated region
      $region53: #{pes_forward.3} parent=15 // pred_check
        %p514 = pneg %p301
      $region54: #{pes_forward.3} parent=15 // pred_check_branch
        %516 = sbr.rel (%p514) target = $region56
      $region55: #{pes_forward.3} parent=15 // pred_region
        %s517 = sld [smem:[#allocation3 + %s31]]
        %p518 = scmp.lt.s32.totalorder %s517, 1
        %s519 = scalar_select %p518, %s517, 1
        %s520 = smul.addr %s519, 4
        %s521 = scalar_lea.vmem %s11, %s520
        %s522 = sld [smem:[#allocation3 + %s31]]
      $region56: #{pes_forward.3} parent=15 // pred_fallthru
        _
      // Predicated region
      $region57: #{pes_forward.3} parent=15 // pred_check
        %p523 = pneg %p329
      $region58: #{pes_forward.3} parent=15 // pred_check_branch
        %525 = sbr.rel (%p523) target = $region60
      $region59: #{pes_forward.3} parent=15 // pred_region
        %s526 = sld [smem:[#allocation3 + %s31]]
        %p527 = scmp.lt.s32.totalorder %s526, 1
        %s528 = scalar_select %p527, %s526, 1
        %s529 = smul.addr %s528, 4
        %s530 = scalar_lea.vmem %s12, %s529
        %s531 = sld [smem:[#allocation3 + %s31]]
      $region60: #{pes_forward.3} parent=15 // pred_fallthru
        _
      // Predicated region
      $region61: #{pes_forward.3} parent=15 // pred_check
        %p532 = pneg %p357
      $region62: #{pes_forward.3} parent=15 // pred_check_branch
        %534 = sbr.rel (%p532) target = $region64
      $region63: #{pes_forward.3} parent=15 // pred_region
        %s535 = sld [smem:[#allocation3 + %s31]]
        %p536 = scmp.lt.s32.totalorder %s535, 1
        %s537 = scalar_select %p536, %s535, 1
        %s538 = smul.addr %s537, 4
        %s539 = scalar_lea.vmem %s13, %s538
        %s540 = sld [smem:[#allocation3 + %s31]]
      $region64: #{pes_forward.3} parent=15 // pred_fallthru
        _
      // Predicated region
      $region65: #{pes_forward.3} parent=15 // pred_check
        %p541 = pneg %p385
      $region66: #{pes_forward.3} parent=15 // pred_check_branch
        %543 = sbr.rel (%p541) target = $region68
      $region67: #{pes_forward.3} parent=15 // pred_region
        %s544 = sld [smem:[#allocation3 + %s31]]
        %p545 = scmp.lt.s32.totalorder %s544, 1
        %s546 = scalar_select %p545, %s544, 1
        %s547 = smul.addr %s546, 4
        %s548 = scalar_lea.vmem %s14, %s547
        %s549 = sld [smem:[#allocation3 + %s31]]
      $region68: #{pes_forward.3} parent=15 // pred_fallthru
        _
    $region16: #{pes_forward.3} parent=5 // pred_fallthru
      _
    %p550 = scmp.le.s32.totalorder 1, %s31
    %p551 = scmp.lt.s32.totalorder %s31, 3
    %p552 = pnand %p550, %p551
    %p553 = pneg %p552
    // Predicated region
    $region69: #{pes_forward.3} parent=5 // pred_check
      _
    $region70: #{pes_forward.3} parent=5 // pred_check_branch
      %555 = sbr.rel (%p552) target = $region72
    $region71: #{pes_forward.3} parent=5 // pred_region
      %s556 = ssub.s32 %s31, 1
      %p557 = scmp.lt.s32.totalorder %s36, 1
      %s558 = scalar_select %p557, %s36, 1
      %s559 = smul.addr %s558, 8
      %s560 = scalar_lea.vmem %s2, %s559
      %p561 = pneg %p57
      %p562 = pneg %p54
      %p563 = scmp.lt.s32.totalorder %s36, 1
      %s564 = scalar_select %p563, %s36, 1
      %s565 = smul.addr %s564, 8
      %s566 = scalar_lea.vmem %s3, %s565
      %p567 = pneg %p83
      %p568 = pneg %p80
      %s569 = sld [smem:[#allocation3 + %s36]]
      %p570 = scmp.lt.s32.totalorder %s569, 1
      %s571 = scalar_select %p570, %s569, 1
      %s572 = smul.addr %s571, 16
      %s573 = smul.addr %s572, 4
      %s574 = scalar_lea.vmem %s4, %s573
      %p575 = pneg %p111
      %p576 = pneg %p108
      %s577 = sld [smem:[#allocation3 + %s36]]
      %p578 = scmp.lt.s32.totalorder %s577, 1
      %s579 = scalar_select %p578, %s577, 1
      %s580 = scalar_lea.vmem %s5, %s579
      %p581 = pneg %p139
      %p582 = pneg %p136
      %s583 = sld [smem:[#allocation3 + %s36]]
      %p584 = scmp.lt.s32.totalorder %s583, 1
      %s585 = scalar_select %p584, %s583, 1
      %s586 = smul.addr %s585, 16
      %s587 = smul.addr %s586, 4
      %s588 = scalar_lea.vmem %s6, %s587
      %p589 = pneg %p167
      %p590 = pneg %p164
      %s591 = sld [smem:[#allocation3 + %s36]]
      %p592 = scmp.lt.s32.totalorder %s591, 1
      %s593 = scalar_select %p592, %s591, 1
      %s594 = scalar_lea.vmem %s7, %s593
      %p595 = pneg %p195
      %p596 = pneg %p192
      %s597 = sld [smem:[#allocation3 + %s36]]
      %p598 = scmp.lt.s32.totalorder %s597, 1
      %s599 = scalar_select %p598, %s597, 1
      %s600 = smul.addr %s599, 16
      %s601 = smul.addr %s600, 4
      %s602 = scalar_lea.vmem %s8, %s601
      %p603 = pneg %p223
      %p604 = pneg %p220
      %s605 = sld [smem:[#allocation3 + %s36]]
      %p606 = scmp.lt.s32.totalorder %s605, 1
      %s607 = scalar_select %p606, %s605, 1
      %s608 = scalar_lea.vmem %s9, %s607
      %p609 = pneg %p251
      %p610 = pneg %p248
      %s611 = sld [smem:[#allocation3 + %s36]]
      %p612 = scmp.lt.s32.totalorder %s611, 1
      %s613 = scalar_select %p612, %s611, 1
      %s614 = smul.addr %s613, 16
      %s615 = smul.addr %s614, 4
      %s616 = scalar_lea.vmem %s10, %s615
      %p617 = pneg %p279
      %p618 = pneg %p276
      %s619 = sld [smem:[#allocation3 + %s36]]
      %p620 = scmp.lt.s32.totalorder %s619, 1
      %s621 = scalar_select %p620, %s619, 1
      %s622 = smul.addr %s621, 4
      %s623 = scalar_lea.vmem %s11, %s622
      %p624 = pneg %p307
      %p625 = pneg %p304
      %s626 = sld [smem:[#allocation3 + %s36]]
      %p627 = scmp.lt.s32.totalorder %s626, 1
      %s628 = scalar_select %p627, %s626, 1
      %s629 = smul.addr %s628, 4
      %s630 = scalar_lea.vmem %s12, %s629
      %p631 = pneg %p335
      %p632 = pneg %p332
      %s633 = sld [smem:[#allocation3 + %s36]]
      %p634 = scmp.lt.s32.totalorder %s633, 1
      %s635 = scalar_select %p634, %s633, 1
      %s636 = smul.addr %s635, 4
      %s637 = scalar_lea.vmem %s13, %s636
      %p638 = pneg %p363
      %p639 = pneg %p360
      %s640 = sld [smem:[#allocation3 + %s36]]
      %p641 = scmp.lt.s32.totalorder %s640, 1
      %s642 = scalar_select %p641, %s640, 1
      %s643 = smul.addr %s642, 4
      %s644 = scalar_lea.vmem %s14, %s643
      %p645 = pneg %p391
      %p646 = pneg %p388
      %p647 = pneg %p417
      %p648 = pneg %p414
      %p649 = scmp.lt.s32.totalorder %s36, 1
      %s650 = scalar_select %p649, %s36, 1
      %s651 = smul.addr %s650, 8
      %s652 = scalar_lea.vmem %s15, %s651
      %p653 = scmp.lt.s32.totalorder %s36, 1
      %s654 = scalar_select %p653, %s36, 1
      %s655 = smul.addr %s654, 8
      %s656 = scalar_lea.vmem %s2, %s655
      %p657 = scmp.lt.s32.totalorder %s36, 1
      %s658 = scalar_select %p657, %s36, 1
      %s659 = smul.addr %s658, 8
      %s660 = scalar_lea.vmem %s3, %s659
      %s661 = sld [smem:[#allocation3 + %s36]]
      %p662 = scmp.lt.s32.totalorder %s661, 1
      %s663 = scalar_select %p662, %s661, 1
      %s664 = smul.addr %s663, 16
      %s665 = smul.addr %s664, 4
      %s666 = scalar_lea.vmem %s4, %s665
      %s667 = sld [smem:[#allocation3 + %s36]]
      %s668 = sld [smem:[#allocation3 + %s36]]
      %p669 = scmp.lt.s32.totalorder %s668, 1
      %s670 = scalar_select %p669, %s668, 1
      %s671 = scalar_lea.vmem %s5, %s670
      %s672 = sld [smem:[#allocation3 + %s36]]
      %s673 = sld [smem:[#allocation3 + %s36]]
      %p674 = scmp.lt.s32.totalorder %s673, 1
      %s675 = scalar_select %p674, %s673, 1
      %s676 = smul.addr %s675, 16
      %s677 = smul.addr %s676, 4
      %s678 = scalar_lea.vmem %s6, %s677
      %s679 = sld [smem:[#allocation3 + %s36]]
      %s680 = sld [smem:[#allocation3 + %s36]]
      %p681 = scmp.lt.s32.totalorder %s680, 1
      %s682 = scalar_select %p681, %s680, 1
      %s683 = scalar_lea.vmem %s7, %s682
      %s684 = sld [smem:[#allocation3 + %s36]]
      %s685 = sld [smem:[#allocation3 + %s36]]
      %p686 = scmp.lt.s32.totalorder %s685, 1
      %s687 = scalar_select %p686, %s685, 1
      %s688 = smul.addr %s687, 16
      %s689 = smul.addr %s688, 4
      %s690 = scalar_lea.vmem %s8, %s689
      %s691 = sld [smem:[#allocation3 + %s36]]
      %s692 = sld [smem:[#allocation3 + %s36]]
      %p693 = scmp.lt.s32.totalorder %s692, 1
      %s694 = scalar_select %p693, %s692, 1
      %s695 = scalar_lea.vmem %s9, %s694
      %s696 = sld [smem:[#allocation3 + %s36]]
      %s697 = sld [smem:[#allocation3 + %s36]]
      %p698 = scmp.lt.s32.totalorder %s697, 1
      %s699 = scalar_select %p698, %s697, 1
      %s700 = smul.addr %s699, 16
      %s701 = smul.addr %s700, 4
      %s702 = scalar_lea.vmem %s10, %s701
      %s703 = sld [smem:[#allocation3 + %s36]]
      %s704 = sld [smem:[#allocation3 + %s36]]
      %p705 = scmp.lt.s32.totalorder %s704, 1
      %s706 = scalar_select %p705, %s704, 1
      %s707 = smul.addr %s706, 4
      %s708 = scalar_lea.vmem %s11, %s707
      %s709 = sld [smem:[#allocation3 + %s36]]
      %s710 = sld [smem:[#allocation3 + %s36]]
      %p711 = scmp.lt.s32.totalorder %s710, 1
      %s712 = scalar_select %p711, %s710, 1
      %s713 = smul.addr %s712, 4
      %s714 = scalar_lea.vmem %s12, %s713
      %s715 = sld [smem:[#allocation3 + %s36]]
      %s716 = sld [smem:[#allocation3 + %s36]]
      %p717 = scmp.lt.s32.totalorder %s716, 1
      %s718 = scalar_select %p717, %s716, 1
      %s719 = smul.addr %s718, 4
      %s720 = scalar_lea.vmem %s13, %s719
      %s721 = sld [smem:[#allocation3 + %s36]]
      %s722 = sld [smem:[#allocation3 + %s36]]
      %p723 = scmp.lt.s32.totalorder %s722, 1
      %s724 = scalar_select %p723, %s722, 1
      %s725 = smul.addr %s724, 4
      %s726 = scalar_lea.vmem %s14, %s725
      %s727 = sld [smem:[#allocation3 + %s36]]
      %p728 = scmp.lt.s32.totalorder %s36, 1
      %s729 = scalar_select %p728, %s36, 1
      %s730 = smul.addr %s729, 8
      %s731 = scalar_lea.vmem %s15, %s730
      %v733 = vld [vmem:[%s708] sm:$0x7]
      %v734 = vld [vmem:[%s714] sm:$0x7]
      %v735 = vld [vmem:[%s720] sm:$0x7]
      %v736 = vld [vmem:[%s726] sm:$0x7]
      %v737 = vld [vmem:[%s656] sm:$0xff]
      %v738 = vld [vmem:[%s666] sm:$0xf]
      %v739 = vld [vmem:[%s666 + $0x4] sm:$0xf]
      %v740 = vld [vmem:[%s666 + $0x8] sm:$0xf]
      %v741 = vld [vmem:[%s666 + $0xc] sm:$0xf]
      %v742 = vld [vmem:[%s666 + $0x10] sm:$0xf]
      %v743 = vld [vmem:[%s666 + $0x14] sm:$0xf]
      %v744 = vld [vmem:[%s666 + $0x18] sm:$0xf]
      %v745 = vld [vmem:[%s666 + $0x1c] sm:$0xf]
      %v746 = vld [vmem:[%s666 + $0x20] sm:$0xf]
      %v747 = vld [vmem:[%s666 + $0x24] sm:$0xf]
      %v748 = vld [vmem:[%s666 + $0x28] sm:$0xf]
      %v749 = vld [vmem:[%s666 + $0x2c] sm:$0xf]
      %v750 = vld [vmem:[%s666 + $0x30] sm:$0xf]
      %v751 = vld [vmem:[%s666 + $0x34] sm:$0xf]
      %v752 = vld [vmem:[%s666 + $0x38] sm:$0xf]
      %v753 = vld [vmem:[%s666 + $0x3c] sm:$0xf]
      %v754 = vld [vmem:[%s671] sm:$0x1]
      %v755 = vld [vmem:[%s678] sm:$0xf]
      %v756 = vld [vmem:[%s678 + $0x4] sm:$0xf]
      %v757 = vld [vmem:[%s678 + $0x8] sm:$0xf]
      %v758 = vld [vmem:[%s678 + $0xc] sm:$0xf]
      %v759 = vld [vmem:[%s678 + $0x10] sm:$0xf]
      %v760 = vld [vmem:[%s678 + $0x14] sm:$0xf]
      %v761 = vld [vmem:[%s678 + $0x18] sm:$0xf]
      %v762 = vld [vmem:[%s678 + $0x1c] sm:$0xf]
      %v763 = vld [vmem:[%s678 + $0x20] sm:$0xf]
      %v764 = vld [vmem:[%s678 + $0x24] sm:$0xf]
      %v765 = vld [vmem:[%s678 + $0x28] sm:$0xf]
      %v766 = vld [vmem:[%s678 + $0x2c] sm:$0xf]
      %v767 = vld [vmem:[%s678 + $0x30] sm:$0xf]
      %v768 = vld [vmem:[%s678 + $0x34] sm:$0xf]
      %v769 = vld [vmem:[%s678 + $0x38] sm:$0xf]
      %v770 = vld [vmem:[%s678 + $0x3c] sm:$0xf]
      %v771 = vld [vmem:[%s683] sm:$0x1]
      %v772 = vld [vmem:[%s690] sm:$0xf]
      %v773 = vld [vmem:[%s690 + $0x4] sm:$0xf]
      %v774 = vld [vmem:[%s690 + $0x8] sm:$0xf]
      %v775 = vld [vmem:[%s690 + $0xc] sm:$0xf]
      %v776 = vld [vmem:[%s690 + $0x10] sm:$0xf]
      %v777 = vld [vmem:[%s690 + $0x14] sm:$0xf]
      %v778 = vld [vmem:[%s690 + $0x18] sm:$0xf]
      %v779 = vld [vmem:[%s690 + $0x1c] sm:$0xf]
      %v780 = vld [vmem:[%s690 + $0x20] sm:$0xf]
      %v781 = vld [vmem:[%s690 + $0x24] sm:$0xf]
      %v782 = vld [vmem:[%s690 + $0x28] sm:$0xf]
      %v783 = vld [vmem:[%s690 + $0x2c] sm:$0xf]
      %v784 = vld [vmem:[%s690 + $0x30] sm:$0xf]
      %v785 = vld [vmem:[%s690 + $0x34] sm:$0xf]
      %v786 = vld [vmem:[%s690 + $0x38] sm:$0xf]
      %v787 = vld [vmem:[%s690 + $0x3c] sm:$0xf]
      %v788 = vld [vmem:[%s695] sm:$0x1]
      %v789 = vpack.c.bf16 %v737, %v737
      %v791 = vlaneseq
      %v792 = vshrl.u32 %v791, 7
      %v793 = vsub.s32 0, %v792
      %v794 = vrot.slane %v754, %v793
      %v812 = vunpack.c.l.b16 %v738
      %v813 = vunpack.c.l.b16 %v739
      %v814 = vunpack.c.l.b16 %v740
      %v815 = vunpack.c.l.b16 %v741
      %v816 = vunpack.c.l.b16 %v742
      %v817 = vunpack.c.l.b16 %v743
      %v818 = vunpack.c.l.b16 %v744
      %v819 = vunpack.c.l.b16 %v745
      %v820 = vunpack.c.l.b16 %v746
      %v821 = vunpack.c.l.b16 %v747
      %v822 = vunpack.c.l.b16 %v748
      %v823 = vunpack.c.l.b16 %v749
      %v824 = vunpack.c.l.b16 %v750
      %v825 = vunpack.c.l.b16 %v751
      %v826 = vunpack.c.l.b16 %v752
      %v827 = vunpack.c.l.b16 %v753
      %v828 = vpack.c.b16 %v813, %v812
      %v829 = vpack.c.b16 %v815, %v814
      %v830 = vpack.c.b16 %v817, %v816
      %v831 = vpack.c.b16 %v819, %v818
      %v832 = vpack.c.b16 %v821, %v820
      %v833 = vpack.c.b16 %v823, %v822
      %v834 = vpack.c.b16 %v825, %v824
      %v835 = vpack.c.b16 %v827, %v826
      %844 = vmatprep.subr.bf16.mxu0 0
      %845 = vmatpush1.bf16.msra.mxu0 %v835
      %846 = vmatprep.subr.bf16.mxu0 0
      %847 = vmatpush1.bf16.msra.mxu0 %v834
      %848 = vmatprep.subr.bf16.mxu0 0
      %849 = vmatpush1.bf16.msra.mxu0 %v833
      %850 = vmatprep.subr.bf16.mxu0 0
      %851 = vmatpush1.bf16.msra.mxu0 %v832
      %852 = vmatprep.subr.bf16.mxu0 0
      %853 = vmatpush1.bf16.msra.mxu0 %v831
      %854 = vmatprep.subr.bf16.mxu0 0
      %855 = vmatpush1.bf16.msra.mxu0 %v830
      %856 = vmatprep.subr.bf16.mxu0 0
      %857 = vmatpush1.bf16.msra.mxu0 %v829
      %858 = vmatprep.subr.bf16.mxu0 0
      %859 = vmatpush1.bf16.msra.mxu0 %v828
      %860 = vmatprep.subr.bf16.mxu0 0
      %861 = vmatpush2.bf16.msra.mxu0 0
      %862 = vmatprep.subr.bf16.mxu0 0
      %863 = vmatpush2.bf16.msra.mxu0 0
      %864 = vmatprep.subr.bf16.mxu0 0
      %865 = vmatpush2.bf16.msra.mxu0 0
      %866 = vmatprep.subr.bf16.mxu0 0
      %867 = vmatpush2.bf16.msra.mxu0 0
      %868 = vmatprep.subr.bf16.mxu0 0
      %869 = vmatpush2.bf16.msra.mxu0 0
      %870 = vmatprep.subr.bf16.mxu0 0
      %871 = vmatpush2.bf16.msra.mxu0 0
      %872 = vmatprep.subr.bf16.mxu0 0
      %873 = vmatpush2.bf16.msra.mxu0 0
      %874 = vmatprep.subr.bf16.mxu0 0
      %875 = vmatpush2.bf16.msra.mxu0 0
      %876 = vmatprep.mubr.bf16.mxu0 0
      %877 = vmatmul.mubr.bf16.gmra.mxu0 %v789
      %v878 = vpop.f32.mrf.mxu0
      %v879 = vadd.f32 %v794, %v878
      %v880 = vpop.f32.mrf.mxu0
      %v881 = vpop.f32.mrf.mxu0
      %v882 = vpop.f32.mrf.mxu0
      %883 = vdwg.mxu0
      %884 = vadd.xlane.f32.xlu0 %v879
      %v885 = vpop.xlane.xlu0 %884
      %v886 = vrcp.pop 128.0
      %v887 = vmul.f32 %v885, %v886
      %v888 = vsub.f32 %v879, %v887
      %v889 = vmul.f32 %v888, %v888
      %890 = vadd.xlane.f32.xlu0 %v889
      %v891 = vpop.xlane.xlu0 %890
      %v892 = vmul.f32 %v891, %v886
      %v893 = vadd.f32 %v892, 1e-05
      %v894 = vrsqrt.pop %v893
      %v895 = vmul.f32 %v888, %v894
      %v896 = vlaneseq
      %v897 = vshrl.u32 %v896, 7
      %v898 = vsub.s32 0, %v897
      %v899 = vrot.slane %v733, %v898
      %v900 = vmul.f32 %v895, %v899
      %v901 = vlaneseq
      %v902 = vshrl.u32 %v901, 7
      %v903 = vsub.s32 0, %v902
      %v904 = vrot.slane %v734, %v903
      %v905 = vadd.f32 %v900, %v904
      %v906 = vlaneseq
      %v907 = vshrl.u32 %v906, 7
      %v908 = vsub.s32 0, %v907
      %v909 = vrot.slane %v736, %v908
      %v910 = vmul.f32 %v909, %v905
      %v911 = vlaneseq
      %v912 = vshrl.u32 %v911, 7
      %v913 = vsub.s32 0, %v912
      %v914 = vrot.slane %v735, %v913
      %v915 = vmul.f32 %v914, %v910
      %v916 = vxor.u32 %v910, 2147483648
      %v917 = vmul.f32 %v916, 1.442695
      %v918 = vpow.pop %v917
      %v919 = vadd.f32 %v918, 1.0
      %v920 = vrcp.pop %v919
      %v921 = vmul.f32 1.0, %v920
      %v922 = vmul.f32 %v915, %v921
      %v923 = vpack.c.bf16 %v922, %v922
      %v925 = vlaneseq
      %v926 = vshrl.u32 %v925, 7
      %v927 = vsub.s32 0, %v926
      %v928 = vrot.slane %v771, %v927
      %v946 = vunpack.c.l.b16 %v755
      %v947 = vunpack.c.l.b16 %v756
      %v948 = vunpack.c.l.b16 %v757
      %v949 = vunpack.c.l.b16 %v758
      %v950 = vunpack.c.l.b16 %v759
      %v951 = vunpack.c.l.b16 %v760
      %v952 = vunpack.c.l.b16 %v761
      %v953 = vunpack.c.l.b16 %v762
      %v954 = vunpack.c.l.b16 %v763
      %v955 = vunpack.c.l.b16 %v764
      %v956 = vunpack.c.l.b16 %v765
      %v957 = vunpack.c.l.b16 %v766
      %v958 = vunpack.c.l.b16 %v767
      %v959 = vunpack.c.l.b16 %v768
      %v960 = vunpack.c.l.b16 %v769
      %v961 = vunpack.c.l.b16 %v770
      %v962 = vpack.c.b16 %v947, %v946
      %v963 = vpack.c.b16 %v949, %v948
      %v964 = vpack.c.b16 %v951, %v950
      %v965 = vpack.c.b16 %v953, %v952
      %v966 = vpack.c.b16 %v955, %v954
      %v967 = vpack.c.b16 %v957, %v956
      %v968 = vpack.c.b16 %v959, %v958
      %v969 = vpack.c.b16 %v961, %v960
      %978 = vmatprep.subr.bf16.mxu0 0
      %979 = vmatpush1.bf16.msra.mxu0 %v969
      %980 = vmatprep.subr.bf16.mxu0 0
      %981 = vmatpush1.bf16.msra.mxu0 %v968
      %982 = vmatprep.subr.bf16.mxu0 0
      %983 = vmatpush1.bf16.msra.mxu0 %v967
      %984 = vmatprep.subr.bf16.mxu0 0
      %985 = vmatpush1.bf16.msra.mxu0 %v966
      %986 = vmatprep.subr.bf16.mxu0 0
      %987 = vmatpush1.bf16.msra.mxu0 %v965
      %988 = vmatprep.subr.bf16.mxu0 0
      %989 = vmatpush1.bf16.msra.mxu0 %v964
      %990 = vmatprep.subr.bf16.mxu0 0
      %991 = vmatpush1.bf16.msra.mxu0 %v963
      %992 = vmatprep.subr.bf16.mxu0 0
      %993 = vmatpush1.bf16.msra.mxu0 %v962
      %994 = vmatprep.subr.bf16.mxu0 0
      %995 = vmatpush2.bf16.msra.mxu0 0
      %996 = vmatprep.subr.bf16.mxu0 0
      %997 = vmatpush2.bf16.msra.mxu0 0
      %998 = vmatprep.subr.bf16.mxu0 0
      %999 = vmatpush2.bf16.msra.mxu0 0
      %1000 = vmatprep.subr.bf16.mxu0 0
      %1001 = vmatpush2.bf16.msra.mxu0 0
      %1002 = vmatprep.subr.bf16.mxu0 0
      %1003 = vmatpush2.bf16.msra.mxu0 0
      %1004 = vmatprep.subr.bf16.mxu0 0
      %1005 = vmatpush2.bf16.msra.mxu0 0
      %1006 = vmatprep.subr.bf16.mxu0 0
      %1007 = vmatpush2.bf16.msra.mxu0 0
      %1008 = vmatprep.subr.bf16.mxu0 0
      %1009 = vmatpush2.bf16.msra.mxu0 0
      %1010 = vmatprep.mubr.bf16.mxu0 0
      %1011 = vmatmul.mubr.bf16.gmra.mxu0 %v923
      %v1012 = vpop.f32.mrf.mxu0
      %v1013 = vadd.f32 %v928, %v1012
      %v1014 = vpop.f32.mrf.mxu0
      %v1015 = vpop.f32.mrf.mxu0
      %v1016 = vpop.f32.mrf.mxu0
      %1017 = vdwg.mxu0
      %1018 = vadd.xlane.f32.xlu0 %v1013
      %v1019 = vpop.xlane.xlu0 %1018
      %v1020 = vmul.f32 %v1019, %v886
      %v1021 = vsub.f32 %v1013, %v1020
      %v1022 = vmul.f32 %v1021, %v1021
      %1023 = vadd.xlane.f32.xlu0 %v1022
      %v1024 = vpop.xlane.xlu0 %1023
      %v1025 = vmul.f32 %v1024, %v886
      %v1026 = vadd.f32 %v1025, 1e-05
      %v1027 = vrsqrt.pop %v1026
      %v1028 = vmul.f32 %v1021, %v1027
      %v1029 = vlaneseq
      %v1030 = vshrl.u32 %v1029, 7
      %v1031 = vsub.s32 1, %v1030
      %v1032 = vrot.slane %v733, %v1031
      %v1033 = vmul.f32 %v1028, %v1032
      %v1034 = vlaneseq
      %v1035 = vshrl.u32 %v1034, 7
      %v1036 = vsub.s32 1, %v1035
      %v1037 = vrot.slane %v734, %v1036
      %v1038 = vadd.f32 %v1033, %v1037
      %v1039 = vlaneseq
      %v1040 = vshrl.u32 %v1039, 7
      %v1041 = vsub.s32 1, %v1040
      %v1042 = vrot.slane %v736, %v1041
      %v1043 = vmul.f32 %v1042, %v1038
      %v1044 = vlaneseq
      %v1045 = vshrl.u32 %v1044, 7
      %v1046 = vsub.s32 1, %v1045
      %v1047 = vrot.slane %v735, %v1046
      %v1048 = vmul.f32 %v1047, %v1043
      %v1049 = vxor.u32 %v1043, 2147483648
      %v1050 = vmul.f32 %v1049, 1.442695
      %v1051 = vpow.pop %v1050
      %v1052 = vadd.f32 %v1051, 1.0
      %v1053 = vrcp.pop %v1052
      %v1054 = vmul.f32 1.0, %v1053
      %v1055 = vmul.f32 %v1048, %v1054
      %v1056 = vpack.c.bf16 %v1055, %v1055
      %v1058 = vlaneseq
      %v1059 = vshrl.u32 %v1058, 7
      %v1060 = vsub.s32 0, %v1059
      %v1061 = vrot.slane %v788, %v1060
      %v1079 = vunpack.c.l.b16 %v772
      %v1080 = vunpack.c.l.b16 %v773
      %v1081 = vunpack.c.l.b16 %v774
      %v1082 = vunpack.c.l.b16 %v775
      %v1083 = vunpack.c.l.b16 %v776
      %v1084 = vunpack.c.l.b16 %v777
      %v1085 = vunpack.c.l.b16 %v778
      %v1086 = vunpack.c.l.b16 %v779
      %v1087 = vunpack.c.l.b16 %v780
      %v1088 = vunpack.c.l.b16 %v781
      %v1089 = vunpack.c.l.b16 %v782
      %v1090 = vunpack.c.l.b16 %v783
      %v1091 = vunpack.c.l.b16 %v784
      %v1092 = vunpack.c.l.b16 %v785
      %v1093 = vunpack.c.l.b16 %v786
      %v1094 = vunpack.c.l.b16 %v787
      %v1095 = vpack.c.b16 %v1080, %v1079
      %v1096 = vpack.c.b16 %v1082, %v1081
      %v1097 = vpack.c.b16 %v1084, %v1083
      %v1098 = vpack.c.b16 %v1086, %v1085
      %v1099 = vpack.c.b16 %v1088, %v1087
      %v1100 = vpack.c.b16 %v1090, %v1089
      %v1101 = vpack.c.b16 %v1092, %v1091
      %v1102 = vpack.c.b16 %v1094, %v1093
      %1111 = vmatprep.subr.bf16.mxu0 0
      %1112 = vmatpush1.bf16.msra.mxu0 %v1102
      %1113 = vmatprep.subr.bf16.mxu0 0
      %1114 = vmatpush1.bf16.msra.mxu0 %v1101
      %1115 = vmatprep.subr.bf16.mxu0 0
      %1116 = vmatpush1.bf16.msra.mxu0 %v1100
      %1117 = vmatprep.subr.bf16.mxu0 0
      %1118 = vmatpush1.bf16.msra.mxu0 %v1099
      %1119 = vmatprep.subr.bf16.mxu0 0
      %1120 = vmatpush1.bf16.msra.mxu0 %v1098
      %1121 = vmatprep.subr.bf16.mxu0 0
      %1122 = vmatpush1.bf16.msra.mxu0 %v1097
      %1123 = vmatprep.subr.bf16.mxu0 0
      %1124 = vmatpush1.bf16.msra.mxu0 %v1096
      %1125 = vmatprep.subr.bf16.mxu0 0
      %1126 = vmatpush1.bf16.msra.mxu0 %v1095
      %1127 = vmatprep.subr.bf16.mxu0 0
      %1128 = vmatpush2.bf16.msra.mxu0 0
      %1129 = vmatprep.subr.bf16.mxu0 0
      %1130 = vmatpush2.bf16.msra.mxu0 0
      %1131 = vmatprep.subr.bf16.mxu0 0
      %1132 = vmatpush2.bf16.msra.mxu0 0
      %1133 = vmatprep.subr.bf16.mxu0 0
      %1134 = vmatpush2.bf16.msra.mxu0 0
      %1135 = vmatprep.subr.bf16.mxu0 0
      %1136 = vmatpush2.bf16.msra.mxu0 0
      %1137 = vmatprep.subr.bf16.mxu0 0
      %1138 = vmatpush2.bf16.msra.mxu0 0
      %1139 = vmatprep.subr.bf16.mxu0 0
      %1140 = vmatpush2.bf16.msra.mxu0 0
      %1141 = vmatprep.subr.bf16.mxu0 0
      %1142 = vmatpush2.bf16.msra.mxu0 0
      %1143 = vmatprep.mubr.bf16.mxu0 0
      %1144 = vmatmul.mubr.bf16.gmra.mxu0 %v1056
      %v1145 = vpop.f32.mrf.mxu0
      %v1146 = vadd.f32 %v1061, %v1145
      %v1147 = vpop.f32.mrf.mxu0
      %v1148 = vpop.f32.mrf.mxu0
      %v1149 = vpop.f32.mrf.mxu0
      %1150 = vdwg.mxu0
      %1151 = vadd.xlane.f32.xlu0 %v1146
      %v1152 = vpop.xlane.xlu0 %1151
      %v1153 = vmul.f32 %v1152, %v886
      %v1154 = vsub.f32 %v1146, %v1153
      %v1155 = vmul.f32 %v1154, %v1154
      %1156 = vadd.xlane.f32.xlu0 %v1155
      %v1157 = vpop.xlane.xlu0 %1156
      %v1158 = vmul.f32 %v1157, %v886
      %v1159 = vadd.f32 %v1158, 1e-05
      %v1160 = vrsqrt.pop %v1159
      %v1161 = vmul.f32 %v1154, %v1160
      %v1162 = vlaneseq
      %v1163 = vshrl.u32 %v1162, 7
      %v1164 = vsub.s32 2, %v1163
      %v1165 = vrot.slane %v733, %v1164
      %v1166 = vmul.f32 %v1161, %v1165
      %v1167 = vlaneseq
      %v1168 = vshrl.u32 %v1167, 7
      %v1169 = vsub.s32 2, %v1168
      %v1170 = vrot.slane %v734, %v1169
      %v1171 = vadd.f32 %v1166, %v1170
      %v1172 = vld [vmem:[%s660] sm:$0xff]
      %v1173 = vpack.c.bf16 %v1172, %v1172
      %v1174 = vld [vmem:[%s702] sm:$0xf]
      %v1175 = vld [vmem:[%s702 + $0x4] sm:$0xf]
      %v1176 = vld [vmem:[%s702 + $0x8] sm:$0xf]
      %v1177 = vld [vmem:[%s702 + $0xc] sm:$0xf]
      %v1178 = vld [vmem:[%s702 + $0x10] sm:$0xf]
      %v1179 = vld [vmem:[%s702 + $0x14] sm:$0xf]
      %v1180 = vld [vmem:[%s702 + $0x18] sm:$0xf]
      %v1181 = vld [vmem:[%s702 + $0x1c] sm:$0xf]
      %v1182 = vld [vmem:[%s702 + $0x20] sm:$0xf]
      %v1183 = vld [vmem:[%s702 + $0x24] sm:$0xf]
      %v1184 = vld [vmem:[%s702 + $0x28] sm:$0xf]
      %v1185 = vld [vmem:[%s702 + $0x2c] sm:$0xf]
      %v1186 = vld [vmem:[%s702 + $0x30] sm:$0xf]
      %v1187 = vld [vmem:[%s702 + $0x34] sm:$0xf]
      %v1188 = vld [vmem:[%s702 + $0x38] sm:$0xf]
      %v1189 = vld [vmem:[%s702 + $0x3c] sm:$0xf]
      %v1206 = vunpack.c.l.b16 %v1174
      %v1207 = vunpack.c.l.b16 %v1175
      %v1208 = vunpack.c.l.b16 %v1176
      %v1209 = vunpack.c.l.b16 %v1177
      %v1210 = vunpack.c.l.b16 %v1178
      %v1211 = vunpack.c.l.b16 %v1179
      %v1212 = vunpack.c.l.b16 %v1180
      %v1213 = vunpack.c.l.b16 %v1181
      %v1214 = vunpack.c.l.b16 %v1182
      %v1215 = vunpack.c.l.b16 %v1183
      %v1216 = vunpack.c.l.b16 %v1184
      %v1217 = vunpack.c.l.b16 %v1185
      %v1218 = vunpack.c.l.b16 %v1186
      %v1219 = vunpack.c.l.b16 %v1187
      %v1220 = vunpack.c.l.b16 %v1188
      %v1221 = vunpack.c.l.b16 %v1189
      %v1222 = vpack.c.b16 %v1207, %v1206
      %v1223 = vpack.c.b16 %v1209, %v1208
      %v1224 = vpack.c.b16 %v1211, %v1210
      %v1225 = vpack.c.b16 %v1213, %v1212
      %v1226 = vpack.c.b16 %v1215, %v1214
      %v1227 = vpack.c.b16 %v1217, %v1216
      %v1228 = vpack.c.b16 %v1219, %v1218
      %v1229 = vpack.c.b16 %v1221, %v1220
      %vm1230 = vcmask 64512
      %v1232 = vsel %vm1230, %v1173, 0
      %v1235 = vsel %vm1230, %v1222, 0
      %v1238 = vsel %vm1230, %v1223, 0
      %v1241 = vsel %vm1230, %v1224, 0
      %v1244 = vsel %vm1230, %v1225, 0
      %v1247 = vsel %vm1230, %v1226, 0
      %v1250 = vsel %vm1230, %v1227, 0
      %v1253 = vsel %vm1230, %v1228, 0
      %v1256 = vsel %vm1230, %v1229, 0
      %1258 = vmatprep.subr.bf16.mxu0 0
      %1259 = vmatpush1.bf16.xpose.msra.mxu0 %v1256
      %1260 = vmatprep.subr.bf16.mxu0 0
      %1261 = vmatpush1.bf16.xpose.msra.mxu0 %v1253
      %1262 = vmatprep.subr.bf16.mxu0 0
      %1263 = vmatpush1.bf16.xpose.msra.mxu0 %v1250
      %1264 = vmatprep.subr.bf16.mxu0 0
      %1265 = vmatpush1.bf16.xpose.msra.mxu0 %v1247
      %1266 = vmatprep.subr.bf16.mxu0 0
      %1267 = vmatpush1.bf16.xpose.msra.mxu0 %v1244
      %1268 = vmatprep.subr.bf16.mxu0 0
      %1269 = vmatpush1.bf16.xpose.msra.mxu0 %v1241
      %1270 = vmatprep.subr.bf16.mxu0 0
      %1271 = vmatpush1.bf16.xpose.msra.mxu0 %v1238
      %1272 = vmatprep.subr.bf16.mxu0 0
      %1273 = vmatpush1.bf16.xpose.msra.mxu0 %v1235
      %1274 = vmatprep.subr.bf16.mxu0 0
      %1275 = vmatpush2.bf16.xpose.msra.mxu0 0
      %1276 = vmatprep.subr.bf16.mxu0 0
      %1277 = vmatpush2.bf16.xpose.msra.mxu0 0
      %1278 = vmatprep.subr.bf16.mxu0 0
      %1279 = vmatpush2.bf16.xpose.msra.mxu0 0
      %1280 = vmatprep.subr.bf16.mxu0 0
      %1281 = vmatpush2.bf16.xpose.msra.mxu0 0
      %1282 = vmatprep.subr.bf16.mxu0 0
      %1283 = vmatpush2.bf16.xpose.msra.mxu0 0
      %1284 = vmatprep.subr.bf16.mxu0 0
      %1285 = vmatpush2.bf16.xpose.msra.mxu0 0
      %1286 = vmatprep.subr.bf16.mxu0 0
      %1287 = vmatpush2.bf16.xpose.msra.mxu0 0
      %1288 = vmatprep.subr.bf16.mxu0 0
      %1289 = vmatpush2.bf16.xpose.msra.mxu0 0
      %1290 = vmatprep.mubr.bf16.mxu0 0
      %1291 = vmatmul.mubr.bf16.gmra.mxu0 %v1232
      %v1292 = vpop.f32.mrf.mxu0
      %v1293 = vadd.f32 0.0, %v1292
      %v1294 = vpop.f32.mrf.mxu0
      %v1295 = vpop.f32.mrf.mxu0
      %v1296 = vpop.f32.mrf.mxu0
      %1297 = vdwg.mxu0
      %v1298 = vlaneseq
      %v1299 = vshrl.u32 %v1298, 7
      %v1300 = vsub.s32 2, %v1299
      %v1301 = vrot.slane %v736, %v1300
      %v1302 = vmul.f32 %v1301, %v1171
      %v1303 = vxor.u32 %v1302, 2147483648
      %v1304 = vmul.f32 %v1303, 1.442695
      %v1305 = vpow.pop %v1304
      %v1306 = vadd.f32 %v1305, 1.0
      %v1307 = vrcp.pop %v1306
      %v1308 = vmul.f32 1.0, %v1307
      %v1309 = vmul.f32 %v735, %v736
      %v1310 = vlaneseq
      %v1311 = vshrl.u32 %v1310, 7
      %v1312 = vsub.s32 2, %v1311
      %v1313 = vrot.slane %v1309, %v1312
      %v1314 = vmul.f32 %v1313, %v1308
      %v1315 = vsub.f32 1.0, %v1308
      %v1316 = vmul.f32 %v1302, %v1315
      %v1317 = vadd.f32 %v1316, 1.0
      %v1318 = vmul.f32 %v1314, %v1317
      %v1319 = vmul.f32 %v1293, %v1318
      %v1320 = vmul.f32 %v1319, %v1165
      %1321 = vadd.xlane.f32.xlu0 %v1320
      %v1322 = vpop.xlane.xlu0 %1321
      %v1323 = vmul.f32 %v1322, %v886
      %v1324 = vsub.f32 %v1320, %v1323
      %v1325 = vmul.f32 %v1320, %v1161
      %1326 = vadd.xlane.f32.xlu0 %v1325
      %v1327 = vpop.xlane.xlu0 %1326
      %v1328 = vmul.f32 %v1327, %v886
      %v1329 = vmul.f32 %v1161, %v1328
      %v1330 = vsub.f32 %v1324, %v1329
      %v1331 = vmul.f32 %v1160, %v1330
      %v1332 = vpack.c.bf16 %v1331, %v1331
      %1333 = vmatprep.subr.bf16.mxu0 0
      %1334 = vmatpush1.bf16.xpose.msra.mxu0 %v1102
      %1335 = vmatprep.subr.bf16.mxu0 0
      %1336 = vmatpush1.bf16.xpose.msra.mxu0 %v1101
      %1337 = vmatprep.subr.bf16.mxu0 0
      %1338 = vmatpush1.bf16.xpose.msra.mxu0 %v1100
      %1339 = vmatprep.subr.bf16.mxu0 0
      %1340 = vmatpush1.bf16.xpose.msra.mxu0 %v1099
      %1341 = vmatprep.subr.bf16.mxu0 0
      %1342 = vmatpush1.bf16.xpose.msra.mxu0 %v1098
      %1343 = vmatprep.subr.bf16.mxu0 0
      %1344 = vmatpush1.bf16.xpose.msra.mxu0 %v1097
      %1345 = vmatprep.subr.bf16.mxu0 0
      %1346 = vmatpush1.bf16.xpose.msra.mxu0 %v1096
      %1347 = vmatprep.subr.bf16.mxu0 0
      %1348 = vmatpush1.bf16.xpose.msra.mxu0 %v1095
      %1349 = vmatprep.subr.bf16.mxu0 0
      %1350 = vmatpush2.bf16.xpose.msra.mxu0 0
      %1351 = vmatprep.subr.bf16.mxu0 0
      %1352 = vmatpush2.bf16.xpose.msra.mxu0 0
      %1353 = vmatprep.subr.bf16.mxu0 0
      %1354 = vmatpush2.bf16.xpose.msra.mxu0 0
      %1355 = vmatprep.subr.bf16.mxu0 0
      %1356 = vmatpush2.bf16.xpose.msra.mxu0 0
      %1357 = vmatprep.subr.bf16.mxu0 0
      %1358 = vmatpush2.bf16.xpose.msra.mxu0 0
      %1359 = vmatprep.subr.bf16.mxu0 0
      %1360 = vmatpush2.bf16.xpose.msra.mxu0 0
      %1361 = vmatprep.subr.bf16.mxu0 0
      %1362 = vmatpush2.bf16.xpose.msra.mxu0 0
      %1363 = vmatprep.subr.bf16.mxu0 0
      %1364 = vmatpush2.bf16.xpose.msra.mxu0 0
      %1365 = vmatprep.mubr.bf16.mxu0 0
      %1366 = vmatmul.mubr.bf16.gmra.mxu0 %v1332
      %v1367 = vpop.f32.mrf.mxu0
      %v1368 = vadd.f32 0.0, %v1367
      %v1369 = vpop.f32.mrf.mxu0
      %v1370 = vpop.f32.mrf.mxu0
      %v1371 = vpop.f32.mrf.mxu0
      %1372 = vdwg.mxu0
      %v1373 = vlaneseq
      %v1374 = vshrl.u32 %v1373, 7
      %v1375 = vsub.s32 1, %v1374
      %v1376 = vrot.slane %v1309, %v1375
      %v1377 = vmul.f32 %v1376, %v1054
      %v1378 = vsub.f32 1.0, %v1054
      %v1379 = vmul.f32 %v1043, %v1378
      %v1380 = vadd.f32 %v1379, 1.0
      %v1381 = vmul.f32 %v1377, %v1380
      %v1382 = vmul.f32 %v1368, %v1381
      %v1383 = vmul.f32 %v1382, %v1032
      %1384 = vadd.xlane.f32.xlu0 %v1383
      %v1385 = vpop.xlane.xlu0 %1384
      %v1386 = vmul.f32 %v1385, %v886
      %v1387 = vsub.f32 %v1383, %v1386
      %v1388 = vmul.f32 %v1383, %v1028
      %1389 = vadd.xlane.f32.xlu0 %v1388
      %v1390 = vpop.xlane.xlu0 %1389
      %v1391 = vmul.f32 %v1390, %v886
      %v1392 = vmul.f32 %v1028, %v1391
      %v1393 = vsub.f32 %v1387, %v1392
      %v1394 = vmul.f32 %v1027, %v1393
      %v1395 = vpack.c.bf16 %v1394, %v1394
      %1396 = vmatprep.subr.bf16.mxu0 0
      %1397 = vmatpush1.bf16.xpose.msra.mxu0 %v969
      %1398 = vmatprep.subr.bf16.mxu0 0
      %1399 = vmatpush1.bf16.xpose.msra.mxu0 %v968
      %1400 = vmatprep.subr.bf16.mxu0 0
      %1401 = vmatpush1.bf16.xpose.msra.mxu0 %v967
      %1402 = vmatprep.subr.bf16.mxu0 0
      %1403 = vmatpush1.bf16.xpose.msra.mxu0 %v966
      %1404 = vmatprep.subr.bf16.mxu0 0
      %1405 = vmatpush1.bf16.xpose.msra.mxu0 %v965
      %1406 = vmatprep.subr.bf16.mxu0 0
      %1407 = vmatpush1.bf16.xpose.msra.mxu0 %v964
      %1408 = vmatprep.subr.bf16.mxu0 0
      %1409 = vmatpush1.bf16.xpose.msra.mxu0 %v963
      %1410 = vmatprep.subr.bf16.mxu0 0
      %1411 = vmatpush1.bf16.xpose.msra.mxu0 %v962
      %1412 = vmatprep.subr.bf16.mxu0 0
      %1413 = vmatpush2.bf16.xpose.msra.mxu0 0
      %1414 = vmatprep.subr.bf16.mxu0 0
      %1415 = vmatpush2.bf16.xpose.msra.mxu0 0
      %1416 = vmatprep.subr.bf16.mxu0 0
      %1417 = vmatpush2.bf16.xpose.msra.mxu0 0
      %1418 = vmatprep.subr.bf16.mxu0 0
      %1419 = vmatpush2.bf16.xpose.msra.mxu0 0
      %1420 = vmatprep.subr.bf16.mxu0 0
      %1421 = vmatpush2.bf16.xpose.msra.mxu0 0
      %1422 = vmatprep.subr.bf16.mxu0 0
      %1423 = vmatpush2.bf16.xpose.msra.mxu0 0
      %1424 = vmatprep.subr.bf16.mxu0 0
      %1425 = vmatpush2.bf16.xpose.msra.mxu0 0
      %1426 = vmatprep.subr.bf16.mxu0 0
      %1427 = vmatpush2.bf16.xpose.msra.mxu0 0
      %1428 = vmatprep.mubr.bf16.mxu0 0
      %1429 = vmatmul.mubr.bf16.gmra.mxu0 %v1395
      %v1430 = vpop.f32.mrf.mxu0
      %v1431 = vadd.f32 0.0, %v1430
      %v1432 = vpop.f32.mrf.mxu0
      %v1433 = vpop.f32.mrf.mxu0
      %v1434 = vpop.f32.mrf.mxu0
      %1435 = vdwg.mxu0
      %v1436 = vadd.f32 %v1293, %v1431
      %v1437 = vlaneseq
      %v1438 = vshrl.u32 %v1437, 7
      %v1439 = vsub.s32 0, %v1438
      %v1440 = vrot.slane %v1309, %v1439
      %v1441 = vmul.f32 %v1440, %v921
      %v1442 = vsub.f32 1.0, %v921
      %v1443 = vmul.f32 %v910, %v1442
      %v1444 = vadd.f32 %v1443, 1.0
      %v1445 = vmul.f32 %v1441, %v1444
      %v1446 = vmul.f32 %v1436, %v1445
      %v1447 = vmul.f32 %v1446, %v899
      %1448 = vadd.xlane.f32.xlu0 %v1447
      %v1449 = vpop.xlane.xlu0 %1448
      %v1450 = vmul.f32 %v1449, %v886
      %v1451 = vsub.f32 %v1447, %v1450
      %v1452 = vmul.f32 %v1447, %v895
      %1453 = vadd.xlane.f32.xlu0 %v1452
      %v1454 = vpop.xlane.xlu0 %1453
      %v1455 = vmul.f32 %v1454, %v886
      %v1456 = vmul.f32 %v895, %v1455
      %v1457 = vsub.f32 %v1451, %v1456
      %v1458 = vmul.f32 %v894, %v1457
      %v1459 = vpack.c.bf16 %v1458, %v1458
      %1460 = vmatprep.subr.bf16.mxu0 0
      %1461 = vmatpush1.bf16.xpose.msra.mxu0 %v835
      %1462 = vmatprep.subr.bf16.mxu0 0
      %1463 = vmatpush1.bf16.xpose.msra.mxu0 %v834
      %1464 = vmatprep.subr.bf16.mxu0 0
      %1465 = vmatpush1.bf16.xpose.msra.mxu0 %v833
      %1466 = vmatprep.subr.bf16.mxu0 0
      %1467 = vmatpush1.bf16.xpose.msra.mxu0 %v832
      %1468 = vmatprep.subr.bf16.mxu0 0
      %1469 = vmatpush1.bf16.xpose.msra.mxu0 %v831
      %1470 = vmatprep.subr.bf16.mxu0 0
      %1471 = vmatpush1.bf16.xpose.msra.mxu0 %v830
      %1472 = vmatprep.subr.bf16.mxu0 0
      %1473 = vmatpush1.bf16.xpose.msra.mxu0 %v829
      %1474 = vmatprep.subr.bf16.mxu0 0
      %1475 = vmatpush1.bf16.xpose.msra.mxu0 %v828
      %1476 = vmatprep.subr.bf16.mxu0 0
      %1477 = vmatpush2.bf16.xpose.msra.mxu0 0
      %1478 = vmatprep.subr.bf16.mxu0 0
      %1479 = vmatpush2.bf16.xpose.msra.mxu0 0
      %1480 = vmatprep.subr.bf16.mxu0 0
      %1481 = vmatpush2.bf16.xpose.msra.mxu0 0
      %1482 = vmatprep.subr.bf16.mxu0 0
      %1483 = vmatpush2.bf16.xpose.msra.mxu0 0
      %1484 = vmatprep.subr.bf16.mxu0 0
      %1485 = vmatpush2.bf16.xpose.msra.mxu0 0
      %1486 = vmatprep.subr.bf16.mxu0 0
      %1487 = vmatpush2.bf16.xpose.msra.mxu0 0
      %1488 = vmatprep.subr.bf16.mxu0 0
      %1489 = vmatpush2.bf16.xpose.msra.mxu0 0
      %1490 = vmatprep.subr.bf16.mxu0 0
      %1491 = vmatpush2.bf16.xpose.msra.mxu0 0
      %1492 = vmatprep.mubr.bf16.mxu0 0
      %1493 = vmatmul.mubr.bf16.gmra.mxu0 %v1459
      %v1494 = vpop.f32.mrf.mxu0
      %v1495 = vadd.f32 0.0, %v1494
      %v1496 = vpop.f32.mrf.mxu0
      %v1497 = vpop.f32.mrf.mxu0
      %v1498 = vpop.f32.mrf.mxu0
      %1499 = vdwg.mxu0
      %1500 = vst [vmem:[%s731] sm:$0xff] %v1495
      %p1501 = scmp.lt.s32.totalorder %s36, 1
      %s1502 = scalar_select %p1501, %s36, 1
      %s1503 = smul.addr %s1502, 8
      %s1504 = scalar_lea.vmem %s15, %s1503
      // Predicated region
      $region73: #{pes_forward.3} parent=71 // pred_check
        %p1505 = pneg %p414
      $region74: #{pes_forward.3} parent=71 // pred_check_branch
        %1507 = sbr.rel (%p1505) target = $region76
      $region75: #{pes_forward.3} parent=71 // pred_region
        _
      $region76: #{pes_forward.3} parent=71 // pred_fallthru
        _
    $region72: #{pes_forward.3} parent=5 // pred_fallthru
      _
    %p1508 = scmp.le.s32.totalorder 2, %s31
    // Predicated region
    $region77: #{pes_forward.3} parent=5 // pred_check
      %p1509 = pneg %p1508
    $region78: #{pes_forward.3} parent=5 // pred_check_branch
      %1511 = sbr.rel (%p1509) target = $region80
    $region79: #{pes_forward.3} parent=5 // pred_region
      %s1512 = ssub.s32 %s31, 2
      // Predicated region
      $region81: #{pes_forward.3} parent=79 // pred_check
        %p1513 = pneg %p420
      $region82: #{pes_forward.3} parent=79 // pred_check_branch
        %1515 = sbr.rel (%p1513) target = $region84
      $region83: #{pes_forward.3} parent=79 // pred_region
        %p1516 = scmp.lt.s32.totalorder %s37, 1
        %s1517 = scalar_select %p1516, %s37, 1
        %s1518 = smul.addr %s1517, 8
        %s1519 = scalar_lea.vmem %s15, %s1518
      $region84: #{pes_forward.3} parent=79 // pred_fallthru
        _
    $region80: #{pes_forward.3} parent=5 // pred_fallthru
      _
  $region6: #{pes_forward.3} parent=0 // loop_footer
    %s35 = sadd.s32 1, %s31
  $region7: #{pes_forward.3} parent=0 // loop_footer_branch
    %30 = sbr.rel target = $region3
  $region8: #{pes_forward.3} parent=0 // loop_exit
    _

// kernel: jvp__.1
$region0: #{jvp__.1}
  #allocation0 [shape = 'u32[]', space=smem, size = 0x4, offset = 0x4, fixed_abs, tag = 'smem constant byte address 0x4 - core index']
  #allocation1 [shape = 'u32[144,128]{1,0:T(1,128)}', space=vmem, size = 0x12000, scoped, tag = 'internal scratch']
  #allocation2 [shape = 's32[1]{0}', space=sflag, size = 0x4, scoped, tag = 'scoped memory for jvp__.1']
  #allocation3 [shape = 'u8[512]{0}', space=smem, size = 0x200, scoped, tag = 'prefetched SMEM operand 0']
  #allocation4 [shape = 'u8[512]{0}', space=smem, size = 0x200, scoped, tag = 'prefetched SMEM operand 1']
  %s0 = inlined_call_operand.vmem [shape: s32[2], index: 0, kind: input, shape index: {}]
  %s1 = inlined_call_operand.vmem [shape: s32[2], index: 1, kind: input, shape index: {}]
  %s2 = inlined_call_operand.vmem [shape: f32[16,128], index: 2, kind: input, shape index: {}]
  %s3 = inlined_call_operand.vmem [shape: bf16[2,128,128], index: 3, kind: input, shape index: {}]
  %s4 = inlined_call_operand.vmem [shape: f32[2,1,128], index: 4, kind: input, shape index: {}]
  %s5 = inlined_call_operand.vmem [shape: bf16[2,128,128], index: 5, kind: input, shape index: {}]
  %s6 = inlined_call_operand.vmem [shape: f32[2,1,128], index: 6, kind: input, shape index: {}]
  %s7 = inlined_call_operand.vmem [shape: bf16[2,128,128], index: 7, kind: input, shape index: {}]
  %s8 = inlined_call_operand.vmem [shape: f32[2,1,128], index: 8, kind: input, shape index: {}]
  %s9 = inlined_call_operand.vmem [shape: bf16[2,128,8], index: 9, kind: input, shape index: {}]
  %s10 = inlined_call_operand.vmem [shape: f32[2,1,8], index: 10, kind: input, shape index: {}]
  %s11 = inlined_call_operand.vmem [shape: f32[2,3,128], index: 11, kind: input, shape index: {}]
  %s12 = inlined_call_operand.vmem [shape: f32[2,3,128], index: 12, kind: input, shape index: {}]
  %s13 = inlined_call_operand.vmem [shape: f32[2,3,128], index: 13, kind: input, shape index: {}]
  %s14 = inlined_call_operand.vmem [shape: f32[2,3,128], index: 14, kind: input, shape index: {}]
  %s15 = inlined_call_operand.vmem [shape: f32[16,8], index: 15, kind: output, shape index: {}]
  %s16 = sld [smem:[#allocation0]]
  $region85: #{jvp__.1} parent=0
    _
  %s18 = ssub.s32 1, %s16
  %s19 = scalar_select 0, %s18, %s16
  %s20 = sshll.u32 %s0, 4
  %s21 = int_to_ptr.vmem [resolvable:$true] %s20
  %23 = dma.vmem_to_smem %s21, 16, [#allocation3], [#allocation2]
  %s24 = sshll.u32 %s1, 4
  %s25 = int_to_ptr.vmem [resolvable:$true] %s24
  %27 = dma.vmem_to_smem %s25, 16, [#allocation4], [#allocation2]
  %28 = dma.done [#allocation2], 32
  %29 = sfence
  loop: start=0, step=1, limit=4
  $region2: #{jvp__.1} parent=0 // loop_pre_header
    _
  $region3: #{jvp__.1} parent=0 // loop_header
    %s31 = sphi 0, %s35
    %p32 = scmp.ge.s32.totalorder %s31, 4
    %s41 = sphi 0, %s43
    %s44 = sphi 0, %s41
    %s45 = sphi 0, %s44
    %s61 = sphi 0, %s45
    %s69 = sphi 0, %s71
    %s72 = sphi 0, %s69
    %s73 = sphi 0, %s72
    %s89 = sphi 0, %s73
    %s97 = sphi 0, %s99
    %s100 = sphi 0, %s97
    %s101 = sphi 0, %s100
    %s117 = sphi 0, %s101
    %s125 = sphi 0, %s127
    %s128 = sphi 0, %s125
    %s129 = sphi 0, %s128
    %s145 = sphi 0, %s129
    %s153 = sphi 0, %s155
    %s156 = sphi 0, %s153
    %s157 = sphi 0, %s156
    %s173 = sphi 0, %s157
    %s181 = sphi 0, %s183
    %s184 = sphi 0, %s181
    %s185 = sphi 0, %s184
    %s201 = sphi 0, %s185
    %s209 = sphi 0, %s211
    %s212 = sphi 0, %s209
    %s213 = sphi 0, %s212
    %s229 = sphi 0, %s213
    %s237 = sphi 0, %s239
    %s240 = sphi 0, %s237
    %s241 = sphi 0, %s240
    %s257 = sphi 0, %s241
    %s265 = sphi 0, %s267
    %s268 = sphi 0, %s265
    %s269 = sphi 0, %s268
    %s285 = sphi 0, %s269
    %s293 = sphi 0, %s295
    %s296 = sphi 0, %s293
    %s297 = sphi 0, %s296
    %s313 = sphi 0, %s297
    %s321 = sphi 0, %s323
    %s324 = sphi 0, %s321
    %s325 = sphi 0, %s324
    %s341 = sphi 0, %s325
    %s349 = sphi 0, %s351
    %s352 = sphi 0, %s349
    %s353 = sphi 0, %s352
    %s369 = sphi 0, %s353
    %s377 = sphi 0, %s379
    %s380 = sphi 0, %s377
    %s381 = sphi 0, %s380
    %s397 = sphi 0, %s381
    %s403 = sphi 0, %s405
    %s406 = sphi 0, %s403
    %s407 = sphi 0, %s406
    %s423 = sphi 0, %s407
  $region4: #{jvp__.1} parent=0 // loop_header_branch
    %34 = sbr.rel (%p32) target = $region8
  $region5: #{jvp__.1} parent=0 // loop_body
    %s36 = ssub.s32 %s31, 1
    %s37 = ssub.s32 %s31, 2
    %s38 = sadd.s32 %s31, 1
    %s39 = ssub.s32 %s31, %s38
    %p40 = scmp.eq.s32.totalorder %s39, 0
    %s42 = sadd.s32 %s41, 1
    %s43 = scalar_select %p40, %s41, %s42
    %p46 = pneg %p40
    %p47 = scmp.eq.s32.totalorder %s31, 1
    %p48 = por %p46, %p47
    %p49 = scmp.ne.s32.totalorder %s41, %s44
    %p50 = scmp.eq.s32.totalorder %s31, 0
    %p51 = por %p49, %p50
    %p52 = scmp.ne.s32.totalorder %s41, %s44
    %p53 = scmp.eq.s32.totalorder %s36, 1
    %p54 = por %p52, %p53
    %p55 = scmp.ne.s32.totalorder %s44, %s45
    %p56 = scmp.eq.s32.totalorder %s36, 0
    %p57 = por %p55, %p56
    %p58 = scmp.ne.s32.totalorder %s44, %s45
    %p59 = scmp.eq.s32.totalorder %s37, 1
    %p60 = por %p58, %p59
    %p62 = scmp.ne.s32.totalorder %s45, %s61
    %p63 = scmp.eq.s32.totalorder %s37, 0
    %p64 = por %p62, %p63
    %s65 = sld [smem:[#allocation3 + %s31]]
    %s66 = sld [smem:[#allocation3 + %s38]]
    %s67 = ssub.s32 %s65, %s66
    %p68 = scmp.eq.s32.totalorder %s67, 0
    %s70 = sadd.s32 %s69, 1
    %s71 = scalar_select %p68, %s69, %s70
    %p74 = pneg %p68
    %p75 = scmp.eq.s32.totalorder %s31, 1
    %p76 = por %p74, %p75
    %p77 = scmp.ne.s32.totalorder %s69, %s72
    %p78 = scmp.eq.s32.totalorder %s31, 0
    %p79 = por %p77, %p78
    %p80 = scmp.ne.s32.totalorder %s69, %s72
    %p81 = scmp.eq.s32.totalorder %s36, 1
    %p82 = por %p80, %p81
    %p83 = scmp.ne.s32.totalorder %s72, %s73
    %p84 = scmp.eq.s32.totalorder %s36, 0
    %p85 = por %p83, %p84
    %p86 = scmp.ne.s32.totalorder %s72, %s73
    %p87 = scmp.eq.s32.totalorder %s37, 1
    %p88 = por %p86, %p87
    %p90 = scmp.ne.s32.totalorder %s73, %s89
    %p91 = scmp.eq.s32.totalorder %s37, 0
    %p92 = por %p90, %p91
    %s93 = sld [smem:[#allocation3 + %s31]]
    %s94 = sld [smem:[#allocation3 + %s38]]
    %s95 = ssub.s32 %s93, %s94
    %p96 = scmp.eq.s32.totalorder %s95, 0
    %s98 = sadd.s32 %s97, 1
    %s99 = scalar_select %p96, %s97, %s98
    %p102 = pneg %p96
    %p103 = scmp.eq.s32.totalorder %s31, 1
    %p104 = por %p102, %p103
    %p105 = scmp.ne.s32.totalorder %s97, %s100
    %p106 = scmp.eq.s32.totalorder %s31, 0
    %p107 = por %p105, %p106
    %p108 = scmp.ne.s32.totalorder %s97, %s100
    %p109 = scmp.eq.s32.totalorder %s36, 1
    %p110 = por %p108, %p109
    %p111 = scmp.ne.s32.totalorder %s100, %s101
    %p112 = scmp.eq.s32.totalorder %s36, 0
    %p113 = por %p111, %p112
    %p114 = scmp.ne.s32.totalorder %s100, %s101
    %p115 = scmp.eq.s32.totalorder %s37, 1
    %p116 = por %p114, %p115
    %p118 = scmp.ne.s32.totalorder %s101, %s117
    %p119 = scmp.eq.s32.totalorder %s37, 0
    %p120 = por %p118, %p119
    %s121 = sld [smem:[#allocation3 + %s31]]
    %s122 = sld [smem:[#allocation3 + %s38]]
    %s123 = ssub.s32 %s121, %s122
    %p124 = scmp.eq.s32.totalorder %s123, 0
    %s126 = sadd.s32 %s125, 1
    %s127 = scalar_select %p124, %s125, %s126
    %p130 = pneg %p124
    %p131 = scmp.eq.s32.totalorder %s31, 1
    %p132 = por %p130, %p131
    %p133 = scmp.ne.s32.totalorder %s125, %s128
    %p134 = scmp.eq.s32.totalorder %s31, 0
    %p135 = por %p133, %p134
    %p136 = scmp.ne.s32.totalorder %s125, %s128
    %p137 = scmp.eq.s32.totalorder %s36, 1
    %p138 = por %p136, %p137
    %p139 = scmp.ne.s32.totalorder %s128, %s129
    %p140 = scmp.eq.s32.totalorder %s36, 0
    %p141 = por %p139, %p140
    %p142 = scmp.ne.s32.totalorder %s128, %s129
    %p143 = scmp.eq.s32.totalorder %s37, 1
    %p144 = por %p142, %p143
    %p146 = scmp.ne.s32.totalorder %s129, %s145
    %p147 = scmp.eq.s32.totalorder %s37, 0
    %p148 = por %p146, %p147
    %s149 = sld [smem:[#allocation3 + %s31]]
    %s150 = sld [smem:[#allocation3 + %s38]]
    %s151 = ssub.s32 %s149, %s150
    %p152 = scmp.eq.s32.totalorder %s151, 0
    %s154 = sadd.s32 %s153, 1
    %s155 = scalar_select %p152, %s153, %s154
    %p158 = pneg %p152
    %p159 = scmp.eq.s32.totalorder %s31, 1
    %p160 = por %p158, %p159
    %p161 = scmp.ne.s32.totalorder %s153, %s156
    %p162 = scmp.eq.s32.totalorder %s31, 0
    %p163 = por %p161, %p162
    %p164 = scmp.ne.s32.totalorder %s153, %s156
    %p165 = scmp.eq.s32.totalorder %s36, 1
    %p166 = por %p164, %p165
    %p167 = scmp.ne.s32.totalorder %s156, %s157
    %p168 = scmp.eq.s32.totalorder %s36, 0
    %p169 = por %p167, %p168
    %p170 = scmp.ne.s32.totalorder %s156, %s157
    %p171 = scmp.eq.s32.totalorder %s37, 1
    %p172 = por %p170, %p171
    %p174 = scmp.ne.s32.totalorder %s157, %s173
    %p175 = scmp.eq.s32.totalorder %s37, 0
    %p176 = por %p174, %p175
    %s177 = sld [smem:[#allocation3 + %s31]]
    %s178 = sld [smem:[#allocation3 + %s38]]
    %s179 = ssub.s32 %s177, %s178
    %p180 = scmp.eq.s32.totalorder %s179, 0
    %s182 = sadd.s32 %s181, 1
    %s183 = scalar_select %p180, %s181, %s182
    %p186 = pneg %p180
    %p187 = scmp.eq.s32.totalorder %s31, 1
    %p188 = por %p186, %p187
    %p189 = scmp.ne.s32.totalorder %s181, %s184
    %p190 = scmp.eq.s32.totalorder %s31, 0
    %p191 = por %p189, %p190
    %p192 = scmp.ne.s32.totalorder %s181, %s184
    %p193 = scmp.eq.s32.totalorder %s36, 1
    %p194 = por %p192, %p193
    %p195 = scmp.ne.s32.totalorder %s184, %s185
    %p196 = scmp.eq.s32.totalorder %s36, 0
    %p197 = por %p195, %p196
    %p198 = scmp.ne.s32.totalorder %s184, %s185
    %p199 = scmp.eq.s32.totalorder %s37, 1
    %p200 = por %p198, %p199
    %p202 = scmp.ne.s32.totalorder %s185, %s201
    %p203 = scmp.eq.s32.totalorder %s37, 0
    %p204 = por %p202, %p203
    %s205 = sld [smem:[#allocation3 + %s31]]
    %s206 = sld [smem:[#allocation3 + %s38]]
    %s207 = ssub.s32 %s205, %s206
    %p208 = scmp.eq.s32.totalorder %s207, 0
    %s210 = sadd.s32 %s209, 1
    %s211 = scalar_select %p208, %s209, %s210
    %p214 = pneg %p208
    %p215 = scmp.eq.s32.totalorder %s31, 1
    %p216 = por %p214, %p215
    %p217 = scmp.ne.s32.totalorder %s209, %s212
    %p218 = scmp.eq.s32.totalorder %s31, 0
    %p219 = por %p217, %p218
    %p220 = scmp.ne.s32.totalorder %s209, %s212
    %p221 = scmp.eq.s32.totalorder %s36, 1
    %p222 = por %p220, %p221
    %p223 = scmp.ne.s32.totalorder %s212, %s213
    %p224 = scmp.eq.s32.totalorder %s36, 0
    %p225 = por %p223, %p224
    %p226 = scmp.ne.s32.totalorder %s212, %s213
    %p227 = scmp.eq.s32.totalorder %s37, 1
    %p228 = por %p226, %p227
    %p230 = scmp.ne.s32.totalorder %s213, %s229
    %p231 = scmp.eq.s32.totalorder %s37, 0
    %p232 = por %p230, %p231
    %s233 = sld [smem:[#allocation3 + %s31]]
    %s234 = sld [smem:[#allocation3 + %s38]]
    %s235 = ssub.s32 %s233, %s234
    %p236 = scmp.eq.s32.totalorder %s235, 0
    %s238 = sadd.s32 %s237, 1
    %s239 = scalar_select %p236, %s237, %s238
    %p242 = pneg %p236
    %p243 = scmp.eq.s32.totalorder %s31, 1
    %p244 = por %p242, %p243
    %p245 = scmp.ne.s32.totalorder %s237, %s240
    %p246 = scmp.eq.s32.totalorder %s31, 0
    %p247 = por %p245, %p246
    %p248 = scmp.ne.s32.totalorder %s237, %s240
    %p249 = scmp.eq.s32.totalorder %s36, 1
    %p250 = por %p248, %p249
    %p251 = scmp.ne.s32.totalorder %s240, %s241
    %p252 = scmp.eq.s32.totalorder %s36, 0
    %p253 = por %p251, %p252
    %p254 = scmp.ne.s32.totalorder %s240, %s241
    %p255 = scmp.eq.s32.totalorder %s37, 1
    %p256 = por %p254, %p255
    %p258 = scmp.ne.s32.totalorder %s241, %s257
    %p259 = scmp.eq.s32.totalorder %s37, 0
    %p260 = por %p258, %p259
    %s261 = sld [smem:[#allocation3 + %s31]]
    %s262 = sld [smem:[#allocation3 + %s38]]
    %s263 = ssub.s32 %s261, %s262
    %p264 = scmp.eq.s32.totalorder %s263, 0
    %s266 = sadd.s32 %s265, 1
    %s267 = scalar_select %p264, %s265, %s266
    %p270 = pneg %p264
    %p271 = scmp.eq.s32.totalorder %s31, 1
    %p272 = por %p270, %p271
    %p273 = scmp.ne.s32.totalorder %s265, %s268
    %p274 = scmp.eq.s32.totalorder %s31, 0
    %p275 = por %p273, %p274
    %p276 = scmp.ne.s32.totalorder %s265, %s268
    %p277 = scmp.eq.s32.totalorder %s36, 1
    %p278 = por %p276, %p277
    %p279 = scmp.ne.s32.totalorder %s268, %s269
    %p280 = scmp.eq.s32.totalorder %s36, 0
    %p281 = por %p279, %p280
    %p282 = scmp.ne.s32.totalorder %s268, %s269
    %p283 = scmp.eq.s32.totalorder %s37, 1
    %p284 = por %p282, %p283
    %p286 = scmp.ne.s32.totalorder %s269, %s285
    %p287 = scmp.eq.s32.totalorder %s37, 0
    %p288 = por %p286, %p287
    %s289 = sld [smem:[#allocation3 + %s31]]
    %s290 = sld [smem:[#allocation3 + %s38]]
    %s291 = ssub.s32 %s289, %s290
    %p292 = scmp.eq.s32.totalorder %s291, 0
    %s294 = sadd.s32 %s293, 1
    %s295 = scalar_select %p292, %s293, %s294
    %p298 = pneg %p292
    %p299 = scmp.eq.s32.totalorder %s31, 1
    %p300 = por %p298, %p299
    %p301 = scmp.ne.s32.totalorder %s293, %s296
    %p302 = scmp.eq.s32.totalorder %s31, 0
    %p303 = por %p301, %p302
    %p304 = scmp.ne.s32.totalorder %s293, %s296
    %p305 = scmp.eq.s32.totalorder %s36, 1
    %p306 = por %p304, %p305
    %p307 = scmp.ne.s32.totalorder %s296, %s297
    %p308 = scmp.eq.s32.totalorder %s36, 0
    %p309 = por %p307, %p308
    %p310 = scmp.ne.s32.totalorder %s296, %s297
    %p311 = scmp.eq.s32.totalorder %s37, 1
    %p312 = por %p310, %p311
    %p314 = scmp.ne.s32.totalorder %s297, %s313
    %p315 = scmp.eq.s32.totalorder %s37, 0
    %p316 = por %p314, %p315
    %s317 = sld [smem:[#allocation3 + %s31]]
    %s318 = sld [smem:[#allocation3 + %s38]]
    %s319 = ssub.s32 %s317, %s318
    %p320 = scmp.eq.s32.totalorder %s319, 0
    %s322 = sadd.s32 %s321, 1
    %s323 = scalar_select %p320, %s321, %s322
    %p326 = pneg %p320
    %p327 = scmp.eq.s32.totalorder %s31, 1
    %p328 = por %p326, %p327
    %p329 = scmp.ne.s32.totalorder %s321, %s324
    %p330 = scmp.eq.s32.totalorder %s31, 0
    %p331 = por %p329, %p330
    %p332 = scmp.ne.s32.totalorder %s321, %s324
    %p333 = scmp.eq.s32.totalorder %s36, 1
    %p334 = por %p332, %p333
    %p335 = scmp.ne.s32.totalorder %s324, %s325
    %p336 = scmp.eq.s32.totalorder %s36, 0
    %p337 = por %p335, %p336
    %p338 = scmp.ne.s32.totalorder %s324, %s325
    %p339 = scmp.eq.s32.totalorder %s37, 1
    %p340 = por %p338, %p339
    %p342 = scmp.ne.s32.totalorder %s325, %s341
    %p343 = scmp.eq.s32.totalorder %s37, 0
    %p344 = por %p342, %p343
    %s345 = sld [smem:[#allocation3 + %s31]]
    %s346 = sld [smem:[#allocation3 + %s38]]
    %s347 = ssub.s32 %s345, %s346
    %p348 = scmp.eq.s32.totalorder %s347, 0
    %s350 = sadd.s32 %s349, 1
    %s351 = scalar_select %p348, %s349, %s350
    %p354 = pneg %p348
    %p355 = scmp.eq.s32.totalorder %s31, 1
    %p356 = por %p354, %p355
    %p357 = scmp.ne.s32.totalorder %s349, %s352
    %p358 = scmp.eq.s32.totalorder %s31, 0
    %p359 = por %p357, %p358
    %p360 = scmp.ne.s32.totalorder %s349, %s352
    %p361 = scmp.eq.s32.totalorder %s36, 1
    %p362 = por %p360, %p361
    %p363 = scmp.ne.s32.totalorder %s352, %s353
    %p364 = scmp.eq.s32.totalorder %s36, 0
    %p365 = por %p363, %p364
    %p366 = scmp.ne.s32.totalorder %s352, %s353
    %p367 = scmp.eq.s32.totalorder %s37, 1
    %p368 = por %p366, %p367
    %p370 = scmp.ne.s32.totalorder %s353, %s369
    %p371 = scmp.eq.s32.totalorder %s37, 0
    %p372 = por %p370, %p371
    %s373 = sld [smem:[#allocation3 + %s31]]
    %s374 = sld [smem:[#allocation3 + %s38]]
    %s375 = ssub.s32 %s373, %s374
    %p376 = scmp.eq.s32.totalorder %s375, 0
    %s378 = sadd.s32 %s377, 1
    %s379 = scalar_select %p376, %s377, %s378
    %p382 = pneg %p376
    %p383 = scmp.eq.s32.totalorder %s31, 1
    %p384 = por %p382, %p383
    %p385 = scmp.ne.s32.totalorder %s377, %s380
    %p386 = scmp.eq.s32.totalorder %s31, 0
    %p387 = por %p385, %p386
    %p388 = scmp.ne.s32.totalorder %s377, %s380
    %p389 = scmp.eq.s32.totalorder %s36, 1
    %p390 = por %p388, %p389
    %p391 = scmp.ne.s32.totalorder %s380, %s381
    %p392 = scmp.eq.s32.totalorder %s36, 0
    %p393 = por %p391, %p392
    %p394 = scmp.ne.s32.totalorder %s380, %s381
    %p395 = scmp.eq.s32.totalorder %s37, 1
    %p396 = por %p394, %p395
    %p398 = scmp.ne.s32.totalorder %s381, %s397
    %p399 = scmp.eq.s32.totalorder %s37, 0
    %p400 = por %p398, %p399
    %s401 = ssub.s32 %s31, %s38
    %p402 = scmp.eq.s32.totalorder %s401, 0
    %s404 = sadd.s32 %s403, 1
    %s405 = scalar_select %p402, %s403, %s404
    %p408 = pneg %p402
    %p409 = scmp.eq.s32.totalorder %s31, 1
    %p410 = por %p408, %p409
    %p411 = scmp.ne.s32.totalorder %s403, %s406
    %p412 = scmp.eq.s32.totalorder %s31, 0
    %p413 = por %p411, %p412
    %p414 = scmp.ne.s32.totalorder %s403, %s406
    %p415 = scmp.eq.s32.totalorder %s36, 1
    %p416 = por %p414, %p415
    %p417 = scmp.ne.s32.totalorder %s406, %s407
    %p418 = scmp.eq.s32.totalorder %s36, 0
    %p419 = por %p417, %p418
    %p420 = scmp.ne.s32.totalorder %s406, %s407
    %p421 = scmp.eq.s32.totalorder %s37, 1
    %p422 = por %p420, %p421
    %p424 = scmp.ne.s32.totalorder %s407, %s423
    %p425 = scmp.eq.s32.totalorder %s37, 0
    %p426 = por %p424, %p425
    %p427 = scmp.le.s32.totalorder 1, %s31
    %p428 = scmp.lt.s32.totalorder %s31, 3
    %p429 = pnand %p427, %p428
    %p430 = pneg %p429
    // Predicated region
    $region9: #{jvp__.1} parent=5 // pred_check
      _
    $region10: #{jvp__.1} parent=5 // pred_check_branch
      %432 = sbr.rel (%p429) target = $region12
    $region11: #{jvp__.1} parent=5 // pred_region
      %s433 = ssub.s32 %s31, 1
    $region12: #{jvp__.1} parent=5 // pred_fallthru
      _
    %p434 = scmp.lt.s32.totalorder %s31, 2
    // Predicated region
    $region13: #{jvp__.1} parent=5 // pred_check
      %p435 = pneg %p434
    $region14: #{jvp__.1} parent=5 // pred_check_branch
      %437 = sbr.rel (%p435) target = $region16
    $region15: #{jvp__.1} parent=5 // pred_region
      // Predicated region
      $region17: #{jvp__.1} parent=15 // pred_check
        %p438 = pneg %p51
      $region18: #{jvp__.1} parent=15 // pred_check_branch
        %440 = sbr.rel (%p438) target = $region20
      $region19: #{jvp__.1} parent=15 // pred_region
        %p441 = scmp.lt.s32.totalorder %s31, 1
        %s442 = scalar_select %p441, %s31, 1
        %s443 = smul.addr %s442, 8
        %s444 = scalar_lea.vmem %s2, %s443
      $region20: #{jvp__.1} parent=15 // pred_fallthru
        _
      // Predicated region
      $region21: #{jvp__.1} parent=15 // pred_check
        %p445 = pneg %p79
      $region22: #{jvp__.1} parent=15 // pred_check_branch
        %447 = sbr.rel (%p445) target = $region24
      $region23: #{jvp__.1} parent=15 // pred_region
        %s448 = sld [smem:[#allocation3 + %s31]]
        %p449 = scmp.lt.s32.totalorder %s448, 1
        %s450 = scalar_select %p449, %s448, 1
        %s451 = smul.addr %s450, 16
        %s452 = smul.addr %s451, 4
        %s453 = scalar_lea.vmem %s3, %s452
        %s454 = sld [smem:[#allocation3 + %s31]]
      $region24: #{jvp__.1} parent=15 // pred_fallthru
        _
      // Predicated region
      $region25: #{jvp__.1} parent=15 // pred_check
        %p455 = pneg %p107
      $region26: #{jvp__.1} parent=15 // pred_check_branch
        %457 = sbr.rel (%p455) target = $region28
      $region27: #{jvp__.1} parent=15 // pred_region
        %s458 = sld [smem:[#allocation3 + %s31]]
        %p459 = scmp.lt.s32.totalorder %s458, 1
        %s460 = scalar_select %p459, %s458, 1
        %s461 = scalar_lea.vmem %s4, %s460
        %s462 = sld [smem:[#allocation3 + %s31]]
      $region28: #{jvp__.1} parent=15 // pred_fallthru
        _
      // Predicated region
      $region29: #{jvp__.1} parent=15 // pred_check
        %p463 = pneg %p135
      $region30: #{jvp__.1} parent=15 // pred_check_branch
        %465 = sbr.rel (%p463) target = $region32
      $region31: #{jvp__.1} parent=15 // pred_region
        %s466 = sld [smem:[#allocation3 + %s31]]
        %p467 = scmp.lt.s32.totalorder %s466, 1
        %s468 = scalar_select %p467, %s466, 1
        %s469 = smul.addr %s468, 16
        %s470 = smul.addr %s469, 4
        %s471 = scalar_lea.vmem %s5, %s470
        %s472 = sld [smem:[#allocation3 + %s31]]
      $region32: #{jvp__.1} parent=15 // pred_fallthru
        _
      // Predicated region
      $region33: #{jvp__.1} parent=15 // pred_check
        %p473 = pneg %p163
      $region34: #{jvp__.1} parent=15 // pred_check_branch
        %475 = sbr.rel (%p473) target = $region36
      $region35: #{jvp__.1} parent=15 // pred_region
        %s476 = sld [smem:[#allocation3 + %s31]]
        %p477 = scmp.lt.s32.totalorder %s476, 1
        %s478 = scalar_select %p477, %s476, 1
        %s479 = scalar_lea.vmem %s6, %s478
        %s480 = sld [smem:[#allocation3 + %s31]]
      $region36: #{jvp__.1} parent=15 // pred_fallthru
        _
      // Predicated region
      $region37: #{jvp__.1} parent=15 // pred_check
        %p481 = pneg %p191
      $region38: #{jvp__.1} parent=15 // pred_check_branch
        %483 = sbr.rel (%p481) target = $region40
      $region39: #{jvp__.1} parent=15 // pred_region
        %s484 = sld [smem:[#allocation3 + %s31]]
        %p485 = scmp.lt.s32.totalorder %s484, 1
        %s486 = scalar_select %p485, %s484, 1
        %s487 = smul.addr %s486, 16
        %s488 = smul.addr %s487, 4
        %s489 = scalar_lea.vmem %s7, %s488
        %s490 = sld [smem:[#allocation3 + %s31]]
      $region40: #{jvp__.1} parent=15 // pred_fallthru
        _
      // Predicated region
      $region41: #{jvp__.1} parent=15 // pred_check
        %p491 = pneg %p219
      $region42: #{jvp__.1} parent=15 // pred_check_branch
        %493 = sbr.rel (%p491) target = $region44
      $region43: #{jvp__.1} parent=15 // pred_region
        %s494 = sld [smem:[#allocation3 + %s31]]
        %p495 = scmp.lt.s32.totalorder %s494, 1
        %s496 = scalar_select %p495, %s494, 1
        %s497 = scalar_lea.vmem %s8, %s496
        %s498 = sld [smem:[#allocation3 + %s31]]
      $region44: #{jvp__.1} parent=15 // pred_fallthru
        _
      // Predicated region
      $region45: #{jvp__.1} parent=15 // pred_check
        %p499 = pneg %p247
      $region46: #{jvp__.1} parent=15 // pred_check_branch
        %501 = sbr.rel (%p499) target = $region48
      $region47: #{jvp__.1} parent=15 // pred_region
        %s502 = sld [smem:[#allocation3 + %s31]]
        %p503 = scmp.lt.s32.totalorder %s502, 1
        %s504 = scalar_select %p503, %s502, 1
        %s505 = smul.addr %s504, 16
        %s506 = smul.addr %s505, 4
        %s507 = scalar_lea.vmem %s9, %s506
        %s508 = sld [smem:[#allocation3 + %s31]]
      $region48: #{jvp__.1} parent=15 // pred_fallthru
        _
      // Predicated region
      $region49: #{jvp__.1} parent=15 // pred_check
        %p509 = pneg %p275
      $region50: #{jvp__.1} parent=15 // pred_check_branch
        %511 = sbr.rel (%p509) target = $region52
      $region51: #{jvp__.1} parent=15 // pred_region
        %s512 = sld [smem:[#allocation3 + %s31]]
        %p513 = scmp.lt.s32.totalorder %s512, 1
        %s514 = scalar_select %p513, %s512, 1
        %s515 = scalar_lea.vmem %s10, %s514
        %s516 = sld [smem:[#allocation3 + %s31]]
      $region52: #{jvp__.1} parent=15 // pred_fallthru
        _
      // Predicated region
      $region53: #{jvp__.1} parent=15 // pred_check
        %p517 = pneg %p303
      $region54: #{jvp__.1} parent=15 // pred_check_branch
        %519 = sbr.rel (%p517) target = $region56
      $region55: #{jvp__.1} parent=15 // pred_region
        %s520 = sld [smem:[#allocation3 + %s31]]
        %p521 = scmp.lt.s32.totalorder %s520, 1
        %s522 = scalar_select %p521, %s520, 1
        %s523 = smul.addr %s522, 4
        %s524 = scalar_lea.vmem %s11, %s523
        %s525 = sld [smem:[#allocation3 + %s31]]
      $region56: #{jvp__.1} parent=15 // pred_fallthru
        _
      // Predicated region
      $region57: #{jvp__.1} parent=15 // pred_check
        %p526 = pneg %p331
      $region58: #{jvp__.1} parent=15 // pred_check_branch
        %528 = sbr.rel (%p526) target = $region60
      $region59: #{jvp__.1} parent=15 // pred_region
        %s529 = sld [smem:[#allocation3 + %s31]]
        %p530 = scmp.lt.s32.totalorder %s529, 1
        %s531 = scalar_select %p530, %s529, 1
        %s532 = smul.addr %s531, 4
        %s533 = scalar_lea.vmem %s12, %s532
        %s534 = sld [smem:[#allocation3 + %s31]]
      $region60: #{jvp__.1} parent=15 // pred_fallthru
        _
      // Predicated region
      $region61: #{jvp__.1} parent=15 // pred_check
        %p535 = pneg %p359
      $region62: #{jvp__.1} parent=15 // pred_check_branch
        %537 = sbr.rel (%p535) target = $region64
      $region63: #{jvp__.1} parent=15 // pred_region
        %s538 = sld [smem:[#allocation3 + %s31]]
        %p539 = scmp.lt.s32.totalorder %s538, 1
        %s540 = scalar_select %p539, %s538, 1
        %s541 = smul.addr %s540, 4
        %s542 = scalar_lea.vmem %s13, %s541
        %s543 = sld [smem:[#allocation3 + %s31]]
      $region64: #{jvp__.1} parent=15 // pred_fallthru
        _
      // Predicated region
      $region65: #{jvp__.1} parent=15 // pred_check
        %p544 = pneg %p387
      $region66: #{jvp__.1} parent=15 // pred_check_branch
        %546 = sbr.rel (%p544) target = $region68
      $region67: #{jvp__.1} parent=15 // pred_region
        %s547 = sld [smem:[#allocation3 + %s31]]
        %p548 = scmp.lt.s32.totalorder %s547, 1
        %s549 = scalar_select %p548, %s547, 1
        %s550 = smul.addr %s549, 4
        %s551 = scalar_lea.vmem %s14, %s550
        %s552 = sld [smem:[#allocation3 + %s31]]
      $region68: #{jvp__.1} parent=15 // pred_fallthru
        _
    $region16: #{jvp__.1} parent=5 // pred_fallthru
      _
    %p553 = scmp.le.s32.totalorder 1, %s31
    %p554 = scmp.lt.s32.totalorder %s31, 3
    %p555 = pnand %p553, %p554
    %p556 = pneg %p555
    // Predicated region
    $region69: #{jvp__.1} parent=5 // pred_check
      _
    $region70: #{jvp__.1} parent=5 // pred_check_branch
      %558 = sbr.rel (%p555) target = $region72
    $region71: #{jvp__.1} parent=5 // pred_region
      %s559 = ssub.s32 %s31, 1
      %p560 = scmp.lt.s32.totalorder %s36, 1
      %s561 = scalar_select %p560, %s36, 1
      %s562 = smul.addr %s561, 8
      %s563 = scalar_lea.vmem %s2, %s562
      %p564 = pneg %p57
      %p565 = pneg %p54
      %s566 = sld [smem:[#allocation3 + %s36]]
      %p567 = scmp.lt.s32.totalorder %s566, 1
      %s568 = scalar_select %p567, %s566, 1
      %s569 = smul.addr %s568, 16
      %s570 = smul.addr %s569, 4
      %s571 = scalar_lea.vmem %s3, %s570
      %p572 = pneg %p85
      %p573 = pneg %p82
      %s574 = sld [smem:[#allocation3 + %s36]]
      %p575 = scmp.lt.s32.totalorder %s574, 1
      %s576 = scalar_select %p575, %s574, 1
      %s577 = scalar_lea.vmem %s4, %s576
      %p578 = pneg %p113
      %p579 = pneg %p110
      %s580 = sld [smem:[#allocation3 + %s36]]
      %p581 = scmp.lt.s32.totalorder %s580, 1
      %s582 = scalar_select %p581, %s580, 1
      %s583 = smul.addr %s582, 16
      %s584 = smul.addr %s583, 4
      %s585 = scalar_lea.vmem %s5, %s584
      %p586 = pneg %p141
      %p587 = pneg %p138
      %s588 = sld [smem:[#allocation3 + %s36]]
      %p589 = scmp.lt.s32.totalorder %s588, 1
      %s590 = scalar_select %p589, %s588, 1
      %s591 = scalar_lea.vmem %s6, %s590
      %p592 = pneg %p169
      %p593 = pneg %p166
      %s594 = sld [smem:[#allocation3 + %s36]]
      %p595 = scmp.lt.s32.totalorder %s594, 1
      %s596 = scalar_select %p595, %s594, 1
      %s597 = smul.addr %s596, 16
      %s598 = smul.addr %s597, 4
      %s599 = scalar_lea.vmem %s7, %s598
      %p600 = pneg %p197
      %p601 = pneg %p194
      %s602 = sld [smem:[#allocation3 + %s36]]
      %p603 = scmp.lt.s32.totalorder %s602, 1
      %s604 = scalar_select %p603, %s602, 1
      %s605 = scalar_lea.vmem %s8, %s604
      %p606 = pneg %p225
      %p607 = pneg %p222
      %s608 = sld [smem:[#allocation3 + %s36]]
      %p609 = scmp.lt.s32.totalorder %s608, 1
      %s610 = scalar_select %p609, %s608, 1
      %s611 = smul.addr %s610, 16
      %s612 = smul.addr %s611, 4
      %s613 = scalar_lea.vmem %s9, %s612
      %p614 = pneg %p253
      %p615 = pneg %p250
      %s616 = sld [smem:[#allocation3 + %s36]]
      %p617 = scmp.lt.s32.totalorder %s616, 1
      %s618 = scalar_select %p617, %s616, 1
      %s619 = scalar_lea.vmem %s10, %s618
      %p620 = pneg %p281
      %p621 = pneg %p278
      %s622 = sld [smem:[#allocation3 + %s36]]
      %p623 = scmp.lt.s32.totalorder %s622, 1
      %s624 = scalar_select %p623, %s622, 1
      %s625 = smul.addr %s624, 4
      %s626 = scalar_lea.vmem %s11, %s625
      %p627 = pneg %p309
      %p628 = pneg %p306
      %s629 = sld [smem:[#allocation3 + %s36]]
      %p630 = scmp.lt.s32.totalorder %s629, 1
      %s631 = scalar_select %p630, %s629, 1
      %s632 = smul.addr %s631, 4
      %s633 = scalar_lea.vmem %s12, %s632
      %p634 = pneg %p337
      %p635 = pneg %p334
      %s636 = sld [smem:[#allocation3 + %s36]]
      %p637 = scmp.lt.s32.totalorder %s636, 1
      %s638 = scalar_select %p637, %s636, 1
      %s639 = smul.addr %s638, 4
      %s640 = scalar_lea.vmem %s13, %s639
      %p641 = pneg %p365
      %p642 = pneg %p362
      %s643 = sld [smem:[#allocation3 + %s36]]
      %p644 = scmp.lt.s32.totalorder %s643, 1
      %s645 = scalar_select %p644, %s643, 1
      %s646 = smul.addr %s645, 4
      %s647 = scalar_lea.vmem %s14, %s646
      %p648 = pneg %p393
      %p649 = pneg %p390
      %p650 = pneg %p419
      %p651 = pneg %p416
      %p652 = scmp.lt.s32.totalorder %s36, 1
      %s653 = scalar_select %p652, %s36, 1
      %s654 = smul.addr %s653, 8
      %s655 = scalar_lea.vmem %s15, %s654
      %p656 = scmp.lt.s32.totalorder %s36, 1
      %s657 = scalar_select %p656, %s36, 1
      %s658 = smul.addr %s657, 8
      %s659 = scalar_lea.vmem %s2, %s658
      %s660 = sld [smem:[#allocation3 + %s36]]
      %p661 = scmp.lt.s32.totalorder %s660, 1
      %s662 = scalar_select %p661, %s660, 1
      %s663 = smul.addr %s662, 16
      %s664 = smul.addr %s663, 4
      %s665 = scalar_lea.vmem %s3, %s664
      %s666 = sld [smem:[#allocation3 + %s36]]
      %s667 = sld [smem:[#allocation3 + %s36]]
      %p668 = scmp.lt.s32.totalorder %s667, 1
      %s669 = scalar_select %p668, %s667, 1
      %s670 = scalar_lea.vmem %s4, %s669
      %s671 = sld [smem:[#allocation3 + %s36]]
      %s672 = sld [smem:[#allocation3 + %s36]]
      %p673 = scmp.lt.s32.totalorder %s672, 1
      %s674 = scalar_select %p673, %s672, 1
      %s675 = smul.addr %s674, 16
      %s676 = smul.addr %s675, 4
      %s677 = scalar_lea.vmem %s5, %s676
      %s678 = sld [smem:[#allocation3 + %s36]]
      %s679 = sld [smem:[#allocation3 + %s36]]
      %p680 = scmp.lt.s32.totalorder %s679, 1
      %s681 = scalar_select %p680, %s679, 1
      %s682 = scalar_lea.vmem %s6, %s681
      %s683 = sld [smem:[#allocation3 + %s36]]
      %s684 = sld [smem:[#allocation3 + %s36]]
      %p685 = scmp.lt.s32.totalorder %s684, 1
      %s686 = scalar_select %p685, %s684, 1
      %s687 = smul.addr %s686, 16
      %s688 = smul.addr %s687, 4
      %s689 = scalar_lea.vmem %s7, %s688
      %s690 = sld [smem:[#allocation3 + %s36]]
      %s691 = sld [smem:[#allocation3 + %s36]]
      %p692 = scmp.lt.s32.totalorder %s691, 1
      %s693 = scalar_select %p692, %s691, 1
      %s694 = scalar_lea.vmem %s8, %s693
      %s695 = sld [smem:[#allocation3 + %s36]]
      %s696 = sld [smem:[#allocation3 + %s36]]
      %p697 = scmp.lt.s32.totalorder %s696, 1
      %s698 = scalar_select %p697, %s696, 1
      %s699 = smul.addr %s698, 16
      %s700 = smul.addr %s699, 4
      %s701 = scalar_lea.vmem %s9, %s700
      %s702 = sld [smem:[#allocation3 + %s36]]
      %s703 = sld [smem:[#allocation3 + %s36]]
      %p704 = scmp.lt.s32.totalorder %s703, 1
      %s705 = scalar_select %p704, %s703, 1
      %s706 = scalar_lea.vmem %s10, %s705
      %s707 = sld [smem:[#allocation3 + %s36]]
      %s708 = sld [smem:[#allocation3 + %s36]]
      %p709 = scmp.lt.s32.totalorder %s708, 1
      %s710 = scalar_select %p709, %s708, 1
      %s711 = smul.addr %s710, 4
      %s712 = scalar_lea.vmem %s11, %s711
      %s713 = sld [smem:[#allocation3 + %s36]]
      %s714 = sld [smem:[#allocation3 + %s36]]
      %p715 = scmp.lt.s32.totalorder %s714, 1
      %s716 = scalar_select %p715, %s714, 1
      %s717 = smul.addr %s716, 4
      %s718 = scalar_lea.vmem %s12, %s717
      %s719 = sld [smem:[#allocation3 + %s36]]
      %s720 = sld [smem:[#allocation3 + %s36]]
      %p721 = scmp.lt.s32.totalorder %s720, 1
      %s722 = scalar_select %p721, %s720, 1
      %s723 = smul.addr %s722, 4
      %s724 = scalar_lea.vmem %s13, %s723
      %s725 = sld [smem:[#allocation3 + %s36]]
      %s726 = sld [smem:[#allocation3 + %s36]]
      %p727 = scmp.lt.s32.totalorder %s726, 1
      %s728 = scalar_select %p727, %s726, 1
      %s729 = smul.addr %s728, 4
      %s730 = scalar_lea.vmem %s14, %s729
      %s731 = sld [smem:[#allocation3 + %s36]]
      %p732 = scmp.lt.s32.totalorder %s36, 1
      %s733 = scalar_select %p732, %s36, 1
      %s734 = smul.addr %s733, 8
      %s735 = scalar_lea.vmem %s15, %s734
      %v737 = vld [vmem:[%s659] sm:$0xff]
      %v738 = vld [vmem:[%s665] sm:$0xf]
      %v739 = vld [vmem:[%s665 + $0x4] sm:$0xf]
      %v740 = vld [vmem:[%s665 + $0x8] sm:$0xf]
      %v741 = vld [vmem:[%s665 + $0xc] sm:$0xf]
      %v742 = vld [vmem:[%s665 + $0x10] sm:$0xf]
      %v743 = vld [vmem:[%s665 + $0x14] sm:$0xf]
      %v744 = vld [vmem:[%s665 + $0x18] sm:$0xf]
      %v745 = vld [vmem:[%s665 + $0x1c] sm:$0xf]
      %v746 = vld [vmem:[%s665 + $0x20] sm:$0xf]
      %v747 = vld [vmem:[%s665 + $0x24] sm:$0xf]
      %v748 = vld [vmem:[%s665 + $0x28] sm:$0xf]
      %v749 = vld [vmem:[%s665 + $0x2c] sm:$0xf]
      %v750 = vld [vmem:[%s665 + $0x30] sm:$0xf]
      %v751 = vld [vmem:[%s665 + $0x34] sm:$0xf]
      %v752 = vld [vmem:[%s665 + $0x38] sm:$0xf]
      %v753 = vld [vmem:[%s665 + $0x3c] sm:$0xf]
      %v754 = vld [vmem:[%s670] sm:$0x1]
      %v755 = vld [vmem:[%s677] sm:$0xf]
      %v756 = vld [vmem:[%s677 + $0x4] sm:$0xf]
      %v757 = vld [vmem:[%s677 + $0x8] sm:$0xf]
      %v758 = vld [vmem:[%s677 + $0xc] sm:$0xf]
      %v759 = vld [vmem:[%s677 + $0x10] sm:$0xf]
      %v760 = vld [vmem:[%s677 + $0x14] sm:$0xf]
      %v761 = vld [vmem:[%s677 + $0x18] sm:$0xf]
      %v762 = vld [vmem:[%s677 + $0x1c] sm:$0xf]
      %v763 = vld [vmem:[%s677 + $0x20] sm:$0xf]
      %v764 = vld [vmem:[%s677 + $0x24] sm:$0xf]
      %v765 = vld [vmem:[%s677 + $0x28] sm:$0xf]
      %v766 = vld [vmem:[%s677 + $0x2c] sm:$0xf]
      %v767 = vld [vmem:[%s677 + $0x30] sm:$0xf]
      %v768 = vld [vmem:[%s677 + $0x34] sm:$0xf]
      %v769 = vld [vmem:[%s677 + $0x38] sm:$0xf]
      %v770 = vld [vmem:[%s677 + $0x3c] sm:$0xf]
      %v771 = vld [vmem:[%s682] sm:$0x1]
      %v772 = vld [vmem:[%s689] sm:$0xf]
      %v773 = vld [vmem:[%s689 + $0x4] sm:$0xf]
      %v774 = vld [vmem:[%s689 + $0x8] sm:$0xf]
      %v775 = vld [vmem:[%s689 + $0xc] sm:$0xf]
      %v776 = vld [vmem:[%s689 + $0x10] sm:$0xf]
      %v777 = vld [vmem:[%s689 + $0x14] sm:$0xf]
      %v778 = vld [vmem:[%s689 + $0x18] sm:$0xf]
      %v779 = vld [vmem:[%s689 + $0x1c] sm:$0xf]
      %v780 = vld [vmem:[%s689 + $0x20] sm:$0xf]
      %v781 = vld [vmem:[%s689 + $0x24] sm:$0xf]
      %v782 = vld [vmem:[%s689 + $0x28] sm:$0xf]
      %v783 = vld [vmem:[%s689 + $0x2c] sm:$0xf]
      %v784 = vld [vmem:[%s689 + $0x30] sm:$0xf]
      %v785 = vld [vmem:[%s689 + $0x34] sm:$0xf]
      %v786 = vld [vmem:[%s689 + $0x38] sm:$0xf]
      %v787 = vld [vmem:[%s689 + $0x3c] sm:$0xf]
      %v788 = vld [vmem:[%s694] sm:$0x1]
      %v789 = vld [vmem:[%s712] sm:$0x7]
      %v790 = vld [vmem:[%s718] sm:$0x7]
      %v791 = vld [vmem:[%s724] sm:$0x7]
      %v792 = vld [vmem:[%s730] sm:$0x7]
      %v793 = vpack.c.bf16 %v737, %v737
      %v795 = vlaneseq
      %v796 = vshrl.u32 %v795, 7
      %v797 = vsub.s32 0, %v796
      %v798 = vrot.slane %v754, %v797
      %v816 = vunpack.c.l.b16 %v738
      %v817 = vunpack.c.l.b16 %v739
      %v818 = vunpack.c.l.b16 %v740
      %v819 = vunpack.c.l.b16 %v741
      %v820 = vunpack.c.l.b16 %v742
      %v821 = vunpack.c.l.b16 %v743
      %v822 = vunpack.c.l.b16 %v744
      %v823 = vunpack.c.l.b16 %v745
      %v824 = vunpack.c.l.b16 %v746
      %v825 = vunpack.c.l.b16 %v747
      %v826 = vunpack.c.l.b16 %v748
      %v827 = vunpack.c.l.b16 %v749
      %v828 = vunpack.c.l.b16 %v750
      %v829 = vunpack.c.l.b16 %v751
      %v830 = vunpack.c.l.b16 %v752
      %v831 = vunpack.c.l.b16 %v753
      %v832 = vpack.c.b16 %v817, %v816
      %v833 = vpack.c.b16 %v819, %v818
      %v834 = vpack.c.b16 %v821, %v820
      %v835 = vpack.c.b16 %v823, %v822
      %v836 = vpack.c.b16 %v825, %v824
      %v837 = vpack.c.b16 %v827, %v826
      %v838 = vpack.c.b16 %v829, %v828
      %v839 = vpack.c.b16 %v831, %v830
      %848 = vmatprep.subr.bf16.mxu0 0
      %849 = vmatpush1.bf16.msra.mxu0 %v839
      %850 = vmatprep.subr.bf16.mxu0 0
      %851 = vmatpush1.bf16.msra.mxu0 %v838
      %852 = vmatprep.subr.bf16.mxu0 0
      %853 = vmatpush1.bf16.msra.mxu0 %v837
      %854 = vmatprep.subr.bf16.mxu0 0
      %855 = vmatpush1.bf16.msra.mxu0 %v836
      %856 = vmatprep.subr.bf16.mxu0 0
      %857 = vmatpush1.bf16.msra.mxu0 %v835
      %858 = vmatprep.subr.bf16.mxu0 0
      %859 = vmatpush1.bf16.msra.mxu0 %v834
      %860 = vmatprep.subr.bf16.mxu0 0
      %861 = vmatpush1.bf16.msra.mxu0 %v833
      %862 = vmatprep.subr.bf16.mxu0 0
      %863 = vmatpush1.bf16.msra.mxu0 %v832
      %864 = vmatprep.subr.bf16.mxu0 0
      %865 = vmatpush2.bf16.msra.mxu0 0
      %866 = vmatprep.subr.bf16.mxu0 0
      %867 = vmatpush2.bf16.msra.mxu0 0
      %868 = vmatprep.subr.bf16.mxu0 0
      %869 = vmatpush2.bf16.msra.mxu0 0
      %870 = vmatprep.subr.bf16.mxu0 0
      %871 = vmatpush2.bf16.msra.mxu0 0
      %872 = vmatprep.subr.bf16.mxu0 0
      %873 = vmatpush2.bf16.msra.mxu0 0
      %874 = vmatprep.subr.bf16.mxu0 0
      %875 = vmatpush2.bf16.msra.mxu0 0
      %876 = vmatprep.subr.bf16.mxu0 0
      %877 = vmatpush2.bf16.msra.mxu0 0
      %878 = vmatprep.subr.bf16.mxu0 0
      %879 = vmatpush2.bf16.msra.mxu0 0
      %880 = vmatprep.mubr.bf16.mxu0 0
      %881 = vmatmul.mubr.bf16.gmra.mxu0 %v793
      %v882 = vpop.f32.mrf.mxu0
      %v883 = vadd.f32 %v798, %v882
      %v884 = vpop.f32.mrf.mxu0
      %v885 = vpop.f32.mrf.mxu0
      %v886 = vpop.f32.mrf.mxu0
      %887 = vdwg.mxu0
      %888 = vadd.xlane.f32.xlu0 %v883
      %v889 = vpop.xlane.xlu0 %888
      %v890 = vrcp.pop 128.0
      %v891 = vmul.f32 %v889, %v890
      %v892 = vsub.f32 %v883, %v891
      %v893 = vmul.f32 %v892, %v892
      %894 = vadd.xlane.f32.xlu0 %v893
      %v895 = vpop.xlane.xlu0 %894
      %v896 = vmul.f32 %v895, %v890
      %v897 = vadd.f32 %v896, 1e-05
      %v898 = vrsqrt.pop %v897
      %v899 = vmul.f32 %v892, %v898
      %v900 = vlaneseq
      %v901 = vshrl.u32 %v900, 7
      %v902 = vsub.s32 0, %v901
      %v903 = vrot.slane %v789, %v902
      %v904 = vmul.f32 %v899, %v903
      %v905 = vlaneseq
      %v906 = vshrl.u32 %v905, 7
      %v907 = vsub.s32 0, %v906
      %v908 = vrot.slane %v790, %v907
      %v909 = vadd.f32 %v904, %v908
      %v910 = vlaneseq
      %v911 = vshrl.u32 %v910, 7
      %v912 = vsub.s32 0, %v911
      %v913 = vrot.slane %v792, %v912
      %v914 = vmul.f32 %v913, %v909
      %v915 = vlaneseq
      %v916 = vshrl.u32 %v915, 7
      %v917 = vsub.s32 0, %v916
      %v918 = vrot.slane %v791, %v917
      %v919 = vmul.f32 %v918, %v914
      %v920 = vxor.u32 %v914, 2147483648
      %v921 = vmul.f32 %v920, 1.442695
      %v922 = vpow.pop %v921
      %v923 = vadd.f32 %v922, 1.0
      %v924 = vrcp.pop %v923
      %v925 = vmul.f32 1.0, %v924
      %v926 = vmul.f32 %v919, %v925
      %v927 = vpack.c.bf16 %v926, %v926
      %v929 = vlaneseq
      %v930 = vshrl.u32 %v929, 7
      %v931 = vsub.s32 0, %v930
      %v932 = vrot.slane %v771, %v931
      %v950 = vunpack.c.l.b16 %v755
      %v951 = vunpack.c.l.b16 %v756
      %v952 = vunpack.c.l.b16 %v757
      %v953 = vunpack.c.l.b16 %v758
      %v954 = vunpack.c.l.b16 %v759
      %v955 = vunpack.c.l.b16 %v760
      %v956 = vunpack.c.l.b16 %v761
      %v957 = vunpack.c.l.b16 %v762
      %v958 = vunpack.c.l.b16 %v763
      %v959 = vunpack.c.l.b16 %v764
      %v960 = vunpack.c.l.b16 %v765
      %v961 = vunpack.c.l.b16 %v766
      %v962 = vunpack.c.l.b16 %v767
      %v963 = vunpack.c.l.b16 %v768
      %v964 = vunpack.c.l.b16 %v769
      %v965 = vunpack.c.l.b16 %v770
      %v966 = vpack.c.b16 %v951, %v950
      %v967 = vpack.c.b16 %v953, %v952
      %v968 = vpack.c.b16 %v955, %v954
      %v969 = vpack.c.b16 %v957, %v956
      %v970 = vpack.c.b16 %v959, %v958
      %v971 = vpack.c.b16 %v961, %v960
      %v972 = vpack.c.b16 %v963, %v962
      %v973 = vpack.c.b16 %v965, %v964
      %982 = vmatprep.subr.bf16.mxu0 0
      %983 = vmatpush1.bf16.msra.mxu0 %v973
      %984 = vmatprep.subr.bf16.mxu0 0
      %985 = vmatpush1.bf16.msra.mxu0 %v972
      %986 = vmatprep.subr.bf16.mxu0 0
      %987 = vmatpush1.bf16.msra.mxu0 %v971
      %988 = vmatprep.subr.bf16.mxu0 0
      %989 = vmatpush1.bf16.msra.mxu0 %v970
      %990 = vmatprep.subr.bf16.mxu0 0
      %991 = vmatpush1.bf16.msra.mxu0 %v969
      %992 = vmatprep.subr.bf16.mxu0 0
      %993 = vmatpush1.bf16.msra.mxu0 %v968
      %994 = vmatprep.subr.bf16.mxu0 0
      %995 = vmatpush1.bf16.msra.mxu0 %v967
      %996 = vmatprep.subr.bf16.mxu0 0
      %997 = vmatpush1.bf16.msra.mxu0 %v966
      %998 = vmatprep.subr.bf16.mxu0 0
      %999 = vmatpush2.bf16.msra.mxu0 0
      %1000 = vmatprep.subr.bf16.mxu0 0
      %1001 = vmatpush2.bf16.msra.mxu0 0
      %1002 = vmatprep.subr.bf16.mxu0 0
      %1003 = vmatpush2.bf16.msra.mxu0 0
      %1004 = vmatprep.subr.bf16.mxu0 0
      %1005 = vmatpush2.bf16.msra.mxu0 0
      %1006 = vmatprep.subr.bf16.mxu0 0
      %1007 = vmatpush2.bf16.msra.mxu0 0
      %1008 = vmatprep.subr.bf16.mxu0 0
      %1009 = vmatpush2.bf16.msra.mxu0 0
      %1010 = vmatprep.subr.bf16.mxu0 0
      %1011 = vmatpush2.bf16.msra.mxu0 0
      %1012 = vmatprep.subr.bf16.mxu0 0
      %1013 = vmatpush2.bf16.msra.mxu0 0
      %1014 = vmatprep.mubr.bf16.mxu0 0
      %1015 = vmatmul.mubr.bf16.gmra.mxu0 %v927
      %v1016 = vpop.f32.mrf.mxu0
      %v1017 = vadd.f32 %v932, %v1016
      %v1018 = vpop.f32.mrf.mxu0
      %v1019 = vpop.f32.mrf.mxu0
      %v1020 = vpop.f32.mrf.mxu0
      %1021 = vdwg.mxu0
      %1022 = vadd.xlane.f32.xlu0 %v1017
      %v1023 = vpop.xlane.xlu0 %1022
      %v1024 = vmul.f32 %v1023, %v890
      %v1025 = vsub.f32 %v1017, %v1024
      %v1026 = vmul.f32 %v1025, %v1025
      %1027 = vadd.xlane.f32.xlu0 %v1026
      %v1028 = vpop.xlane.xlu0 %1027
      %v1029 = vmul.f32 %v1028, %v890
      %v1030 = vadd.f32 %v1029, 1e-05
      %v1031 = vrsqrt.pop %v1030
      %v1032 = vmul.f32 %v1025, %v1031
      %v1033 = vlaneseq
      %v1034 = vshrl.u32 %v1033, 7
      %v1035 = vsub.s32 1, %v1034
      %v1036 = vrot.slane %v789, %v1035
      %v1037 = vmul.f32 %v1032, %v1036
      %v1038 = vlaneseq
      %v1039 = vshrl.u32 %v1038, 7
      %v1040 = vsub.s32 1, %v1039
      %v1041 = vrot.slane %v790, %v1040
      %v1042 = vadd.f32 %v1037, %v1041
      %v1043 = vlaneseq
      %v1044 = vshrl.u32 %v1043, 7
      %v1045 = vsub.s32 1, %v1044
      %v1046 = vrot.slane %v792, %v1045
      %v1047 = vmul.f32 %v1046, %v1042
      %v1048 = vlaneseq
      %v1049 = vshrl.u32 %v1048, 7
      %v1050 = vsub.s32 1, %v1049
      %v1051 = vrot.slane %v791, %v1050
      %v1052 = vmul.f32 %v1051, %v1047
      %v1053 = vxor.u32 %v1047, 2147483648
      %v1054 = vmul.f32 %v1053, 1.442695
      %v1055 = vpow.pop %v1054
      %v1056 = vadd.f32 %v1055, 1.0
      %v1057 = vrcp.pop %v1056
      %v1058 = vmul.f32 1.0, %v1057
      %v1059 = vmul.f32 %v1052, %v1058
      %v1060 = vpack.c.bf16 %v1059, %v1059
      %v1062 = vlaneseq
      %v1063 = vshrl.u32 %v1062, 7
      %v1064 = vsub.s32 0, %v1063
      %v1065 = vrot.slane %v788, %v1064
      %v1083 = vunpack.c.l.b16 %v772
      %v1084 = vunpack.c.l.b16 %v773
      %v1085 = vunpack.c.l.b16 %v774
      %v1086 = vunpack.c.l.b16 %v775
      %v1087 = vunpack.c.l.b16 %v776
      %v1088 = vunpack.c.l.b16 %v777
      %v1089 = vunpack.c.l.b16 %v778
      %v1090 = vunpack.c.l.b16 %v779
      %v1091 = vunpack.c.l.b16 %v780
      %v1092 = vunpack.c.l.b16 %v781
      %v1093 = vunpack.c.l.b16 %v782
      %v1094 = vunpack.c.l.b16 %v783
      %v1095 = vunpack.c.l.b16 %v784
      %v1096 = vunpack.c.l.b16 %v785
      %v1097 = vunpack.c.l.b16 %v786
      %v1098 = vunpack.c.l.b16 %v787
      %v1099 = vpack.c.b16 %v1084, %v1083
      %v1100 = vpack.c.b16 %v1086, %v1085
      %v1101 = vpack.c.b16 %v1088, %v1087
      %v1102 = vpack.c.b16 %v1090, %v1089
      %v1103 = vpack.c.b16 %v1092, %v1091
      %v1104 = vpack.c.b16 %v1094, %v1093
      %v1105 = vpack.c.b16 %v1096, %v1095
      %v1106 = vpack.c.b16 %v1098, %v1097
      %1115 = vmatprep.subr.bf16.mxu0 0
      %1116 = vmatpush1.bf16.msra.mxu0 %v1106
      %1117 = vmatprep.subr.bf16.mxu0 0
      %1118 = vmatpush1.bf16.msra.mxu0 %v1105
      %1119 = vmatprep.subr.bf16.mxu0 0
      %1120 = vmatpush1.bf16.msra.mxu0 %v1104
      %1121 = vmatprep.subr.bf16.mxu0 0
      %1122 = vmatpush1.bf16.msra.mxu0 %v1103
      %1123 = vmatprep.subr.bf16.mxu0 0
      %1124 = vmatpush1.bf16.msra.mxu0 %v1102
      %1125 = vmatprep.subr.bf16.mxu0 0
      %1126 = vmatpush1.bf16.msra.mxu0 %v1101
      %1127 = vmatprep.subr.bf16.mxu0 0
      %1128 = vmatpush1.bf16.msra.mxu0 %v1100
      %1129 = vmatprep.subr.bf16.mxu0 0
      %1130 = vmatpush1.bf16.msra.mxu0 %v1099
      %1131 = vmatprep.subr.bf16.mxu0 0
      %1132 = vmatpush2.bf16.msra.mxu0 0
      %1133 = vmatprep.subr.bf16.mxu0 0
      %1134 = vmatpush2.bf16.msra.mxu0 0
      %1135 = vmatprep.subr.bf16.mxu0 0
      %1136 = vmatpush2.bf16.msra.mxu0 0
      %1137 = vmatprep.subr.bf16.mxu0 0
      %1138 = vmatpush2.bf16.msra.mxu0 0
      %1139 = vmatprep.subr.bf16.mxu0 0
      %1140 = vmatpush2.bf16.msra.mxu0 0
      %1141 = vmatprep.subr.bf16.mxu0 0
      %1142 = vmatpush2.bf16.msra.mxu0 0
      %1143 = vmatprep.subr.bf16.mxu0 0
      %1144 = vmatpush2.bf16.msra.mxu0 0
      %1145 = vmatprep.subr.bf16.mxu0 0
      %1146 = vmatpush2.bf16.msra.mxu0 0
      %1147 = vmatprep.mubr.bf16.mxu0 0
      %1148 = vmatmul.mubr.bf16.gmra.mxu0 %v1060
      %v1149 = vpop.f32.mrf.mxu0
      %v1150 = vadd.f32 %v1065, %v1149
      %v1151 = vpop.f32.mrf.mxu0
      %v1152 = vpop.f32.mrf.mxu0
      %v1153 = vpop.f32.mrf.mxu0
      %1154 = vdwg.mxu0
      %1155 = vadd.xlane.f32.xlu0 %v1150
      %v1156 = vpop.xlane.xlu0 %1155
      %v1157 = vmul.f32 %v1156, %v890
      %v1158 = vsub.f32 %v1150, %v1157
      %v1159 = vmul.f32 %v1158, %v1158
      %1160 = vadd.xlane.f32.xlu0 %v1159
      %v1161 = vpop.xlane.xlu0 %1160
      %v1162 = vmul.f32 %v1161, %v890
      %v1163 = vadd.f32 %v1162, 1e-05
      %v1164 = vrsqrt.pop %v1163
      %v1165 = vmul.f32 %v1158, %v1164
      %v1166 = vlaneseq
      %v1167 = vshrl.u32 %v1166, 7
      %v1168 = vsub.s32 2, %v1167
      %v1169 = vrot.slane %v789, %v1168
      %v1170 = vmul.f32 %v1165, %v1169
      %v1171 = vlaneseq
      %v1172 = vshrl.u32 %v1171, 7
      %v1173 = vsub.s32 2, %v1172
      %v1174 = vrot.slane %v790, %v1173
      %v1175 = vadd.f32 %v1170, %v1174
      %v1176 = vlaneseq
      %v1177 = vshrl.u32 %v1176, 7
      %v1178 = vsub.s32 2, %v1177
      %v1179 = vrot.slane %v792, %v1178
      %v1180 = vmul.f32 %v1179, %v1175
      %v1181 = vlaneseq
      %v1182 = vshrl.u32 %v1181, 7
      %v1183 = vsub.s32 2, %v1182
      %v1184 = vrot.slane %v791, %v1183
      %v1185 = vmul.f32 %v1184, %v1180
      %v1186 = vxor.u32 %v1180, 2147483648
      %v1187 = vmul.f32 %v1186, 1.442695
      %v1188 = vpow.pop %v1187
      %v1189 = vadd.f32 %v1188, 1.0
      %v1190 = vrcp.pop %v1189
      %v1191 = vmul.f32 1.0, %v1190
      %v1192 = vmul.f32 %v1185, %v1191
      %v1193 = vadd.f32 %v926, %v1192
      %v1194 = vpack.c.bf16 %v1193, %v1193
      %v1195 = vld [vmem:[%s701] sm:$0xf]
      %v1196 = vld [vmem:[%s701 + $0x4] sm:$0xf]
      %v1197 = vld [vmem:[%s701 + $0x8] sm:$0xf]
      %v1198 = vld [vmem:[%s701 + $0xc] sm:$0xf]
      %v1199 = vld [vmem:[%s701 + $0x10] sm:$0xf]
      %v1200 = vld [vmem:[%s701 + $0x14] sm:$0xf]
      %v1201 = vld [vmem:[%s701 + $0x18] sm:$0xf]
      %v1202 = vld [vmem:[%s701 + $0x1c] sm:$0xf]
      %v1203 = vld [vmem:[%s701 + $0x20] sm:$0xf]
      %v1204 = vld [vmem:[%s701 + $0x24] sm:$0xf]
      %v1205 = vld [vmem:[%s701 + $0x28] sm:$0xf]
      %v1206 = vld [vmem:[%s701 + $0x2c] sm:$0xf]
      %v1207 = vld [vmem:[%s701 + $0x30] sm:$0xf]
      %v1208 = vld [vmem:[%s701 + $0x34] sm:$0xf]
      %v1209 = vld [vmem:[%s701 + $0x38] sm:$0xf]
      %v1210 = vld [vmem:[%s701 + $0x3c] sm:$0xf]
      %v1211 = vld [vmem:[%s706] sm:$0x1]
      %v1213 = vlaneseq
      %v1214 = vshrl.u32 %v1213, 7
      %v1215 = vsub.s32 0, %v1214
      %v1216 = vrot.slane %v1211, %v1215
      %v1234 = vunpack.c.l.b16 %v1195
      %v1235 = vunpack.c.l.b16 %v1196
      %v1236 = vunpack.c.l.b16 %v1197
      %v1237 = vunpack.c.l.b16 %v1198
      %v1238 = vunpack.c.l.b16 %v1199
      %v1239 = vunpack.c.l.b16 %v1200
      %v1240 = vunpack.c.l.b16 %v1201
      %v1241 = vunpack.c.l.b16 %v1202
      %v1242 = vunpack.c.l.b16 %v1203
      %v1243 = vunpack.c.l.b16 %v1204
      %v1244 = vunpack.c.l.b16 %v1205
      %v1245 = vunpack.c.l.b16 %v1206
      %v1246 = vunpack.c.l.b16 %v1207
      %v1247 = vunpack.c.l.b16 %v1208
      %v1248 = vunpack.c.l.b16 %v1209
      %v1249 = vunpack.c.l.b16 %v1210
      %v1250 = vpack.c.b16 %v1235, %v1234
      %v1251 = vpack.c.b16 %v1237, %v1236
      %v1252 = vpack.c.b16 %v1239, %v1238
      %v1253 = vpack.c.b16 %v1241, %v1240
      %v1254 = vpack.c.b16 %v1243, %v1242
      %v1255 = vpack.c.b16 %v1245, %v1244
      %v1256 = vpack.c.b16 %v1247, %v1246
      %v1257 = vpack.c.b16 %v1249, %v1248
      %1266 = vmatprep.subr.bf16.mxu0 0
      %1267 = vmatpush1.bf16.msra.mxu0 %v1257
      %1268 = vmatprep.subr.bf16.mxu0 0
      %1269 = vmatpush1.bf16.msra.mxu0 %v1256
      %1270 = vmatprep.subr.bf16.mxu0 0
      %1271 = vmatpush1.bf16.msra.mxu0 %v1255
      %1272 = vmatprep.subr.bf16.mxu0 0
      %1273 = vmatpush1.bf16.msra.mxu0 %v1254
      %1274 = vmatprep.subr.bf16.mxu0 0
      %1275 = vmatpush1.bf16.msra.mxu0 %v1253
      %1276 = vmatprep.subr.bf16.mxu0 0
      %1277 = vmatpush1.bf16.msra.mxu0 %v1252
      %1278 = vmatprep.subr.bf16.mxu0 0
      %1279 = vmatpush1.bf16.msra.mxu0 %v1251
      %1280 = vmatprep.subr.bf16.mxu0 0
      %1281 = vmatpush1.bf16.msra.mxu0 %v1250
      %1282 = vmatprep.subr.bf16.mxu0 0
      %1283 = vmatpush2.bf16.msra.mxu0 0
      %1284 = vmatprep.subr.bf16.mxu0 0
      %1285 = vmatpush2.bf16.msra.mxu0 0
      %1286 = vmatprep.subr.bf16.mxu0 0
      %1287 = vmatpush2.bf16.msra.mxu0 0
      %1288 = vmatprep.subr.bf16.mxu0 0
      %1289 = vmatpush2.bf16.msra.mxu0 0
      %1290 = vmatprep.subr.bf16.mxu0 0
      %1291 = vmatpush2.bf16.msra.mxu0 0
      %1292 = vmatprep.subr.bf16.mxu0 0
      %1293 = vmatpush2.bf16.msra.mxu0 0
      %1294 = vmatprep.subr.bf16.mxu0 0
      %1295 = vmatpush2.bf16.msra.mxu0 0
      %1296 = vmatprep.subr.bf16.mxu0 0
      %1297 = vmatpush2.bf16.msra.mxu0 0
      %1298 = vmatprep.mubr.bf16.mxu0 0
      %1299 = vmatmul.mubr.bf16.gmra.mxu0 %v1194
      %v1300 = vpop.f32.mrf.mxu0
      %v1301 = vadd.f32 %v1216, %v1300
      %v1302 = vpop.f32.mrf.mxu0
      %v1303 = vpop.f32.mrf.mxu0
      %v1304 = vpop.f32.mrf.mxu0
      %1305 = vdwg.mxu0
      %vm1306 = vcmask 64512
      %1307 = vst.msk [vmem:[%s735] sm:$0xff] %vm1306, %v1301
      %p1308 = scmp.lt.s32.totalorder %s36, 1
      %s1309 = scalar_select %p1308, %s36, 1
      %s1310 = smul.addr %s1309, 8
      %s1311 = scalar_lea.vmem %s15, %s1310
      // Predicated region
      $region73: #{jvp__.1} parent=71 // pred_check
        %p1312 = pneg %p416
      $region74: #{jvp__.1} parent=71 // pred_check_branch
        %1314 = sbr.rel (%p1312) target = $region76
      $region75: #{jvp__.1} parent=71 // pred_region
        _
      $region76: #{jvp__.1} parent=71 // pred_fallthru
        _
    $region72: #{jvp__.1} parent=5 // pred_fallthru
      _
    %p1315 = scmp.le.s32.totalorder 2, %s31
    // Predicated region
    $region77: #{jvp__.1} parent=5 // pred_check
      %p1316 = pneg %p1315
    $region78: #{jvp__.1} parent=5 // pred_check_branch
      %1318 = sbr.rel (%p1316) target = $region80
    $region79: #{jvp__.1} parent=5 // pred_region
      %s1319 = ssub.s32 %s31, 2
      // Predicated region
      $region81: #{jvp__.1} parent=79 // pred_check
        %p1320 = pneg %p422
      $region82: #{jvp__.1} parent=79 // pred_check_branch
        %1322 = sbr.rel (%p1320) target = $region84
      $region83: #{jvp__.1} parent=79 // pred_region
        %p1323 = scmp.lt.s32.totalorder %s37, 1
        %s1324 = scalar_select %p1323, %s37, 1
        %s1325 = smul.addr %s1324, 8
        %s1326 = scalar_lea.vmem %s15, %s1325
      $region84: #{jvp__.1} parent=79 // pred_fallthru
        _
    $region80: #{jvp__.1} parent=5 // pred_fallthru
      _
  $region6: #{jvp__.1} parent=0 // loop_footer
    %s35 = sadd.s32 1, %s31
  $region7: #{jvp__.1} parent=0 // loop_footer_branch
    %30 = sbr.rel target = $region3
  $region8: #{jvp__.1} parent=0 // loop_exit
    _

// kernel: split.0
$region0: #{split.0}
  #allocation0 [shape = 'u32[2048]{0}', space=vmem, size = 0x2000, scoped, tag = 'scoped memory for split.0']
  #allocation1 [shape = 'u32[2048]{0}', space=vmem, size = 0x2000, scoped, tag = 'scoped memory for split.0']
  #allocation2 [shape = 'u32[2048]{0}', space=vmem, size = 0x2000, scoped, tag = 'scoped memory for split.0']
  #allocation3 [shape = 'u32[2048]{0}', space=vmem, size = 0x2000, scoped, tag = 'scoped memory for split.0']
  #allocation4 [shape = 'u32[2048]{0}', space=vmem, size = 0x2000, scoped, tag = 'scoped memory for split.0']
  #allocation5 [shape = 's32[1]{0}', space=sflag, size = 0x4, scoped, tag = 'scoped memory for split.0']
  %s0 = inlined_call_operand.vmem [shape: f32[56,13], index: 0, kind: input, shape index: {}]
  %s1 = inlined_call_operand.vmem [shape: f32[56,9], index: 1, kind: output, shape index: {}]
  %v2 = vld [vmem:[%s0] sm:$0xff]
  %s3 = scalar_lea.vmem %s0, 8
  %v4 = vld [vmem:[%s3] sm:$0xff]
  %vm5 = vcmask 1043456
  %v6 = vsel %vm5, %v4, %v2
  %v7 = vrot.slane %v6, 4
  %8 = vst [vmem:[%s1] sm:$0xff] %v7
  %vm9 = vcmask 1043456
  %v10 = vsel %vm9, 0, %v4
  %v11 = vrot.slane %v10, 4
  %s12 = scalar_lea.vmem %s1, 8
  %13 = vst [vmem:[%s12] sm:$0xff] %v11

// kernel: pes_forward.5
$region0: #{pes_forward.5}
  #allocation0 [shape = 'u32[]', space=smem, size = 0x4, offset = 0x4, fixed_abs, tag = 'smem constant byte address 0x4 - core index']
  #allocation1 [shape = 'u32[144,128]{1,0:T(1,128)}', space=vmem, size = 0x12000, scoped, tag = 'internal scratch']
  #allocation2 [shape = 's32[1]{0}', space=sflag, size = 0x4, scoped, tag = 'scoped memory for pes_forward.5']
  #allocation3 [shape = 'u8[512]{0}', space=smem, size = 0x200, scoped, tag = 'prefetched SMEM operand 0']
  #allocation4 [shape = 'u8[512]{0}', space=smem, size = 0x200, scoped, tag = 'prefetched SMEM operand 1']
  %s0 = inlined_call_operand.vmem [shape: s32[2], index: 0, kind: input, shape index: {}]
  %s1 = inlined_call_operand.vmem [shape: s32[2], index: 1, kind: input, shape index: {}]
  %s2 = inlined_call_operand.vmem [shape: f32[16,128], index: 2, kind: input, shape index: {}]
  %s3 = inlined_call_operand.vmem [shape: bf16[2,128,128], index: 3, kind: input, shape index: {}]
  %s4 = inlined_call_operand.vmem [shape: f32[2,1,128], index: 4, kind: input, shape index: {}]
  %s5 = inlined_call_operand.vmem [shape: bf16[2,128,128], index: 5, kind: input, shape index: {}]
  %s6 = inlined_call_operand.vmem [shape: f32[2,1,128], index: 6, kind: input, shape index: {}]
  %s7 = inlined_call_operand.vmem [shape: bf16[2,128,128], index: 7, kind: input, shape index: {}]
  %s8 = inlined_call_operand.vmem [shape: f32[2,1,128], index: 8, kind: input, shape index: {}]
  %s9 = inlined_call_operand.vmem [shape: bf16[2,128,8], index: 9, kind: input, shape index: {}]
  %s10 = inlined_call_operand.vmem [shape: f32[2,1,8], index: 10, kind: input, shape index: {}]
  %s11 = inlined_call_operand.vmem [shape: f32[2,3,128], index: 11, kind: input, shape index: {}]
  %s12 = inlined_call_operand.vmem [shape: f32[2,3,128], index: 12, kind: input, shape index: {}]
  %s13 = inlined_call_operand.vmem [shape: f32[2,3,128], index: 13, kind: input, shape index: {}]
  %s14 = inlined_call_operand.vmem [shape: f32[2,3,128], index: 14, kind: input, shape index: {}]
  %s15 = inlined_call_operand.vmem [shape: f32[2,8,128], index: 15, kind: output, shape index: {}]
  %s16 = sld [smem:[#allocation0]]
  $region85: #{pes_forward.5} parent=0
    _
  %s18 = ssub.s32 1, %s16
  %s19 = scalar_select 0, %s18, %s16
  %s20 = sshll.u32 %s0, 4
  %s21 = int_to_ptr.vmem [resolvable:$true] %s20
  %23 = dma.vmem_to_smem %s21, 16, [#allocation3], [#allocation2]
  %s24 = sshll.u32 %s1, 4
  %s25 = int_to_ptr.vmem [resolvable:$true] %s24
  %27 = dma.vmem_to_smem %s25, 16, [#allocation4], [#allocation2]
  %28 = dma.done [#allocation2], 32
  %29 = sfence
  loop: start=0, step=1, limit=4
  $region2: #{pes_forward.5} parent=0 // loop_pre_header
    _
  $region3: #{pes_forward.5} parent=0 // loop_header
    %s31 = sphi 0, %s35
    %p32 = scmp.ge.s32.totalorder %s31, 4
    %s41 = sphi 0, %s43
    %s44 = sphi 0, %s41
    %s45 = sphi 0, %s44
    %s61 = sphi 0, %s45
    %s69 = sphi 0, %s71
    %s72 = sphi 0, %s69
    %s73 = sphi 0, %s72
    %s89 = sphi 0, %s73
    %s97 = sphi 0, %s99
    %s100 = sphi 0, %s97
    %s101 = sphi 0, %s100
    %s117 = sphi 0, %s101
    %s125 = sphi 0, %s127
    %s128 = sphi 0, %s125
    %s129 = sphi 0, %s128
    %s145 = sphi 0, %s129
    %s153 = sphi 0, %s155
    %s156 = sphi 0, %s153
    %s157 = sphi 0, %s156
    %s173 = sphi 0, %s157
    %s181 = sphi 0, %s183
    %s184 = sphi 0, %s181
    %s185 = sphi 0, %s184
    %s201 = sphi 0, %s185
    %s209 = sphi 0, %s211
    %s212 = sphi 0, %s209
    %s213 = sphi 0, %s212
    %s229 = sphi 0, %s213
    %s237 = sphi 0, %s239
    %s240 = sphi 0, %s237
    %s241 = sphi 0, %s240
    %s257 = sphi 0, %s241
    %s265 = sphi 0, %s267
    %s268 = sphi 0, %s265
    %s269 = sphi 0, %s268
    %s285 = sphi 0, %s269
    %s293 = sphi 0, %s295
    %s296 = sphi 0, %s293
    %s297 = sphi 0, %s296
    %s313 = sphi 0, %s297
    %s321 = sphi 0, %s323
    %s324 = sphi 0, %s321
    %s325 = sphi 0, %s324
    %s341 = sphi 0, %s325
    %s349 = sphi 0, %s351
    %s352 = sphi 0, %s349
    %s353 = sphi 0, %s352
    %s369 = sphi 0, %s353
    %s377 = sphi 0, %s379
    %s380 = sphi 0, %s377
    %s381 = sphi 0, %s380
    %s397 = sphi 0, %s381
    %s403 = sphi 0, %s405
    %s406 = sphi 0, %s403
    %s407 = sphi 0, %s406
    %s423 = sphi 0, %s407
  $region4: #{pes_forward.5} parent=0 // loop_header_branch
    %34 = sbr.rel (%p32) target = $region8
  $region5: #{pes_forward.5} parent=0 // loop_body
    %s36 = ssub.s32 %s31, 1
    %s37 = ssub.s32 %s31, 2
    %s38 = sadd.s32 %s31, 1
    %s39 = ssub.s32 %s31, %s38
    %p40 = scmp.eq.s32.totalorder %s39, 0
    %s42 = sadd.s32 %s41, 1
    %s43 = scalar_select %p40, %s41, %s42
    %p46 = pneg %p40
    %p47 = scmp.eq.s32.totalorder %s31, 1
    %p48 = por %p46, %p47
    %p49 = scmp.ne.s32.totalorder %s41, %s44
    %p50 = scmp.eq.s32.totalorder %s31, 0
    %p51 = por %p49, %p50
    %p52 = scmp.ne.s32.totalorder %s41, %s44
    %p53 = scmp.eq.s32.totalorder %s36, 1
    %p54 = por %p52, %p53
    %p55 = scmp.ne.s32.totalorder %s44, %s45
    %p56 = scmp.eq.s32.totalorder %s36, 0
    %p57 = por %p55, %p56
    %p58 = scmp.ne.s32.totalorder %s44, %s45
    %p59 = scmp.eq.s32.totalorder %s37, 1
    %p60 = por %p58, %p59
    %p62 = scmp.ne.s32.totalorder %s45, %s61
    %p63 = scmp.eq.s32.totalorder %s37, 0
    %p64 = por %p62, %p63
    %s65 = sld [smem:[#allocation3 + %s31]]
    %s66 = sld [smem:[#allocation3 + %s38]]
    %s67 = ssub.s32 %s65, %s66
    %p68 = scmp.eq.s32.totalorder %s67, 0
    %s70 = sadd.s32 %s69, 1
    %s71 = scalar_select %p68, %s69, %s70
    %p74 = pneg %p68
    %p75 = scmp.eq.s32.totalorder %s31, 1
    %p76 = por %p74, %p75
    %p77 = scmp.ne.s32.totalorder %s69, %s72
    %p78 = scmp.eq.s32.totalorder %s31, 0
    %p79 = por %p77, %p78
    %p80 = scmp.ne.s32.totalorder %s69, %s72
    %p81 = scmp.eq.s32.totalorder %s36, 1
    %p82 = por %p80, %p81
    %p83 = scmp.ne.s32.totalorder %s72, %s73
    %p84 = scmp.eq.s32.totalorder %s36, 0
    %p85 = por %p83, %p84
    %p86 = scmp.ne.s32.totalorder %s72, %s73
    %p87 = scmp.eq.s32.totalorder %s37, 1
    %p88 = por %p86, %p87
    %p90 = scmp.ne.s32.totalorder %s73, %s89
    %p91 = scmp.eq.s32.totalorder %s37, 0
    %p92 = por %p90, %p91
    %s93 = sld [smem:[#allocation3 + %s31]]
    %s94 = sld [smem:[#allocation3 + %s38]]
    %s95 = ssub.s32 %s93, %s94
    %p96 = scmp.eq.s32.totalorder %s95, 0
    %s98 = sadd.s32 %s97, 1
    %s99 = scalar_select %p96, %s97, %s98
    %p102 = pneg %p96
    %p103 = scmp.eq.s32.totalorder %s31, 1
    %p104 = por %p102, %p103
    %p105 = scmp.ne.s32.totalorder %s97, %s100
    %p106 = scmp.eq.s32.totalorder %s31, 0
    %p107 = por %p105, %p106
    %p108 = scmp.ne.s32.totalorder %s97, %s100
    %p109 = scmp.eq.s32.totalorder %s36, 1
    %p110 = por %p108, %p109
    %p111 = scmp.ne.s32.totalorder %s100, %s101
    %p112 = scmp.eq.s32.totalorder %s36, 0
    %p113 = por %p111, %p112
    %p114 = scmp.ne.s32.totalorder %s100, %s101
    %p115 = scmp.eq.s32.totalorder %s37, 1
    %p116 = por %p114, %p115
    %p118 = scmp.ne.s32.totalorder %s101, %s117
    %p119 = scmp.eq.s32.totalorder %s37, 0
    %p120 = por %p118, %p119
    %s121 = sld [smem:[#allocation3 + %s31]]
    %s122 = sld [smem:[#allocation3 + %s38]]
    %s123 = ssub.s32 %s121, %s122
    %p124 = scmp.eq.s32.totalorder %s123, 0
    %s126 = sadd.s32 %s125, 1
    %s127 = scalar_select %p124, %s125, %s126
    %p130 = pneg %p124
    %p131 = scmp.eq.s32.totalorder %s31, 1
    %p132 = por %p130, %p131
    %p133 = scmp.ne.s32.totalorder %s125, %s128
    %p134 = scmp.eq.s32.totalorder %s31, 0
    %p135 = por %p133, %p134
    %p136 = scmp.ne.s32.totalorder %s125, %s128
    %p137 = scmp.eq.s32.totalorder %s36, 1
    %p138 = por %p136, %p137
    %p139 = scmp.ne.s32.totalorder %s128, %s129
    %p140 = scmp.eq.s32.totalorder %s36, 0
    %p141 = por %p139, %p140
    %p142 = scmp.ne.s32.totalorder %s128, %s129
    %p143 = scmp.eq.s32.totalorder %s37, 1
    %p144 = por %p142, %p143
    %p146 = scmp.ne.s32.totalorder %s129, %s145
    %p147 = scmp.eq.s32.totalorder %s37, 0
    %p148 = por %p146, %p147
    %s149 = sld [smem:[#allocation3 + %s31]]
    %s150 = sld [smem:[#allocation3 + %s38]]
    %s151 = ssub.s32 %s149, %s150
    %p152 = scmp.eq.s32.totalorder %s151, 0
    %s154 = sadd.s32 %s153, 1
    %s155 = scalar_select %p152, %s153, %s154
    %p158 = pneg %p152
    %p159 = scmp.eq.s32.totalorder %s31, 1
    %p160 = por %p158, %p159
    %p161 = scmp.ne.s32.totalorder %s153, %s156
    %p162 = scmp.eq.s32.totalorder %s31, 0
    %p163 = por %p161, %p162
    %p164 = scmp.ne.s32.totalorder %s153, %s156
    %p165 = scmp.eq.s32.totalorder %s36, 1
    %p166 = por %p164, %p165
    %p167 = scmp.ne.s32.totalorder %s156, %s157
    %p168 = scmp.eq.s32.totalorder %s36, 0
    %p169 = por %p167, %p168
    %p170 = scmp.ne.s32.totalorder %s156, %s157
    %p171 = scmp.eq.s32.totalorder %s37, 1
    %p172 = por %p170, %p171
    %p174 = scmp.ne.s32.totalorder %s157, %s173
    %p175 = scmp.eq.s32.totalorder %s37, 0
    %p176 = por %p174, %p175
    %s177 = sld [smem:[#allocation3 + %s31]]
    %s178 = sld [smem:[#allocation3 + %s38]]
    %s179 = ssub.s32 %s177, %s178
    %p180 = scmp.eq.s32.totalorder %s179, 0
    %s182 = sadd.s32 %s181, 1
    %s183 = scalar_select %p180, %s181, %s182
    %p186 = pneg %p180
    %p187 = scmp.eq.s32.totalorder %s31, 1
    %p188 = por %p186, %p187
    %p189 = scmp.ne.s32.totalorder %s181, %s184
    %p190 = scmp.eq.s32.totalorder %s31, 0
    %p191 = por %p189, %p190
    %p192 = scmp.ne.s32.totalorder %s181, %s184
    %p193 = scmp.eq.s32.totalorder %s36, 1
    %p194 = por %p192, %p193
    %p195 = scmp.ne.s32.totalorder %s184, %s185
    %p196 = scmp.eq.s32.totalorder %s36, 0
    %p197 = por %p195, %p196
    %p198 = scmp.ne.s32.totalorder %s184, %s185
    %p199 = scmp.eq.s32.totalorder %s37, 1
    %p200 = por %p198, %p199
    %p202 = scmp.ne.s32.totalorder %s185, %s201
    %p203 = scmp.eq.s32.totalorder %s37, 0
    %p204 = por %p202, %p203
    %s205 = sld [smem:[#allocation3 + %s31]]
    %s206 = sld [smem:[#allocation3 + %s38]]
    %s207 = ssub.s32 %s205, %s206
    %p208 = scmp.eq.s32.totalorder %s207, 0
    %s210 = sadd.s32 %s209, 1
    %s211 = scalar_select %p208, %s209, %s210
    %p214 = pneg %p208
    %p215 = scmp.eq.s32.totalorder %s31, 1
    %p216 = por %p214, %p215
    %p217 = scmp.ne.s32.totalorder %s209, %s212
    %p218 = scmp.eq.s32.totalorder %s31, 0
    %p219 = por %p217, %p218
    %p220 = scmp.ne.s32.totalorder %s209, %s212
    %p221 = scmp.eq.s32.totalorder %s36, 1
    %p222 = por %p220, %p221
    %p223 = scmp.ne.s32.totalorder %s212, %s213
    %p224 = scmp.eq.s32.totalorder %s36, 0
    %p225 = por %p223, %p224
    %p226 = scmp.ne.s32.totalorder %s212, %s213
    %p227 = scmp.eq.s32.totalorder %s37, 1
    %p228 = por %p226, %p227
    %p230 = scmp.ne.s32.totalorder %s213, %s229
    %p231 = scmp.eq.s32.totalorder %s37, 0
    %p232 = por %p230, %p231
    %s233 = sld [smem:[#allocation3 + %s31]]
    %s234 = sld [smem:[#allocation3 + %s38]]
    %s235 = ssub.s32 %s233, %s234
    %p236 = scmp.eq.s32.totalorder %s235, 0
    %s238 = sadd.s32 %s237, 1
    %s239 = scalar_select %p236, %s237, %s238
    %p242 = pneg %p236
    %p243 = scmp.eq.s32.totalorder %s31, 1
    %p244 = por %p242, %p243
    %p245 = scmp.ne.s32.totalorder %s237, %s240
    %p246 = scmp.eq.s32.totalorder %s31, 0
    %p247 = por %p245, %p246
    %p248 = scmp.ne.s32.totalorder %s237, %s240
    %p249 = scmp.eq.s32.totalorder %s36, 1
    %p250 = por %p248, %p249
    %p251 = scmp.ne.s32.totalorder %s240, %s241
    %p252 = scmp.eq.s32.totalorder %s36, 0
    %p253 = por %p251, %p252
    %p254 = scmp.ne.s32.totalorder %s240, %s241
    %p255 = scmp.eq.s32.totalorder %s37, 1
    %p256 = por %p254, %p255
    %p258 = scmp.ne.s32.totalorder %s241, %s257
    %p259 = scmp.eq.s32.totalorder %s37, 0
    %p260 = por %p258, %p259
    %s261 = sld [smem:[#allocation3 + %s31]]
    %s262 = sld [smem:[#allocation3 + %s38]]
    %s263 = ssub.s32 %s261, %s262
    %p264 = scmp.eq.s32.totalorder %s263, 0
    %s266 = sadd.s32 %s265, 1
    %s267 = scalar_select %p264, %s265, %s266
    %p270 = pneg %p264
    %p271 = scmp.eq.s32.totalorder %s31, 1
    %p272 = por %p270, %p271
    %p273 = scmp.ne.s32.totalorder %s265, %s268
    %p274 = scmp.eq.s32.totalorder %s31, 0
    %p275 = por %p273, %p274
    %p276 = scmp.ne.s32.totalorder %s265, %s268
    %p277 = scmp.eq.s32.totalorder %s36, 1
    %p278 = por %p276, %p277
    %p279 = scmp.ne.s32.totalorder %s268, %s269
    %p280 = scmp.eq.s32.totalorder %s36, 0
    %p281 = por %p279, %p280
    %p282 = scmp.ne.s32.totalorder %s268, %s269
    %p283 = scmp.eq.s32.totalorder %s37, 1
    %p284 = por %p282, %p283
    %p286 = scmp.ne.s32.totalorder %s269, %s285
    %p287 = scmp.eq.s32.totalorder %s37, 0
    %p288 = por %p286, %p287
    %s289 = sld [smem:[#allocation3 + %s31]]
    %s290 = sld [smem:[#allocation3 + %s38]]
    %s291 = ssub.s32 %s289, %s290
    %p292 = scmp.eq.s32.totalorder %s291, 0
    %s294 = sadd.s32 %s293, 1
    %s295 = scalar_select %p292, %s293, %s294
    %p298 = pneg %p292
    %p299 = scmp.eq.s32.totalorder %s31, 1
    %p300 = por %p298, %p299
    %p301 = scmp.ne.s32.totalorder %s293, %s296
    %p302 = scmp.eq.s32.totalorder %s31, 0
    %p303 = por %p301, %p302
    %p304 = scmp.ne.s32.totalorder %s293, %s296
    %p305 = scmp.eq.s32.totalorder %s36, 1
    %p306 = por %p304, %p305
    %p307 = scmp.ne.s32.totalorder %s296, %s297
    %p308 = scmp.eq.s32.totalorder %s36, 0
    %p309 = por %p307, %p308
    %p310 = scmp.ne.s32.totalorder %s296, %s297
    %p311 = scmp.eq.s32.totalorder %s37, 1
    %p312 = por %p310, %p311
    %p314 = scmp.ne.s32.totalorder %s297, %s313
    %p315 = scmp.eq.s32.totalorder %s37, 0
    %p316 = por %p314, %p315
    %s317 = sld [smem:[#allocation3 + %s31]]
    %s318 = sld [smem:[#allocation3 + %s38]]
    %s319 = ssub.s32 %s317, %s318
    %p320 = scmp.eq.s32.totalorder %s319, 0
    %s322 = sadd.s32 %s321, 1
    %s323 = scalar_select %p320, %s321, %s322
    %p326 = pneg %p320
    %p327 = scmp.eq.s32.totalorder %s31, 1
    %p328 = por %p326, %p327
    %p329 = scmp.ne.s32.totalorder %s321, %s324
    %p330 = scmp.eq.s32.totalorder %s31, 0
    %p331 = por %p329, %p330
    %p332 = scmp.ne.s32.totalorder %s321, %s324
    %p333 = scmp.eq.s32.totalorder %s36, 1
    %p334 = por %p332, %p333
    %p335 = scmp.ne.s32.totalorder %s324, %s325
    %p336 = scmp.eq.s32.totalorder %s36, 0
    %p337 = por %p335, %p336
    %p338 = scmp.ne.s32.totalorder %s324, %s325
    %p339 = scmp.eq.s32.totalorder %s37, 1
    %p340 = por %p338, %p339
    %p342 = scmp.ne.s32.totalorder %s325, %s341
    %p343 = scmp.eq.s32.totalorder %s37, 0
    %p344 = por %p342, %p343
    %s345 = sld [smem:[#allocation3 + %s31]]
    %s346 = sld [smem:[#allocation3 + %s38]]
    %s347 = ssub.s32 %s345, %s346
    %p348 = scmp.eq.s32.totalorder %s347, 0
    %s350 = sadd.s32 %s349, 1
    %s351 = scalar_select %p348, %s349, %s350
    %p354 = pneg %p348
    %p355 = scmp.eq.s32.totalorder %s31, 1
    %p356 = por %p354, %p355
    %p357 = scmp.ne.s32.totalorder %s349, %s352
    %p358 = scmp.eq.s32.totalorder %s31, 0
    %p359 = por %p357, %p358
    %p360 = scmp.ne.s32.totalorder %s349, %s352
    %p361 = scmp.eq.s32.totalorder %s36, 1
    %p362 = por %p360, %p361
    %p363 = scmp.ne.s32.totalorder %s352, %s353
    %p364 = scmp.eq.s32.totalorder %s36, 0
    %p365 = por %p363, %p364
    %p366 = scmp.ne.s32.totalorder %s352, %s353
    %p367 = scmp.eq.s32.totalorder %s37, 1
    %p368 = por %p366, %p367
    %p370 = scmp.ne.s32.totalorder %s353, %s369
    %p371 = scmp.eq.s32.totalorder %s37, 0
    %p372 = por %p370, %p371
    %s373 = sld [smem:[#allocation3 + %s31]]
    %s374 = sld [smem:[#allocation3 + %s38]]
    %s375 = ssub.s32 %s373, %s374
    %p376 = scmp.eq.s32.totalorder %s375, 0
    %s378 = sadd.s32 %s377, 1
    %s379 = scalar_select %p376, %s377, %s378
    %p382 = pneg %p376
    %p383 = scmp.eq.s32.totalorder %s31, 1
    %p384 = por %p382, %p383
    %p385 = scmp.ne.s32.totalorder %s377, %s380
    %p386 = scmp.eq.s32.totalorder %s31, 0
    %p387 = por %p385, %p386
    %p388 = scmp.ne.s32.totalorder %s377, %s380
    %p389 = scmp.eq.s32.totalorder %s36, 1
    %p390 = por %p388, %p389
    %p391 = scmp.ne.s32.totalorder %s380, %s381
    %p392 = scmp.eq.s32.totalorder %s36, 0
    %p393 = por %p391, %p392
    %p394 = scmp.ne.s32.totalorder %s380, %s381
    %p395 = scmp.eq.s32.totalorder %s37, 1
    %p396 = por %p394, %p395
    %p398 = scmp.ne.s32.totalorder %s381, %s397
    %p399 = scmp.eq.s32.totalorder %s37, 0
    %p400 = por %p398, %p399
    %s401 = ssub.s32 %s31, %s38
    %p402 = scmp.eq.s32.totalorder %s401, 0
    %s404 = sadd.s32 %s403, 1
    %s405 = scalar_select %p402, %s403, %s404
    %p408 = pneg %p402
    %p409 = scmp.eq.s32.totalorder %s31, 1
    %p410 = por %p408, %p409
    %p411 = scmp.ne.s32.totalorder %s403, %s406
    %p412 = scmp.eq.s32.totalorder %s31, 0
    %p413 = por %p411, %p412
    %p414 = scmp.ne.s32.totalorder %s403, %s406
    %p415 = scmp.eq.s32.totalorder %s36, 1
    %p416 = por %p414, %p415
    %p417 = scmp.ne.s32.totalorder %s406, %s407
    %p418 = scmp.eq.s32.totalorder %s36, 0
    %p419 = por %p417, %p418
    %p420 = scmp.ne.s32.totalorder %s406, %s407
    %p421 = scmp.eq.s32.totalorder %s37, 1
    %p422 = por %p420, %p421
    %p424 = scmp.ne.s32.totalorder %s407, %s423
    %p425 = scmp.eq.s32.totalorder %s37, 0
    %p426 = por %p424, %p425
    %p427 = scmp.le.s32.totalorder 1, %s31
    %p428 = scmp.lt.s32.totalorder %s31, 3
    %p429 = pnand %p427, %p428
    %p430 = pneg %p429
    // Predicated region
    $region9: #{pes_forward.5} parent=5 // pred_check
      _
    $region10: #{pes_forward.5} parent=5 // pred_check_branch
      %432 = sbr.rel (%p429) target = $region12
    $region11: #{pes_forward.5} parent=5 // pred_region
      %s433 = ssub.s32 %s31, 1
    $region12: #{pes_forward.5} parent=5 // pred_fallthru
      _
    %p434 = scmp.lt.s32.totalorder %s31, 2
    // Predicated region
    $region13: #{pes_forward.5} parent=5 // pred_check
      %p435 = pneg %p434
    $region14: #{pes_forward.5} parent=5 // pred_check_branch
      %437 = sbr.rel (%p435) target = $region16
    $region15: #{pes_forward.5} parent=5 // pred_region
      // Predicated region
      $region17: #{pes_forward.5} parent=15 // pred_check
        %p438 = pneg %p51
      $region18: #{pes_forward.5} parent=15 // pred_check_branch
        %440 = sbr.rel (%p438) target = $region20
      $region19: #{pes_forward.5} parent=15 // pred_region
        %p441 = scmp.lt.s32.totalorder %s31, 1
        %s442 = scalar_select %p441, %s31, 1
        %s443 = smul.addr %s442, 8
        %s444 = scalar_lea.vmem %s2, %s443
      $region20: #{pes_forward.5} parent=15 // pred_fallthru
        _
      // Predicated region
      $region21: #{pes_forward.5} parent=15 // pred_check
        %p445 = pneg %p79
      $region22: #{pes_forward.5} parent=15 // pred_check_branch
        %447 = sbr.rel (%p445) target = $region24
      $region23: #{pes_forward.5} parent=15 // pred_region
        %s448 = sld [smem:[#allocation3 + %s31]]
        %p449 = scmp.lt.s32.totalorder %s448, 1
        %s450 = scalar_select %p449, %s448, 1
        %s451 = smul.addr %s450, 16
        %s452 = smul.addr %s451, 4
        %s453 = scalar_lea.vmem %s3, %s452
        %s454 = sld [smem:[#allocation3 + %s31]]
      $region24: #{pes_forward.5} parent=15 // pred_fallthru
        _
      // Predicated region
      $region25: #{pes_forward.5} parent=15 // pred_check
        %p455 = pneg %p107
      $region26: #{pes_forward.5} parent=15 // pred_check_branch
        %457 = sbr.rel (%p455) target = $region28
      $region27: #{pes_forward.5} parent=15 // pred_region
        %s458 = sld [smem:[#allocation3 + %s31]]
        %p459 = scmp.lt.s32.totalorder %s458, 1
        %s460 = scalar_select %p459, %s458, 1
        %s461 = scalar_lea.vmem %s4, %s460
        %s462 = sld [smem:[#allocation3 + %s31]]
      $region28: #{pes_forward.5} parent=15 // pred_fallthru
        _
      // Predicated region
      $region29: #{pes_forward.5} parent=15 // pred_check
        %p463 = pneg %p135
      $region30: #{pes_forward.5} parent=15 // pred_check_branch
        %465 = sbr.rel (%p463) target = $region32
      $region31: #{pes_forward.5} parent=15 // pred_region
        %s466 = sld [smem:[#allocation3 + %s31]]
        %p467 = scmp.lt.s32.totalorder %s466, 1
        %s468 = scalar_select %p467, %s466, 1
        %s469 = smul.addr %s468, 16
        %s470 = smul.addr %s469, 4
        %s471 = scalar_lea.vmem %s5, %s470
        %s472 = sld [smem:[#allocation3 + %s31]]
      $region32: #{pes_forward.5} parent=15 // pred_fallthru
        _
      // Predicated region
      $region33: #{pes_forward.5} parent=15 // pred_check
        %p473 = pneg %p163
      $region34: #{pes_forward.5} parent=15 // pred_check_branch
        %475 = sbr.rel (%p473) target = $region36
      $region35: #{pes_forward.5} parent=15 // pred_region
        %s476 = sld [smem:[#allocation3 + %s31]]
        %p477 = scmp.lt.s32.totalorder %s476, 1
        %s478 = scalar_select %p477, %s476, 1
        %s479 = scalar_lea.vmem %s6, %s478
        %s480 = sld [smem:[#allocation3 + %s31]]
      $region36: #{pes_forward.5} parent=15 // pred_fallthru
        _
      // Predicated region
      $region37: #{pes_forward.5} parent=15 // pred_check
        %p481 = pneg %p191
      $region38: #{pes_forward.5} parent=15 // pred_check_branch
        %483 = sbr.rel (%p481) target = $region40
      $region39: #{pes_forward.5} parent=15 // pred_region
        %s484 = sld [smem:[#allocation3 + %s31]]
        %p485 = scmp.lt.s32.totalorder %s484, 1
        %s486 = scalar_select %p485, %s484, 1
        %s487 = smul.addr %s486, 16
        %s488 = smul.addr %s487, 4
        %s489 = scalar_lea.vmem %s7, %s488
        %s490 = sld [smem:[#allocation3 + %s31]]
      $region40: #{pes_forward.5} parent=15 // pred_fallthru
        _
      // Predicated region
      $region41: #{pes_forward.5} parent=15 // pred_check
        %p491 = pneg %p219
      $region42: #{pes_forward.5} parent=15 // pred_check_branch
        %493 = sbr.rel (%p491) target = $region44
      $region43: #{pes_forward.5} parent=15 // pred_region
        %s494 = sld [smem:[#allocation3 + %s31]]
        %p495 = scmp.lt.s32.totalorder %s494, 1
        %s496 = scalar_select %p495, %s494, 1
        %s497 = scalar_lea.vmem %s8, %s496
        %s498 = sld [smem:[#allocation3 + %s31]]
      $region44: #{pes_forward.5} parent=15 // pred_fallthru
        _
      // Predicated region
      $region45: #{pes_forward.5} parent=15 // pred_check
        %p499 = pneg %p247
      $region46: #{pes_forward.5} parent=15 // pred_check_branch
        %501 = sbr.rel (%p499) target = $region48
      $region47: #{pes_forward.5} parent=15 // pred_region
        %s502 = sld [smem:[#allocation3 + %s31]]
        %p503 = scmp.lt.s32.totalorder %s502, 1
        %s504 = scalar_select %p503, %s502, 1
        %s505 = smul.addr %s504, 16
        %s506 = smul.addr %s505, 4
        %s507 = scalar_lea.vmem %s9, %s506
        %s508 = sld [smem:[#allocation3 + %s31]]
      $region48: #{pes_forward.5} parent=15 // pred_fallthru
        _
      // Predicated region
      $region49: #{pes_forward.5} parent=15 // pred_check
        %p509 = pneg %p275
      $region50: #{pes_forward.5} parent=15 // pred_check_branch
        %511 = sbr.rel (%p509) target = $region52
      $region51: #{pes_forward.5} parent=15 // pred_region
        %s512 = sld [smem:[#allocation3 + %s31]]
        %p513 = scmp.lt.s32.totalorder %s512, 1
        %s514 = scalar_select %p513, %s512, 1
        %s515 = scalar_lea.vmem %s10, %s514
        %s516 = sld [smem:[#allocation3 + %s31]]
      $region52: #{pes_forward.5} parent=15 // pred_fallthru
        _
      // Predicated region
      $region53: #{pes_forward.5} parent=15 // pred_check
        %p517 = pneg %p303
      $region54: #{pes_forward.5} parent=15 // pred_check_branch
        %519 = sbr.rel (%p517) target = $region56
      $region55: #{pes_forward.5} parent=15 // pred_region
        %s520 = sld [smem:[#allocation3 + %s31]]
        %p521 = scmp.lt.s32.totalorder %s520, 1
        %s522 = scalar_select %p521, %s520, 1
        %s523 = smul.addr %s522, 4
        %s524 = scalar_lea.vmem %s11, %s523
        %s525 = sld [smem:[#allocation3 + %s31]]
      $region56: #{pes_forward.5} parent=15 // pred_fallthru
        _
      // Predicated region
      $region57: #{pes_forward.5} parent=15 // pred_check
        %p526 = pneg %p331
      $region58: #{pes_forward.5} parent=15 // pred_check_branch
        %528 = sbr.rel (%p526) target = $region60
      $region59: #{pes_forward.5} parent=15 // pred_region
        %s529 = sld [smem:[#allocation3 + %s31]]
        %p530 = scmp.lt.s32.totalorder %s529, 1
        %s531 = scalar_select %p530, %s529, 1
        %s532 = smul.addr %s531, 4
        %s533 = scalar_lea.vmem %s12, %s532
        %s534 = sld [smem:[#allocation3 + %s31]]
      $region60: #{pes_forward.5} parent=15 // pred_fallthru
        _
      // Predicated region
      $region61: #{pes_forward.5} parent=15 // pred_check
        %p535 = pneg %p359
      $region62: #{pes_forward.5} parent=15 // pred_check_branch
        %537 = sbr.rel (%p535) target = $region64
      $region63: #{pes_forward.5} parent=15 // pred_region
        %s538 = sld [smem:[#allocation3 + %s31]]
        %p539 = scmp.lt.s32.totalorder %s538, 1
        %s540 = scalar_select %p539, %s538, 1
        %s541 = smul.addr %s540, 4
        %s542 = scalar_lea.vmem %s13, %s541
        %s543 = sld [smem:[#allocation3 + %s31]]
      $region64: #{pes_forward.5} parent=15 // pred_fallthru
        _
      // Predicated region
      $region65: #{pes_forward.5} parent=15 // pred_check
        %p544 = pneg %p387
      $region66: #{pes_forward.5} parent=15 // pred_check_branch
        %546 = sbr.rel (%p544) target = $region68
      $region67: #{pes_forward.5} parent=15 // pred_region
        %s547 = sld [smem:[#allocation3 + %s31]]
        %p548 = scmp.lt.s32.totalorder %s547, 1
        %s549 = scalar_select %p548, %s547, 1
        %s550 = smul.addr %s549, 4
        %s551 = scalar_lea.vmem %s14, %s550
        %s552 = sld [smem:[#allocation3 + %s31]]
      $region68: #{pes_forward.5} parent=15 // pred_fallthru
        _
    $region16: #{pes_forward.5} parent=5 // pred_fallthru
      _
    %p553 = scmp.le.s32.totalorder 1, %s31
    %p554 = scmp.lt.s32.totalorder %s31, 3
    %p555 = pnand %p553, %p554
    %p556 = pneg %p555
    // Predicated region
    $region69: #{pes_forward.5} parent=5 // pred_check
      _
    $region70: #{pes_forward.5} parent=5 // pred_check_branch
      %558 = sbr.rel (%p555) target = $region72
    $region71: #{pes_forward.5} parent=5 // pred_region
      %s559 = ssub.s32 %s31, 1
      %p560 = scmp.lt.s32.totalorder %s36, 1
      %s561 = scalar_select %p560, %s36, 1
      %s562 = smul.addr %s561, 8
      %s563 = scalar_lea.vmem %s2, %s562
      %p564 = pneg %p57
      %p565 = pneg %p54
      %s566 = sld [smem:[#allocation3 + %s36]]
      %p567 = scmp.lt.s32.totalorder %s566, 1
      %s568 = scalar_select %p567, %s566, 1
      %s569 = smul.addr %s568, 16
      %s570 = smul.addr %s569, 4
      %s571 = scalar_lea.vmem %s3, %s570
      %p572 = pneg %p85
      %p573 = pneg %p82
      %s574 = sld [smem:[#allocation3 + %s36]]
      %p575 = scmp.lt.s32.totalorder %s574, 1
      %s576 = scalar_select %p575, %s574, 1
      %s577 = scalar_lea.vmem %s4, %s576
      %p578 = pneg %p113
      %p579 = pneg %p110
      %s580 = sld [smem:[#allocation3 + %s36]]
      %p581 = scmp.lt.s32.totalorder %s580, 1
      %s582 = scalar_select %p581, %s580, 1
      %s583 = smul.addr %s582, 16
      %s584 = smul.addr %s583, 4
      %s585 = scalar_lea.vmem %s5, %s584
      %p586 = pneg %p141
      %p587 = pneg %p138
      %s588 = sld [smem:[#allocation3 + %s36]]
      %p589 = scmp.lt.s32.totalorder %s588, 1
      %s590 = scalar_select %p589, %s588, 1
      %s591 = scalar_lea.vmem %s6, %s590
      %p592 = pneg %p169
      %p593 = pneg %p166
      %s594 = sld [smem:[#allocation3 + %s36]]
      %p595 = scmp.lt.s32.totalorder %s594, 1
      %s596 = scalar_select %p595, %s594, 1
      %s597 = smul.addr %s596, 16
      %s598 = smul.addr %s597, 4
      %s599 = scalar_lea.vmem %s7, %s598
      %p600 = pneg %p197
      %p601 = pneg %p194
      %s602 = sld [smem:[#allocation3 + %s36]]
      %p603 = scmp.lt.s32.totalorder %s602, 1
      %s604 = scalar_select %p603, %s602, 1
      %s605 = scalar_lea.vmem %s8, %s604
      %p606 = pneg %p225
      %p607 = pneg %p222
      %s608 = sld [smem:[#allocation3 + %s36]]
      %p609 = scmp.lt.s32.totalorder %s608, 1
      %s610 = scalar_select %p609, %s608, 1
      %s611 = smul.addr %s610, 16
      %s612 = smul.addr %s611, 4
      %s613 = scalar_lea.vmem %s9, %s612
      %p614 = pneg %p253
      %p615 = pneg %p250
      %s616 = sld [smem:[#allocation3 + %s36]]
      %p617 = scmp.lt.s32.totalorder %s616, 1
      %s618 = scalar_select %p617, %s616, 1
      %s619 = scalar_lea.vmem %s10, %s618
      %p620 = pneg %p281
      %p621 = pneg %p278
      %s622 = sld [smem:[#allocation3 + %s36]]
      %p623 = scmp.lt.s32.totalorder %s622, 1
      %s624 = scalar_select %p623, %s622, 1
      %s625 = smul.addr %s624, 4
      %s626 = scalar_lea.vmem %s11, %s625
      %p627 = pneg %p309
      %p628 = pneg %p306
      %s629 = sld [smem:[#allocation3 + %s36]]
      %p630 = scmp.lt.s32.totalorder %s629, 1
      %s631 = scalar_select %p630, %s629, 1
      %s632 = smul.addr %s631, 4
      %s633 = scalar_lea.vmem %s12, %s632
      %p634 = pneg %p337
      %p635 = pneg %p334
      %s636 = sld [smem:[#allocation3 + %s36]]
      %p637 = scmp.lt.s32.totalorder %s636, 1
      %s638 = scalar_select %p637, %s636, 1
      %s639 = smul.addr %s638, 4
      %s640 = scalar_lea.vmem %s13, %s639
      %p641 = pneg %p365
      %p642 = pneg %p362
      %s643 = sld [smem:[#allocation3 + %s36]]
      %p644 = scmp.lt.s32.totalorder %s643, 1
      %s645 = scalar_select %p644, %s643, 1
      %s646 = smul.addr %s645, 4
      %s647 = scalar_lea.vmem %s14, %s646
      %p648 = pneg %p393
      %p649 = pneg %p390
      %p650 = pneg %p419
      %p651 = pneg %p416
      %p652 = scmp.lt.s32.totalorder %s36, 1
      %s653 = scalar_select %p652, %s36, 1
      %s654 = smul.addr %s653, 8
      %s655 = scalar_lea.vmem %s15, %s654
      %p656 = scmp.lt.s32.totalorder %s36, 1
      %s657 = scalar_select %p656, %s36, 1
      %s658 = smul.addr %s657, 8
      %s659 = scalar_lea.vmem %s2, %s658
      %s660 = sld [smem:[#allocation3 + %s36]]
      %p661 = scmp.lt.s32.totalorder %s660, 1
      %s662 = scalar_select %p661, %s660, 1
      %s663 = smul.addr %s662, 16
      %s664 = smul.addr %s663, 4
      %s665 = scalar_lea.vmem %s3, %s664
      %s666 = sld [smem:[#allocation3 + %s36]]
      %s667 = sld [smem:[#allocation3 + %s36]]
      %p668 = scmp.lt.s32.totalorder %s667, 1
      %s669 = scalar_select %p668, %s667, 1
      %s670 = scalar_lea.vmem %s4, %s669
      %s671 = sld [smem:[#allocation3 + %s36]]
      %s672 = sld [smem:[#allocation3 + %s36]]
      %p673 = scmp.lt.s32.totalorder %s672, 1
      %s674 = scalar_select %p673, %s672, 1
      %s675 = smul.addr %s674, 16
      %s676 = smul.addr %s675, 4
      %s677 = scalar_lea.vmem %s5, %s676
      %s678 = sld [smem:[#allocation3 + %s36]]
      %s679 = sld [smem:[#allocation3 + %s36]]
      %p680 = scmp.lt.s32.totalorder %s679, 1
      %s681 = scalar_select %p680, %s679, 1
      %s682 = scalar_lea.vmem %s6, %s681
      %s683 = sld [smem:[#allocation3 + %s36]]
      %s684 = sld [smem:[#allocation3 + %s36]]
      %p685 = scmp.lt.s32.totalorder %s684, 1
      %s686 = scalar_select %p685, %s684, 1
      %s687 = smul.addr %s686, 16
      %s688 = smul.addr %s687, 4
      %s689 = scalar_lea.vmem %s7, %s688
      %s690 = sld [smem:[#allocation3 + %s36]]
      %s691 = sld [smem:[#allocation3 + %s36]]
      %p692 = scmp.lt.s32.totalorder %s691, 1
      %s693 = scalar_select %p692, %s691, 1
      %s694 = scalar_lea.vmem %s8, %s693
      %s695 = sld [smem:[#allocation3 + %s36]]
      %s696 = sld [smem:[#allocation3 + %s36]]
      %p697 = scmp.lt.s32.totalorder %s696, 1
      %s698 = scalar_select %p697, %s696, 1
      %s699 = smul.addr %s698, 16
      %s700 = smul.addr %s699, 4
      %s701 = scalar_lea.vmem %s9, %s700
      %s702 = sld [smem:[#allocation3 + %s36]]
      %s703 = sld [smem:[#allocation3 + %s36]]
      %p704 = scmp.lt.s32.totalorder %s703, 1
      %s705 = scalar_select %p704, %s703, 1
      %s706 = scalar_lea.vmem %s10, %s705
      %s707 = sld [smem:[#allocation3 + %s36]]
      %s708 = sld [smem:[#allocation3 + %s36]]
      %p709 = scmp.lt.s32.totalorder %s708, 1
      %s710 = scalar_select %p709, %s708, 1
      %s711 = smul.addr %s710, 4
      %s712 = scalar_lea.vmem %s11, %s711
      %s713 = sld [smem:[#allocation3 + %s36]]
      %s714 = sld [smem:[#allocation3 + %s36]]
      %p715 = scmp.lt.s32.totalorder %s714, 1
      %s716 = scalar_select %p715, %s714, 1
      %s717 = smul.addr %s716, 4
      %s718 = scalar_lea.vmem %s12, %s717
      %s719 = sld [smem:[#allocation3 + %s36]]
      %s720 = sld [smem:[#allocation3 + %s36]]
      %p721 = scmp.lt.s32.totalorder %s720, 1
      %s722 = scalar_select %p721, %s720, 1
      %s723 = smul.addr %s722, 4
      %s724 = scalar_lea.vmem %s13, %s723
      %s725 = sld [smem:[#allocation3 + %s36]]
      %s726 = sld [smem:[#allocation3 + %s36]]
      %p727 = scmp.lt.s32.totalorder %s726, 1
      %s728 = scalar_select %p727, %s726, 1
      %s729 = smul.addr %s728, 4
      %s730 = scalar_lea.vmem %s14, %s729
      %s731 = sld [smem:[#allocation3 + %s36]]
      %p732 = scmp.lt.s32.totalorder %s36, 1
      %s733 = scalar_select %p732, %s36, 1
      %s734 = smul.addr %s733, 8
      %s735 = scalar_lea.vmem %s15, %s734
      %v737 = vld [vmem:[%s659] sm:$0xff]
      %v738 = vld [vmem:[%s665] sm:$0xf]
      %v739 = vld [vmem:[%s665 + $0x4] sm:$0xf]
      %v740 = vld [vmem:[%s665 + $0x8] sm:$0xf]
      %v741 = vld [vmem:[%s665 + $0xc] sm:$0xf]
      %v742 = vld [vmem:[%s665 + $0x10] sm:$0xf]
      %v743 = vld [vmem:[%s665 + $0x14] sm:$0xf]
      %v744 = vld [vmem:[%s665 + $0x18] sm:$0xf]
      %v745 = vld [vmem:[%s665 + $0x1c] sm:$0xf]
      %v746 = vld [vmem:[%s665 + $0x20] sm:$0xf]
      %v747 = vld [vmem:[%s665 + $0x24] sm:$0xf]
      %v748 = vld [vmem:[%s665 + $0x28] sm:$0xf]
      %v749 = vld [vmem:[%s665 + $0x2c] sm:$0xf]
      %v750 = vld [vmem:[%s665 + $0x30] sm:$0xf]
      %v751 = vld [vmem:[%s665 + $0x34] sm:$0xf]
      %v752 = vld [vmem:[%s665 + $0x38] sm:$0xf]
      %v753 = vld [vmem:[%s665 + $0x3c] sm:$0xf]
      %v754 = vld [vmem:[%s670] sm:$0x1]
      %v755 = vld [vmem:[%s677] sm:$0xf]
      %v756 = vld [vmem:[%s677 + $0x4] sm:$0xf]
      %v757 = vld [vmem:[%s677 + $0x8] sm:$0xf]
      %v758 = vld [vmem:[%s677 + $0xc] sm:$0xf]
      %v759 = vld [vmem:[%s677 + $0x10] sm:$0xf]
      %v760 = vld [vmem:[%s677 + $0x14] sm:$0xf]
      %v761 = vld [vmem:[%s677 + $0x18] sm:$0xf]
      %v762 = vld [vmem:[%s677 + $0x1c] sm:$0xf]
      %v763 = vld [vmem:[%s677 + $0x20] sm:$0xf]
      %v764 = vld [vmem:[%s677 + $0x24] sm:$0xf]
      %v765 = vld [vmem:[%s677 + $0x28] sm:$0xf]
      %v766 = vld [vmem:[%s677 + $0x2c] sm:$0xf]
      %v767 = vld [vmem:[%s677 + $0x30] sm:$0xf]
      %v768 = vld [vmem:[%s677 + $0x34] sm:$0xf]
      %v769 = vld [vmem:[%s677 + $0x38] sm:$0xf]
      %v770 = vld [vmem:[%s677 + $0x3c] sm:$0xf]
      %v771 = vld [vmem:[%s682] sm:$0x1]
      %v772 = vld [vmem:[%s689] sm:$0xf]
      %v773 = vld [vmem:[%s689 + $0x4] sm:$0xf]
      %v774 = vld [vmem:[%s689 + $0x8] sm:$0xf]
      %v775 = vld [vmem:[%s689 + $0xc] sm:$0xf]
      %v776 = vld [vmem:[%s689 + $0x10] sm:$0xf]
      %v777 = vld [vmem:[%s689 + $0x14] sm:$0xf]
      %v778 = vld [vmem:[%s689 + $0x18] sm:$0xf]
      %v779 = vld [vmem:[%s689 + $0x1c] sm:$0xf]
      %v780 = vld [vmem:[%s689 + $0x20] sm:$0xf]
      %v781 = vld [vmem:[%s689 + $0x24] sm:$0xf]
      %v782 = vld [vmem:[%s689 + $0x28] sm:$0xf]
      %v783 = vld [vmem:[%s689 + $0x2c] sm:$0xf]
      %v784 = vld [vmem:[%s689 + $0x30] sm:$0xf]
      %v785 = vld [vmem:[%s689 + $0x34] sm:$0xf]
      %v786 = vld [vmem:[%s689 + $0x38] sm:$0xf]
      %v787 = vld [vmem:[%s689 + $0x3c] sm:$0xf]
      %v788 = vld [vmem:[%s694] sm:$0x1]
      %v789 = vld [vmem:[%s712] sm:$0x7]
      %v790 = vld [vmem:[%s718] sm:$0x7]
      %v791 = vld [vmem:[%s724] sm:$0x7]
      %v792 = vld [vmem:[%s730] sm:$0x7]
      %v793 = vpack.c.bf16 %v737, %v737
      %v795 = vlaneseq
      %v796 = vshrl.u32 %v795, 7
      %v797 = vsub.s32 0, %v796
      %v798 = vrot.slane %v754, %v797
      %v816 = vunpack.c.l.b16 %v738
      %v817 = vunpack.c.l.b16 %v739
      %v818 = vunpack.c.l.b16 %v740
      %v819 = vunpack.c.l.b16 %v741
      %v820 = vunpack.c.l.b16 %v742
      %v821 = vunpack.c.l.b16 %v743
      %v822 = vunpack.c.l.b16 %v744
      %v823 = vunpack.c.l.b16 %v745
      %v824 = vunpack.c.l.b16 %v746
      %v825 = vunpack.c.l.b16 %v747
      %v826 = vunpack.c.l.b16 %v748
      %v827 = vunpack.c.l.b16 %v749
      %v828 = vunpack.c.l.b16 %v750
      %v829 = vunpack.c.l.b16 %v751
      %v830 = vunpack.c.l.b16 %v752
      %v831 = vunpack.c.l.b16 %v753
      %v832 = vpack.c.b16 %v817, %v816
      %v833 = vpack.c.b16 %v819, %v818
      %v834 = vpack.c.b16 %v821, %v820
      %v835 = vpack.c.b16 %v823, %v822
      %v836 = vpack.c.b16 %v825, %v824
      %v837 = vpack.c.b16 %v827, %v826
      %v838 = vpack.c.b16 %v829, %v828
      %v839 = vpack.c.b16 %v831, %v830
      %848 = vmatprep.subr.bf16.mxu0 0
      %849 = vmatpush1.bf16.msra.mxu0 %v839
      %850 = vmatprep.subr.bf16.mxu0 0
      %851 = vmatpush1.bf16.msra.mxu0 %v838
      %852 = vmatprep.subr.bf16.mxu0 0
      %853 = vmatpush1.bf16.msra.mxu0 %v837
      %854 = vmatprep.subr.bf16.mxu0 0
      %855 = vmatpush1.bf16.msra.mxu0 %v836
      %856 = vmatprep.subr.bf16.mxu0 0
      %857 = vmatpush1.bf16.msra.mxu0 %v835
      %858 = vmatprep.subr.bf16.mxu0 0
      %859 = vmatpush1.bf16.msra.mxu0 %v834
      %860 = vmatprep.subr.bf16.mxu0 0
      %861 = vmatpush1.bf16.msra.mxu0 %v833
      %862 = vmatprep.subr.bf16.mxu0 0
      %863 = vmatpush1.bf16.msra.mxu0 %v832
      %864 = vmatprep.subr.bf16.mxu0 0
      %865 = vmatpush2.bf16.msra.mxu0 0
      %866 = vmatprep.subr.bf16.mxu0 0
      %867 = vmatpush2.bf16.msra.mxu0 0
      %868 = vmatprep.subr.bf16.mxu0 0
      %869 = vmatpush2.bf16.msra.mxu0 0
      %870 = vmatprep.subr.bf16.mxu0 0
      %871 = vmatpush2.bf16.msra.mxu0 0
      %872 = vmatprep.subr.bf16.mxu0 0
      %873 = vmatpush2.bf16.msra.mxu0 0
      %874 = vmatprep.subr.bf16.mxu0 0
      %875 = vmatpush2.bf16.msra.mxu0 0
      %876 = vmatprep.subr.bf16.mxu0 0
      %877 = vmatpush2.bf16.msra.mxu0 0
      %878 = vmatprep.subr.bf16.mxu0 0
      %879 = vmatpush2.bf16.msra.mxu0 0
      %880 = vmatprep.mubr.bf16.mxu0 0
      %881 = vmatmul.mubr.bf16.gmra.mxu0 %v793
      %v882 = vpop.f32.mrf.mxu0
      %v883 = vadd.f32 %v798, %v882
      %v884 = vpop.f32.mrf.mxu0
      %v885 = vpop.f32.mrf.mxu0
      %v886 = vpop.f32.mrf.mxu0
      %887 = vdwg.mxu0
      %888 = vadd.xlane.f32.xlu0 %v883
      %v889 = vpop.xlane.xlu0 %888
      %v890 = vrcp.pop 128.0
      %v891 = vmul.f32 %v889, %v890
      %v892 = vsub.f32 %v883, %v891
      %v893 = vmul.f32 %v892, %v892
      %894 = vadd.xlane.f32.xlu0 %v893
      %v895 = vpop.xlane.xlu0 %894
      %v896 = vmul.f32 %v895, %v890
      %v897 = vadd.f32 %v896, 1e-05
      %v898 = vrsqrt.pop %v897
      %v899 = vmul.f32 %v892, %v898
      %v900 = vlaneseq
      %v901 = vshrl.u32 %v900, 7
      %v902 = vsub.s32 0, %v901
      %v903 = vrot.slane %v789, %v902
      %v904 = vmul.f32 %v899, %v903
      %v905 = vlaneseq
      %v906 = vshrl.u32 %v905, 7
      %v907 = vsub.s32 0, %v906
      %v908 = vrot.slane %v790, %v907
      %v909 = vadd.f32 %v904, %v908
      %v910 = vlaneseq
      %v911 = vshrl.u32 %v910, 7
      %v912 = vsub.s32 0, %v911
      %v913 = vrot.slane %v792, %v912
      %v914 = vmul.f32 %v913, %v909
      %v915 = vlaneseq
      %v916 = vshrl.u32 %v915, 7
      %v917 = vsub.s32 0, %v916
      %v918 = vrot.slane %v791, %v917
      %v919 = vmul.f32 %v918, %v914
      %v920 = vxor.u32 %v914, 2147483648
      %v921 = vmul.f32 %v920, 1.442695
      %v922 = vpow.pop %v921
      %v923 = vadd.f32 %v922, 1.0
      %v924 = vrcp.pop %v923
      %v925 = vmul.f32 1.0, %v924
      %v926 = vmul.f32 %v919, %v925
      %v927 = vpack.c.bf16 %v926, %v926
      %v929 = vlaneseq
      %v930 = vshrl.u32 %v929, 7
      %v931 = vsub.s32 0, %v930
      %v932 = vrot.slane %v771, %v931
      %v950 = vunpack.c.l.b16 %v755
      %v951 = vunpack.c.l.b16 %v756
      %v952 = vunpack.c.l.b16 %v757
      %v953 = vunpack.c.l.b16 %v758
      %v954 = vunpack.c.l.b16 %v759
      %v955 = vunpack.c.l.b16 %v760
      %v956 = vunpack.c.l.b16 %v761
      %v957 = vunpack.c.l.b16 %v762
      %v958 = vunpack.c.l.b16 %v763
      %v959 = vunpack.c.l.b16 %v764
      %v960 = vunpack.c.l.b16 %v765
      %v961 = vunpack.c.l.b16 %v766
      %v962 = vunpack.c.l.b16 %v767
      %v963 = vunpack.c.l.b16 %v768
      %v964 = vunpack.c.l.b16 %v769
      %v965 = vunpack.c.l.b16 %v770
      %v966 = vpack.c.b16 %v951, %v950
      %v967 = vpack.c.b16 %v953, %v952
      %v968 = vpack.c.b16 %v955, %v954
      %v969 = vpack.c.b16 %v957, %v956
      %v970 = vpack.c.b16 %v959, %v958
      %v971 = vpack.c.b16 %v961, %v960
      %v972 = vpack.c.b16 %v963, %v962
      %v973 = vpack.c.b16 %v965, %v964
      %982 = vmatprep.subr.bf16.mxu0 0
      %983 = vmatpush1.bf16.msra.mxu0 %v973
      %984 = vmatprep.subr.bf16.mxu0 0
      %985 = vmatpush1.bf16.msra.mxu0 %v972
      %986 = vmatprep.subr.bf16.mxu0 0
      %987 = vmatpush1.bf16.msra.mxu0 %v971
      %988 = vmatprep.subr.bf16.mxu0 0
      %989 = vmatpush1.bf16.msra.mxu0 %v970
      %990 = vmatprep.subr.bf16.mxu0 0
      %991 = vmatpush1.bf16.msra.mxu0 %v969
      %992 = vmatprep.subr.bf16.mxu0 0
      %993 = vmatpush1.bf16.msra.mxu0 %v968
      %994 = vmatprep.subr.bf16.mxu0 0
      %995 = vmatpush1.bf16.msra.mxu0 %v967
      %996 = vmatprep.subr.bf16.mxu0 0
      %997 = vmatpush1.bf16.msra.mxu0 %v966
      %998 = vmatprep.subr.bf16.mxu0 0
      %999 = vmatpush2.bf16.msra.mxu0 0
      %1000 = vmatprep.subr.bf16.mxu0 0
      %1001 = vmatpush2.bf16.msra.mxu0 0
      %1002 = vmatprep.subr.bf16.mxu0 0
      %1003 = vmatpush2.bf16.msra.mxu0 0
      %1004 = vmatprep.subr.bf16.mxu0 0
      %1005 = vmatpush2.bf16.msra.mxu0 0
      %1006 = vmatprep.subr.bf16.mxu0 0
      %1007 = vmatpush2.bf16.msra.mxu0 0
      %1008 = vmatprep.subr.bf16.mxu0 0
      %1009 = vmatpush2.bf16.msra.mxu0 0
      %1010 = vmatprep.subr.bf16.mxu0 0
      %1011 = vmatpush2.bf16.msra.mxu0 0
      %1012 = vmatprep.subr.bf16.mxu0 0
      %1013 = vmatpush2.bf16.msra.mxu0 0
      %1014 = vmatprep.mubr.bf16.mxu0 0
      %1015 = vmatmul.mubr.bf16.gmra.mxu0 %v927
      %v1016 = vpop.f32.mrf.mxu0
      %v1017 = vadd.f32 %v932, %v1016
      %v1018 = vpop.f32.mrf.mxu0
      %v1019 = vpop.f32.mrf.mxu0
      %v1020 = vpop.f32.mrf.mxu0
      %1021 = vdwg.mxu0
      %1022 = vadd.xlane.f32.xlu0 %v1017
      %v1023 = vpop.xlane.xlu0 %1022
      %v1024 = vmul.f32 %v1023, %v890
      %v1025 = vsub.f32 %v1017, %v1024
      %v1026 = vmul.f32 %v1025, %v1025
      %1027 = vadd.xlane.f32.xlu0 %v1026
      %v1028 = vpop.xlane.xlu0 %1027
      %v1029 = vmul.f32 %v1028, %v890
      %v1030 = vadd.f32 %v1029, 1e-05
      %v1031 = vrsqrt.pop %v1030
      %v1032 = vmul.f32 %v1025, %v1031
      %v1033 = vlaneseq
      %v1034 = vshrl.u32 %v1033, 7
      %v1035 = vsub.s32 1, %v1034
      %v1036 = vrot.slane %v789, %v1035
      %v1037 = vmul.f32 %v1032, %v1036
      %v1038 = vlaneseq
      %v1039 = vshrl.u32 %v1038, 7
      %v1040 = vsub.s32 1, %v1039
      %v1041 = vrot.slane %v790, %v1040
      %v1042 = vadd.f32 %v1037, %v1041
      %v1043 = vlaneseq
      %v1044 = vshrl.u32 %v1043, 7
      %v1045 = vsub.s32 1, %v1044
      %v1046 = vrot.slane %v792, %v1045
      %v1047 = vmul.f32 %v1046, %v1042
      %v1048 = vlaneseq
      %v1049 = vshrl.u32 %v1048, 7
      %v1050 = vsub.s32 1, %v1049
      %v1051 = vrot.slane %v791, %v1050
      %v1052 = vmul.f32 %v1051, %v1047
      %v1053 = vxor.u32 %v1047, 2147483648
      %v1054 = vmul.f32 %v1053, 1.442695
      %v1055 = vpow.pop %v1054
      %v1056 = vadd.f32 %v1055, 1.0
      %v1057 = vrcp.pop %v1056
      %v1058 = vmul.f32 1.0, %v1057
      %v1059 = vmul.f32 %v1052, %v1058
      %v1060 = vpack.c.bf16 %v1059, %v1059
      %v1062 = vlaneseq
      %v1063 = vshrl.u32 %v1062, 7
      %v1064 = vsub.s32 0, %v1063
      %v1065 = vrot.slane %v788, %v1064
      %v1083 = vunpack.c.l.b16 %v772
      %v1084 = vunpack.c.l.b16 %v773
      %v1085 = vunpack.c.l.b16 %v774
      %v1086 = vunpack.c.l.b16 %v775
      %v1087 = vunpack.c.l.b16 %v776
      %v1088 = vunpack.c.l.b16 %v777
      %v1089 = vunpack.c.l.b16 %v778
      %v1090 = vunpack.c.l.b16 %v779
      %v1091 = vunpack.c.l.b16 %v780
      %v1092 = vunpack.c.l.b16 %v781
      %v1093 = vunpack.c.l.b16 %v782
      %v1094 = vunpack.c.l.b16 %v783
      %v1095 = vunpack.c.l.b16 %v784
      %v1096 = vunpack.c.l.b16 %v785
      %v1097 = vunpack.c.l.b16 %v786
      %v1098 = vunpack.c.l.b16 %v787
      %v1099 = vpack.c.b16 %v1084, %v1083
      %v1100 = vpack.c.b16 %v1086, %v1085
      %v1101 = vpack.c.b16 %v1088, %v1087
      %v1102 = vpack.c.b16 %v1090, %v1089
      %v1103 = vpack.c.b16 %v1092, %v1091
      %v1104 = vpack.c.b16 %v1094, %v1093
      %v1105 = vpack.c.b16 %v1096, %v1095
      %v1106 = vpack.c.b16 %v1098, %v1097
      %1115 = vmatprep.subr.bf16.mxu0 0
      %1116 = vmatpush1.bf16.msra.mxu0 %v1106
      %1117 = vmatprep.subr.bf16.mxu0 0
      %1118 = vmatpush1.bf16.msra.mxu0 %v1105
      %1119 = vmatprep.subr.bf16.mxu0 0
      %1120 = vmatpush1.bf16.msra.mxu0 %v1104
      %1121 = vmatprep.subr.bf16.mxu0 0
      %1122 = vmatpush1.bf16.msra.mxu0 %v1103
      %1123 = vmatprep.subr.bf16.mxu0 0
      %1124 = vmatpush1.bf16.msra.mxu0 %v1102
      %1125 = vmatprep.subr.bf16.mxu0 0
      %1126 = vmatpush1.bf16.msra.mxu0 %v1101
      %1127 = vmatprep.subr.bf16.mxu0 0
      %1128 = vmatpush1.bf16.msra.mxu0 %v1100
      %1129 = vmatprep.subr.bf16.mxu0 0
      %1130 = vmatpush1.bf16.msra.mxu0 %v1099
      %1131 = vmatprep.subr.bf16.mxu0 0
      %1132 = vmatpush2.bf16.msra.mxu0 0
      %1133 = vmatprep.subr.bf16.mxu0 0
      %1134 = vmatpush2.bf16.msra.mxu0 0
      %1135 = vmatprep.subr.bf16.mxu0 0
      %1136 = vmatpush2.bf16.msra.mxu0 0
      %1137 = vmatprep.subr.bf16.mxu0 0
      %1138 = vmatpush2.bf16.msra.mxu0 0
      %1139 = vmatprep.subr.bf16.mxu0 0
      %1140 = vmatpush2.bf16.msra.mxu0 0
      %1141 = vmatprep.subr.bf16.mxu0 0
      %1142 = vmatpush2.bf16.msra.mxu0 0
      %1143 = vmatprep.subr.bf16.mxu0 0
      %1144 = vmatpush2.bf16.msra.mxu0 0
      %1145 = vmatprep.subr.bf16.mxu0 0
      %1146 = vmatpush2.bf16.msra.mxu0 0
      %1147 = vmatprep.mubr.bf16.mxu0 0
      %1148 = vmatmul.mubr.bf16.gmra.mxu0 %v1060
      %v1149 = vpop.f32.mrf.mxu0
      %v1150 = vadd.f32 %v1065, %v1149
      %v1151 = vpop.f32.mrf.mxu0
      %v1152 = vpop.f32.mrf.mxu0
      %v1153 = vpop.f32.mrf.mxu0
      %1154 = vdwg.mxu0
      %1155 = vadd.xlane.f32.xlu0 %v1150
      %v1156 = vpop.xlane.xlu0 %1155
      %v1157 = vmul.f32 %v1156, %v890
      %v1158 = vsub.f32 %v1150, %v1157
      %v1159 = vmul.f32 %v1158, %v1158
      %1160 = vadd.xlane.f32.xlu0 %v1159
      %v1161 = vpop.xlane.xlu0 %1160
      %v1162 = vmul.f32 %v1161, %v890
      %v1163 = vadd.f32 %v1162, 1e-05
      %v1164 = vrsqrt.pop %v1163
      %v1165 = vmul.f32 %v1158, %v1164
      %v1166 = vlaneseq
      %v1167 = vshrl.u32 %v1166, 7
      %v1168 = vsub.s32 2, %v1167
      %v1169 = vrot.slane %v789, %v1168
      %v1170 = vmul.f32 %v1165, %v1169
      %v1171 = vlaneseq
      %v1172 = vshrl.u32 %v1171, 7
      %v1173 = vsub.s32 2, %v1172
      %v1174 = vrot.slane %v790, %v1173
      %v1175 = vadd.f32 %v1170, %v1174
      %v1176 = vlaneseq
      %v1177 = vshrl.u32 %v1176, 7
      %v1178 = vsub.s32 2, %v1177
      %v1179 = vrot.slane %v792, %v1178
      %v1180 = vmul.f32 %v1179, %v1175
      %v1181 = vlaneseq
      %v1182 = vshrl.u32 %v1181, 7
      %v1183 = vsub.s32 2, %v1182
      %v1184 = vrot.slane %v791, %v1183
      %v1185 = vmul.f32 %v1184, %v1180
      %v1186 = vxor.u32 %v1180, 2147483648
      %v1187 = vmul.f32 %v1186, 1.442695
      %v1188 = vpow.pop %v1187
      %v1189 = vadd.f32 %v1188, 1.0
      %v1190 = vrcp.pop %v1189
      %v1191 = vmul.f32 1.0, %v1190
      %v1192 = vmul.f32 %v1185, %v1191
      %v1193 = vadd.f32 %v926, %v1192
      %v1194 = vpack.c.bf16 %v1193, %v1193
      %v1195 = vld [vmem:[%s701] sm:$0xf]
      %v1196 = vld [vmem:[%s701 + $0x4] sm:$0xf]
      %v1197 = vld [vmem:[%s701 + $0x8] sm:$0xf]
      %v1198 = vld [vmem:[%s701 + $0xc] sm:$0xf]
      %v1199 = vld [vmem:[%s701 + $0x10] sm:$0xf]
      %v1200 = vld [vmem:[%s701 + $0x14] sm:$0xf]
      %v1201 = vld [vmem:[%s701 + $0x18] sm:$0xf]
      %v1202 = vld [vmem:[%s701 + $0x1c] sm:$0xf]
      %v1203 = vld [vmem:[%s701 + $0x20] sm:$0xf]
      %v1204 = vld [vmem:[%s701 + $0x24] sm:$0xf]
      %v1205 = vld [vmem:[%s701 + $0x28] sm:$0xf]
      %v1206 = vld [vmem:[%s701 + $0x2c] sm:$0xf]
      %v1207 = vld [vmem:[%s701 + $0x30] sm:$0xf]
      %v1208 = vld [vmem:[%s701 + $0x34] sm:$0xf]
      %v1209 = vld [vmem:[%s701 + $0x38] sm:$0xf]
      %v1210 = vld [vmem:[%s701 + $0x3c] sm:$0xf]
      %v1211 = vld [vmem:[%s706] sm:$0x1]
      %v1213 = vlaneseq
      %v1214 = vshrl.u32 %v1213, 7
      %v1215 = vsub.s32 0, %v1214
      %v1216 = vrot.slane %v1211, %v1215
      %v1234 = vunpack.c.l.b16 %v1195
      %v1235 = vunpack.c.l.b16 %v1196
      %v1236 = vunpack.c.l.b16 %v1197
      %v1237 = vunpack.c.l.b16 %v1198
      %v1238 = vunpack.c.l.b16 %v1199
      %v1239 = vunpack.c.l.b16 %v1200
      %v1240 = vunpack.c.l.b16 %v1201
      %v1241 = vunpack.c.l.b16 %v1202
      %v1242 = vunpack.c.l.b16 %v1203
      %v1243 = vunpack.c.l.b16 %v1204
      %v1244 = vunpack.c.l.b16 %v1205
      %v1245 = vunpack.c.l.b16 %v1206
      %v1246 = vunpack.c.l.b16 %v1207
      %v1247 = vunpack.c.l.b16 %v1208
      %v1248 = vunpack.c.l.b16 %v1209
      %v1249 = vunpack.c.l.b16 %v1210
      %v1250 = vpack.c.b16 %v1235, %v1234
      %v1251 = vpack.c.b16 %v1237, %v1236
      %v1252 = vpack.c.b16 %v1239, %v1238
      %v1253 = vpack.c.b16 %v1241, %v1240
      %v1254 = vpack.c.b16 %v1243, %v1242
      %v1255 = vpack.c.b16 %v1245, %v1244
      %v1256 = vpack.c.b16 %v1247, %v1246
      %v1257 = vpack.c.b16 %v1249, %v1248
      %1266 = vmatprep.subr.bf16.mxu0 0
      %1267 = vmatpush1.bf16.msra.mxu0 %v1257
      %1268 = vmatprep.subr.bf16.mxu0 0
      %1269 = vmatpush1.bf16.msra.mxu0 %v1256
      %1270 = vmatprep.subr.bf16.mxu0 0
      %1271 = vmatpush1.bf16.msra.mxu0 %v1255
      %1272 = vmatprep.subr.bf16.mxu0 0
      %1273 = vmatpush1.bf16.msra.mxu0 %v1254
      %1274 = vmatprep.subr.bf16.mxu0 0
      %1275 = vmatpush1.bf16.msra.mxu0 %v1253
      %1276 = vmatprep.subr.bf16.mxu0 0
      %1277 = vmatpush1.bf16.msra.mxu0 %v1252
      %1278 = vmatprep.subr.bf16.mxu0 0
      %1279 = vmatpush1.bf16.msra.mxu0 %v1251
      %1280 = vmatprep.subr.bf16.mxu0 0
      %1281 = vmatpush1.bf16.msra.mxu0 %v1250
      %1282 = vmatprep.subr.bf16.mxu0 0
      %1283 = vmatpush2.bf16.msra.mxu0 0
      %1284 = vmatprep.subr.bf16.mxu0 0
      %1285 = vmatpush2.bf16.msra.mxu0 0
      %1286 = vmatprep.subr.bf16.mxu0 0
      %1287 = vmatpush2.bf16.msra.mxu0 0
      %1288 = vmatprep.subr.bf16.mxu0 0
      %1289 = vmatpush2.bf16.msra.mxu0 0
      %1290 = vmatprep.subr.bf16.mxu0 0
      %1291 = vmatpush2.bf16.msra.mxu0 0
      %1292 = vmatprep.subr.bf16.mxu0 0
      %1293 = vmatpush2.bf16.msra.mxu0 0
      %1294 = vmatprep.subr.bf16.mxu0 0
      %1295 = vmatpush2.bf16.msra.mxu0 0
      %1296 = vmatprep.subr.bf16.mxu0 0
      %1297 = vmatpush2.bf16.msra.mxu0 0
      %1298 = vmatprep.mubr.bf16.mxu0 0
      %1299 = vmatmul.mubr.bf16.gmra.mxu0 %v1194
      %v1300 = vpop.f32.mrf.mxu0
      %v1301 = vadd.f32 %v1216, %v1300
      %v1302 = vpop.f32.mrf.mxu0
      %v1303 = vpop.f32.mrf.mxu0
      %v1304 = vpop.f32.mrf.mxu0
      %1305 = vdwg.mxu0
      %s1306 = sld [smem:[#allocation4 + %s36]]
      %v1307 = vlaneseq
      %v1308 = vshrl.u32 %v1307, 7
      %v1309 = vlaneseq
      %v1310 = vand.u32 %v1309, 127
      %v1311 = vstv %s1306
      %vm1312 = vcmp.lt.s32.totalorder %v1308, %v1311
      %vm1313 = vcmp.lt.s32.totalorder %v1310, 1
      %vm1314 = vmand %vm1312, %vm1313
      %v1315 = vsel %vm1314, %v1301, 0.0
      %vm1316 = vcmask 64512
      %v1317 = vsel %vm1316, %v1315, 0.0
      %1318 = vadd.xlane.f32.xlu0 %v1317
      %v1319 = vpop.xlane.xlu0 %1318
      %v1320 = vrot.slane %v1319, 4
      %v1321 = vadd.f32 %v1319, %v1320
      %v1322 = vrot.slane %v1321, 2
      %v1323 = vadd.f32 %v1321, %v1322
      %v1324 = vrot.slane %v1323, 1
      %v1325 = vadd.f32 %v1323, %v1324
      %s1326 = vtos %v1325
      %v1327 = vstv %s1326
      %v1328 = vadd.f32 %v1327, 0.0
      %1329 = vst [vmem:[%s735] sm:$0xff] %v1328
      %p1330 = scmp.lt.s32.totalorder %s36, 1
      %s1331 = scalar_select %p1330, %s36, 1
      %s1332 = smul.addr %s1331, 8
      %s1333 = scalar_lea.vmem %s15, %s1332
      // Predicated region
      $region73: #{pes_forward.5} parent=71 // pred_check
        %p1334 = pneg %p416
      $region74: #{pes_forward.5} parent=71 // pred_check_branch
        %1336 = sbr.rel (%p1334) target = $region76
      $region75: #{pes_forward.5} parent=71 // pred_region
        _
      $region76: #{pes_forward.5} parent=71 // pred_fallthru
        _
    $region72: #{pes_forward.5} parent=5 // pred_fallthru
      _
    %p1337 = scmp.le.s32.totalorder 2, %s31
    // Predicated region
    $region77: #{pes_forward.5} parent=5 // pred_check
      %p1338 = pneg %p1337
    $region78: #{pes_forward.5} parent=5 // pred_check_branch
      %1340 = sbr.rel (%p1338) target = $region80
    $region79: #{pes_forward.5} parent=5 // pred_region
      %s1341 = ssub.s32 %s31, 2
      // Predicated region
      $region81: #{pes_forward.5} parent=79 // pred_check
        %p1342 = pneg %p422
      $region82: #{pes_forward.5} parent=79 // pred_check_branch
        %1344 = sbr.rel (%p1342) target = $region84
      $region83: #{pes_forward.5} parent=79 // pred_region
        %p1345 = scmp.lt.s32.totalorder %s37, 1
        %s1346 = scalar_select %p1345, %s37, 1
        %s1347 = smul.addr %s1346, 8
        %s1348 = scalar_lea.vmem %s15, %s1347
      $region84: #{pes_forward.5} parent=79 // pred_fallthru
        _
    $region80: #{pes_forward.5} parent=5 // pred_fallthru
      _
  $region6: #{pes_forward.5} parent=0 // loop_footer
    %s35 = sadd.s32 1, %s31
  $region7: #{pes_forward.5} parent=0 // loop_footer_branch
    %30 = sbr.rel target = $region3
  $region8: #{pes_forward.5} parent=0 // loop_exit
    _

</llo_original>
